<compile_context>
chip_gen: v7x
topology: tpu7x:2x2x1
jax: 0.10.0
libtpu: 0.0.40
codegen_flags: <defaults>
</compile_context>

<pallas_src>
import functools

import jax
import jax.numpy as jnp
from jax.experimental import pallas as pl
from jax.experimental.pallas import tpu as pltpu


# -------------------------- small in-kernel helpers --------------------------

def _mm(a, b):
    return jnp.dot(a, b, preferred_element_type=jnp.float32)


def _softplus(x):
    # numerically stable softplus, matches torch.nn.Softplus (beta=1)
    return jnp.maximum(x, 0.0) + jnp.log(1.0 + jnp.exp(-jnp.abs(x)))


def _sigmoid(x):
    # divide goes to the (otherwise idle) EUP slot
    return pl.reciprocal(1.0 + jnp.exp(-x), approx=True)


def _views_per_grid_step(n_views):
    """How many views to process per grid step.

    v5e / v6e have a single TensorCore: collapse all views into one grid step
    (removes per-step pipeline overhead, lets the views' independent chains
    interleave).  v4 / v5p / v7x have 2 TensorCores per chip: keep one view per
    grid step so the "parallel" view axis maps one view to each core.
    """
    try:
        kind = jax.devices()[0].device_kind.lower()
    except Exception:
        kind = ""
    if "lite" in kind or "v5e" in kind or "v6e" in kind:
        return n_views
    if any(m in kind for m in ("v4", "v5p", "v7")):
        return 1
    return n_views  # unknown / older single-core chips: collapse (always correct)


# ------------------------------ fused kernel ------------------------------
# One grid step == V views.  Everything stays resident in VMEM/vregs.

def fused_views_kernel(x_ref, wfold_ref, bfold_ref, whh_ref,
                       wt_ref, bt_ref, wmusig_ref, bmusig_ref, zinit_ref,
                       wgp1_ref, bgp1_ref, wgp2_ref, bgp2_ref, sw_ref, sb_ref,
                       we1_ref, be1_ref, we2_ref, be2_ref, eps_ref,
                       o_ref,
                       comb_scr,
                       *, T, B, V, H, dz, Ht, dv_max, slab_w):
    TB = T * B

    x = x_ref[...]                                   # (TB, total_sz)
    whh = whh_ref[...]                               # (2H, 2H) block-diag
    wt = wt_ref[...]
    bt = bt_ref[...]
    wmusig = wmusig_ref[...]                         # (H, 2dz)
    bmusig = bmusig_ref[...]
    zinit_b = jnp.broadcast_to(zinit_ref[...], (B, dz))

    # ---- per view: folded input projection + merged bi-RNN + Gaussian combine ----
    for vi in range(V):
        # stage 1: (filters1|filters2) ∘ (W_ih_fwd|W_ih_bwd) pre-composed -> 1 matmul
        xi = _mm(x, wfold_ref[vi]) + bfold_ref[vi]                      # (TB, 2H)

        # recurrence inputs precomputed off the serial chain:
        #   row block t = [xi_fwd at time t | xi_bwd at time T-1-t]
        xt = [jnp.concatenate([xi[t * B:(t + 1) * B, :H],
                               xi[(T - 1 - t) * B:(T - t) * B, H:]], axis=-1)
              for t in range(T)]                                        # each (B, 2H)

        # stage 2: fwd+bwd recurrence merged via block-diag W_hh (T pushes, not 2T)
        hs = []
        h = jnp.zeros((B, 2 * H), jnp.float32)
        for t in range(T):
            h = jnp.tanh(xt[t] + _mm(h, whh))
            hs.append(h)
        # h_fwd[t] = hs[t][:, :H] ; h_bwd[t] = hs[T-1-t][:, H:]
        hsum = [hs[t][:, :H] + hs[T - 1 - t][:, H:] for t in range(T)]  # (B, H)

        # stage 3: sequential Gaussian combine (mu|sigma folded; vreg-resident,
        # one packed (B, 4*dz) store per step into a single merged scratch)
        eps_v = eps_ref[vi]                                             # (TB, dz)
        c0 = vi * 4 * dz
        z_prev = jnp.zeros((B, dz), jnp.float32)
        dmm_prev = zinit_b
        for t in range(T):
            tmp = jnp.tanh(_mm(z_prev, wt) + bt)
            h_t = (tmp + hsum[t]) * (1.0 / 3.0)
            ms = _mm(h_t, wmusig) + bmusig                              # (B, 2dz)
            mu = ms[:, :dz]
            std = _softplus(ms[:, dz:])
            z = mu + std * eps_v[t * B:(t + 1) * B, :]
            comb_scr[t * B:(t + 1) * B, c0:c0 + 4 * dz] = jnp.concatenate(
                [z, mu, std, dmm_prev], axis=-1)
            dmm_prev = z
            z_prev = z

    comb = comb_scr[...]                              # (TB, V*4*dz), one reload

    wgp1 = wgp1_ref[...]
    bgp1 = bgp1_ref[...]
    wgp2 = wgp2_ref[...]
    bgp2 = bgp2_ref[...]
    sw = sw_ref[...]
    sb = sb_ref[...]

    pad = slab_w - (5 * dz + 2 * dv_max)
    zeros_pad = jnp.zeros((TB, pad), jnp.float32)

    # ---- per view: DMM gated-transition prior + emissions + packed store ----
    for vi in range(V):
        c0 = vi * 4 * dz
        zf = comb[:, c0:c0 + dz]                     # z_post rows
        muf = comb[:, c0 + dz:c0 + 2 * dz]
        stdf = comb[:, c0 + 2 * dz:c0 + 3 * dz]
        zpf = comb[:, c0 + 3 * dz:c0 + 4 * dz]       # DMM z_prev rows

        # stage 4: DMM (gate | proposed-mean | linear-mean folded into one matmul)
        gpm = _mm(zpf, wgp1) + bgp1                  # (TB, 2Ht + dz)
        lin_mean = gpm[:, 2 * Ht:]
        gp1 = jnp.maximum(gpm[:, :2 * Ht], 0.0)
        gp2 = _mm(gp1, wgp2) + bgp2                  # (TB, 2dz)
        g = _sigmoid(gp2[:, :dz])
        hprop = gp2[:, dz:]
        mu_prior = (1.0 - g) * lin_mean + g * hprop
        std_prior = _softplus(_mm(jnp.maximum(hprop, 0.0), sw) + sb)

        # stage 5: emission MLPs (mu | sigma folded block-diagonally)
        e1 = jnp.maximum(_mm(zf, we1_ref[vi]) + be1_ref[vi], 0.0)       # (TB, 2He)
        e2 = _mm(e1, we2_ref[vi]) + be2_ref[vi]                         # (TB, 2*dv_max)
        mu_x = e2[:, :dv_max]
        std_x = _softplus(e2[:, dv_max:])

        # stage 6: lane-dense packed output (single full-width store per view)
        o_ref[vi] = jnp.concatenate(
            [zf, muf, stdf, mu_prior, std_prior, mu_x, std_x, zeros_pad], axis=-1)


# ------------------------------ pallas_call wrapper ------------------------------

def fused_forward_call(x_flat, fp, eps, *, T, B, n_views, V, H, dz, Ht,
                       dv_max, slab_w):
    TB = T * B
    n_steps = n_views // V

    def shared_spec(a):
        zeros = (0,) * a.ndim
        return pl.BlockSpec(a.shape, lambda s, _z=zeros: _z)

    def per_view_spec(a):
        tail = (0,) * (a.ndim - 1)
        return pl.BlockSpec((V,) + a.shape[1:], lambda s, _t=tail: (s,) + _t)

    arrays = [
        (x_flat, False),
        (fp["wfold"], True), (fp["bfold"], True),
        (fp["whh_blk"], False),
        (fp["wt"], False), (fp["bt"], False),
        (fp["wmusig"], False), (fp["bmusig"], False),
        (fp["z_init"], False),
        (fp["wgp1"], False), (fp["bgp1"], False),
        (fp["wgp2"], False), (fp["bgp2"], False),
        (fp["sw"], False), (fp["sb"], False),
        (fp["we1"], True), (fp["be1"], True), (fp["we2"], True), (fp["be2"], True),
        (eps, True),
    ]
    args = [a for a, _ in arrays]
    in_specs = [per_view_spec(a) if pv else shared_spec(a) for a, pv in arrays]

    kernel = functools.partial(fused_views_kernel, T=T, B=B, V=V, H=H, dz=dz,
                               Ht=Ht, dv_max=dv_max, slab_w=slab_w)
    return pl.pallas_call(
        kernel,
        out_shape=jax.ShapeDtypeStruct((n_views, TB, slab_w), jnp.float32),
        grid_spec=pltpu.PrefetchScalarGridSpec(
            num_scalar_prefetch=0,
            grid=(n_steps,),
            in_specs=in_specs,
            out_specs=pl.BlockSpec((V, TB, slab_w), lambda s: (s, 0, 0)),
            scratch_shapes=[pltpu.VMEM((TB, V * 4 * dz), jnp.float32)]),
        compiler_params=pltpu.CompilerParams(dimension_semantics=("parallel",)),
    )(*args)


# ------------------------------ parameter setup -------------------------------

def init_params(key, view_szes, latent_sz, rnn_hidden_sz, emission_hidden_sz,
                transition_hidden_sz):
    in_sz = max(view_szes)
    total_sz = sum(view_szes)
    keys = iter(jax.random.split(key, 128))

    def lin(i, o):
        k1, k2 = jax.random.split(next(keys))
        s = 1.0 / (i ** 0.5)
        w = jax.random.uniform(k1, (i, o), jnp.float32, -s, s)   # stored as (in, out)
        b = jax.random.uniform(k2, (1, o), jnp.float32, -s, s)
        return w, b

    p = {}
    p["filters1"] = [lin(dv, in_sz) for dv in view_szes]
    p["filters2"] = [lin(total_sz - dv, in_sz) for dv in view_szes]

    din = 2 * in_sz
    H = rnn_hidden_sz
    enc = {}
    enc["wih_f"], enc["bih_f"] = lin(din, H)
    enc["whh_f"], enc["bhh_f"] = lin(H, H)
    enc["wih_b"], enc["bih_b"] = lin(din, H)
    enc["whh_b"], enc["bhh_b"] = lin(H, H)
    enc["wt"], enc["bt"] = lin(latent_sz, H)        # transition_net (tanh in kernel)
    enc["wmu"], enc["bmu"] = lin(H, latent_sz)      # GaussianNN mu
    enc["wsig"], enc["bsig"] = lin(H, latent_sz)    # GaussianNN sigma (softplus in kernel)
    p["encoder"] = enc

    dec = {}
    dec["gw1"], dec["gb1"] = lin(latent_sz, transition_hidden_sz)
    dec["gw2"], dec["gb2"] = lin(transition_hidden_sz, latent_sz)
    dec["pw1"], dec["pb1"] = lin(latent_sz, transition_hidden_sz)
    dec["pw2"], dec["pb2"] = lin(transition_hidden_sz, latent_sz)
    dec["mw"], dec["mb"] = lin(latent_sz, latent_sz)
    dec["sw"], dec["sb"] = lin(latent_sz, latent_sz)
    dec["z_init"] = jnp.zeros((1, latent_sz), jnp.float32)   # nn.Parameter(zeros)
    p["decoder"] = dec

    p["mu_emissions"] = [(lin(latent_sz, emission_hidden_sz), lin(emission_hidden_sz, dv))
                         for dv in view_szes]
    p["sigma_emissions"] = [(lin(latent_sz, emission_hidden_sz), lin(emission_hidden_sz, dv))
                            for dv in view_szes]
    return p


def build_fused_params(p, view_szes):
    """Fold filters/RNN-input/emission/DMM weights into the fused layout (exact algebra,
    host-side folds at Precision.HIGHEST)."""
    hp = jax.lax.Precision.HIGHEST
    in_sz = p["filters1"][0][0].shape[1]
    total = sum(view_szes)
    offs = [0]
    for d in view_szes:
        offs.append(offs[-1] + d)

    enc = p["encoder"]
    H = enc["whh_f"].shape[0]
    wih_cat = jnp.concatenate([enc["wih_f"], enc["wih_b"]], axis=1)      # (2*in_sz, 2H)
    bi_cat = jnp.concatenate([enc["bih_f"] + enc["bhh_f"],
                              enc["bih_b"] + enc["bhh_b"]], axis=1)      # (1, 2H)

    # filters1|filters2 zero-embedded into (total_sz, 2*in_sz), then pre-composed
    # with the RNN input projections: x @ wfold == [X_v@W1+b? | X_rest@W2] @ [Wih_f|Wih_b]
    wfold_l, bfold_l = [], []
    for v, dv in enumerate(view_szes):
        w1, b1 = p["filters1"][v]
        w2, b2 = p["filters2"][v]
        w1_full = jnp.zeros((total, in_sz), jnp.float32).at[offs[v]:offs[v] + dv].set(w1)
        w2_full = jnp.zeros((total, in_sz), jnp.float32)
        r = 0
        for i, di in enumerate(view_szes):
            if i == v:
                continue
            w2_full = w2_full.at[offs[i]:offs[i] + di].set(w2[r:r + di])
            r += di
        win_v = jnp.concatenate([w1_full, w2_full], axis=1)              # (total, 2*in_sz)
        bin_v = jnp.concatenate([b1, b2], axis=1)                        # (1, 2*in_sz)
        wfold_l.append(jnp.dot(win_v, wih_cat, precision=hp))            # (total, 2H)
        bfold_l.append(jnp.dot(bin_v, wih_cat, precision=hp) + bi_cat)   # (1, 2H)
    fp = {"wfold": jnp.stack(wfold_l), "bfold": jnp.stack(bfold_l)}

    zH = jnp.zeros((H, H), jnp.float32)
    fp["whh_blk"] = jnp.concatenate(                                     # (2H, 2H) block-diag
        [jnp.concatenate([enc["whh_f"], zH], axis=1),
         jnp.concatenate([zH, enc["whh_b"]], axis=1)], axis=0)

    fp["wt"], fp["bt"] = enc["wt"], enc["bt"]
    fp["wmusig"] = jnp.concatenate([enc["wmu"], enc["wsig"]], axis=1)    # (H, 2dz)
    fp["bmusig"] = jnp.concatenate([enc["bmu"], enc["bsig"]], axis=1)

    dec = p["decoder"]
    dz = dec["gw1"].shape[0]
    Ht = dec["gw1"].shape[1]
    zb = jnp.zeros((Ht, dz), jnp.float32)
    # gate | proposed-mean | linear-mean folded into one matmul on z_prev
    fp["wgp1"] = jnp.concatenate([dec["gw1"], dec["pw1"], dec["mw"]], axis=1)   # (dz, 2Ht+dz)
    fp["bgp1"] = jnp.concatenate([dec["gb1"], dec["pb1"], dec["mb"]], axis=1)
    fp["wgp2"] = jnp.concatenate(                                         # block-diag (2Ht, 2dz)
        [jnp.concatenate([dec["gw2"], zb], axis=1),
         jnp.concatenate([zb, dec["pw2"]], axis=1)], axis=0)
    fp["bgp2"] = jnp.concatenate([dec["gb2"], dec["pb2"]], axis=1)
    fp["sw"], fp["sb"] = dec["sw"], dec["sb"]
    fp["z_init"] = dec["z_init"]

    dv_max = max(view_szes)
    He = p["mu_emissions"][0][0][0].shape[1]
    zhe = jnp.zeros((He, dv_max), jnp.float32)
    we1_l, be1_l, we2_l, be2_l = [], [], [], []
    for v, dv in enumerate(view_szes):
        (mw1, mb1), (mw2, mb2) = p["mu_emissions"][v]
        (sw1, sb1), (sw2, sb2) = p["sigma_emissions"][v]
        mw2p = zhe.at[:, :dv].set(mw2)
        sw2p = zhe.at[:, :dv].set(sw2)
        mb2p = jnp.zeros((1, dv_max), jnp.float32).at[:, :dv].set(mb2)
        sb2p = jnp.zeros((1, dv_max), jnp.float32).at[:, :dv].set(sb2)
        we1_l.append(jnp.concatenate([mw1, sw1], axis=1))                # (dz, 2He)
        be1_l.append(jnp.concatenate([mb1, sb1], axis=1))
        we2_l.append(jnp.concatenate(                                    # block-diag (2He, 2dv_max)
            [jnp.concatenate([mw2p, zhe], axis=1),
             jnp.concatenate([zhe, sw2p], axis=1)], axis=0))
        be2_l.append(jnp.concatenate([mb2p, sb2p], axis=1))
    fp["we1"] = jnp.stack(we1_l)
    fp["be1"] = jnp.stack(be1_l)
    fp["we2"] = jnp.stack(we2_l)
    fp["be2"] = jnp.stack(be2_l)
    return fp


# --------------------------------- forward ------------------------------------

def stlr_one_vae_forward(X, params, eps_key, latent_sz):
    n_views = len(X)
    view_szes = [int(Xv.shape[-1]) for Xv in X]
    Xt = [jnp.transpose(Xv, (1, 0, 2)) for Xv in X]       # (T, B, dv)
    T, B = Xt[0].shape[0], Xt[0].shape[1]
    TB = T * B
    total = sum(view_szes)
    dv_max = max(view_szes)
    dz = latent_sz
    H = params["encoder"]["whh_f"].shape[0]
    Ht = params["decoder"]["gw1"].shape[1]
    slab_w = ((5 * dz + 2 * dv_max + 127) // 128) * 128

    x_flat = jnp.concatenate(Xt, axis=-1).reshape(TB, total)
    # deterministic eps replaces randn_like (one draw per view)
    eps = jnp.stack([jax.random.normal(jax.random.fold_in(eps_key, v), (TB, dz), jnp.float32)
                     for v in range(n_views)])

    V = _views_per_grid_step(n_views)
    fp = build_fused_params(params, view_szes)
    slab = fused_forward_call(x_flat, fp, eps, T=T, B=B, n_views=n_views, V=V,
                              H=H, dz=dz, Ht=Ht, dv_max=dv_max, slab_w=slab_w)

    output = {k: [] for k in ("z_post", "mu_post", "std_post",
                              "mu_prior", "std_prior", "mu_x", "std_x")}
    for v, dv in enumerate(view_szes):
        s = slab[v]
        output["z_post"].append(s[:, 0:dz].reshape(T, B, dz))
        output["mu_post"].append(s[:, dz:2 * dz].reshape(T, B, dz))
        output["std_post"].append(s[:, 2 * dz:3 * dz].reshape(T, B, dz))
        output["mu_prior"].append(s[:, 3 * dz:4 * dz].reshape(T, B, dz))
        output["std_prior"].append(s[:, 4 * dz:5 * dz].reshape(T, B, dz))
        output["mu_x"].append(s[:, 5 * dz:5 * dz + dv].reshape(T, B, dv))
        output["std_x"].append(s[:, 5 * dz + dv_max:5 * dz + dv_max + dv].reshape(T, B, dv))

    # TODO(synk): negELBO / logllh_pxz_score are external undefined helpers in the
    # reference source; the loss terms cannot be reproduced and are left as None.
    loss = {"negELBO": None, "kld": None, "logllh": None}
    return output, loss, eps


# ---------------------- pure-JAX reference (correctness check) ------------------

def reference_forward(X, params, eps_all, latent_sz):
    hp = jax.lax.Precision.HIGHEST
    mm = lambda a, b: jnp.dot(a, b, precision=hp)
    sp = jax.nn.softplus
    sig = jax.nn.sigmoid
    nv = len(X)
    Xt = [jnp.transpose(Xv, (1, 0, 2)) for Xv in X]
    T, B = Xt[0].shape[0], Xt[0].shape[1]
    enc, dec = params["encoder"], params["decoder"]
    H, dz = enc["whh_f"].shape[0], latent_sz
    out = {k: [] for k in ("z_post", "mu_post", "std_post",
                           "mu_prior", "std_prior", "mu_x", "std_x")}
    for v in range(nv):
        w1, b1 = params["filters1"][v]
        w2, b2 = params["filters2"][v]
        X_v = mm(Xt[v], w1) + b1
        rest = jnp.concatenate([Xt[i] for i in range(nv) if i != v], axis=-1)
        X_rest = mm(rest, w2) + b2
        inp = jnp.concatenate([X_v, X_rest], axis=-1)
        hf, hb = [], [None] * T
        h = jnp.zeros((B, H), jnp.float32)
        for t in range(T):
            h = jnp.tanh(mm(inp[t], enc["wih_f"]) + enc["bih_f"] +
                         mm(h, enc["whh_f"]) + enc["bhh_f"])
            hf.append(h)
        h = jnp.zeros((B, H), jnp.float32)
        for t in range(T - 1, -1, -1):
            h = jnp.tanh(mm(inp[t], enc["wih_b"]) + enc["bih_b"] +
                         mm(h, enc["whh_b"]) + enc["bhh_b"])
            hb[t] = h
        eps_v = eps_all[v].reshape(T, B, dz)
        zs, mus, stds = [], [], []
        z_prev = jnp.zeros((B, dz), jnp.float32)
        for t in range(T):
            tmp = jnp.tanh(mm(z_prev, enc["wt"]) + enc["bt"])
            h_t = (tmp + hf[t] + hb[t]) * (1.0 / 3.0)
            mu = mm(h_t, enc["wmu"]) + enc["bmu"]
            std = sp(mm(h_t, enc["wsig"]) + enc["bsig"])
            z = mu + std * eps_v[t]
            zs.append(z); mus.append(mu); stds.append(std)
            z_prev = z
        z_post = jnp.stack(zs)
        mu_pr, std_pr = [], []
        for t in range(T):
            zp = jnp.broadcast_to(dec["z_init"], (B, dz)) if t == 0 else zs[t - 1]
            g = sig(mm(jnp.maximum(mm(zp, dec["gw1"]) + dec["gb1"], 0.0), dec["gw2"]) + dec["gb2"])
            hq = mm(jnp.maximum(mm(zp, dec["pw1"]) + dec["pb1"], 0.0), dec["pw2"]) + dec["pb2"]
            mu_pr.append((1.0 - g) * (mm(zp, dec["mw"]) + dec["mb"]) + g * hq)
            std_pr.append(sp(mm(jnp.maximum(hq, 0.0), dec["sw"]) + dec["sb"]))
        (mw1, mb1), (mw2, mb2) = params["mu_emissions"][v]
        (sw1, sb1), (sw2, sb2) = params["sigma_emissions"][v]
        mu_x = mm(jnp.maximum(mm(z_post, mw1) + mb1, 0.0), mw2) + mb2
        std_x = sp(mm(jnp.maximum(mm(z_post, sw1) + sb1, 0.0), sw2) + sb2)
        out["z_post"].append(z_post)
        out["mu_post"].append(jnp.stack(mus))
        out["std_post"].append(jnp.stack(stds))
        out["mu_prior"].append(jnp.stack(mu_pr))
        out["std_prior"].append(jnp.stack(std_pr))
        out["mu_x"].append(mu_x)
        out["std_x"].append(std_x)
    return out


# ----------------------------------- main --------------------------------------

if __name__ == "__main__":
    view_szes = [6, 10]
    latent_sz = 8
    rnn_hidden_sz = 16
    emission_hidden_sz = 12
    transition_hidden_sz = 12
    T, B = 8, 2

    key = jax.random.PRNGKey(0)
    kx, kp, ke = jax.random.split(key, 3)

    # X is a list of views, each (B, T, view_sz) as in the PyTorch module
    X = [jax.random.normal(jax.random.fold_in(kx, v), (B, T, dv), jnp.float32)
         for v, dv in enumerate(view_szes)]

    params = init_params(kp, view_szes, latent_sz, rnn_hidden_sz,
                         emission_hidden_sz, transition_hidden_sz)

    output, loss, eps_used = stlr_one_vae_forward(X, params, ke, latent_sz)
    jax.block_until_ready(output)

    # correctness check against a pure-JAX transcription of the PyTorch forward
    # (documented tolerance: default MXU matmul precision through the T=8 chain)
    ref = reference_forward(X, params, eps_used, latent_sz)
    for k in output:
        for v in range(len(view_szes)):
            if not bool(jnp.allclose(output[k][v], ref[k][v], rtol=2e-2, atol=2e-2)):
                raise RuntimeError(f"mismatch vs reference for output '{k}' view {v}")

    print("KERNEL_OK")
</pallas_src>

<mosaic_0001>
module attributes {stable_mosaic.version = 11 : i64} {
  func.func @fused_views_kernel(%arg0: i32, %arg1: memref<16x16xf32, #tpu.memory_space<vmem>>, %arg2: memref<2x16x32xf32, #tpu.memory_space<vmem>>, %arg3: memref<2x1x32xf32, #tpu.memory_space<vmem>>, %arg4: memref<32x32xf32, #tpu.memory_space<vmem>>, %arg5: memref<8x16xf32, #tpu.memory_space<vmem>>, %arg6: memref<1x16xf32, #tpu.memory_space<vmem>>, %arg7: memref<16x16xf32, #tpu.memory_space<vmem>>, %arg8: memref<1x16xf32, #tpu.memory_space<vmem>>, %arg9: memref<1x8xf32, #tpu.memory_space<vmem>>, %arg10: memref<8x32xf32, #tpu.memory_space<vmem>>, %arg11: memref<1x32xf32, #tpu.memory_space<vmem>>, %arg12: memref<24x16xf32, #tpu.memory_space<vmem>>, %arg13: memref<1x16xf32, #tpu.memory_space<vmem>>, %arg14: memref<8x8xf32, #tpu.memory_space<vmem>>, %arg15: memref<1x8xf32, #tpu.memory_space<vmem>>, %arg16: memref<2x8x24xf32, #tpu.memory_space<vmem>>, %arg17: memref<2x1x24xf32, #tpu.memory_space<vmem>>, %arg18: memref<2x24x20xf32, #tpu.memory_space<vmem>>, %arg19: memref<2x1x20xf32, #tpu.memory_space<vmem>>, %arg20: memref<2x16x8xf32, #tpu.memory_space<vmem>>, %arg21: memref<2x16x128xf32, #tpu.memory_space<vmem>>, %arg22: memref<16x64xf32, #tpu.memory_space<vmem>>) attributes {dimension_semantics = [#tpu.dimension_semantics<parallel>], iteration_bounds = array<i64: 1>, scalar_prefetch = 0 : i64, scratch_operands = 1 : i64, tpu.core_type = #tpu.core_type<tc>, window_params = [{pipeline_mode = #tpu.pipeline_mode<synchronous>, transform_indices = @transform_0, window_bounds = array<i64: 16, 16>}, {transform_indices = @transform_1, window_bounds = array<i64: 2, 16, 32>}, {transform_indices = @transform_2, window_bounds = array<i64: 2, 1, 32>}, {pipeline_mode = #tpu.pipeline_mode<synchronous>, transform_indices = @transform_3, window_bounds = array<i64: 32, 32>}, {pipeline_mode = #tpu.pipeline_mode<synchronous>, transform_indices = @transform_4, window_bounds = array<i64: 8, 16>}, {pipeline_mode = #tpu.pipeline_mode<synchronous>, transform_indices = @transform_5, window_bounds = array<i64: 1, 16>}, {pipeline_mode = #tpu.pipeline_mode<synchronous>, transform_indices = @transform_6, window_bounds = array<i64: 16, 16>}, {pipeline_mode = #tpu.pipeline_mode<synchronous>, transform_indices = @transform_7, window_bounds = array<i64: 1, 16>}, {pipeline_mode = #tpu.pipeline_mode<synchronous>, transform_indices = @transform_8, window_bounds = array<i64: 1, 8>}, {pipeline_mode = #tpu.pipeline_mode<synchronous>, transform_indices = @transform_9, window_bounds = array<i64: 8, 32>}, {pipeline_mode = #tpu.pipeline_mode<synchronous>, transform_indices = @transform_10, window_bounds = array<i64: 1, 32>}, {pipeline_mode = #tpu.pipeline_mode<synchronous>, transform_indices = @transform_11, window_bounds = array<i64: 24, 16>}, {pipeline_mode = #tpu.pipeline_mode<synchronous>, transform_indices = @transform_12, window_bounds = array<i64: 1, 16>}, {pipeline_mode = #tpu.pipeline_mode<synchronous>, transform_indices = @transform_13, window_bounds = array<i64: 8, 8>}, {pipeline_mode = #tpu.pipeline_mode<synchronous>, transform_indices = @transform_14, window_bounds = array<i64: 1, 8>}, {transform_indices = @transform_15, window_bounds = array<i64: 2, 8, 24>}, {transform_indices = @transform_16, window_bounds = array<i64: 2, 1, 24>}, {transform_indices = @transform_17, window_bounds = array<i64: 2, 24, 20>}, {transform_indices = @transform_18, window_bounds = array<i64: 2, 1, 20>}, {transform_indices = @transform_19, window_bounds = array<i64: 2, 16, 8>}, {transform_indices = @transform_20, window_bounds = array<i64: 2, 16, 128>}]} {
    %c0 = arith.constant 0 : index
    %c0_0 = arith.constant 0 : index
    %0 = vector.load %arg1[%c0, %c0_0] : memref<16x16xf32, #tpu.memory_space<vmem>>, vector<16x16xf32>
    %c0_1 = arith.constant 0 : index
    %c0_2 = arith.constant 0 : index
    %1 = vector.load %arg4[%c0_1, %c0_2] : memref<32x32xf32, #tpu.memory_space<vmem>>, vector<32x32xf32>
    %c0_3 = arith.constant 0 : index
    %c0_4 = arith.constant 0 : index
    %2 = vector.load %arg5[%c0_3, %c0_4] : memref<8x16xf32, #tpu.memory_space<vmem>>, vector<8x16xf32>
    %c0_5 = arith.constant 0 : index
    %c0_6 = arith.constant 0 : index
    %3 = vector.load %arg6[%c0_5, %c0_6] : memref<1x16xf32, #tpu.memory_space<vmem>>, vector<1x16xf32>
    %c0_7 = arith.constant 0 : index
    %c0_8 = arith.constant 0 : index
    %4 = vector.load %arg7[%c0_7, %c0_8] : memref<16x16xf32, #tpu.memory_space<vmem>>, vector<16x16xf32>
    %c0_9 = arith.constant 0 : index
    %c0_10 = arith.constant 0 : index
    %5 = vector.load %arg8[%c0_9, %c0_10] : memref<1x16xf32, #tpu.memory_space<vmem>>, vector<1x16xf32>
    %c0_11 = arith.constant 0 : index
    %c0_12 = arith.constant 0 : index
    %6 = vector.load %arg9[%c0_11, %c0_12] : memref<1x8xf32, #tpu.memory_space<vmem>>, vector<1x8xf32>
    %7 = vector.shape_cast %6 : vector<1x8xf32> to vector<1x8xf32>
    %8 = vector.broadcast %7 : vector<1x8xf32> to vector<2x8xf32>
    %c0_13 = arith.constant 0 : index
    %c0_14 = arith.constant 0 : index
    %c0_15 = arith.constant 0 : index
    %9 = vector.load %arg2[%c0_13, %c0_14, %c0_15] : memref<2x16x32xf32, #tpu.memory_space<vmem>>, vector<1x16x32xf32>
    %10 = vector.shape_cast %9 : vector<1x16x32xf32> to vector<16x32xf32>
    %cst = arith.constant dense<0.000000e+00> : vector<16x32xf32>
    %11 = tpu.matmul %0, %10, %cst {dimension_numbers = #tpu.dot_dimension_numbers<[1], [0], [0], [1], [0, 0, 1, 1], [], []>} : vector<16x16xf32>, vector<16x32xf32>, vector<16x32xf32> -> vector<16x32xf32>
    %c0_16 = arith.constant 0 : index
    %c0_17 = arith.constant 0 : index
    %c0_18 = arith.constant 0 : index
    %12 = vector.load %arg3[%c0_16, %c0_17, %c0_18] : memref<2x1x32xf32, #tpu.memory_space<vmem>>, vector<1x1x32xf32>
    %13 = vector.shape_cast %12 : vector<1x1x32xf32> to vector<1x32xf32>
    %14 = vector.broadcast %13 : vector<1x32xf32> to vector<16x32xf32>
    %15 = arith.addf %11, %14 : vector<16x32xf32>
    %16 = vector.extract_strided_slice %15 {offsets = [0, 0], sizes = [2, 16], strides = [1, 1]} : vector<16x32xf32> to vector<2x16xf32>
    %17 = vector.extract_strided_slice %15 {offsets = [14, 16], sizes = [2, 16], strides = [1, 1]} : vector<16x32xf32> to vector<2x16xf32>
    %18 = tpu.concatenate %16, %17 in 1 : vector<2x16xf32>, vector<2x16xf32> -> vector<2x32xf32>
    %19 = vector.extract_strided_slice %15 {offsets = [2, 0], sizes = [2, 16], strides = [1, 1]} : vector<16x32xf32> to vector<2x16xf32>
    %20 = vector.extract_strided_slice %15 {offsets = [12, 16], sizes = [2, 16], strides = [1, 1]} : vector<16x32xf32> to vector<2x16xf32>
    %21 = tpu.concatenate %19, %20 in 1 : vector<2x16xf32>, vector<2x16xf32> -> vector<2x32xf32>
    %22 = vector.extract_strided_slice %15 {offsets = [4, 0], sizes = [2, 16], strides = [1, 1]} : vector<16x32xf32> to vector<2x16xf32>
    %23 = vector.extract_strided_slice %15 {offsets = [10, 16], sizes = [2, 16], strides = [1, 1]} : vector<16x32xf32> to vector<2x16xf32>
    %24 = tpu.concatenate %22, %23 in 1 : vector<2x16xf32>, vector<2x16xf32> -> vector<2x32xf32>
    %25 = vector.extract_strided_slice %15 {offsets = [6, 0], sizes = [2, 16], strides = [1, 1]} : vector<16x32xf32> to vector<2x16xf32>
    %26 = vector.extract_strided_slice %15 {offsets = [8, 16], sizes = [2, 16], strides = [1, 1]} : vector<16x32xf32> to vector<2x16xf32>
    %27 = tpu.concatenate %25, %26 in 1 : vector<2x16xf32>, vector<2x16xf32> -> vector<2x32xf32>
    %28 = vector.extract_strided_slice %15 {offsets = [8, 0], sizes = [2, 16], strides = [1, 1]} : vector<16x32xf32> to vector<2x16xf32>
    %29 = vector.extract_strided_slice %15 {offsets = [6, 16], sizes = [2, 16], strides = [1, 1]} : vector<16x32xf32> to vector<2x16xf32>
    %30 = tpu.concatenate %28, %29 in 1 : vector<2x16xf32>, vector<2x16xf32> -> vector<2x32xf32>
    %31 = vector.extract_strided_slice %15 {offsets = [10, 0], sizes = [2, 16], strides = [1, 1]} : vector<16x32xf32> to vector<2x16xf32>
    %32 = vector.extract_strided_slice %15 {offsets = [4, 16], sizes = [2, 16], strides = [1, 1]} : vector<16x32xf32> to vector<2x16xf32>
    %33 = tpu.concatenate %31, %32 in 1 : vector<2x16xf32>, vector<2x16xf32> -> vector<2x32xf32>
    %34 = vector.extract_strided_slice %15 {offsets = [12, 0], sizes = [2, 16], strides = [1, 1]} : vector<16x32xf32> to vector<2x16xf32>
    %35 = vector.extract_strided_slice %15 {offsets = [2, 16], sizes = [2, 16], strides = [1, 1]} : vector<16x32xf32> to vector<2x16xf32>
    %36 = tpu.concatenate %34, %35 in 1 : vector<2x16xf32>, vector<2x16xf32> -> vector<2x32xf32>
    %37 = vector.extract_strided_slice %15 {offsets = [14, 0], sizes = [2, 16], strides = [1, 1]} : vector<16x32xf32> to vector<2x16xf32>
    %38 = vector.extract_strided_slice %15 {offsets = [0, 16], sizes = [2, 16], strides = [1, 1]} : vector<16x32xf32> to vector<2x16xf32>
    %39 = tpu.concatenate %37, %38 in 1 : vector<2x16xf32>, vector<2x16xf32> -> vector<2x32xf32>
    %cst_19 = arith.constant 0.000000e+00 : f32
    %40 = vector.broadcast %cst_19 : f32 to vector<2x32xf32>
    %cst_20 = arith.constant dense<0.000000e+00> : vector<2x32xf32>
    %41 = tpu.matmul %40, %1, %cst_20 {dimension_numbers = #tpu.dot_dimension_numbers<[1], [0], [0], [1], [0, 0, 1, 1], [], []>} : vector<2x32xf32>, vector<32x32xf32>, vector<2x32xf32> -> vector<2x32xf32>
    %42 = arith.addf %18, %41 : vector<2x32xf32>
    %43 = math.tanh %42 : vector<2x32xf32>
    %cst_21 = arith.constant dense<0.000000e+00> : vector<2x32xf32>
    %44 = tpu.matmul %43, %1, %cst_21 {dimension_numbers = #tpu.dot_dimension_numbers<[1], [0], [0], [1], [0, 0, 1, 1], [], []>} : vector<2x32xf32>, vector<32x32xf32>, vector<2x32xf32> -> vector<2x32xf32>
    %45 = arith.addf %21, %44 : vector<2x32xf32>
    %46 = math.tanh %45 : vector<2x32xf32>
    %cst_22 = arith.constant dense<0.000000e+00> : vector<2x32xf32>
    %47 = tpu.matmul %46, %1, %cst_22 {dimension_numbers = #tpu.dot_dimension_numbers<[1], [0], [0], [1], [0, 0, 1, 1], [], []>} : vector<2x32xf32>, vector<32x32xf32>, vector<2x32xf32> -> vector<2x32xf32>
    %48 = arith.addf %24, %47 : vector<2x32xf32>
    %49 = math.tanh %48 : vector<2x32xf32>
    %cst_23 = arith.constant dense<0.000000e+00> : vector<2x32xf32>
    %50 = tpu.matmul %49, %1, %cst_23 {dimension_numbers = #tpu.dot_dimension_numbers<[1], [0], [0], [1], [0, 0, 1, 1], [], []>} : vector<2x32xf32>, vector<32x32xf32>, vector<2x32xf32> -> vector<2x32xf32>
    %51 = arith.addf %27, %50 : vector<2x32xf32>
    %52 = math.tanh %51 : vector<2x32xf32>
    %cst_24 = arith.constant dense<0.000000e+00> : vector<2x32xf32>
    %53 = tpu.matmul %52, %1, %cst_24 {dimension_numbers = #tpu.dot_dimension_numbers<[1], [0], [0], [1], [0, 0, 1, 1], [], []>} : vector<2x32xf32>, vector<32x32xf32>, vector<2x32xf32> -> vector<2x32xf32>
    %54 = arith.addf %30, %53 : vector<2x32xf32>
    %55 = math.tanh %54 : vector<2x32xf32>
    %cst_25 = arith.constant dense<0.000000e+00> : vector<2x32xf32>
    %56 = tpu.matmul %55, %1, %cst_25 {dimension_numbers = #tpu.dot_dimension_numbers<[1], [0], [0], [1], [0, 0, 1, 1], [], []>} : vector<2x32xf32>, vector<32x32xf32>, vector<2x32xf32> -> vector<2x32xf32>
    %57 = arith.addf %33, %56 : vector<2x32xf32>
    %58 = math.tanh %57 : vector<2x32xf32>
    %cst_26 = arith.constant dense<0.000000e+00> : vector<2x32xf32>
    %59 = tpu.matmul %58, %1, %cst_26 {dimension_numbers = #tpu.dot_dimension_numbers<[1], [0], [0], [1], [0, 0, 1, 1], [], []>} : vector<2x32xf32>, vector<32x32xf32>, vector<2x32xf32> -> vector<2x32xf32>
    %60 = arith.addf %36, %59 : vector<2x32xf32>
    %61 = math.tanh %60 : vector<2x32xf32>
    %cst_27 = arith.constant dense<0.000000e+00> : vector<2x32xf32>
    %62 = tpu.matmul %61, %1, %cst_27 {dimension_numbers = #tpu.dot_dimension_numbers<[1], [0], [0], [1], [0, 0, 1, 1], [], []>} : vector<2x32xf32>, vector<32x32xf32>, vector<2x32xf32> -> vector<2x32xf32>
    %63 = arith.addf %39, %62 : vector<2x32xf32>
    %64 = math.tanh %63 : vector<2x32xf32>
    %65 = vector.extract_strided_slice %43 {offsets = [0, 0], sizes = [2, 16], strides = [1, 1]} : vector<2x32xf32> to vector<2x16xf32>
    %66 = vector.extract_strided_slice %64 {offsets = [0, 16], sizes = [2, 16], strides = [1, 1]} : vector<2x32xf32> to vector<2x16xf32>
    %67 = arith.addf %65, %66 : vector<2x16xf32>
    %68 = vector.extract_strided_slice %46 {offsets = [0, 0], sizes = [2, 16], strides = [1, 1]} : vector<2x32xf32> to vector<2x16xf32>
    %69 = vector.extract_strided_slice %61 {offsets = [0, 16], sizes = [2, 16], strides = [1, 1]} : vector<2x32xf32> to vector<2x16xf32>
    %70 = arith.addf %68, %69 : vector<2x16xf32>
    %71 = vector.extract_strided_slice %49 {offsets = [0, 0], sizes = [2, 16], strides = [1, 1]} : vector<2x32xf32> to vector<2x16xf32>
    %72 = vector.extract_strided_slice %58 {offsets = [0, 16], sizes = [2, 16], strides = [1, 1]} : vector<2x32xf32> to vector<2x16xf32>
    %73 = arith.addf %71, %72 : vector<2x16xf32>
    %74 = vector.extract_strided_slice %52 {offsets = [0, 0], sizes = [2, 16], strides = [1, 1]} : vector<2x32xf32> to vector<2x16xf32>
    %75 = vector.extract_strided_slice %55 {offsets = [0, 16], sizes = [2, 16], strides = [1, 1]} : vector<2x32xf32> to vector<2x16xf32>
    %76 = arith.addf %74, %75 : vector<2x16xf32>
    %77 = vector.extract_strided_slice %55 {offsets = [0, 0], sizes = [2, 16], strides = [1, 1]} : vector<2x32xf32> to vector<2x16xf32>
    %78 = vector.extract_strided_slice %52 {offsets = [0, 16], sizes = [2, 16], strides = [1, 1]} : vector<2x32xf32> to vector<2x16xf32>
    %79 = arith.addf %77, %78 : vector<2x16xf32>
    %80 = vector.extract_strided_slice %58 {offsets = [0, 0], sizes = [2, 16], strides = [1, 1]} : vector<2x32xf32> to vector<2x16xf32>
    %81 = vector.extract_strided_slice %49 {offsets = [0, 16], sizes = [2, 16], strides = [1, 1]} : vector<2x32xf32> to vector<2x16xf32>
    %82 = arith.addf %80, %81 : vector<2x16xf32>
    %83 = vector.extract_strided_slice %61 {offsets = [0, 0], sizes = [2, 16], strides = [1, 1]} : vector<2x32xf32> to vector<2x16xf32>
    %84 = vector.extract_strided_slice %46 {offsets = [0, 16], sizes = [2, 16], strides = [1, 1]} : vector<2x32xf32> to vector<2x16xf32>
    %85 = arith.addf %83, %84 : vector<2x16xf32>
    %86 = vector.extract_strided_slice %64 {offsets = [0, 0], sizes = [2, 16], strides = [1, 1]} : vector<2x32xf32> to vector<2x16xf32>
    %87 = vector.extract_strided_slice %43 {offsets = [0, 16], sizes = [2, 16], strides = [1, 1]} : vector<2x32xf32> to vector<2x16xf32>
    %88 = arith.addf %86, %87 : vector<2x16xf32>
    %c0_28 = arith.constant 0 : index
    %c0_29 = arith.constant 0 : index
    %c0_30 = arith.constant 0 : index
    %89 = vector.load %arg20[%c0_28, %c0_29, %c0_30] : memref<2x16x8xf32, #tpu.memory_space<vmem>>, vector<1x16x8xf32>
    %90 = vector.shape_cast %89 : vector<1x16x8xf32> to vector<16x8xf32>
    %cst_31 = arith.constant 0.000000e+00 : f32
    %91 = vector.broadcast %cst_31 : f32 to vector<2x8xf32>
    %cst_32 = arith.constant dense<0.000000e+00> : vector<2x16xf32>
    %92 = tpu.matmul %91, %2, %cst_32 {dimension_numbers = #tpu.dot_dimension_numbers<[1], [0], [0], [1], [0, 0, 1, 1], [], []>} : vector<2x8xf32>, vector<8x16xf32>, vector<2x16xf32> -> vector<2x16xf32>
    %93 = vector.broadcast %3 : vector<1x16xf32> to vector<2x16xf32>
    %94 = arith.addf %92, %93 : vector<2x16xf32>
    %95 = math.tanh %94 : vector<2x16xf32>
    %96 = arith.addf %95, %67 : vector<2x16xf32>
    %cst_33 = arith.constant 0.333333343 : f32
    %97 = vector.broadcast %cst_33 : f32 to vector<2x16xf32>
    %98 = arith.mulf %96, %97 : vector<2x16xf32>
    %cst_34 = arith.constant dense<0.000000e+00> : vector<2x16xf32>
    %99 = tpu.matmul %98, %4, %cst_34 {dimension_numbers = #tpu.dot_dimension_numbers<[1], [0], [0], [1], [0, 0, 1, 1], [], []>} : vector<2x16xf32>, vector<16x16xf32>, vector<2x16xf32> -> vector<2x16xf32>
    %100 = vector.broadcast %5 : vector<1x16xf32> to vector<2x16xf32>
    %101 = arith.addf %99, %100 : vector<2x16xf32>
    %102 = vector.extract_strided_slice %101 {offsets = [0, 0], sizes = [2, 8], strides = [1, 1]} : vector<2x16xf32> to vector<2x8xf32>
    %103 = vector.extract_strided_slice %101 {offsets = [0, 8], sizes = [2, 8], strides = [1, 1]} : vector<2x16xf32> to vector<2x8xf32>
    %cst_35 = arith.constant 0.000000e+00 : f32
    %104 = vector.broadcast %cst_35 : f32 to vector<2x8xf32>
    %105 = arith.maximumf %103, %104 : vector<2x8xf32>
    %106 = math.absf %103 : vector<2x8xf32>
    %cst_36 = arith.constant 0.000000e+00 : f32
    %107 = vector.broadcast %cst_36 : f32 to vector<2x8xf32>
    %108 = arith.subf %107, %106 : vector<2x8xf32>
    %109 = math.exp %108 : vector<2x8xf32>
    %cst_37 = arith.constant 1.000000e+00 : f32
    %110 = vector.broadcast %cst_37 : f32 to vector<2x8xf32>
    %111 = arith.addf %110, %109 : vector<2x8xf32>
    %112 = math.log %111 : vector<2x8xf32>
    %113 = arith.addf %105, %112 : vector<2x8xf32>
    %114 = vector.extract_strided_slice %90 {offsets = [0, 0], sizes = [2, 8], strides = [1, 1]} : vector<16x8xf32> to vector<2x8xf32>
    %115 = arith.mulf %113, %114 : vector<2x8xf32>
    %116 = arith.addf %102, %115 : vector<2x8xf32>
    %117 = tpu.concatenate %116, %102, %113, %8 in 1 : vector<2x8xf32>, vector<2x8xf32>, vector<2x8xf32>, vector<2x8xf32> -> vector<2x32xf32>
    %c0_38 = arith.constant 0 : index
    %c0_39 = arith.constant 0 : index
    %118 = vector.load %arg22[%c0_38, %c0_39] : memref<16x64xf32, #tpu.memory_space<vmem>>, vector<2x32xf32>
    tpu.vector_store %arg22[%c0_38, %c0_39], %117 {strides = array<i32>} : memref<16x64xf32, #tpu.memory_space<vmem>>, vector<2x32xf32>,
    %cst_40 = arith.constant dense<0.000000e+00> : vector<2x16xf32>
    %119 = tpu.matmul %116, %2, %cst_40 {dimension_numbers = #tpu.dot_dimension_numbers<[1], [0], [0], [1], [0, 0, 1, 1], [], []>} : vector<2x8xf32>, vector<8x16xf32>, vector<2x16xf32> -> vector<2x16xf32>
    %120 = vector.broadcast %3 : vector<1x16xf32> to vector<2x16xf32>
    %121 = arith.addf %119, %120 : vector<2x16xf32>
    %122 = math.tanh %121 : vector<2x16xf32>
    %123 = arith.addf %122, %70 : vector<2x16xf32>
    %cst_41 = arith.constant 0.333333343 : f32
    %124 = vector.broadcast %cst_41 : f32 to vector<2x16xf32>
    %125 = arith.mulf %123, %124 : vector<2x16xf32>
    %cst_42 = arith.constant dense<0.000000e+00> : vector<2x16xf32>
    %126 = tpu.matmul %125, %4, %cst_42 {dimension_numbers = #tpu.dot_dimension_numbers<[1], [0], [0], [1], [0, 0, 1, 1], [], []>} : vector<2x16xf32>, vector<16x16xf32>, vector<2x16xf32> -> vector<2x16xf32>
    %127 = vector.broadcast %5 : vector<1x16xf32> to vector<2x16xf32>
    %128 = arith.addf %126, %127 : vector<2x16xf32>
    %129 = vector.extract_strided_slice %128 {offsets = [0, 0], sizes = [2, 8], strides = [1, 1]} : vector<2x16xf32> to vector<2x8xf32>
    %130 = vector.extract_strided_slice %128 {offsets = [0, 8], sizes = [2, 8], strides = [1, 1]} : vector<2x16xf32> to vector<2x8xf32>
    %cst_43 = arith.constant 0.000000e+00 : f32
    %131 = vector.broadcast %cst_43 : f32 to vector<2x8xf32>
    %132 = arith.maximumf %130, %131 : vector<2x8xf32>
    %133 = math.absf %130 : vector<2x8xf32>
    %cst_44 = arith.constant 0.000000e+00 : f32
    %134 = vector.broadcast %cst_44 : f32 to vector<2x8xf32>
    %135 = arith.subf %134, %133 : vector<2x8xf32>
    %136 = math.exp %135 : vector<2x8xf32>
    %cst_45 = arith.constant 1.000000e+00 : f32
    %137 = vector.broadcast %cst_45 : f32 to vector<2x8xf32>
    %138 = arith.addf %137, %136 : vector<2x8xf32>
    %139 = math.log %138 : vector<2x8xf32>
    %140 = arith.addf %132, %139 : vector<2x8xf32>
    %141 = vector.extract_strided_slice %90 {offsets = [2, 0], sizes = [2, 8], strides = [1, 1]} : vector<16x8xf32> to vector<2x8xf32>
    %142 = arith.mulf %140, %141 : vector<2x8xf32>
    %143 = arith.addf %129, %142 : vector<2x8xf32>
    %144 = tpu.concatenate %143, %129, %140, %116 in 1 : vector<2x8xf32>, vector<2x8xf32>, vector<2x8xf32>, vector<2x8xf32> -> vector<2x32xf32>
    %c2 = arith.constant 2 : index
    %c0_46 = arith.constant 0 : index
    %145 = vector.load %arg22[%c2, %c0_46] : memref<16x64xf32, #tpu.memory_space<vmem>>, vector<2x32xf32>
    tpu.vector_store %arg22[%c2, %c0_46], %144 {strides = array<i32>} : memref<16x64xf32, #tpu.memory_space<vmem>>, vector<2x32xf32>,
    %cst_47 = arith.constant dense<0.000000e+00> : vector<2x16xf32>
    %146 = tpu.matmul %143, %2, %cst_47 {dimension_numbers = #tpu.dot_dimension_numbers<[1], [0], [0], [1], [0, 0, 1, 1], [], []>} : vector<2x8xf32>, vector<8x16xf32>, vector<2x16xf32> -> vector<2x16xf32>
    %147 = vector.broadcast %3 : vector<1x16xf32> to vector<2x16xf32>
    %148 = arith.addf %146, %147 : vector<2x16xf32>
    %149 = math.tanh %148 : vector<2x16xf32>
    %150 = arith.addf %149, %73 : vector<2x16xf32>
    %cst_48 = arith.constant 0.333333343 : f32
    %151 = vector.broadcast %cst_48 : f32 to vector<2x16xf32>
    %152 = arith.mulf %150, %151 : vector<2x16xf32>
    %cst_49 = arith.constant dense<0.000000e+00> : vector<2x16xf32>
    %153 = tpu.matmul %152, %4, %cst_49 {dimension_numbers = #tpu.dot_dimension_numbers<[1], [0], [0], [1], [0, 0, 1, 1], [], []>} : vector<2x16xf32>, vector<16x16xf32>, vector<2x16xf32> -> vector<2x16xf32>
    %154 = vector.broadcast %5 : vector<1x16xf32> to vector<2x16xf32>
    %155 = arith.addf %153, %154 : vector<2x16xf32>
    %156 = vector.extract_strided_slice %155 {offsets = [0, 0], sizes = [2, 8], strides = [1, 1]} : vector<2x16xf32> to vector<2x8xf32>
    %157 = vector.extract_strided_slice %155 {offsets = [0, 8], sizes = [2, 8], strides = [1, 1]} : vector<2x16xf32> to vector<2x8xf32>
    %cst_50 = arith.constant 0.000000e+00 : f32
    %158 = vector.broadcast %cst_50 : f32 to vector<2x8xf32>
    %159 = arith.maximumf %157, %158 : vector<2x8xf32>
    %160 = math.absf %157 : vector<2x8xf32>
    %cst_51 = arith.constant 0.000000e+00 : f32
    %161 = vector.broadcast %cst_51 : f32 to vector<2x8xf32>
    %162 = arith.subf %161, %160 : vector<2x8xf32>
    %163 = math.exp %162 : vector<2x8xf32>
    %cst_52 = arith.constant 1.000000e+00 : f32
    %164 = vector.broadcast %cst_52 : f32 to vector<2x8xf32>
    %165 = arith.addf %164, %163 : vector<2x8xf32>
    %166 = math.log %165 : vector<2x8xf32>
    %167 = arith.addf %159, %166 : vector<2x8xf32>
    %168 = vector.extract_strided_slice %90 {offsets = [4, 0], sizes = [2, 8], strides = [1, 1]} : vector<16x8xf32> to vector<2x8xf32>
    %169 = arith.mulf %167, %168 : vector<2x8xf32>
    %170 = arith.addf %156, %169 : vector<2x8xf32>
    %171 = tpu.concatenate %170, %156, %167, %143 in 1 : vector<2x8xf32>, vector<2x8xf32>, vector<2x8xf32>, vector<2x8xf32> -> vector<2x32xf32>
    %c4 = arith.constant 4 : index
    %c0_53 = arith.constant 0 : index
    %172 = vector.load %arg22[%c4, %c0_53] : memref<16x64xf32, #tpu.memory_space<vmem>>, vector<2x32xf32>
    tpu.vector_store %arg22[%c4, %c0_53], %171 {strides = array<i32>} : memref<16x64xf32, #tpu.memory_space<vmem>>, vector<2x32xf32>,
    %cst_54 = arith.constant dense<0.000000e+00> : vector<2x16xf32>
    %173 = tpu.matmul %170, %2, %cst_54 {dimension_numbers = #tpu.dot_dimension_numbers<[1], [0], [0], [1], [0, 0, 1, 1], [], []>} : vector<2x8xf32>, vector<8x16xf32>, vector<2x16xf32> -> vector<2x16xf32>
    %174 = vector.broadcast %3 : vector<1x16xf32> to vector<2x16xf32>
    %175 = arith.addf %173, %174 : vector<2x16xf32>
    %176 = math.tanh %175 : vector<2x16xf32>
    %177 = arith.addf %176, %76 : vector<2x16xf32>
    %cst_55 = arith.constant 0.333333343 : f32
    %178 = vector.broadcast %cst_55 : f32 to vector<2x16xf32>
    %179 = arith.mulf %177, %178 : vector<2x16xf32>
    %cst_56 = arith.constant dense<0.000000e+00> : vector<2x16xf32>
    %180 = tpu.matmul %179, %4, %cst_56 {dimension_numbers = #tpu.dot_dimension_numbers<[1], [0], [0], [1], [0, 0, 1, 1], [], []>} : vector<2x16xf32>, vector<16x16xf32>, vector<2x16xf32> -> vector<2x16xf32>
    %181 = vector.broadcast %5 : vector<1x16xf32> to vector<2x16xf32>
    %182 = arith.addf %180, %181 : vector<2x16xf32>
    %183 = vector.extract_strided_slice %182 {offsets = [0, 0], sizes = [2, 8], strides = [1, 1]} : vector<2x16xf32> to vector<2x8xf32>
    %184 = vector.extract_strided_slice %182 {offsets = [0, 8], sizes = [2, 8], strides = [1, 1]} : vector<2x16xf32> to vector<2x8xf32>
    %cst_57 = arith.constant 0.000000e+00 : f32
    %185 = vector.broadcast %cst_57 : f32 to vector<2x8xf32>
    %186 = arith.maximumf %184, %185 : vector<2x8xf32>
    %187 = math.absf %184 : vector<2x8xf32>
    %cst_58 = arith.constant 0.000000e+00 : f32
    %188 = vector.broadcast %cst_58 : f32 to vector<2x8xf32>
    %189 = arith.subf %188, %187 : vector<2x8xf32>
    %190 = math.exp %189 : vector<2x8xf32>
    %cst_59 = arith.constant 1.000000e+00 : f32
    %191 = vector.broadcast %cst_59 : f32 to vector<2x8xf32>
    %192 = arith.addf %191, %190 : vector<2x8xf32>
    %193 = math.log %192 : vector<2x8xf32>
    %194 = arith.addf %186, %193 : vector<2x8xf32>
    %195 = vector.extract_strided_slice %90 {offsets = [6, 0], sizes = [2, 8], strides = [1, 1]} : vector<16x8xf32> to vector<2x8xf32>
    %196 = arith.mulf %194, %195 : vector<2x8xf32>
    %197 = arith.addf %183, %196 : vector<2x8xf32>
    %198 = tpu.concatenate %197, %183, %194, %170 in 1 : vector<2x8xf32>, vector<2x8xf32>, vector<2x8xf32>, vector<2x8xf32> -> vector<2x32xf32>
    %c6 = arith.constant 6 : index
    %c0_60 = arith.constant 0 : index
    %199 = vector.load %arg22[%c6, %c0_60] : memref<16x64xf32, #tpu.memory_space<vmem>>, vector<2x32xf32>
    tpu.vector_store %arg22[%c6, %c0_60], %198 {strides = array<i32>} : memref<16x64xf32, #tpu.memory_space<vmem>>, vector<2x32xf32>,
    %cst_61 = arith.constant dense<0.000000e+00> : vector<2x16xf32>
    %200 = tpu.matmul %197, %2, %cst_61 {dimension_numbers = #tpu.dot_dimension_numbers<[1], [0], [0], [1], [0, 0, 1, 1], [], []>} : vector<2x8xf32>, vector<8x16xf32>, vector<2x16xf32> -> vector<2x16xf32>
    %201 = vector.broadcast %3 : vector<1x16xf32> to vector<2x16xf32>
    %202 = arith.addf %200, %201 : vector<2x16xf32>
    %203 = math.tanh %202 : vector<2x16xf32>
    %204 = arith.addf %203, %79 : vector<2x16xf32>
    %cst_62 = arith.constant 0.333333343 : f32
    %205 = vector.broadcast %cst_62 : f32 to vector<2x16xf32>
    %206 = arith.mulf %204, %205 : vector<2x16xf32>
    %cst_63 = arith.constant dense<0.000000e+00> : vector<2x16xf32>
    %207 = tpu.matmul %206, %4, %cst_63 {dimension_numbers = #tpu.dot_dimension_numbers<[1], [0], [0], [1], [0, 0, 1, 1], [], []>} : vector<2x16xf32>, vector<16x16xf32>, vector<2x16xf32> -> vector<2x16xf32>
    %208 = vector.broadcast %5 : vector<1x16xf32> to vector<2x16xf32>
    %209 = arith.addf %207, %208 : vector<2x16xf32>
    %210 = vector.extract_strided_slice %209 {offsets = [0, 0], sizes = [2, 8], strides = [1, 1]} : vector<2x16xf32> to vector<2x8xf32>
    %211 = vector.extract_strided_slice %209 {offsets = [0, 8], sizes = [2, 8], strides = [1, 1]} : vector<2x16xf32> to vector<2x8xf32>
    %cst_64 = arith.constant 0.000000e+00 : f32
    %212 = vector.broadcast %cst_64 : f32 to vector<2x8xf32>
    %213 = arith.maximumf %211, %212 : vector<2x8xf32>
    %214 = math.absf %211 : vector<2x8xf32>
    %cst_65 = arith.constant 0.000000e+00 : f32
    %215 = vector.broadcast %cst_65 : f32 to vector<2x8xf32>
    %216 = arith.subf %215, %214 : vector<2x8xf32>
    %217 = math.exp %216 : vector<2x8xf32>
    %cst_66 = arith.constant 1.000000e+00 : f32
    %218 = vector.broadcast %cst_66 : f32 to vector<2x8xf32>
    %219 = arith.addf %218, %217 : vector<2x8xf32>
    %220 = math.log %219 : vector<2x8xf32>
    %221 = arith.addf %213, %220 : vector<2x8xf32>
    %222 = vector.extract_strided_slice %90 {offsets = [8, 0], sizes = [2, 8], strides = [1, 1]} : vector<16x8xf32> to vector<2x8xf32>
    %223 = arith.mulf %221, %222 : vector<2x8xf32>
    %224 = arith.addf %210, %223 : vector<2x8xf32>
    %225 = tpu.concatenate %224, %210, %221, %197 in 1 : vector<2x8xf32>, vector<2x8xf32>, vector<2x8xf32>, vector<2x8xf32> -> vector<2x32xf32>
    %c8 = arith.constant 8 : index
    %c0_67 = arith.constant 0 : index
    %226 = vector.load %arg22[%c8, %c0_67] : memref<16x64xf32, #tpu.memory_space<vmem>>, vector<2x32xf32>
    tpu.vector_store %arg22[%c8, %c0_67], %225 {strides = array<i32>} : memref<16x64xf32, #tpu.memory_space<vmem>>, vector<2x32xf32>,
    %cst_68 = arith.constant dense<0.000000e+00> : vector<2x16xf32>
    %227 = tpu.matmul %224, %2, %cst_68 {dimension_numbers = #tpu.dot_dimension_numbers<[1], [0], [0], [1], [0, 0, 1, 1], [], []>} : vector<2x8xf32>, vector<8x16xf32>, vector<2x16xf32> -> vector<2x16xf32>
    %228 = vector.broadcast %3 : vector<1x16xf32> to vector<2x16xf32>
    %229 = arith.addf %227, %228 : vector<2x16xf32>
    %230 = math.tanh %229 : vector<2x16xf32>
    %231 = arith.addf %230, %82 : vector<2x16xf32>
    %cst_69 = arith.constant 0.333333343 : f32
    %232 = vector.broadcast %cst_69 : f32 to vector<2x16xf32>
    %233 = arith.mulf %231, %232 : vector<2x16xf32>
    %cst_70 = arith.constant dense<0.000000e+00> : vector<2x16xf32>
    %234 = tpu.matmul %233, %4, %cst_70 {dimension_numbers = #tpu.dot_dimension_numbers<[1], [0], [0], [1], [0, 0, 1, 1], [], []>} : vector<2x16xf32>, vector<16x16xf32>, vector<2x16xf32> -> vector<2x16xf32>
    %235 = vector.broadcast %5 : vector<1x16xf32> to vector<2x16xf32>
    %236 = arith.addf %234, %235 : vector<2x16xf32>
    %237 = vector.extract_strided_slice %236 {offsets = [0, 0], sizes = [2, 8], strides = [1, 1]} : vector<2x16xf32> to vector<2x8xf32>
    %238 = vector.extract_strided_slice %236 {offsets = [0, 8], sizes = [2, 8], strides = [1, 1]} : vector<2x16xf32> to vector<2x8xf32>
    %cst_71 = arith.constant 0.000000e+00 : f32
    %239 = vector.broadcast %cst_71 : f32 to vector<2x8xf32>
    %240 = arith.maximumf %238, %239 : vector<2x8xf32>
    %241 = math.absf %238 : vector<2x8xf32>
    %cst_72 = arith.constant 0.000000e+00 : f32
    %242 = vector.broadcast %cst_72 : f32 to vector<2x8xf32>
    %243 = arith.subf %242, %241 : vector<2x8xf32>
    %244 = math.exp %243 : vector<2x8xf32>
    %cst_73 = arith.constant 1.000000e+00 : f32
    %245 = vector.broadcast %cst_73 : f32 to vector<2x8xf32>
    %246 = arith.addf %245, %244 : vector<2x8xf32>
    %247 = math.log %246 : vector<2x8xf32>
    %248 = arith.addf %240, %247 : vector<2x8xf32>
    %249 = vector.extract_strided_slice %90 {offsets = [10, 0], sizes = [2, 8], strides = [1, 1]} : vector<16x8xf32> to vector<2x8xf32>
    %250 = arith.mulf %248, %249 : vector<2x8xf32>
    %251 = arith.addf %237, %250 : vector<2x8xf32>
    %252 = tpu.concatenate %251, %237, %248, %224 in 1 : vector<2x8xf32>, vector<2x8xf32>, vector<2x8xf32>, vector<2x8xf32> -> vector<2x32xf32>
    %c10 = arith.constant 10 : index
    %c0_74 = arith.constant 0 : index
    %253 = vector.load %arg22[%c10, %c0_74] : memref<16x64xf32, #tpu.memory_space<vmem>>, vector<2x32xf32>
    tpu.vector_store %arg22[%c10, %c0_74], %252 {strides = array<i32>} : memref<16x64xf32, #tpu.memory_space<vmem>>, vector<2x32xf32>,
    %cst_75 = arith.constant dense<0.000000e+00> : vector<2x16xf32>
    %254 = tpu.matmul %251, %2, %cst_75 {dimension_numbers = #tpu.dot_dimension_numbers<[1], [0], [0], [1], [0, 0, 1, 1], [], []>} : vector<2x8xf32>, vector<8x16xf32>, vector<2x16xf32> -> vector<2x16xf32>
    %255 = vector.broadcast %3 : vector<1x16xf32> to vector<2x16xf32>
    %256 = arith.addf %254, %255 : vector<2x16xf32>
    %257 = math.tanh %256 : vector<2x16xf32>
    %258 = arith.addf %257, %85 : vector<2x16xf32>
    %cst_76 = arith.constant 0.333333343 : f32
    %259 = vector.broadcast %cst_76 : f32 to vector<2x16xf32>
    %260 = arith.mulf %258, %259 : vector<2x16xf32>
    %cst_77 = arith.constant dense<0.000000e+00> : vector<2x16xf32>
    %261 = tpu.matmul %260, %4, %cst_77 {dimension_numbers = #tpu.dot_dimension_numbers<[1], [0], [0], [1], [0, 0, 1, 1], [], []>} : vector<2x16xf32>, vector<16x16xf32>, vector<2x16xf32> -> vector<2x16xf32>
    %262 = vector.broadcast %5 : vector<1x16xf32> to vector<2x16xf32>
    %263 = arith.addf %261, %262 : vector<2x16xf32>
    %264 = vector.extract_strided_slice %263 {offsets = [0, 0], sizes = [2, 8], strides = [1, 1]} : vector<2x16xf32> to vector<2x8xf32>
    %265 = vector.extract_strided_slice %263 {offsets = [0, 8], sizes = [2, 8], strides = [1, 1]} : vector<2x16xf32> to vector<2x8xf32>
    %cst_78 = arith.constant 0.000000e+00 : f32
    %266 = vector.broadcast %cst_78 : f32 to vector<2x8xf32>
    %267 = arith.maximumf %265, %266 : vector<2x8xf32>
    %268 = math.absf %265 : vector<2x8xf32>
    %cst_79 = arith.constant 0.000000e+00 : f32
    %269 = vector.broadcast %cst_79 : f32 to vector<2x8xf32>
    %270 = arith.subf %269, %268 : vector<2x8xf32>
    %271 = math.exp %270 : vector<2x8xf32>
    %cst_80 = arith.constant 1.000000e+00 : f32
    %272 = vector.broadcast %cst_80 : f32 to vector<2x8xf32>
    %273 = arith.addf %272, %271 : vector<2x8xf32>
    %274 = math.log %273 : vector<2x8xf32>
    %275 = arith.addf %267, %274 : vector<2x8xf32>
    %276 = vector.extract_strided_slice %90 {offsets = [12, 0], sizes = [2, 8], strides = [1, 1]} : vector<16x8xf32> to vector<2x8xf32>
    %277 = arith.mulf %275, %276 : vector<2x8xf32>
    %278 = arith.addf %264, %277 : vector<2x8xf32>
    %279 = tpu.concatenate %278, %264, %275, %251 in 1 : vector<2x8xf32>, vector<2x8xf32>, vector<2x8xf32>, vector<2x8xf32> -> vector<2x32xf32>
    %c12 = arith.constant 12 : index
    %c0_81 = arith.constant 0 : index
    %280 = vector.load %arg22[%c12, %c0_81] : memref<16x64xf32, #tpu.memory_space<vmem>>, vector<2x32xf32>
    tpu.vector_store %arg22[%c12, %c0_81], %279 {strides = array<i32>} : memref<16x64xf32, #tpu.memory_space<vmem>>, vector<2x32xf32>,
    %cst_82 = arith.constant dense<0.000000e+00> : vector<2x16xf32>
    %281 = tpu.matmul %278, %2, %cst_82 {dimension_numbers = #tpu.dot_dimension_numbers<[1], [0], [0], [1], [0, 0, 1, 1], [], []>} : vector<2x8xf32>, vector<8x16xf32>, vector<2x16xf32> -> vector<2x16xf32>
    %282 = vector.broadcast %3 : vector<1x16xf32> to vector<2x16xf32>
    %283 = arith.addf %281, %282 : vector<2x16xf32>
    %284 = math.tanh %283 : vector<2x16xf32>
    %285 = arith.addf %284, %88 : vector<2x16xf32>
    %cst_83 = arith.constant 0.333333343 : f32
    %286 = vector.broadcast %cst_83 : f32 to vector<2x16xf32>
    %287 = arith.mulf %285, %286 : vector<2x16xf32>
    %cst_84 = arith.constant dense<0.000000e+00> : vector<2x16xf32>
    %288 = tpu.matmul %287, %4, %cst_84 {dimension_numbers = #tpu.dot_dimension_numbers<[1], [0], [0], [1], [0, 0, 1, 1], [], []>} : vector<2x16xf32>, vector<16x16xf32>, vector<2x16xf32> -> vector<2x16xf32>
    %289 = vector.broadcast %5 : vector<1x16xf32> to vector<2x16xf32>
    %290 = arith.addf %288, %289 : vector<2x16xf32>
    %291 = vector.extract_strided_slice %290 {offsets = [0, 0], sizes = [2, 8], strides = [1, 1]} : vector<2x16xf32> to vector<2x8xf32>
    %292 = vector.extract_strided_slice %290 {offsets = [0, 8], sizes = [2, 8], strides = [1, 1]} : vector<2x16xf32> to vector<2x8xf32>
    %cst_85 = arith.constant 0.000000e+00 : f32
    %293 = vector.broadcast %cst_85 : f32 to vector<2x8xf32>
    %294 = arith.maximumf %292, %293 : vector<2x8xf32>
    %295 = math.absf %292 : vector<2x8xf32>
    %cst_86 = arith.constant 0.000000e+00 : f32
    %296 = vector.broadcast %cst_86 : f32 to vector<2x8xf32>
    %297 = arith.subf %296, %295 : vector<2x8xf32>
    %298 = math.exp %297 : vector<2x8xf32>
    %cst_87 = arith.constant 1.000000e+00 : f32
    %299 = vector.broadcast %cst_87 : f32 to vector<2x8xf32>
    %300 = arith.addf %299, %298 : vector<2x8xf32>
    %301 = math.log %300 : vector<2x8xf32>
    %302 = arith.addf %294, %301 : vector<2x8xf32>
    %303 = vector.extract_strided_slice %90 {offsets = [14, 0], sizes = [2, 8], strides = [1, 1]} : vector<16x8xf32> to vector<2x8xf32>
    %304 = arith.mulf %302, %303 : vector<2x8xf32>
    %305 = arith.addf %291, %304 : vector<2x8xf32>
    %306 = tpu.concatenate %305, %291, %302, %278 in 1 : vector<2x8xf32>, vector<2x8xf32>, vector<2x8xf32>, vector<2x8xf32> -> vector<2x32xf32>
    %c14 = arith.constant 14 : index
    %c0_88 = arith.constant 0 : index
    %307 = vector.load %arg22[%c14, %c0_88] : memref<16x64xf32, #tpu.memory_space<vmem>>, vector<2x32xf32>
    tpu.vector_store %arg22[%c14, %c0_88], %306 {strides = array<i32>} : memref<16x64xf32, #tpu.memory_space<vmem>>, vector<2x32xf32>,
    %c1 = arith.constant 1 : index
    %c0_89 = arith.constant 0 : index
    %c0_90 = arith.constant 0 : index
    %308 = vector.load %arg2[%c1, %c0_89, %c0_90] : memref<2x16x32xf32, #tpu.memory_space<vmem>>, vector<1x16x32xf32>
    %309 = vector.shape_cast %308 : vector<1x16x32xf32> to vector<16x32xf32>
    %cst_91 = arith.constant dense<0.000000e+00> : vector<16x32xf32>
    %310 = tpu.matmul %0, %309, %cst_91 {dimension_numbers = #tpu.dot_dimension_numbers<[1], [0], [0], [1], [0, 0, 1, 1], [], []>} : vector<16x16xf32>, vector<16x32xf32>, vector<16x32xf32> -> vector<16x32xf32>
    %c1_92 = arith.constant 1 : index
    %c0_93 = arith.constant 0 : index
    %c0_94 = arith.constant 0 : index
    %311 = vector.load %arg3[%c1_92, %c0_93, %c0_94] : memref<2x1x32xf32, #tpu.memory_space<vmem>>, vector<1x1x32xf32>
    %312 = vector.shape_cast %311 : vector<1x1x32xf32> to vector<1x32xf32>
    %313 = vector.broadcast %312 : vector<1x32xf32> to vector<16x32xf32>
    %314 = arith.addf %310, %313 : vector<16x32xf32>
    %315 = vector.extract_strided_slice %314 {offsets = [0, 0], sizes = [2, 16], strides = [1, 1]} : vector<16x32xf32> to vector<2x16xf32>
    %316 = vector.extract_strided_slice %314 {offsets = [14, 16], sizes = [2, 16], strides = [1, 1]} : vector<16x32xf32> to vector<2x16xf32>
    %317 = tpu.concatenate %315, %316 in 1 : vector<2x16xf32>, vector<2x16xf32> -> vector<2x32xf32>
    %318 = vector.extract_strided_slice %314 {offsets = [2, 0], sizes = [2, 16], strides = [1, 1]} : vector<16x32xf32> to vector<2x16xf32>
    %319 = vector.extract_strided_slice %314 {offsets = [12, 16], sizes = [2, 16], strides = [1, 1]} : vector<16x32xf32> to vector<2x16xf32>
    %320 = tpu.concatenate %318, %319 in 1 : vector<2x16xf32>, vector<2x16xf32> -> vector<2x32xf32>
    %321 = vector.extract_strided_slice %314 {offsets = [4, 0], sizes = [2, 16], strides = [1, 1]} : vector<16x32xf32> to vector<2x16xf32>
    %322 = vector.extract_strided_slice %314 {offsets = [10, 16], sizes = [2, 16], strides = [1, 1]} : vector<16x32xf32> to vector<2x16xf32>
    %323 = tpu.concatenate %321, %322 in 1 : vector<2x16xf32>, vector<2x16xf32> -> vector<2x32xf32>
    %324 = vector.extract_strided_slice %314 {offsets = [6, 0], sizes = [2, 16], strides = [1, 1]} : vector<16x32xf32> to vector<2x16xf32>
    %325 = vector.extract_strided_slice %314 {offsets = [8, 16], sizes = [2, 16], strides = [1, 1]} : vector<16x32xf32> to vector<2x16xf32>
    %326 = tpu.concatenate %324, %325 in 1 : vector<2x16xf32>, vector<2x16xf32> -> vector<2x32xf32>
    %327 = vector.extract_strided_slice %314 {offsets = [8, 0], sizes = [2, 16], strides = [1, 1]} : vector<16x32xf32> to vector<2x16xf32>
    %328 = vector.extract_strided_slice %314 {offsets = [6, 16], sizes = [2, 16], strides = [1, 1]} : vector<16x32xf32> to vector<2x16xf32>
    %329 = tpu.concatenate %327, %328 in 1 : vector<2x16xf32>, vector<2x16xf32> -> vector<2x32xf32>
    %330 = vector.extract_strided_slice %314 {offsets = [10, 0], sizes = [2, 16], strides = [1, 1]} : vector<16x32xf32> to vector<2x16xf32>
    %331 = vector.extract_strided_slice %314 {offsets = [4, 16], sizes = [2, 16], strides = [1, 1]} : vector<16x32xf32> to vector<2x16xf32>
    %332 = tpu.concatenate %330, %331 in 1 : vector<2x16xf32>, vector<2x16xf32> -> vector<2x32xf32>
    %333 = vector.extract_strided_slice %314 {offsets = [12, 0], sizes = [2, 16], strides = [1, 1]} : vector<16x32xf32> to vector<2x16xf32>
    %334 = vector.extract_strided_slice %314 {offsets = [2, 16], sizes = [2, 16], strides = [1, 1]} : vector<16x32xf32> to vector<2x16xf32>
    %335 = tpu.concatenate %333, %334 in 1 : vector<2x16xf32>, vector<2x16xf32> -> vector<2x32xf32>
    %336 = vector.extract_strided_slice %314 {offsets = [14, 0], sizes = [2, 16], strides = [1, 1]} : vector<16x32xf32> to vector<2x16xf32>
    %337 = vector.extract_strided_slice %314 {offsets = [0, 16], sizes = [2, 16], strides = [1, 1]} : vector<16x32xf32> to vector<2x16xf32>
    %338 = tpu.concatenate %336, %337 in 1 : vector<2x16xf32>, vector<2x16xf32> -> vector<2x32xf32>
    %cst_95 = arith.constant 0.000000e+00 : f32
    %339 = vector.broadcast %cst_95 : f32 to vector<2x32xf32>
    %cst_96 = arith.constant dense<0.000000e+00> : vector<2x32xf32>
    %340 = tpu.matmul %339, %1, %cst_96 {dimension_numbers = #tpu.dot_dimension_numbers<[1], [0], [0], [1], [0, 0, 1, 1], [], []>} : vector<2x32xf32>, vector<32x32xf32>, vector<2x32xf32> -> vector<2x32xf32>
    %341 = arith.addf %317, %340 : vector<2x32xf32>
    %342 = math.tanh %341 : vector<2x32xf32>
    %cst_97 = arith.constant dense<0.000000e+00> : vector<2x32xf32>
    %343 = tpu.matmul %342, %1, %cst_97 {dimension_numbers = #tpu.dot_dimension_numbers<[1], [0], [0], [1], [0, 0, 1, 1], [], []>} : vector<2x32xf32>, vector<32x32xf32>, vector<2x32xf32> -> vector<2x32xf32>
    %344 = arith.addf %320, %343 : vector<2x32xf32>
    %345 = math.tanh %344 : vector<2x32xf32>
    %cst_98 = arith.constant dense<0.000000e+00> : vector<2x32xf32>
    %346 = tpu.matmul %345, %1, %cst_98 {dimension_numbers = #tpu.dot_dimension_numbers<[1], [0], [0], [1], [0, 0, 1, 1], [], []>} : vector<2x32xf32>, vector<32x32xf32>, vector<2x32xf32> -> vector<2x32xf32>
    %347 = arith.addf %323, %346 : vector<2x32xf32>
    %348 = math.tanh %347 : vector<2x32xf32>
    %cst_99 = arith.constant dense<0.000000e+00> : vector<2x32xf32>
    %349 = tpu.matmul %348, %1, %cst_99 {dimension_numbers = #tpu.dot_dimension_numbers<[1], [0], [0], [1], [0, 0, 1, 1], [], []>} : vector<2x32xf32>, vector<32x32xf32>, vector<2x32xf32> -> vector<2x32xf32>
    %350 = arith.addf %326, %349 : vector<2x32xf32>
    %351 = math.tanh %350 : vector<2x32xf32>
    %cst_100 = arith.constant dense<0.000000e+00> : vector<2x32xf32>
    %352 = tpu.matmul %351, %1, %cst_100 {dimension_numbers = #tpu.dot_dimension_numbers<[1], [0], [0], [1], [0, 0, 1, 1], [], []>} : vector<2x32xf32>, vector<32x32xf32>, vector<2x32xf32> -> vector<2x32xf32>
    %353 = arith.addf %329, %352 : vector<2x32xf32>
    %354 = math.tanh %353 : vector<2x32xf32>
    %cst_101 = arith.constant dense<0.000000e+00> : vector<2x32xf32>
    %355 = tpu.matmul %354, %1, %cst_101 {dimension_numbers = #tpu.dot_dimension_numbers<[1], [0], [0], [1], [0, 0, 1, 1], [], []>} : vector<2x32xf32>, vector<32x32xf32>, vector<2x32xf32> -> vector<2x32xf32>
    %356 = arith.addf %332, %355 : vector<2x32xf32>
    %357 = math.tanh %356 : vector<2x32xf32>
    %cst_102 = arith.constant dense<0.000000e+00> : vector<2x32xf32>
    %358 = tpu.matmul %357, %1, %cst_102 {dimension_numbers = #tpu.dot_dimension_numbers<[1], [0], [0], [1], [0, 0, 1, 1], [], []>} : vector<2x32xf32>, vector<32x32xf32>, vector<2x32xf32> -> vector<2x32xf32>
    %359 = arith.addf %335, %358 : vector<2x32xf32>
    %360 = math.tanh %359 : vector<2x32xf32>
    %cst_103 = arith.constant dense<0.000000e+00> : vector<2x32xf32>
    %361 = tpu.matmul %360, %1, %cst_103 {dimension_numbers = #tpu.dot_dimension_numbers<[1], [0], [0], [1], [0, 0, 1, 1], [], []>} : vector<2x32xf32>, vector<32x32xf32>, vector<2x32xf32> -> vector<2x32xf32>
    %362 = arith.addf %338, %361 : vector<2x32xf32>
    %363 = math.tanh %362 : vector<2x32xf32>
    %364 = vector.extract_strided_slice %342 {offsets = [0, 0], sizes = [2, 16], strides = [1, 1]} : vector<2x32xf32> to vector<2x16xf32>
    %365 = vector.extract_strided_slice %363 {offsets = [0, 16], sizes = [2, 16], strides = [1, 1]} : vector<2x32xf32> to vector<2x16xf32>
    %366 = arith.addf %364, %365 : vector<2x16xf32>
    %367 = vector.extract_strided_slice %345 {offsets = [0, 0], sizes = [2, 16], strides = [1, 1]} : vector<2x32xf32> to vector<2x16xf32>
    %368 = vector.extract_strided_slice %360 {offsets = [0, 16], sizes = [2, 16], strides = [1, 1]} : vector<2x32xf32> to vector<2x16xf32>
    %369 = arith.addf %367, %368 : vector<2x16xf32>
    %370 = vector.extract_strided_slice %348 {offsets = [0, 0], sizes = [2, 16], strides = [1, 1]} : vector<2x32xf32> to vector<2x16xf32>
    %371 = vector.extract_strided_slice %357 {offsets = [0, 16], sizes = [2, 16], strides = [1, 1]} : vector<2x32xf32> to vector<2x16xf32>
    %372 = arith.addf %370, %371 : vector<2x16xf32>
    %373 = vector.extract_strided_slice %351 {offsets = [0, 0], sizes = [2, 16], strides = [1, 1]} : vector<2x32xf32> to vector<2x16xf32>
    %374 = vector.extract_strided_slice %354 {offsets = [0, 16], sizes = [2, 16], strides = [1, 1]} : vector<2x32xf32> to vector<2x16xf32>
    %375 = arith.addf %373, %374 : vector<2x16xf32>
    %376 = vector.extract_strided_slice %354 {offsets = [0, 0], sizes = [2, 16], strides = [1, 1]} : vector<2x32xf32> to vector<2x16xf32>
    %377 = vector.extract_strided_slice %351 {offsets = [0, 16], sizes = [2, 16], strides = [1, 1]} : vector<2x32xf32> to vector<2x16xf32>
    %378 = arith.addf %376, %377 : vector<2x16xf32>
    %379 = vector.extract_strided_slice %357 {offsets = [0, 0], sizes = [2, 16], strides = [1, 1]} : vector<2x32xf32> to vector<2x16xf32>
    %380 = vector.extract_strided_slice %348 {offsets = [0, 16], sizes = [2, 16], strides = [1, 1]} : vector<2x32xf32> to vector<2x16xf32>
    %381 = arith.addf %379, %380 : vector<2x16xf32>
    %382 = vector.extract_strided_slice %360 {offsets = [0, 0], sizes = [2, 16], strides = [1, 1]} : vector<2x32xf32> to vector<2x16xf32>
    %383 = vector.extract_strided_slice %345 {offsets = [0, 16], sizes = [2, 16], strides = [1, 1]} : vector<2x32xf32> to vector<2x16xf32>
    %384 = arith.addf %382, %383 : vector<2x16xf32>
    %385 = vector.extract_strided_slice %363 {offsets = [0, 0], sizes = [2, 16], strides = [1, 1]} : vector<2x32xf32> to vector<2x16xf32>
    %386 = vector.extract_strided_slice %342 {offsets = [0, 16], sizes = [2, 16], strides = [1, 1]} : vector<2x32xf32> to vector<2x16xf32>
    %387 = arith.addf %385, %386 : vector<2x16xf32>
    %c1_104 = arith.constant 1 : index
    %c0_105 = arith.constant 0 : index
    %c0_106 = arith.constant 0 : index
    %388 = vector.load %arg20[%c1_104, %c0_105, %c0_106] : memref<2x16x8xf32, #tpu.memory_space<vmem>>, vector<1x16x8xf32>
    %389 = vector.shape_cast %388 : vector<1x16x8xf32> to vector<16x8xf32>
    %cst_107 = arith.constant 0.000000e+00 : f32
    %390 = vector.broadcast %cst_107 : f32 to vector<2x8xf32>
    %cst_108 = arith.constant dense<0.000000e+00> : vector<2x16xf32>
    %391 = tpu.matmul %390, %2, %cst_108 {dimension_numbers = #tpu.dot_dimension_numbers<[1], [0], [0], [1], [0, 0, 1, 1], [], []>} : vector<2x8xf32>, vector<8x16xf32>, vector<2x16xf32> -> vector<2x16xf32>
    %392 = vector.broadcast %3 : vector<1x16xf32> to vector<2x16xf32>
    %393 = arith.addf %391, %392 : vector<2x16xf32>
    %394 = math.tanh %393 : vector<2x16xf32>
    %395 = arith.addf %394, %366 : vector<2x16xf32>
    %cst_109 = arith.constant 0.333333343 : f32
    %396 = vector.broadcast %cst_109 : f32 to vector<2x16xf32>
    %397 = arith.mulf %395, %396 : vector<2x16xf32>
    %cst_110 = arith.constant dense<0.000000e+00> : vector<2x16xf32>
    %398 = tpu.matmul %397, %4, %cst_110 {dimension_numbers = #tpu.dot_dimension_numbers<[1], [0], [0], [1], [0, 0, 1, 1], [], []>} : vector<2x16xf32>, vector<16x16xf32>, vector<2x16xf32> -> vector<2x16xf32>
    %399 = vector.broadcast %5 : vector<1x16xf32> to vector<2x16xf32>
    %400 = arith.addf %398, %399 : vector<2x16xf32>
    %401 = vector.extract_strided_slice %400 {offsets = [0, 0], sizes = [2, 8], strides = [1, 1]} : vector<2x16xf32> to vector<2x8xf32>
    %402 = vector.extract_strided_slice %400 {offsets = [0, 8], sizes = [2, 8], strides = [1, 1]} : vector<2x16xf32> to vector<2x8xf32>
    %cst_111 = arith.constant 0.000000e+00 : f32
    %403 = vector.broadcast %cst_111 : f32 to vector<2x8xf32>
    %404 = arith.maximumf %402, %403 : vector<2x8xf32>
    %405 = math.absf %402 : vector<2x8xf32>
    %cst_112 = arith.constant 0.000000e+00 : f32
    %406 = vector.broadcast %cst_112 : f32 to vector<2x8xf32>
    %407 = arith.subf %406, %405 : vector<2x8xf32>
    %408 = math.exp %407 : vector<2x8xf32>
    %cst_113 = arith.constant 1.000000e+00 : f32
    %409 = vector.broadcast %cst_113 : f32 to vector<2x8xf32>
    %410 = arith.addf %409, %408 : vector<2x8xf32>
    %411 = math.log %410 : vector<2x8xf32>
    %412 = arith.addf %404, %411 : vector<2x8xf32>
    %413 = vector.extract_strided_slice %389 {offsets = [0, 0], sizes = [2, 8], strides = [1, 1]} : vector<16x8xf32> to vector<2x8xf32>
    %414 = arith.mulf %412, %413 : vector<2x8xf32>
    %415 = arith.addf %401, %414 : vector<2x8xf32>
    %416 = tpu.concatenate %415, %401, %412, %8 in 1 : vector<2x8xf32>, vector<2x8xf32>, vector<2x8xf32>, vector<2x8xf32> -> vector<2x32xf32>
    %c0_114 = arith.constant 0 : index
    %c32 = arith.constant 32 : index
    %417 = vector.load %arg22[%c0_114, %c32] : memref<16x64xf32, #tpu.memory_space<vmem>>, vector<2x32xf32>
    tpu.vector_store %arg22[%c0_114, %c32], %416 {strides = array<i32>} : memref<16x64xf32, #tpu.memory_space<vmem>>, vector<2x32xf32>,
    %cst_115 = arith.constant dense<0.000000e+00> : vector<2x16xf32>
    %418 = tpu.matmul %415, %2, %cst_115 {dimension_numbers = #tpu.dot_dimension_numbers<[1], [0], [0], [1], [0, 0, 1, 1], [], []>} : vector<2x8xf32>, vector<8x16xf32>, vector<2x16xf32> -> vector<2x16xf32>
    %419 = vector.broadcast %3 : vector<1x16xf32> to vector<2x16xf32>
    %420 = arith.addf %418, %419 : vector<2x16xf32>
    %421 = math.tanh %420 : vector<2x16xf32>
    %422 = arith.addf %421, %369 : vector<2x16xf32>
    %cst_116 = arith.constant 0.333333343 : f32
    %423 = vector.broadcast %cst_116 : f32 to vector<2x16xf32>
    %424 = arith.mulf %422, %423 : vector<2x16xf32>
    %cst_117 = arith.constant dense<0.000000e+00> : vector<2x16xf32>
    %425 = tpu.matmul %424, %4, %cst_117 {dimension_numbers = #tpu.dot_dimension_numbers<[1], [0], [0], [1], [0, 0, 1, 1], [], []>} : vector<2x16xf32>, vector<16x16xf32>, vector<2x16xf32> -> vector<2x16xf32>
    %426 = vector.broadcast %5 : vector<1x16xf32> to vector<2x16xf32>
    %427 = arith.addf %425, %426 : vector<2x16xf32>
    %428 = vector.extract_strided_slice %427 {offsets = [0, 0], sizes = [2, 8], strides = [1, 1]} : vector<2x16xf32> to vector<2x8xf32>
    %429 = vector.extract_strided_slice %427 {offsets = [0, 8], sizes = [2, 8], strides = [1, 1]} : vector<2x16xf32> to vector<2x8xf32>
    %cst_118 = arith.constant 0.000000e+00 : f32
    %430 = vector.broadcast %cst_118 : f32 to vector<2x8xf32>
    %431 = arith.maximumf %429, %430 : vector<2x8xf32>
    %432 = math.absf %429 : vector<2x8xf32>
    %cst_119 = arith.constant 0.000000e+00 : f32
    %433 = vector.broadcast %cst_119 : f32 to vector<2x8xf32>
    %434 = arith.subf %433, %432 : vector<2x8xf32>
    %435 = math.exp %434 : vector<2x8xf32>
    %cst_120 = arith.constant 1.000000e+00 : f32
    %436 = vector.broadcast %cst_120 : f32 to vector<2x8xf32>
    %437 = arith.addf %436, %435 : vector<2x8xf32>
    %438 = math.log %437 : vector<2x8xf32>
    %439 = arith.addf %431, %438 : vector<2x8xf32>
    %440 = vector.extract_strided_slice %389 {offsets = [2, 0], sizes = [2, 8], strides = [1, 1]} : vector<16x8xf32> to vector<2x8xf32>
    %441 = arith.mulf %439, %440 : vector<2x8xf32>
    %442 = arith.addf %428, %441 : vector<2x8xf32>
    %443 = tpu.concatenate %442, %428, %439, %415 in 1 : vector<2x8xf32>, vector<2x8xf32>, vector<2x8xf32>, vector<2x8xf32> -> vector<2x32xf32>
    %c2_121 = arith.constant 2 : index
    %c32_122 = arith.constant 32 : index
    %444 = vector.load %arg22[%c2_121, %c32_122] : memref<16x64xf32, #tpu.memory_space<vmem>>, vector<2x32xf32>
    tpu.vector_store %arg22[%c2_121, %c32_122], %443 {strides = array<i32>} : memref<16x64xf32, #tpu.memory_space<vmem>>, vector<2x32xf32>,
    %cst_123 = arith.constant dense<0.000000e+00> : vector<2x16xf32>
    %445 = tpu.matmul %442, %2, %cst_123 {dimension_numbers = #tpu.dot_dimension_numbers<[1], [0], [0], [1], [0, 0, 1, 1], [], []>} : vector<2x8xf32>, vector<8x16xf32>, vector<2x16xf32> -> vector<2x16xf32>
    %446 = vector.broadcast %3 : vector<1x16xf32> to vector<2x16xf32>
    %447 = arith.addf %445, %446 : vector<2x16xf32>
    %448 = math.tanh %447 : vector<2x16xf32>
    %449 = arith.addf %448, %372 : vector<2x16xf32>
    %cst_124 = arith.constant 0.333333343 : f32
    %450 = vector.broadcast %cst_124 : f32 to vector<2x16xf32>
    %451 = arith.mulf %449, %450 : vector<2x16xf32>
    %cst_125 = arith.constant dense<0.000000e+00> : vector<2x16xf32>
    %452 = tpu.matmul %451, %4, %cst_125 {dimension_numbers = #tpu.dot_dimension_numbers<[1], [0], [0], [1], [0, 0, 1, 1], [], []>} : vector<2x16xf32>, vector<16x16xf32>, vector<2x16xf32> -> vector<2x16xf32>
    %453 = vector.broadcast %5 : vector<1x16xf32> to vector<2x16xf32>
    %454 = arith.addf %452, %453 : vector<2x16xf32>
    %455 = vector.extract_strided_slice %454 {offsets = [0, 0], sizes = [2, 8], strides = [1, 1]} : vector<2x16xf32> to vector<2x8xf32>
    %456 = vector.extract_strided_slice %454 {offsets = [0, 8], sizes = [2, 8], strides = [1, 1]} : vector<2x16xf32> to vector<2x8xf32>
    %cst_126 = arith.constant 0.000000e+00 : f32
    %457 = vector.broadcast %cst_126 : f32 to vector<2x8xf32>
    %458 = arith.maximumf %456, %457 : vector<2x8xf32>
    %459 = math.absf %456 : vector<2x8xf32>
    %cst_127 = arith.constant 0.000000e+00 : f32
    %460 = vector.broadcast %cst_127 : f32 to vector<2x8xf32>
    %461 = arith.subf %460, %459 : vector<2x8xf32>
    %462 = math.exp %461 : vector<2x8xf32>
    %cst_128 = arith.constant 1.000000e+00 : f32
    %463 = vector.broadcast %cst_128 : f32 to vector<2x8xf32>
    %464 = arith.addf %463, %462 : vector<2x8xf32>
    %465 = math.log %464 : vector<2x8xf32>
    %466 = arith.addf %458, %465 : vector<2x8xf32>
    %467 = vector.extract_strided_slice %389 {offsets = [4, 0], sizes = [2, 8], strides = [1, 1]} : vector<16x8xf32> to vector<2x8xf32>
    %468 = arith.mulf %466, %467 : vector<2x8xf32>
    %469 = arith.addf %455, %468 : vector<2x8xf32>
    %470 = tpu.concatenate %469, %455, %466, %442 in 1 : vector<2x8xf32>, vector<2x8xf32>, vector<2x8xf32>, vector<2x8xf32> -> vector<2x32xf32>
    %c4_129 = arith.constant 4 : index
    %c32_130 = arith.constant 32 : index
    %471 = vector.load %arg22[%c4_129, %c32_130] : memref<16x64xf32, #tpu.memory_space<vmem>>, vector<2x32xf32>
    tpu.vector_store %arg22[%c4_129, %c32_130], %470 {strides = array<i32>} : memref<16x64xf32, #tpu.memory_space<vmem>>, vector<2x32xf32>,
    %cst_131 = arith.constant dense<0.000000e+00> : vector<2x16xf32>
    %472 = tpu.matmul %469, %2, %cst_131 {dimension_numbers = #tpu.dot_dimension_numbers<[1], [0], [0], [1], [0, 0, 1, 1], [], []>} : vector<2x8xf32>, vector<8x16xf32>, vector<2x16xf32> -> vector<2x16xf32>
    %473 = vector.broadcast %3 : vector<1x16xf32> to vector<2x16xf32>
    %474 = arith.addf %472, %473 : vector<2x16xf32>
    %475 = math.tanh %474 : vector<2x16xf32>
    %476 = arith.addf %475, %375 : vector<2x16xf32>
    %cst_132 = arith.constant 0.333333343 : f32
    %477 = vector.broadcast %cst_132 : f32 to vector<2x16xf32>
    %478 = arith.mulf %476, %477 : vector<2x16xf32>
    %cst_133 = arith.constant dense<0.000000e+00> : vector<2x16xf32>
    %479 = tpu.matmul %478, %4, %cst_133 {dimension_numbers = #tpu.dot_dimension_numbers<[1], [0], [0], [1], [0, 0, 1, 1], [], []>} : vector<2x16xf32>, vector<16x16xf32>, vector<2x16xf32> -> vector<2x16xf32>
    %480 = vector.broadcast %5 : vector<1x16xf32> to vector<2x16xf32>
    %481 = arith.addf %479, %480 : vector<2x16xf32>
    %482 = vector.extract_strided_slice %481 {offsets = [0, 0], sizes = [2, 8], strides = [1, 1]} : vector<2x16xf32> to vector<2x8xf32>
    %483 = vector.extract_strided_slice %481 {offsets = [0, 8], sizes = [2, 8], strides = [1, 1]} : vector<2x16xf32> to vector<2x8xf32>
    %cst_134 = arith.constant 0.000000e+00 : f32
    %484 = vector.broadcast %cst_134 : f32 to vector<2x8xf32>
    %485 = arith.maximumf %483, %484 : vector<2x8xf32>
    %486 = math.absf %483 : vector<2x8xf32>
    %cst_135 = arith.constant 0.000000e+00 : f32
    %487 = vector.broadcast %cst_135 : f32 to vector<2x8xf32>
    %488 = arith.subf %487, %486 : vector<2x8xf32>
    %489 = math.exp %488 : vector<2x8xf32>
    %cst_136 = arith.constant 1.000000e+00 : f32
    %490 = vector.broadcast %cst_136 : f32 to vector<2x8xf32>
    %491 = arith.addf %490, %489 : vector<2x8xf32>
    %492 = math.log %491 : vector<2x8xf32>
    %493 = arith.addf %485, %492 : vector<2x8xf32>
    %494 = vector.extract_strided_slice %389 {offsets = [6, 0], sizes = [2, 8], strides = [1, 1]} : vector<16x8xf32> to vector<2x8xf32>
    %495 = arith.mulf %493, %494 : vector<2x8xf32>
    %496 = arith.addf %482, %495 : vector<2x8xf32>
    %497 = tpu.concatenate %496, %482, %493, %469 in 1 : vector<2x8xf32>, vector<2x8xf32>, vector<2x8xf32>, vector<2x8xf32> -> vector<2x32xf32>
    %c6_137 = arith.constant 6 : index
    %c32_138 = arith.constant 32 : index
    %498 = vector.load %arg22[%c6_137, %c32_138] : memref<16x64xf32, #tpu.memory_space<vmem>>, vector<2x32xf32>
    tpu.vector_store %arg22[%c6_137, %c32_138], %497 {strides = array<i32>} : memref<16x64xf32, #tpu.memory_space<vmem>>, vector<2x32xf32>,
    %cst_139 = arith.constant dense<0.000000e+00> : vector<2x16xf32>
    %499 = tpu.matmul %496, %2, %cst_139 {dimension_numbers = #tpu.dot_dimension_numbers<[1], [0], [0], [1], [0, 0, 1, 1], [], []>} : vector<2x8xf32>, vector<8x16xf32>, vector<2x16xf32> -> vector<2x16xf32>
    %500 = vector.broadcast %3 : vector<1x16xf32> to vector<2x16xf32>
    %501 = arith.addf %499, %500 : vector<2x16xf32>
    %502 = math.tanh %501 : vector<2x16xf32>
    %503 = arith.addf %502, %378 : vector<2x16xf32>
    %cst_140 = arith.constant 0.333333343 : f32
    %504 = vector.broadcast %cst_140 : f32 to vector<2x16xf32>
    %505 = arith.mulf %503, %504 : vector<2x16xf32>
    %cst_141 = arith.constant dense<0.000000e+00> : vector<2x16xf32>
    %506 = tpu.matmul %505, %4, %cst_141 {dimension_numbers = #tpu.dot_dimension_numbers<[1], [0], [0], [1], [0, 0, 1, 1], [], []>} : vector<2x16xf32>, vector<16x16xf32>, vector<2x16xf32> -> vector<2x16xf32>
    %507 = vector.broadcast %5 : vector<1x16xf32> to vector<2x16xf32>
    %508 = arith.addf %506, %507 : vector<2x16xf32>
    %509 = vector.extract_strided_slice %508 {offsets = [0, 0], sizes = [2, 8], strides = [1, 1]} : vector<2x16xf32> to vector<2x8xf32>
    %510 = vector.extract_strided_slice %508 {offsets = [0, 8], sizes = [2, 8], strides = [1, 1]} : vector<2x16xf32> to vector<2x8xf32>
    %cst_142 = arith.constant 0.000000e+00 : f32
    %511 = vector.broadcast %cst_142 : f32 to vector<2x8xf32>
    %512 = arith.maximumf %510, %511 : vector<2x8xf32>
    %513 = math.absf %510 : vector<2x8xf32>
    %cst_143 = arith.constant 0.000000e+00 : f32
    %514 = vector.broadcast %cst_143 : f32 to vector<2x8xf32>
    %515 = arith.subf %514, %513 : vector<2x8xf32>
    %516 = math.exp %515 : vector<2x8xf32>
    %cst_144 = arith.constant 1.000000e+00 : f32
    %517 = vector.broadcast %cst_144 : f32 to vector<2x8xf32>
    %518 = arith.addf %517, %516 : vector<2x8xf32>
    %519 = math.log %518 : vector<2x8xf32>
    %520 = arith.addf %512, %519 : vector<2x8xf32>
    %521 = vector.extract_strided_slice %389 {offsets = [8, 0], sizes = [2, 8], strides = [1, 1]} : vector<16x8xf32> to vector<2x8xf32>
    %522 = arith.mulf %520, %521 : vector<2x8xf32>
    %523 = arith.addf %509, %522 : vector<2x8xf32>
    %524 = tpu.concatenate %523, %509, %520, %496 in 1 : vector<2x8xf32>, vector<2x8xf32>, vector<2x8xf32>, vector<2x8xf32> -> vector<2x32xf32>
    %c8_145 = arith.constant 8 : index
    %c32_146 = arith.constant 32 : index
    %525 = vector.load %arg22[%c8_145, %c32_146] : memref<16x64xf32, #tpu.memory_space<vmem>>, vector<2x32xf32>
    tpu.vector_store %arg22[%c8_145, %c32_146], %524 {strides = array<i32>} : memref<16x64xf32, #tpu.memory_space<vmem>>, vector<2x32xf32>,
    %cst_147 = arith.constant dense<0.000000e+00> : vector<2x16xf32>
    %526 = tpu.matmul %523, %2, %cst_147 {dimension_numbers = #tpu.dot_dimension_numbers<[1], [0], [0], [1], [0, 0, 1, 1], [], []>} : vector<2x8xf32>, vector<8x16xf32>, vector<2x16xf32> -> vector<2x16xf32>
    %527 = vector.broadcast %3 : vector<1x16xf32> to vector<2x16xf32>
    %528 = arith.addf %526, %527 : vector<2x16xf32>
    %529 = math.tanh %528 : vector<2x16xf32>
    %530 = arith.addf %529, %381 : vector<2x16xf32>
    %cst_148 = arith.constant 0.333333343 : f32
    %531 = vector.broadcast %cst_148 : f32 to vector<2x16xf32>
    %532 = arith.mulf %530, %531 : vector<2x16xf32>
    %cst_149 = arith.constant dense<0.000000e+00> : vector<2x16xf32>
    %533 = tpu.matmul %532, %4, %cst_149 {dimension_numbers = #tpu.dot_dimension_numbers<[1], [0], [0], [1], [0, 0, 1, 1], [], []>} : vector<2x16xf32>, vector<16x16xf32>, vector<2x16xf32> -> vector<2x16xf32>
    %534 = vector.broadcast %5 : vector<1x16xf32> to vector<2x16xf32>
    %535 = arith.addf %533, %534 : vector<2x16xf32>
    %536 = vector.extract_strided_slice %535 {offsets = [0, 0], sizes = [2, 8], strides = [1, 1]} : vector<2x16xf32> to vector<2x8xf32>
    %537 = vector.extract_strided_slice %535 {offsets = [0, 8], sizes = [2, 8], strides = [1, 1]} : vector<2x16xf32> to vector<2x8xf32>
    %cst_150 = arith.constant 0.000000e+00 : f32
    %538 = vector.broadcast %cst_150 : f32 to vector<2x8xf32>
    %539 = arith.maximumf %537, %538 : vector<2x8xf32>
    %540 = math.absf %537 : vector<2x8xf32>
    %cst_151 = arith.constant 0.000000e+00 : f32
    %541 = vector.broadcast %cst_151 : f32 to vector<2x8xf32>
    %542 = arith.subf %541, %540 : vector<2x8xf32>
    %543 = math.exp %542 : vector<2x8xf32>
    %cst_152 = arith.constant 1.000000e+00 : f32
    %544 = vector.broadcast %cst_152 : f32 to vector<2x8xf32>
    %545 = arith.addf %544, %543 : vector<2x8xf32>
    %546 = math.log %545 : vector<2x8xf32>
    %547 = arith.addf %539, %546 : vector<2x8xf32>
    %548 = vector.extract_strided_slice %389 {offsets = [10, 0], sizes = [2, 8], strides = [1, 1]} : vector<16x8xf32> to vector<2x8xf32>
    %549 = arith.mulf %547, %548 : vector<2x8xf32>
    %550 = arith.addf %536, %549 : vector<2x8xf32>
    %551 = tpu.concatenate %550, %536, %547, %523 in 1 : vector<2x8xf32>, vector<2x8xf32>, vector<2x8xf32>, vector<2x8xf32> -> vector<2x32xf32>
    %c10_153 = arith.constant 10 : index
    %c32_154 = arith.constant 32 : index
    %552 = vector.load %arg22[%c10_153, %c32_154] : memref<16x64xf32, #tpu.memory_space<vmem>>, vector<2x32xf32>
    tpu.vector_store %arg22[%c10_153, %c32_154], %551 {strides = array<i32>} : memref<16x64xf32, #tpu.memory_space<vmem>>, vector<2x32xf32>,
    %cst_155 = arith.constant dense<0.000000e+00> : vector<2x16xf32>
    %553 = tpu.matmul %550, %2, %cst_155 {dimension_numbers = #tpu.dot_dimension_numbers<[1], [0], [0], [1], [0, 0, 1, 1], [], []>} : vector<2x8xf32>, vector<8x16xf32>, vector<2x16xf32> -> vector<2x16xf32>
    %554 = vector.broadcast %3 : vector<1x16xf32> to vector<2x16xf32>
    %555 = arith.addf %553, %554 : vector<2x16xf32>
    %556 = math.tanh %555 : vector<2x16xf32>
    %557 = arith.addf %556, %384 : vector<2x16xf32>
    %cst_156 = arith.constant 0.333333343 : f32
    %558 = vector.broadcast %cst_156 : f32 to vector<2x16xf32>
    %559 = arith.mulf %557, %558 : vector<2x16xf32>
    %cst_157 = arith.constant dense<0.000000e+00> : vector<2x16xf32>
    %560 = tpu.matmul %559, %4, %cst_157 {dimension_numbers = #tpu.dot_dimension_numbers<[1], [0], [0], [1], [0, 0, 1, 1], [], []>} : vector<2x16xf32>, vector<16x16xf32>, vector<2x16xf32> -> vector<2x16xf32>
    %561 = vector.broadcast %5 : vector<1x16xf32> to vector<2x16xf32>
    %562 = arith.addf %560, %561 : vector<2x16xf32>
    %563 = vector.extract_strided_slice %562 {offsets = [0, 0], sizes = [2, 8], strides = [1, 1]} : vector<2x16xf32> to vector<2x8xf32>
    %564 = vector.extract_strided_slice %562 {offsets = [0, 8], sizes = [2, 8], strides = [1, 1]} : vector<2x16xf32> to vector<2x8xf32>
    %cst_158 = arith.constant 0.000000e+00 : f32
    %565 = vector.broadcast %cst_158 : f32 to vector<2x8xf32>
    %566 = arith.maximumf %564, %565 : vector<2x8xf32>
    %567 = math.absf %564 : vector<2x8xf32>
    %cst_159 = arith.constant 0.000000e+00 : f32
    %568 = vector.broadcast %cst_159 : f32 to vector<2x8xf32>
    %569 = arith.subf %568, %567 : vector<2x8xf32>
    %570 = math.exp %569 : vector<2x8xf32>
    %cst_160 = arith.constant 1.000000e+00 : f32
    %571 = vector.broadcast %cst_160 : f32 to vector<2x8xf32>
    %572 = arith.addf %571, %570 : vector<2x8xf32>
    %573 = math.log %572 : vector<2x8xf32>
    %574 = arith.addf %566, %573 : vector<2x8xf32>
    %575 = vector.extract_strided_slice %389 {offsets = [12, 0], sizes = [2, 8], strides = [1, 1]} : vector<16x8xf32> to vector<2x8xf32>
    %576 = arith.mulf %574, %575 : vector<2x8xf32>
    %577 = arith.addf %563, %576 : vector<2x8xf32>
    %578 = tpu.concatenate %577, %563, %574, %550 in 1 : vector<2x8xf32>, vector<2x8xf32>, vector<2x8xf32>, vector<2x8xf32> -> vector<2x32xf32>
    %c12_161 = arith.constant 12 : index
    %c32_162 = arith.constant 32 : index
    %579 = vector.load %arg22[%c12_161, %c32_162] : memref<16x64xf32, #tpu.memory_space<vmem>>, vector<2x32xf32>
    tpu.vector_store %arg22[%c12_161, %c32_162], %578 {strides = array<i32>} : memref<16x64xf32, #tpu.memory_space<vmem>>, vector<2x32xf32>,
    %cst_163 = arith.constant dense<0.000000e+00> : vector<2x16xf32>
    %580 = tpu.matmul %577, %2, %cst_163 {dimension_numbers = #tpu.dot_dimension_numbers<[1], [0], [0], [1], [0, 0, 1, 1], [], []>} : vector<2x8xf32>, vector<8x16xf32>, vector<2x16xf32> -> vector<2x16xf32>
    %581 = vector.broadcast %3 : vector<1x16xf32> to vector<2x16xf32>
    %582 = arith.addf %580, %581 : vector<2x16xf32>
    %583 = math.tanh %582 : vector<2x16xf32>
    %584 = arith.addf %583, %387 : vector<2x16xf32>
    %cst_164 = arith.constant 0.333333343 : f32
    %585 = vector.broadcast %cst_164 : f32 to vector<2x16xf32>
    %586 = arith.mulf %584, %585 : vector<2x16xf32>
    %cst_165 = arith.constant dense<0.000000e+00> : vector<2x16xf32>
    %587 = tpu.matmul %586, %4, %cst_165 {dimension_numbers = #tpu.dot_dimension_numbers<[1], [0], [0], [1], [0, 0, 1, 1], [], []>} : vector<2x16xf32>, vector<16x16xf32>, vector<2x16xf32> -> vector<2x16xf32>
    %588 = vector.broadcast %5 : vector<1x16xf32> to vector<2x16xf32>
    %589 = arith.addf %587, %588 : vector<2x16xf32>
    %590 = vector.extract_strided_slice %589 {offsets = [0, 0], sizes = [2, 8], strides = [1, 1]} : vector<2x16xf32> to vector<2x8xf32>
    %591 = vector.extract_strided_slice %589 {offsets = [0, 8], sizes = [2, 8], strides = [1, 1]} : vector<2x16xf32> to vector<2x8xf32>
    %cst_166 = arith.constant 0.000000e+00 : f32
    %592 = vector.broadcast %cst_166 : f32 to vector<2x8xf32>
    %593 = arith.maximumf %591, %592 : vector<2x8xf32>
    %594 = math.absf %591 : vector<2x8xf32>
    %cst_167 = arith.constant 0.000000e+00 : f32
    %595 = vector.broadcast %cst_167 : f32 to vector<2x8xf32>
    %596 = arith.subf %595, %594 : vector<2x8xf32>
    %597 = math.exp %596 : vector<2x8xf32>
    %cst_168 = arith.constant 1.000000e+00 : f32
    %598 = vector.broadcast %cst_168 : f32 to vector<2x8xf32>
    %599 = arith.addf %598, %597 : vector<2x8xf32>
    %600 = math.log %599 : vector<2x8xf32>
    %601 = arith.addf %593, %600 : vector<2x8xf32>
    %602 = vector.extract_strided_slice %389 {offsets = [14, 0], sizes = [2, 8], strides = [1, 1]} : vector<16x8xf32> to vector<2x8xf32>
    %603 = arith.mulf %601, %602 : vector<2x8xf32>
    %604 = arith.addf %590, %603 : vector<2x8xf32>
    %605 = tpu.concatenate %604, %590, %601, %577 in 1 : vector<2x8xf32>, vector<2x8xf32>, vector<2x8xf32>, vector<2x8xf32> -> vector<2x32xf32>
    %c14_169 = arith.constant 14 : index
    %c32_170 = arith.constant 32 : index
    %606 = vector.load %arg22[%c14_169, %c32_170] : memref<16x64xf32, #tpu.memory_space<vmem>>, vector<2x32xf32>
    tpu.vector_store %arg22[%c14_169, %c32_170], %605 {strides = array<i32>} : memref<16x64xf32, #tpu.memory_space<vmem>>, vector<2x32xf32>,
    %c0_171 = arith.constant 0 : index
    %c0_172 = arith.constant 0 : index
    %607 = vector.load %arg22[%c0_171, %c0_172] : memref<16x64xf32, #tpu.memory_space<vmem>>, vector<16x64xf32>
    %c0_173 = arith.constant 0 : index
    %c0_174 = arith.constant 0 : index
    %608 = vector.load %arg10[%c0_173, %c0_174] : memref<8x32xf32, #tpu.memory_space<vmem>>, vector<8x32xf32>
    %c0_175 = arith.constant 0 : index
    %c0_176 = arith.constant 0 : index
    %609 = vector.load %arg11[%c0_175, %c0_176] : memref<1x32xf32, #tpu.memory_space<vmem>>, vector<1x32xf32>
    %c0_177 = arith.constant 0 : index
    %c0_178 = arith.constant 0 : index
    %610 = vector.load %arg12[%c0_177, %c0_178] : memref<24x16xf32, #tpu.memory_space<vmem>>, vector<24x16xf32>
    %c0_179 = arith.constant 0 : index
    %c0_180 = arith.constant 0 : index
    %611 = vector.load %arg13[%c0_179, %c0_180] : memref<1x16xf32, #tpu.memory_space<vmem>>, vector<1x16xf32>
    %c0_181 = arith.constant 0 : index
    %c0_182 = arith.constant 0 : index
    %612 = vector.load %arg14[%c0_181, %c0_182] : memref<8x8xf32, #tpu.memory_space<vmem>>, vector<8x8xf32>
    %c0_183 = arith.constant 0 : index
    %c0_184 = arith.constant 0 : index
    %613 = vector.load %arg15[%c0_183, %c0_184] : memref<1x8xf32, #tpu.memory_space<vmem>>, vector<1x8xf32>
    %cst_185 = arith.constant 0.000000e+00 : f32
    %614 = vector.broadcast %cst_185 : f32 to vector<16x68xf32>
    %615 = vector.extract_strided_slice %607 {offsets = [0, 0], sizes = [16, 8], strides = [1, 1]} : vector<16x64xf32> to vector<16x8xf32>
    %616 = vector.extract_strided_slice %607 {offsets = [0, 8], sizes = [16, 8], strides = [1, 1]} : vector<16x64xf32> to vector<16x8xf32>
    %617 = vector.extract_strided_slice %607 {offsets = [0, 16], sizes = [16, 8], strides = [1, 1]} : vector<16x64xf32> to vector<16x8xf32>
    %618 = vector.extract_strided_slice %607 {offsets = [0, 24], sizes = [16, 8], strides = [1, 1]} : vector<16x64xf32> to vector<16x8xf32>
    %cst_186 = arith.constant dense<0.000000e+00> : vector<16x32xf32>
    %619 = tpu.matmul %618, %608, %cst_186 {dimension_numbers = #tpu.dot_dimension_numbers<[1], [0], [0], [1], [0, 0, 1, 1], [], []>} : vector<16x8xf32>, vector<8x32xf32>, vector<16x32xf32> -> vector<16x32xf32>
    %620 = vector.broadcast %609 : vector<1x32xf32> to vector<16x32xf32>
    %621 = arith.addf %619, %620 : vector<16x32xf32>
    %622 = vector.extract_strided_slice %621 {offsets = [0, 24], sizes = [16, 8], strides = [1, 1]} : vector<16x32xf32> to vector<16x8xf32>
    %623 = vector.extract_strided_slice %621 {offsets = [0, 0], sizes = [16, 24], strides = [1, 1]} : vector<16x32xf32> to vector<16x24xf32>
    %cst_187 = arith.constant 0.000000e+00 : f32
    %624 = vector.broadcast %cst_187 : f32 to vector<16x24xf32>
    %625 = arith.maximumf %623, %624 : vector<16x24xf32>
    %cst_188 = arith.constant dense<0.000000e+00> : vector<16x16xf32>
    %626 = tpu.matmul %625, %610, %cst_188 {dimension_numbers = #tpu.dot_dimension_numbers<[1], [0], [0], [1], [0, 0, 1, 1], [], []>} : vector<16x24xf32>, vector<24x16xf32>, vector<16x16xf32> -> vector<16x16xf32>
    %627 = vector.broadcast %611 : vector<1x16xf32> to vector<16x16xf32>
    %628 = arith.addf %626, %627 : vector<16x16xf32>
    %629 = vector.extract_strided_slice %628 {offsets = [0, 0], sizes = [16, 8], strides = [1, 1]} : vector<16x16xf32> to vector<16x8xf32>
    %cst_189 = arith.constant 0.000000e+00 : f32
    %630 = vector.broadcast %cst_189 : f32 to vector<16x8xf32>
    %631 = arith.subf %630, %629 : vector<16x8xf32>
    %632 = math.exp %631 : vector<16x8xf32>
    %cst_190 = arith.constant 1.000000e+00 : f32
    %633 = vector.broadcast %cst_190 : f32 to vector<16x8xf32>
    %634 = arith.addf %633, %632 : vector<16x8xf32>
    %635 = tpu.reciprocal %634 {approx = true} : vector<16x8xf32> -> vector<16x8xf32>
    %636 = vector.extract_strided_slice %628 {offsets = [0, 8], sizes = [16, 8], strides = [1, 1]} : vector<16x16xf32> to vector<16x8xf32>
    %cst_191 = arith.constant 1.000000e+00 : f32
    %637 = vector.broadcast %cst_191 : f32 to vector<16x8xf32>
    %638 = arith.subf %637, %635 : vector<16x8xf32>
    %639 = arith.mulf %638, %622 : vector<16x8xf32>
    %640 = arith.mulf %635, %636 : vector<16x8xf32>
    %641 = arith.addf %639, %640 : vector<16x8xf32>
    %cst_192 = arith.constant 0.000000e+00 : f32
    %642 = vector.broadcast %cst_192 : f32 to vector<16x8xf32>
    %643 = arith.maximumf %636, %642 : vector<16x8xf32>
    %cst_193 = arith.constant dense<0.000000e+00> : vector<16x8xf32>
    %644 = tpu.matmul %643, %612, %cst_193 {dimension_numbers = #tpu.dot_dimension_numbers<[1], [0], [0], [1], [0, 0, 1, 1], [], []>} : vector<16x8xf32>, vector<8x8xf32>, vector<16x8xf32> -> vector<16x8xf32>
    %645 = vector.broadcast %613 : vector<1x8xf32> to vector<16x8xf32>
    %646 = arith.addf %644, %645 : vector<16x8xf32>
    %cst_194 = arith.constant 0.000000e+00 : f32
    %647 = vector.broadcast %cst_194 : f32 to vector<16x8xf32>
    %648 = arith.maximumf %646, %647 : vector<16x8xf32>
    %649 = math.absf %646 : vector<16x8xf32>
    %cst_195 = arith.constant 0.000000e+00 : f32
    %650 = vector.broadcast %cst_195 : f32 to vector<16x8xf32>
    %651 = arith.subf %650, %649 : vector<16x8xf32>
    %652 = math.exp %651 : vector<16x8xf32>
    %cst_196 = arith.constant 1.000000e+00 : f32
    %653 = vector.broadcast %cst_196 : f32 to vector<16x8xf32>
    %654 = arith.addf %653, %652 : vector<16x8xf32>
    %655 = math.log %654 : vector<16x8xf32>
    %656 = arith.addf %648, %655 : vector<16x8xf32>
    %c0_197 = arith.constant 0 : index
    %c0_198 = arith.constant 0 : index
    %c0_199 = arith.constant 0 : index
    %657 = vector.load %arg16[%c0_197, %c0_198, %c0_199] : memref<2x8x24xf32, #tpu.memory_space<vmem>>, vector<1x8x24xf32>
    %658 = vector.shape_cast %657 : vector<1x8x24xf32> to vector<8x24xf32>
    %cst_200 = arith.constant dense<0.000000e+00> : vector<16x24xf32>
    %659 = tpu.matmul %615, %658, %cst_200 {dimension_numbers = #tpu.dot_dimension_numbers<[1], [0], [0], [1], [0, 0, 1, 1], [], []>} : vector<16x8xf32>, vector<8x24xf32>, vector<16x24xf32> -> vector<16x24xf32>
    %c0_201 = arith.constant 0 : index
    %c0_202 = arith.constant 0 : index
    %c0_203 = arith.constant 0 : index
    %660 = vector.load %arg17[%c0_201, %c0_202, %c0_203] : memref<2x1x24xf32, #tpu.memory_space<vmem>>, vector<1x1x24xf32>
    %661 = vector.shape_cast %660 : vector<1x1x24xf32> to vector<1x24xf32>
    %662 = vector.broadcast %661 : vector<1x24xf32> to vector<16x24xf32>
    %663 = arith.addf %659, %662 : vector<16x24xf32>
    %cst_204 = arith.constant 0.000000e+00 : f32
    %664 = vector.broadcast %cst_204 : f32 to vector<16x24xf32>
    %665 = arith.maximumf %663, %664 : vector<16x24xf32>
    %c0_205 = arith.constant 0 : index
    %c0_206 = arith.constant 0 : index
    %c0_207 = arith.constant 0 : index
    %666 = vector.load %arg18[%c0_205, %c0_206, %c0_207] : memref<2x24x20xf32, #tpu.memory_space<vmem>>, vector<1x24x20xf32>
    %667 = vector.shape_cast %666 : vector<1x24x20xf32> to vector<24x20xf32>
    %cst_208 = arith.constant dense<0.000000e+00> : vector<16x20xf32>
    %668 = tpu.matmul %665, %667, %cst_208 {dimension_numbers = #tpu.dot_dimension_numbers<[1], [0], [0], [1], [0, 0, 1, 1], [], []>} : vector<16x24xf32>, vector<24x20xf32>, vector<16x20xf32> -> vector<16x20xf32>
    %c0_209 = arith.constant 0 : index
    %c0_210 = arith.constant 0 : index
    %c0_211 = arith.constant 0 : index
    %669 = vector.load %arg19[%c0_209, %c0_210, %c0_211] : memref<2x1x20xf32, #tpu.memory_space<vmem>>, vector<1x1x20xf32>
    %670 = vector.shape_cast %669 : vector<1x1x20xf32> to vector<1x20xf32>
    %671 = vector.broadcast %670 : vector<1x20xf32> to vector<16x20xf32>
    %672 = arith.addf %668, %671 : vector<16x20xf32>
    %673 = vector.extract_strided_slice %672 {offsets = [0, 0], sizes = [16, 10], strides = [1, 1]} : vector<16x20xf32> to vector<16x10xf32>
    %674 = vector.extract_strided_slice %672 {offsets = [0, 10], sizes = [16, 10], strides = [1, 1]} : vector<16x20xf32> to vector<16x10xf32>
    %cst_212 = arith.constant 0.000000e+00 : f32
    %675 = vector.broadcast %cst_212 : f32 to vector<16x10xf32>
    %676 = arith.maximumf %674, %675 : vector<16x10xf32>
    %677 = math.absf %674 : vector<16x10xf32>
    %cst_213 = arith.constant 0.000000e+00 : f32
    %678 = vector.broadcast %cst_213 : f32 to vector<16x10xf32>
    %679 = arith.subf %678, %677 : vector<16x10xf32>
    %680 = math.exp %679 : vector<16x10xf32>
    %cst_214 = arith.constant 1.000000e+00 : f32
    %681 = vector.broadcast %cst_214 : f32 to vector<16x10xf32>
    %682 = arith.addf %681, %680 : vector<16x10xf32>
    %683 = math.log %682 : vector<16x10xf32>
    %684 = arith.addf %676, %683 : vector<16x10xf32>
    %685 = tpu.concatenate %615, %616, %617, %641, %656, %673, %684, %614 in 1 : vector<16x8xf32>, vector<16x8xf32>, vector<16x8xf32>, vector<16x8xf32>, vector<16x8xf32>, vector<16x10xf32>, vector<16x10xf32>, vector<16x68xf32> -> vector<16x128xf32>
    %c0_215 = arith.constant 0 : index
    %c0_216 = arith.constant 0 : index
    %c0_217 = arith.constant 0 : index
    %686 = vector.load %arg21[%c0_215, %c0_216, %c0_217] : memref<2x16x128xf32, #tpu.memory_space<vmem>>, vector<1x16x128xf32>
    %687 = vector.shape_cast %686 : vector<1x16x128xf32> to vector<16x128xf32>
    %688 = vector.shape_cast %685 : vector<16x128xf32> to vector<1x16x128xf32>
    tpu.vector_store %arg21[%c0_215, %c0_216, %c0_217], %688 {strides = array<i32>} : memref<2x16x128xf32, #tpu.memory_space<vmem>>, vector<1x16x128xf32>,
    %689 = vector.extract_strided_slice %607 {offsets = [0, 32], sizes = [16, 8], strides = [1, 1]} : vector<16x64xf32> to vector<16x8xf32>
    %690 = vector.extract_strided_slice %607 {offsets = [0, 40], sizes = [16, 8], strides = [1, 1]} : vector<16x64xf32> to vector<16x8xf32>
    %691 = vector.extract_strided_slice %607 {offsets = [0, 48], sizes = [16, 8], strides = [1, 1]} : vector<16x64xf32> to vector<16x8xf32>
    %692 = vector.extract_strided_slice %607 {offsets = [0, 56], sizes = [16, 8], strides = [1, 1]} : vector<16x64xf32> to vector<16x8xf32>
    %cst_218 = arith.constant dense<0.000000e+00> : vector<16x32xf32>
    %693 = tpu.matmul %692, %608, %cst_218 {dimension_numbers = #tpu.dot_dimension_numbers<[1], [0], [0], [1], [0, 0, 1, 1], [], []>} : vector<16x8xf32>, vector<8x32xf32>, vector<16x32xf32> -> vector<16x32xf32>
    %694 = vector.broadcast %609 : vector<1x32xf32> to vector<16x32xf32>
    %695 = arith.addf %693, %694 : vector<16x32xf32>
    %696 = vector.extract_strided_slice %695 {offsets = [0, 24], sizes = [16, 8], strides = [1, 1]} : vector<16x32xf32> to vector<16x8xf32>
    %697 = vector.extract_strided_slice %695 {offsets = [0, 0], sizes = [16, 24], strides = [1, 1]} : vector<16x32xf32> to vector<16x24xf32>
    %cst_219 = arith.constant 0.000000e+00 : f32
    %698 = vector.broadcast %cst_219 : f32 to vector<16x24xf32>
    %699 = arith.maximumf %697, %698 : vector<16x24xf32>
    %cst_220 = arith.constant dense<0.000000e+00> : vector<16x16xf32>
    %700 = tpu.matmul %699, %610, %cst_220 {dimension_numbers = #tpu.dot_dimension_numbers<[1], [0], [0], [1], [0, 0, 1, 1], [], []>} : vector<16x24xf32>, vector<24x16xf32>, vector<16x16xf32> -> vector<16x16xf32>
    %701 = vector.broadcast %611 : vector<1x16xf32> to vector<16x16xf32>
    %702 = arith.addf %700, %701 : vector<16x16xf32>
    %703 = vector.extract_strided_slice %702 {offsets = [0, 0], sizes = [16, 8], strides = [1, 1]} : vector<16x16xf32> to vector<16x8xf32>
    %cst_221 = arith.constant 0.000000e+00 : f32
    %704 = vector.broadcast %cst_221 : f32 to vector<16x8xf32>
    %705 = arith.subf %704, %703 : vector<16x8xf32>
    %706 = math.exp %705 : vector<16x8xf32>
    %cst_222 = arith.constant 1.000000e+00 : f32
    %707 = vector.broadcast %cst_222 : f32 to vector<16x8xf32>
    %708 = arith.addf %707, %706 : vector<16x8xf32>
    %709 = tpu.reciprocal %708 {approx = true} : vector<16x8xf32> -> vector<16x8xf32>
    %710 = vector.extract_strided_slice %702 {offsets = [0, 8], sizes = [16, 8], strides = [1, 1]} : vector<16x16xf32> to vector<16x8xf32>
    %cst_223 = arith.constant 1.000000e+00 : f32
    %711 = vector.broadcast %cst_223 : f32 to vector<16x8xf32>
    %712 = arith.subf %711, %709 : vector<16x8xf32>
    %713 = arith.mulf %712, %696 : vector<16x8xf32>
    %714 = arith.mulf %709, %710 : vector<16x8xf32>
    %715 = arith.addf %713, %714 : vector<16x8xf32>
    %cst_224 = arith.constant 0.000000e+00 : f32
    %716 = vector.broadcast %cst_224 : f32 to vector<16x8xf32>
    %717 = arith.maximumf %710, %716 : vector<16x8xf32>
    %cst_225 = arith.constant dense<0.000000e+00> : vector<16x8xf32>
    %718 = tpu.matmul %717, %612, %cst_225 {dimension_numbers = #tpu.dot_dimension_numbers<[1], [0], [0], [1], [0, 0, 1, 1], [], []>} : vector<16x8xf32>, vector<8x8xf32>, vector<16x8xf32> -> vector<16x8xf32>
    %719 = vector.broadcast %613 : vector<1x8xf32> to vector<16x8xf32>
    %720 = arith.addf %718, %719 : vector<16x8xf32>
    %cst_226 = arith.constant 0.000000e+00 : f32
    %721 = vector.broadcast %cst_226 : f32 to vector<16x8xf32>
    %722 = arith.maximumf %720, %721 : vector<16x8xf32>
    %723 = math.absf %720 : vector<16x8xf32>
    %cst_227 = arith.constant 0.000000e+00 : f32
    %724 = vector.broadcast %cst_227 : f32 to vector<16x8xf32>
    %725 = arith.subf %724, %723 : vector<16x8xf32>
    %726 = math.exp %725 : vector<16x8xf32>
    %cst_228 = arith.constant 1.000000e+00 : f32
    %727 = vector.broadcast %cst_228 : f32 to vector<16x8xf32>
    %728 = arith.addf %727, %726 : vector<16x8xf32>
    %729 = math.log %728 : vector<16x8xf32>
    %730 = arith.addf %722, %729 : vector<16x8xf32>
    %c1_229 = arith.constant 1 : index
    %c0_230 = arith.constant 0 : index
    %c0_231 = arith.constant 0 : index
    %731 = vector.load %arg16[%c1_229, %c0_230, %c0_231] : memref<2x8x24xf32, #tpu.memory_space<vmem>>, vector<1x8x24xf32>
    %732 = vector.shape_cast %731 : vector<1x8x24xf32> to vector<8x24xf32>
    %cst_232 = arith.constant dense<0.000000e+00> : vector<16x24xf32>
    %733 = tpu.matmul %689, %732, %cst_232 {dimension_numbers = #tpu.dot_dimension_numbers<[1], [0], [0], [1], [0, 0, 1, 1], [], []>} : vector<16x8xf32>, vector<8x24xf32>, vector<16x24xf32> -> vector<16x24xf32>
    %c1_233 = arith.constant 1 : index
    %c0_234 = arith.constant 0 : index
    %c0_235 = arith.constant 0 : index
    %734 = vector.load %arg17[%c1_233, %c0_234, %c0_235] : memref<2x1x24xf32, #tpu.memory_space<vmem>>, vector<1x1x24xf32>
    %735 = vector.shape_cast %734 : vector<1x1x24xf32> to vector<1x24xf32>
    %736 = vector.broadcast %735 : vector<1x24xf32> to vector<16x24xf32>
    %737 = arith.addf %733, %736 : vector<16x24xf32>
    %cst_236 = arith.constant 0.000000e+00 : f32
    %738 = vector.broadcast %cst_236 : f32 to vector<16x24xf32>
    %739 = arith.maximumf %737, %738 : vector<16x24xf32>
    %c1_237 = arith.constant 1 : index
    %c0_238 = arith.constant 0 : index
    %c0_239 = arith.constant 0 : index
    %740 = vector.load %arg18[%c1_237, %c0_238, %c0_239] : memref<2x24x20xf32, #tpu.memory_space<vmem>>, vector<1x24x20xf32>
    %741 = vector.shape_cast %740 : vector<1x24x20xf32> to vector<24x20xf32>
    %cst_240 = arith.constant dense<0.000000e+00> : vector<16x20xf32>
    %742 = tpu.matmul %739, %741, %cst_240 {dimension_numbers = #tpu.dot_dimension_numbers<[1], [0], [0], [1], [0, 0, 1, 1], [], []>} : vector<16x24xf32>, vector<24x20xf32>, vector<16x20xf32> -> vector<16x20xf32>
    %c1_241 = arith.constant 1 : index
    %c0_242 = arith.constant 0 : index
    %c0_243 = arith.constant 0 : index
    %743 = vector.load %arg19[%c1_241, %c0_242, %c0_243] : memref<2x1x20xf32, #tpu.memory_space<vmem>>, vector<1x1x20xf32>
    %744 = vector.shape_cast %743 : vector<1x1x20xf32> to vector<1x20xf32>
    %745 = vector.broadcast %744 : vector<1x20xf32> to vector<16x20xf32>
    %746 = arith.addf %742, %745 : vector<16x20xf32>
    %747 = vector.extract_strided_slice %746 {offsets = [0, 0], sizes = [16, 10], strides = [1, 1]} : vector<16x20xf32> to vector<16x10xf32>
    %748 = vector.extract_strided_slice %746 {offsets = [0, 10], sizes = [16, 10], strides = [1, 1]} : vector<16x20xf32> to vector<16x10xf32>
    %cst_244 = arith.constant 0.000000e+00 : f32
    %749 = vector.broadcast %cst_244 : f32 to vector<16x10xf32>
    %750 = arith.maximumf %748, %749 : vector<16x10xf32>
    %751 = math.absf %748 : vector<16x10xf32>
    %cst_245 = arith.constant 0.000000e+00 : f32
    %752 = vector.broadcast %cst_245 : f32 to vector<16x10xf32>
    %753 = arith.subf %752, %751 : vector<16x10xf32>
    %754 = math.exp %753 : vector<16x10xf32>
    %cst_246 = arith.constant 1.000000e+00 : f32
    %755 = vector.broadcast %cst_246 : f32 to vector<16x10xf32>
    %756 = arith.addf %755, %754 : vector<16x10xf32>
    %757 = math.log %756 : vector<16x10xf32>
    %758 = arith.addf %750, %757 : vector<16x10xf32>
    %759 = tpu.concatenate %689, %690, %691, %715, %730, %747, %758, %614 in 1 : vector<16x8xf32>, vector<16x8xf32>, vector<16x8xf32>, vector<16x8xf32>, vector<16x8xf32>, vector<16x10xf32>, vector<16x10xf32>, vector<16x68xf32> -> vector<16x128xf32>
    %c1_247 = arith.constant 1 : index
    %c0_248 = arith.constant 0 : index
    %c0_249 = arith.constant 0 : index
    %760 = vector.load %arg21[%c1_247, %c0_248, %c0_249] : memref<2x16x128xf32, #tpu.memory_space<vmem>>, vector<1x16x128xf32>
    %761 = vector.shape_cast %760 : vector<1x16x128xf32> to vector<16x128xf32>
    %762 = vector.shape_cast %759 : vector<16x128xf32> to vector<1x16x128xf32>
    tpu.vector_store %arg21[%c1_247, %c0_248, %c0_249], %762 {strides = array<i32>} : memref<2x16x128xf32, #tpu.memory_space<vmem>>, vector<1x16x128xf32>,
    return
  }
  func.func @transform_0(%arg0: i32) -> (i32, i32) {
    %c0_i32 = arith.constant 0 : i32
    %c0_i32_0 = arith.constant 0 : i32
    %c0_i32_1 = arith.constant 0 : i32
    return %c0_i32, %c0_i32_0 : i32, i32
  }
  func.func @transform_1(%arg0: i32) -> (i32, i32, i32) {
    %c0_i32 = arith.constant 0 : i32
    %c0_i32_0 = arith.constant 0 : i32
    %c0_i32_1 = arith.constant 0 : i32
    return %arg0, %c0_i32, %c0_i32_0 : i32, i32, i32
  }
  func.func @transform_2(%arg0: i32) -> (i32, i32, i32) {
    %c0_i32 = arith.constant 0 : i32
    %c0_i32_0 = arith.constant 0 : i32
    %c0_i32_1 = arith.constant 0 : i32
    return %arg0, %c0_i32, %c0_i32_0 : i32, i32, i32
  }
  func.func @transform_3(%arg0: i32) -> (i32, i32) {
    %c0_i32 = arith.constant 0 : i32
    %c0_i32_0 = arith.constant 0 : i32
    %c0_i32_1 = arith.constant 0 : i32
    return %c0_i32, %c0_i32_0 : i32, i32
  }
  func.func @transform_4(%arg0: i32) -> (i32, i32) {
    %c0_i32 = arith.constant 0 : i32
    %c0_i32_0 = arith.constant 0 : i32
    %c0_i32_1 = arith.constant 0 : i32
    return %c0_i32, %c0_i32_0 : i32, i32
  }
  func.func @transform_5(%arg0: i32) -> (i32, i32) {
    %c0_i32 = arith.constant 0 : i32
    %c0_i32_0 = arith.constant 0 : i32
    %c0_i32_1 = arith.constant 0 : i32
    return %c0_i32, %c0_i32_0 : i32, i32
  }
  func.func @transform_6(%arg0: i32) -> (i32, i32) {
    %c0_i32 = arith.constant 0 : i32
    %c0_i32_0 = arith.constant 0 : i32
    %c0_i32_1 = arith.constant 0 : i32
    return %c0_i32, %c0_i32_0 : i32, i32
  }
  func.func @transform_7(%arg0: i32) -> (i32, i32) {
    %c0_i32 = arith.constant 0 : i32
    %c0_i32_0 = arith.constant 0 : i32
    %c0_i32_1 = arith.constant 0 : i32
    return %c0_i32, %c0_i32_0 : i32, i32
  }
  func.func @transform_8(%arg0: i32) -> (i32, i32) {
    %c0_i32 = arith.constant 0 : i32
    %c0_i32_0 = arith.constant 0 : i32
    %c0_i32_1 = arith.constant 0 : i32
    return %c0_i32, %c0_i32_0 : i32, i32
  }
  func.func @transform_9(%arg0: i32) -> (i32, i32) {
    %c0_i32 = arith.constant 0 : i32
    %c0_i32_0 = arith.constant 0 : i32
    %c0_i32_1 = arith.constant 0 : i32
    return %c0_i32, %c0_i32_0 : i32, i32
  }
  func.func @transform_10(%arg0: i32) -> (i32, i32) {
    %c0_i32 = arith.constant 0 : i32
    %c0_i32_0 = arith.constant 0 : i32
    %c0_i32_1 = arith.constant 0 : i32
    return %c0_i32, %c0_i32_0 : i32, i32
  }
  func.func @transform_11(%arg0: i32) -> (i32, i32) {
    %c0_i32 = arith.constant 0 : i32
    %c0_i32_0 = arith.constant 0 : i32
    %c0_i32_1 = arith.constant 0 : i32
    return %c0_i32, %c0_i32_0 : i32, i32
  }
  func.func @transform_12(%arg0: i32) -> (i32, i32) {
    %c0_i32 = arith.constant 0 : i32
    %c0_i32_0 = arith.constant 0 : i32
    %c0_i32_1 = arith.constant 0 : i32
    return %c0_i32, %c0_i32_0 : i32, i32
  }
  func.func @transform_13(%arg0: i32) -> (i32, i32) {
    %c0_i32 = arith.constant 0 : i32
    %c0_i32_0 = arith.constant 0 : i32
    %c0_i32_1 = arith.constant 0 : i32
    return %c0_i32, %c0_i32_0 : i32, i32
  }
  func.func @transform_14(%arg0: i32) -> (i32, i32) {
    %c0_i32 = arith.constant 0 : i32
    %c0_i32_0 = arith.constant 0 : i32
    %c0_i32_1 = arith.constant 0 : i32
    return %c0_i32, %c0_i32_0 : i32, i32
  }
  func.func @transform_15(%arg0: i32) -> (i32, i32, i32) {
    %c0_i32 = arith.constant 0 : i32
    %c0_i32_0 = arith.constant 0 : i32
    %c0_i32_1 = arith.constant 0 : i32
    return %arg0, %c0_i32, %c0_i32_0 : i32, i32, i32
  }
  func.func @transform_16(%arg0: i32) -> (i32, i32, i32) {
    %c0_i32 = arith.constant 0 : i32
    %c0_i32_0 = arith.constant 0 : i32
    %c0_i32_1 = arith.constant 0 : i32
    return %arg0, %c0_i32, %c0_i32_0 : i32, i32, i32
  }
  func.func @transform_17(%arg0: i32) -> (i32, i32, i32) {
    %c0_i32 = arith.constant 0 : i32
    %c0_i32_0 = arith.constant 0 : i32
    %c0_i32_1 = arith.constant 0 : i32
    return %arg0, %c0_i32, %c0_i32_0 : i32, i32, i32
  }
  func.func @transform_18(%arg0: i32) -> (i32, i32, i32) {
    %c0_i32 = arith.constant 0 : i32
    %c0_i32_0 = arith.constant 0 : i32
    %c0_i32_1 = arith.constant 0 : i32
    return %arg0, %c0_i32, %c0_i32_0 : i32, i32, i32
  }
  func.func @transform_19(%arg0: i32) -> (i32, i32, i32) {
    %c0_i32 = arith.constant 0 : i32
    %c0_i32_0 = arith.constant 0 : i32
    %c0_i32_1 = arith.constant 0 : i32
    return %arg0, %c0_i32, %c0_i32_0 : i32, i32, i32
  }
  func.func @transform_20(%arg0: i32) -> (i32, i32, i32) {
    %c0_i32 = arith.constant 0 : i32
    %c0_i32_0 = arith.constant 0 : i32
    %c0_i32_1 = arith.constant 0 : i32
    return %arg0, %c0_i32, %c0_i32_0 : i32, i32, i32
  }
}

</mosaic_0001>

<llo_original>
// kernel: tpu_custom_call.1
$region0: #{tpu_custom_call.1}
  #allocation0 [shape = 'u32[]', space=smem, size = 0x4, offset = 0x4, fixed_abs, tag = 'smem constant byte address 0x4 - core index']
  #allocation1 [shape = 'u32[144,128]{1,0:T(1,128)}', space=vmem, size = 0x12000, scoped, tag = 'internal scratch']
  #allocation2 [shape = 'f32[16,64]{1,0:T(8,128)}', space=vmem, size = 0x2000, scoped, tag = 'scratch operand']
  %s0 = inlined_call_operand.vmem [shape: f32[16,16], index: 0, kind: input, shape index: {}]
  %s1 = inlined_call_operand.vmem [shape: f32[2,16,32], index: 1, kind: input, shape index: {}]
  %s2 = inlined_call_operand.vmem [shape: f32[2,1,32], index: 2, kind: input, shape index: {}]
  %s3 = inlined_call_operand.vmem [shape: f32[32,32], index: 3, kind: input, shape index: {}]
  %s4 = inlined_call_operand.vmem [shape: f32[8,16], index: 4, kind: input, shape index: {}]
  %s5 = inlined_call_operand.hbm [shape: f32[1,16], index: 5, kind: input, shape index: {}]
  %s6 = inlined_call_operand.vmem [shape: f32[16,16], index: 6, kind: input, shape index: {}]
  %s7 = inlined_call_operand.hbm [shape: f32[1,16], index: 7, kind: input, shape index: {}]
  %s8 = inlined_call_operand.hbm [shape: f32[1,8], index: 8, kind: input, shape index: {}]
  %s9 = inlined_call_operand.vmem [shape: f32[8,32], index: 9, kind: input, shape index: {}]
  %s10 = inlined_call_operand.vmem [shape: f32[1,32], index: 10, kind: input, shape index: {}]
  %s11 = inlined_call_operand.vmem [shape: f32[24,16], index: 11, kind: input, shape index: {}]
  %s12 = inlined_call_operand.vmem [shape: f32[1,16], index: 12, kind: input, shape index: {}]
  %s13 = inlined_call_operand.vmem [shape: f32[8,8], index: 13, kind: input, shape index: {}]
  %s14 = inlined_call_operand.vmem [shape: f32[1,8], index: 14, kind: input, shape index: {}]
  %s15 = inlined_call_operand.vmem [shape: f32[2,8,24], index: 15, kind: input, shape index: {}]
  %s16 = inlined_call_operand.vmem [shape: f32[2,1,24], index: 16, kind: input, shape index: {}]
  %s17 = inlined_call_operand.vmem [shape: f32[2,24,20], index: 17, kind: input, shape index: {}]
  %s18 = inlined_call_operand.vmem [shape: f32[2,1,20], index: 18, kind: input, shape index: {}]
  %s19 = inlined_call_operand.vmem [shape: f32[2,16,8], index: 19, kind: input, shape index: {}]
  %s20 = inlined_call_operand.hbm [shape: f32[2,16,128], index: 20, kind: output, shape index: {}]
  %s21 = sld [smem:[#allocation0]]
  $region102: #{tpu_custom_call.1} parent=0
    _
  %s23 = ssub.s32 1, %s21
  %s24 = scalar_select 0, %s23, %s21
  $region1: #{tpu_custom_call.1} parent=0
    #allocation3 [shape = 'u8[512]{0}', space=vmem, size = 0x400, scoped, tag = 'input window, operand 5, single buffered']
    #allocation4 [shape = 's32[1]{0}', space=sflag, size = 0x4, scoped, tag = 'scoped memory for tpu_custom_call.1']
    #allocation5 [shape = 's32[1]{0}', space=sflag, size = 0x4, scoped, tag = 'scoped memory for tpu_custom_call.1']
    #allocation6 [shape = 'u8[512]{0}', space=vmem, size = 0x400, scoped, tag = 'input window, operand 7, single buffered']
    #allocation7 [shape = 's32[1]{0}', space=sflag, size = 0x4, scoped, tag = 'scoped memory for tpu_custom_call.1']
    #allocation8 [shape = 'u8[512]{0}', space=vmem, size = 0x400, scoped, tag = 'input window, operand 8, single buffered']
    #allocation9 [shape = 'u8[16384]{0}', space=vmem, size = 0x4000, scoped, tag = 'output window, operand 0, single buffered']
    %25 = vsyncpa [#allocation4], 0
    %26 = vsyncpa [#allocation7], 0
    %27 = vsyncpa [#allocation5], 0
    // Predicated region
    $region2: #{tpu_custom_call.1} parent=1 // pred_check
      _
    $region3: #{tpu_custom_call.1} parent=1 // pred_check_branch
      %29 = sbr.rel (0) target = $region5
    $region4: #{tpu_custom_call.1} parent=1 // pred_region
      _
    $region5: #{tpu_custom_call.1} parent=1 // pred_fallthru
      _
    // Predicated region
    $region6: #{tpu_custom_call.1} parent=1 // pred_check
      _
    $region7: #{tpu_custom_call.1} parent=1 // pred_check_branch
      %31 = sbr.rel (0) target = $region9
    $region8: #{tpu_custom_call.1} parent=1 // pred_region
      _
    $region9: #{tpu_custom_call.1} parent=1 // pred_fallthru
      _
    // Predicated region
    $region10: #{tpu_custom_call.1} parent=1 // pred_check
      _
    $region11: #{tpu_custom_call.1} parent=1 // pred_check_branch
      %33 = sbr.rel (0) target = $region13
    $region12: #{tpu_custom_call.1} parent=1 // pred_region
      _
    $region13: #{tpu_custom_call.1} parent=1 // pred_fallthru
      _
    // Predicated region
    $region14: #{tpu_custom_call.1} parent=1 // pred_check
      _
    $region15: #{tpu_custom_call.1} parent=1 // pred_check_branch
      %35 = sbr.rel (0) target = $region17
    $region16: #{tpu_custom_call.1} parent=1 // pred_region
      _
    $region17: #{tpu_custom_call.1} parent=1 // pred_fallthru
      _
    // Predicated region
    $region18: #{tpu_custom_call.1} parent=1 // pred_check
      _
    $region19: #{tpu_custom_call.1} parent=1 // pred_check_branch
      %37 = sbr.rel (0) target = $region21
    $region20: #{tpu_custom_call.1} parent=1 // pred_region
      _
    $region21: #{tpu_custom_call.1} parent=1 // pred_fallthru
      _
    // Predicated region
    $region22: #{tpu_custom_call.1} parent=1 // pred_check
      _
    $region23: #{tpu_custom_call.1} parent=1 // pred_check_branch
      %39 = sbr.rel (0) target = $region25
    $region24: #{tpu_custom_call.1} parent=1 // pred_region
      %s41 = ssub.s32 16, 16
      %42 = vsyncadd [#allocation4], %s41
      %s44 = sshll.u32 [#allocation3], 4
      %s45 = int_to_ptr.vmem [resolvable:$true] %s44
      %47 = dma.hbm_to_vmem [thread:$0]  %s5, 16, %s45, [#allocation4]
    $region25: #{tpu_custom_call.1} parent=1 // pred_fallthru
      _
    // Predicated region
    $region26: #{tpu_custom_call.1} parent=1 // pred_check
      _
    $region27: #{tpu_custom_call.1} parent=1 // pred_check_branch
      %49 = sbr.rel (0) target = $region29
    $region28: #{tpu_custom_call.1} parent=1 // pred_region
      _
    $region29: #{tpu_custom_call.1} parent=1 // pred_fallthru
      _
    // Predicated region
    $region30: #{tpu_custom_call.1} parent=1 // pred_check
      _
    $region31: #{tpu_custom_call.1} parent=1 // pred_check_branch
      %51 = sbr.rel (0) target = $region33
    $region32: #{tpu_custom_call.1} parent=1 // pred_region
      %s53 = ssub.s32 16, 16
      %54 = vsyncadd [#allocation7], %s53
      %s56 = sshll.u32 [#allocation6], 4
      %s57 = int_to_ptr.vmem [resolvable:$true] %s56
      %59 = dma.hbm_to_vmem [thread:$0]  %s7, 16, %s57, [#allocation7]
    $region33: #{tpu_custom_call.1} parent=1 // pred_fallthru
      _
    // Predicated region
    $region34: #{tpu_custom_call.1} parent=1 // pred_check
      _
    $region35: #{tpu_custom_call.1} parent=1 // pred_check_branch
      %61 = sbr.rel (0) target = $region37
    $region36: #{tpu_custom_call.1} parent=1 // pred_region
      %s63 = ssub.s32 16, 16
      %64 = vsyncadd [#allocation7], %s63
      %s66 = sshll.u32 [#allocation8], 4
      %s67 = int_to_ptr.vmem [resolvable:$true] %s66
      %69 = dma.hbm_to_vmem [thread:$0]  %s8, 16, %s67, [#allocation7]
    $region37: #{tpu_custom_call.1} parent=1 // pred_fallthru
      _
    // Predicated region
    $region38: #{tpu_custom_call.1} parent=1 // pred_check
      _
    $region39: #{tpu_custom_call.1} parent=1 // pred_check_branch
      %71 = sbr.rel (0) target = $region41
    $region40: #{tpu_custom_call.1} parent=1 // pred_region
      _
    $region41: #{tpu_custom_call.1} parent=1 // pred_fallthru
      _
    // Predicated region
    $region42: #{tpu_custom_call.1} parent=1 // pred_check
      _
    $region43: #{tpu_custom_call.1} parent=1 // pred_check_branch
      %73 = sbr.rel (0) target = $region45
    $region44: #{tpu_custom_call.1} parent=1 // pred_region
      _
    $region45: #{tpu_custom_call.1} parent=1 // pred_fallthru
      _
    // Predicated region
    $region46: #{tpu_custom_call.1} parent=1 // pred_check
      _
    $region47: #{tpu_custom_call.1} parent=1 // pred_check_branch
      %75 = sbr.rel (0) target = $region49
    $region48: #{tpu_custom_call.1} parent=1 // pred_region
      _
    $region49: #{tpu_custom_call.1} parent=1 // pred_fallthru
      _
    // Predicated region
    $region50: #{tpu_custom_call.1} parent=1 // pred_check
      _
    $region51: #{tpu_custom_call.1} parent=1 // pred_check_branch
      %77 = sbr.rel (0) target = $region53
    $region52: #{tpu_custom_call.1} parent=1 // pred_region
      _
    $region53: #{tpu_custom_call.1} parent=1 // pred_fallthru
      _
    // Predicated region
    $region54: #{tpu_custom_call.1} parent=1 // pred_check
      _
    $region55: #{tpu_custom_call.1} parent=1 // pred_check_branch
      %79 = sbr.rel (0) target = $region57
    $region56: #{tpu_custom_call.1} parent=1 // pred_region
      _
    $region57: #{tpu_custom_call.1} parent=1 // pred_fallthru
      _
    // Predicated region
    $region58: #{tpu_custom_call.1} parent=1 // pred_check
      _
    $region59: #{tpu_custom_call.1} parent=1 // pred_check_branch
      %81 = sbr.rel (0) target = $region61
    $region60: #{tpu_custom_call.1} parent=1 // pred_region
      _
    $region61: #{tpu_custom_call.1} parent=1 // pred_fallthru
      _
    // Predicated region
    $region62: #{tpu_custom_call.1} parent=1 // pred_check
      _
    $region63: #{tpu_custom_call.1} parent=1 // pred_check_branch
      %83 = sbr.rel (0) target = $region65
    $region64: #{tpu_custom_call.1} parent=1 // pred_region
      _
    $region65: #{tpu_custom_call.1} parent=1 // pred_fallthru
      _
    // Predicated region
    $region66: #{tpu_custom_call.1} parent=1 // pred_check
      _
    $region67: #{tpu_custom_call.1} parent=1 // pred_check_branch
      %85 = sbr.rel (0) target = $region69
    $region68: #{tpu_custom_call.1} parent=1 // pred_region
      _
    $region69: #{tpu_custom_call.1} parent=1 // pred_fallthru
      _
    // Predicated region
    $region70: #{tpu_custom_call.1} parent=1 // pred_check
      _
    $region71: #{tpu_custom_call.1} parent=1 // pred_check_branch
      %87 = sbr.rel (0) target = $region73
    $region72: #{tpu_custom_call.1} parent=1 // pred_region
      _
    $region73: #{tpu_custom_call.1} parent=1 // pred_fallthru
      _
    // Predicated region
    $region74: #{tpu_custom_call.1} parent=1 // pred_check
      _
    $region75: #{tpu_custom_call.1} parent=1 // pred_check_branch
      %89 = sbr.rel (0) target = $region77
    $region76: #{tpu_custom_call.1} parent=1 // pred_region
      _
    $region77: #{tpu_custom_call.1} parent=1 // pred_fallthru
      _
    // Predicated region
    $region78: #{tpu_custom_call.1} parent=1 // pred_check
      _
    $region79: #{tpu_custom_call.1} parent=1 // pred_check_branch
      %91 = sbr.rel (0) target = $region81
    $region80: #{tpu_custom_call.1} parent=1 // pred_region
      _
    $region81: #{tpu_custom_call.1} parent=1 // pred_fallthru
      _
    // Predicated region
    $region82: #{tpu_custom_call.1} parent=1 // pred_check
      _
    $region83: #{tpu_custom_call.1} parent=1 // pred_check_branch
      %93 = sbr.rel (0) target = $region85
    $region84: #{tpu_custom_call.1} parent=1 // pred_region
      %94 = dma.done [#allocation4], 16
    $region85: #{tpu_custom_call.1} parent=1 // pred_fallthru
      _
    // Predicated region
    $region86: #{tpu_custom_call.1} parent=1 // pred_check
      _
    $region87: #{tpu_custom_call.1} parent=1 // pred_check_branch
      %96 = sbr.rel (0) target = $region89
    $region88: #{tpu_custom_call.1} parent=1 // pred_region
      %97 = dma.done [#allocation7], 16
    $region89: #{tpu_custom_call.1} parent=1 // pred_fallthru
      _
    // Predicated region
    $region90: #{tpu_custom_call.1} parent=1 // pred_check
      _
    $region91: #{tpu_custom_call.1} parent=1 // pred_check_branch
      %99 = sbr.rel (0) target = $region93
    $region92: #{tpu_custom_call.1} parent=1 // pred_region
      %100 = dma.done [#allocation7], 16
    $region93: #{tpu_custom_call.1} parent=1 // pred_fallthru
      _
    %v101 = vld [vmem:[%s0] sm:$0xff]
    %v102 = vld [vmem:[%s0 + $0x8] sm:$0xff]
    %v103 = vld [vmem:[%s3] sm:$0xff]
    %v104 = vld [vmem:[%s3 + $0x8] sm:$0xff]
    %v105 = vld [vmem:[%s3 + $0x10] sm:$0xff]
    %v106 = vld [vmem:[%s3 + $0x18] sm:$0xff]
    %v107 = vld [vmem:[%s4] sm:$0xff]
    %v108 = vld [vmem:[#allocation3] sm:$0x1]
    %v109 = vld [vmem:[%s6] sm:$0xff]
    %v110 = vld [vmem:[%s6 + $0x8] sm:$0xff]
    %v111 = vld [vmem:[#allocation6] sm:$0x1]
    %v112 = vld [vmem:[#allocation8] sm:$0x1]
    %v114 = vlaneseq
    %v115 = vshrl.u32 %v114, 7
    %v116 = vsub.s32 0, %v115
    %v117 = vrot.slane %v112, %v116
    %v118 = vld [vmem:[%s1] sm:$0xff]
    %v119 = vld [vmem:[%s1 + $0x8] sm:$0xff]
    %v120 = vld [vmem:[%s2] sm:$0x1]
    %v122 = vlaneseq
    %v123 = vshrl.u32 %v122, 7
    %v124 = vsub.s32 0, %v123
    %v125 = vrot.slane %v120, %v124
    %vm127 = vcmask 130048
    %v129 = vsel %vm127, %v101, 0
    %v132 = vsel %vm127, %v102, 0
    %134 = vmatprep.subr.mxu0 0.0
    %135 = vmatpush1.msra.mxu0 %v118
    %136 = vmatprep.subr.mxu0 0.0
    %137 = vmatpush1.msra.mxu0 %v119
    %138 = vmatprep.subr.mxu0 0.0
    %139 = vmatpush1.msra.mxu0 0.0
    %140 = vmatprep.subr.mxu0 0.0
    %141 = vmatpush1.msra.mxu0 0.0
    %142 = vmatprep.subr.mxu0 0.0
    %143 = vmatpush1.msra.mxu0 0.0
    %144 = vmatprep.subr.mxu0 0.0
    %145 = vmatpush1.msra.mxu0 0.0
    %146 = vmatprep.subr.mxu0 0.0
    %147 = vmatpush1.msra.mxu0 0.0
    %148 = vmatprep.subr.mxu0 0.0
    %149 = vmatpush1.msra.mxu0 0.0
    %150 = vmatprep.subr.mxu0 0.0
    %151 = vmatpush1.msra.mxu0 0.0
    %152 = vmatprep.subr.mxu0 0.0
    %153 = vmatpush1.msra.mxu0 0.0
    %154 = vmatprep.subr.mxu0 0.0
    %155 = vmatpush1.msra.mxu0 0.0
    %156 = vmatprep.subr.mxu0 0.0
    %157 = vmatpush1.msra.mxu0 0.0
    %158 = vmatprep.subr.mxu0 0.0
    %159 = vmatpush1.msra.mxu0 0.0
    %160 = vmatprep.subr.mxu0 0.0
    %161 = vmatpush1.msra.mxu0 0.0
    %162 = vmatprep.subr.mxu0 0.0
    %163 = vmatpush1.msra.mxu0 0.0
    %164 = vmatprep.subr.mxu0 0.0
    %165 = vmatpush1.msra.mxu0 0.0
    %166 = vmatprep.subr.mxu0 0.0
    %167 = vmatpush1.msra.mxu0 0.0
    %168 = vmatprep.subr.mxu0 0.0
    %169 = vmatpush1.msra.mxu0 0.0
    %170 = vmatprep.subr.mxu0 0.0
    %171 = vmatpush1.msra.mxu0 0.0
    %172 = vmatprep.subr.mxu0 0.0
    %173 = vmatpush1.msra.mxu0 0.0
    %174 = vmatprep.subr.mxu0 0.0
    %175 = vmatpush1.msra.mxu0 0.0
    %176 = vmatprep.subr.mxu0 0.0
    %177 = vmatpush1.msra.mxu0 0.0
    %178 = vmatprep.subr.mxu0 0.0
    %179 = vmatpush1.msra.mxu0 0.0
    %180 = vmatprep.subr.mxu0 0.0
    %181 = vmatpush1.msra.mxu0 0.0
    %182 = vmatprep.subr.mxu0 0.0
    %183 = vmatpush1.msra.mxu0 0.0
    %184 = vmatprep.subr.mxu0 0.0
    %185 = vmatpush1.msra.mxu0 0.0
    %186 = vmatprep.subr.mxu0 0.0
    %187 = vmatpush1.msra.mxu0 0.0
    %188 = vmatprep.subr.mxu0 0.0
    %189 = vmatpush1.msra.mxu0 0.0
    %190 = vmatprep.subr.mxu0 0.0
    %191 = vmatpush1.msra.mxu0 0.0
    %192 = vmatprep.subr.mxu0 0.0
    %193 = vmatpush1.msra.mxu0 0.0
    %194 = vmatprep.subr.mxu0 0.0
    %195 = vmatpush1.msra.mxu0 0.0
    %196 = vmatprep.subr.mxu0 0.0
    %197 = vmatpush1.msra.mxu0 0.0
    %198 = vmatprep.mubr.f32.mxu0 0.0
    %199 = vmatmul.mubr.f32.gmra.mrb[0].mxu0 %v129
    %v200 = vpop.f32.mrb[0].mxu0
    %v201 = vadd.f32 %v125, %v200
    %v202 = vpop.f32.mrb[0].mxu0
    %203 = vmatprep.mubr.f32.mxu0 0.0
    %204 = vmatmul.mubr.f32.gmra.mrb[0].mxu0 %v132
    %v205 = vpop.f32.mrb[0].mxu0
    %v206 = vadd.f32 %v125, %v205
    %v207 = vpop.f32.mrb[0].mxu0
    %208 = vdwg.mxu0
    %v210 = vrot.slane %v206, 6
    %v212 = vsel %vm127, %v201, %v210
    %v213 = vrot.slane %v206, 2
    %v215 = vsel %vm127, %v201, %v213
    %v217 = vrot.slane %v201, 6
    %v219 = vsel %vm127, %v206, %v217
    %v220 = vrot.slane %v201, 2
    %v222 = vsel %vm127, %v206, %v220
    %vm223 = vcmask 261120
    %v225 = vsel %vm223, 0.0, 0
    %227 = vmatprep.subr.mxu0 0.0
    %228 = vmatpush1.msra.mxu0 %v103
    %229 = vmatprep.subr.mxu0 0.0
    %230 = vmatpush1.msra.mxu0 %v104
    %231 = vmatprep.subr.mxu0 0.0
    %232 = vmatpush1.msra.mxu0 %v105
    %233 = vmatprep.subr.mxu0 0.0
    %234 = vmatpush1.msra.mxu0 %v106
    %235 = vmatprep.subr.mxu0 0.0
    %236 = vmatpush1.msra.mxu0 0.0
    %237 = vmatprep.subr.mxu0 0.0
    %238 = vmatpush1.msra.mxu0 0.0
    %239 = vmatprep.subr.mxu0 0.0
    %240 = vmatpush1.msra.mxu0 0.0
    %241 = vmatprep.subr.mxu0 0.0
    %242 = vmatpush1.msra.mxu0 0.0
    %243 = vmatprep.subr.mxu0 0.0
    %244 = vmatpush1.msra.mxu0 0.0
    %245 = vmatprep.subr.mxu0 0.0
    %246 = vmatpush1.msra.mxu0 0.0
    %247 = vmatprep.subr.mxu0 0.0
    %248 = vmatpush1.msra.mxu0 0.0
    %249 = vmatprep.subr.mxu0 0.0
    %250 = vmatpush1.msra.mxu0 0.0
    %251 = vmatprep.subr.mxu0 0.0
    %252 = vmatpush1.msra.mxu0 0.0
    %253 = vmatprep.subr.mxu0 0.0
    %254 = vmatpush1.msra.mxu0 0.0
    %255 = vmatprep.subr.mxu0 0.0
    %256 = vmatpush1.msra.mxu0 0.0
    %257 = vmatprep.subr.mxu0 0.0
    %258 = vmatpush1.msra.mxu0 0.0
    %259 = vmatprep.subr.mxu0 0.0
    %260 = vmatpush1.msra.mxu0 0.0
    %261 = vmatprep.subr.mxu0 0.0
    %262 = vmatpush1.msra.mxu0 0.0
    %263 = vmatprep.subr.mxu0 0.0
    %264 = vmatpush1.msra.mxu0 0.0
    %265 = vmatprep.subr.mxu0 0.0
    %266 = vmatpush1.msra.mxu0 0.0
    %267 = vmatprep.subr.mxu0 0.0
    %268 = vmatpush1.msra.mxu0 0.0
    %269 = vmatprep.subr.mxu0 0.0
    %270 = vmatpush1.msra.mxu0 0.0
    %271 = vmatprep.subr.mxu0 0.0
    %272 = vmatpush1.msra.mxu0 0.0
    %273 = vmatprep.subr.mxu0 0.0
    %274 = vmatpush1.msra.mxu0 0.0
    %275 = vmatprep.subr.mxu0 0.0
    %276 = vmatpush1.msra.mxu0 0.0
    %277 = vmatprep.subr.mxu0 0.0
    %278 = vmatpush1.msra.mxu0 0.0
    %279 = vmatprep.subr.mxu0 0.0
    %280 = vmatpush1.msra.mxu0 0.0
    %281 = vmatprep.subr.mxu0 0.0
    %282 = vmatpush1.msra.mxu0 0.0
    %283 = vmatprep.subr.mxu0 0.0
    %284 = vmatpush1.msra.mxu0 0.0
    %285 = vmatprep.subr.mxu0 0.0
    %286 = vmatpush1.msra.mxu0 0.0
    %287 = vmatprep.subr.mxu0 0.0
    %288 = vmatpush1.msra.mxu0 0.0
    %289 = vmatprep.subr.mxu0 0.0
    %290 = vmatpush1.msra.mxu0 0.0
    %291 = vmatprep.mubr.f32.mxu0 0.0
    %292 = vmatmul.mubr.f32.gmra.mrb[0].mxu0 %v225
    %v293 = vpop.f32.mrb[0].mxu0
    %v294 = vadd.f32 0.0, %v293
    %v295 = vpop.f32.mrb[0].mxu0
    %296 = vdwg.mxu0
    %v297 = vadd.f32 %v212, %v294
    %v298 = vtanh.pop %v297
    %v300 = vsel %vm223, %v298, 0
    %302 = vmatprep.subr.mxu0 0.0
    %303 = vmatpush1.msra.mxu0 %v103
    %304 = vmatprep.subr.mxu0 0.0
    %305 = vmatpush1.msra.mxu0 %v104
    %306 = vmatprep.subr.mxu0 0.0
    %307 = vmatpush1.msra.mxu0 %v105
    %308 = vmatprep.subr.mxu0 0.0
    %309 = vmatpush1.msra.mxu0 %v106
    %310 = vmatprep.subr.mxu0 0.0
    %311 = vmatpush1.msra.mxu0 0.0
    %312 = vmatprep.subr.mxu0 0.0
    %313 = vmatpush1.msra.mxu0 0.0
    %314 = vmatprep.subr.mxu0 0.0
    %315 = vmatpush1.msra.mxu0 0.0
    %316 = vmatprep.subr.mxu0 0.0
    %317 = vmatpush1.msra.mxu0 0.0
    %318 = vmatprep.subr.mxu0 0.0
    %319 = vmatpush1.msra.mxu0 0.0
    %320 = vmatprep.subr.mxu0 0.0
    %321 = vmatpush1.msra.mxu0 0.0
    %322 = vmatprep.subr.mxu0 0.0
    %323 = vmatpush1.msra.mxu0 0.0
    %324 = vmatprep.subr.mxu0 0.0
    %325 = vmatpush1.msra.mxu0 0.0
    %326 = vmatprep.subr.mxu0 0.0
    %327 = vmatpush1.msra.mxu0 0.0
    %328 = vmatprep.subr.mxu0 0.0
    %329 = vmatpush1.msra.mxu0 0.0
    %330 = vmatprep.subr.mxu0 0.0
    %331 = vmatpush1.msra.mxu0 0.0
    %332 = vmatprep.subr.mxu0 0.0
    %333 = vmatpush1.msra.mxu0 0.0
    %334 = vmatprep.subr.mxu0 0.0
    %335 = vmatpush1.msra.mxu0 0.0
    %336 = vmatprep.subr.mxu0 0.0
    %337 = vmatpush1.msra.mxu0 0.0
    %338 = vmatprep.subr.mxu0 0.0
    %339 = vmatpush1.msra.mxu0 0.0
    %340 = vmatprep.subr.mxu0 0.0
    %341 = vmatpush1.msra.mxu0 0.0
    %342 = vmatprep.subr.mxu0 0.0
    %343 = vmatpush1.msra.mxu0 0.0
    %344 = vmatprep.subr.mxu0 0.0
    %345 = vmatpush1.msra.mxu0 0.0
    %346 = vmatprep.subr.mxu0 0.0
    %347 = vmatpush1.msra.mxu0 0.0
    %348 = vmatprep.subr.mxu0 0.0
    %349 = vmatpush1.msra.mxu0 0.0
    %350 = vmatprep.subr.mxu0 0.0
    %351 = vmatpush1.msra.mxu0 0.0
    %352 = vmatprep.subr.mxu0 0.0
    %353 = vmatpush1.msra.mxu0 0.0
    %354 = vmatprep.subr.mxu0 0.0
    %355 = vmatpush1.msra.mxu0 0.0
    %356 = vmatprep.subr.mxu0 0.0
    %357 = vmatpush1.msra.mxu0 0.0
    %358 = vmatprep.subr.mxu0 0.0
    %359 = vmatpush1.msra.mxu0 0.0
    %360 = vmatprep.subr.mxu0 0.0
    %361 = vmatpush1.msra.mxu0 0.0
    %362 = vmatprep.subr.mxu0 0.0
    %363 = vmatpush1.msra.mxu0 0.0
    %364 = vmatprep.subr.mxu0 0.0
    %365 = vmatpush1.msra.mxu0 0.0
    %366 = vmatprep.mubr.f32.mxu0 0.0
    %367 = vmatmul.mubr.f32.gmra.mrb[0].mxu0 %v300
    %v368 = vpop.f32.mrb[0].mxu0
    %v369 = vadd.f32 0.0, %v368
    %v370 = vpop.f32.mrb[0].mxu0
    %371 = vdwg.mxu0
    %v373 = vrot.slane %v369, 6
    %v375 = vadd.f32 %v215, %v373
    %v376 = vtanh.pop %v375
    %v378 = vrot.slane %v376, 2
    %v379 = vsel %vm223, %v378, 0
    %381 = vmatprep.subr.mxu0 0.0
    %382 = vmatpush1.msra.mxu0 %v103
    %383 = vmatprep.subr.mxu0 0.0
    %384 = vmatpush1.msra.mxu0 %v104
    %385 = vmatprep.subr.mxu0 0.0
    %386 = vmatpush1.msra.mxu0 %v105
    %387 = vmatprep.subr.mxu0 0.0
    %388 = vmatpush1.msra.mxu0 %v106
    %389 = vmatprep.subr.mxu0 0.0
    %390 = vmatpush1.msra.mxu0 0.0
    %391 = vmatprep.subr.mxu0 0.0
    %392 = vmatpush1.msra.mxu0 0.0
    %393 = vmatprep.subr.mxu0 0.0
    %394 = vmatpush1.msra.mxu0 0.0
    %395 = vmatprep.subr.mxu0 0.0
    %396 = vmatpush1.msra.mxu0 0.0
    %397 = vmatprep.subr.mxu0 0.0
    %398 = vmatpush1.msra.mxu0 0.0
    %399 = vmatprep.subr.mxu0 0.0
    %400 = vmatpush1.msra.mxu0 0.0
    %401 = vmatprep.subr.mxu0 0.0
    %402 = vmatpush1.msra.mxu0 0.0
    %403 = vmatprep.subr.mxu0 0.0
    %404 = vmatpush1.msra.mxu0 0.0
    %405 = vmatprep.subr.mxu0 0.0
    %406 = vmatpush1.msra.mxu0 0.0
    %407 = vmatprep.subr.mxu0 0.0
    %408 = vmatpush1.msra.mxu0 0.0
    %409 = vmatprep.subr.mxu0 0.0
    %410 = vmatpush1.msra.mxu0 0.0
    %411 = vmatprep.subr.mxu0 0.0
    %412 = vmatpush1.msra.mxu0 0.0
    %413 = vmatprep.subr.mxu0 0.0
    %414 = vmatpush1.msra.mxu0 0.0
    %415 = vmatprep.subr.mxu0 0.0
    %416 = vmatpush1.msra.mxu0 0.0
    %417 = vmatprep.subr.mxu0 0.0
    %418 = vmatpush1.msra.mxu0 0.0
    %419 = vmatprep.subr.mxu0 0.0
    %420 = vmatpush1.msra.mxu0 0.0
    %421 = vmatprep.subr.mxu0 0.0
    %422 = vmatpush1.msra.mxu0 0.0
    %423 = vmatprep.subr.mxu0 0.0
    %424 = vmatpush1.msra.mxu0 0.0
    %425 = vmatprep.subr.mxu0 0.0
    %426 = vmatpush1.msra.mxu0 0.0
    %427 = vmatprep.subr.mxu0 0.0
    %428 = vmatpush1.msra.mxu0 0.0
    %429 = vmatprep.subr.mxu0 0.0
    %430 = vmatpush1.msra.mxu0 0.0
    %431 = vmatprep.subr.mxu0 0.0
    %432 = vmatpush1.msra.mxu0 0.0
    %433 = vmatprep.subr.mxu0 0.0
    %434 = vmatpush1.msra.mxu0 0.0
    %435 = vmatprep.subr.mxu0 0.0
    %436 = vmatpush1.msra.mxu0 0.0
    %437 = vmatprep.subr.mxu0 0.0
    %438 = vmatpush1.msra.mxu0 0.0
    %439 = vmatprep.subr.mxu0 0.0
    %440 = vmatpush1.msra.mxu0 0.0
    %441 = vmatprep.subr.mxu0 0.0
    %442 = vmatpush1.msra.mxu0 0.0
    %443 = vmatprep.subr.mxu0 0.0
    %444 = vmatpush1.msra.mxu0 0.0
    %445 = vmatprep.mubr.f32.mxu0 0.0
    %446 = vmatmul.mubr.f32.gmra.mrb[0].mxu0 %v379
    %v447 = vpop.f32.mrb[0].mxu0
    %v448 = vadd.f32 0.0, %v447
    %v449 = vpop.f32.mrb[0].mxu0
    %450 = vdwg.mxu0
    %v452 = vrot.slane %v448, 4
    %v454 = vadd.f32 %v212, %v452
    %v455 = vtanh.pop %v454
    %v457 = vrot.slane %v455, 4
    %v458 = vsel %vm223, %v457, 0
    %460 = vmatprep.subr.mxu0 0.0
    %461 = vmatpush1.msra.mxu0 %v103
    %462 = vmatprep.subr.mxu0 0.0
    %463 = vmatpush1.msra.mxu0 %v104
    %464 = vmatprep.subr.mxu0 0.0
    %465 = vmatpush1.msra.mxu0 %v105
    %466 = vmatprep.subr.mxu0 0.0
    %467 = vmatpush1.msra.mxu0 %v106
    %468 = vmatprep.subr.mxu0 0.0
    %469 = vmatpush1.msra.mxu0 0.0
    %470 = vmatprep.subr.mxu0 0.0
    %471 = vmatpush1.msra.mxu0 0.0
    %472 = vmatprep.subr.mxu0 0.0
    %473 = vmatpush1.msra.mxu0 0.0
    %474 = vmatprep.subr.mxu0 0.0
    %475 = vmatpush1.msra.mxu0 0.0
    %476 = vmatprep.subr.mxu0 0.0
    %477 = vmatpush1.msra.mxu0 0.0
    %478 = vmatprep.subr.mxu0 0.0
    %479 = vmatpush1.msra.mxu0 0.0
    %480 = vmatprep.subr.mxu0 0.0
    %481 = vmatpush1.msra.mxu0 0.0
    %482 = vmatprep.subr.mxu0 0.0
    %483 = vmatpush1.msra.mxu0 0.0
    %484 = vmatprep.subr.mxu0 0.0
    %485 = vmatpush1.msra.mxu0 0.0
    %486 = vmatprep.subr.mxu0 0.0
    %487 = vmatpush1.msra.mxu0 0.0
    %488 = vmatprep.subr.mxu0 0.0
    %489 = vmatpush1.msra.mxu0 0.0
    %490 = vmatprep.subr.mxu0 0.0
    %491 = vmatpush1.msra.mxu0 0.0
    %492 = vmatprep.subr.mxu0 0.0
    %493 = vmatpush1.msra.mxu0 0.0
    %494 = vmatprep.subr.mxu0 0.0
    %495 = vmatpush1.msra.mxu0 0.0
    %496 = vmatprep.subr.mxu0 0.0
    %497 = vmatpush1.msra.mxu0 0.0
    %498 = vmatprep.subr.mxu0 0.0
    %499 = vmatpush1.msra.mxu0 0.0
    %500 = vmatprep.subr.mxu0 0.0
    %501 = vmatpush1.msra.mxu0 0.0
    %502 = vmatprep.subr.mxu0 0.0
    %503 = vmatpush1.msra.mxu0 0.0
    %504 = vmatprep.subr.mxu0 0.0
    %505 = vmatpush1.msra.mxu0 0.0
    %506 = vmatprep.subr.mxu0 0.0
    %507 = vmatpush1.msra.mxu0 0.0
    %508 = vmatprep.subr.mxu0 0.0
    %509 = vmatpush1.msra.mxu0 0.0
    %510 = vmatprep.subr.mxu0 0.0
    %511 = vmatpush1.msra.mxu0 0.0
    %512 = vmatprep.subr.mxu0 0.0
    %513 = vmatpush1.msra.mxu0 0.0
    %514 = vmatprep.subr.mxu0 0.0
    %515 = vmatpush1.msra.mxu0 0.0
    %516 = vmatprep.subr.mxu0 0.0
    %517 = vmatpush1.msra.mxu0 0.0
    %518 = vmatprep.subr.mxu0 0.0
    %519 = vmatpush1.msra.mxu0 0.0
    %520 = vmatprep.subr.mxu0 0.0
    %521 = vmatpush1.msra.mxu0 0.0
    %522 = vmatprep.subr.mxu0 0.0
    %523 = vmatpush1.msra.mxu0 0.0
    %524 = vmatprep.mubr.f32.mxu0 0.0
    %525 = vmatmul.mubr.f32.gmra.mrb[0].mxu0 %v458
    %v526 = vpop.f32.mrb[0].mxu0
    %v527 = vadd.f32 0.0, %v526
    %v528 = vpop.f32.mrb[0].mxu0
    %529 = vdwg.mxu0
    %v531 = vrot.slane %v527, 2
    %v533 = vadd.f32 %v215, %v531
    %v534 = vtanh.pop %v533
    %v536 = vrot.slane %v534, 6
    %v537 = vsel %vm223, %v536, 0
    %539 = vmatprep.subr.mxu0 0.0
    %540 = vmatpush1.msra.mxu0 %v103
    %541 = vmatprep.subr.mxu0 0.0
    %542 = vmatpush1.msra.mxu0 %v104
    %543 = vmatprep.subr.mxu0 0.0
    %544 = vmatpush1.msra.mxu0 %v105
    %545 = vmatprep.subr.mxu0 0.0
    %546 = vmatpush1.msra.mxu0 %v106
    %547 = vmatprep.subr.mxu0 0.0
    %548 = vmatpush1.msra.mxu0 0.0
    %549 = vmatprep.subr.mxu0 0.0
    %550 = vmatpush1.msra.mxu0 0.0
    %551 = vmatprep.subr.mxu0 0.0
    %552 = vmatpush1.msra.mxu0 0.0
    %553 = vmatprep.subr.mxu0 0.0
    %554 = vmatpush1.msra.mxu0 0.0
    %555 = vmatprep.subr.mxu0 0.0
    %556 = vmatpush1.msra.mxu0 0.0
    %557 = vmatprep.subr.mxu0 0.0
    %558 = vmatpush1.msra.mxu0 0.0
    %559 = vmatprep.subr.mxu0 0.0
    %560 = vmatpush1.msra.mxu0 0.0
    %561 = vmatprep.subr.mxu0 0.0
    %562 = vmatpush1.msra.mxu0 0.0
    %563 = vmatprep.subr.mxu0 0.0
    %564 = vmatpush1.msra.mxu0 0.0
    %565 = vmatprep.subr.mxu0 0.0
    %566 = vmatpush1.msra.mxu0 0.0
    %567 = vmatprep.subr.mxu0 0.0
    %568 = vmatpush1.msra.mxu0 0.0
    %569 = vmatprep.subr.mxu0 0.0
    %570 = vmatpush1.msra.mxu0 0.0
    %571 = vmatprep.subr.mxu0 0.0
    %572 = vmatpush1.msra.mxu0 0.0
    %573 = vmatprep.subr.mxu0 0.0
    %574 = vmatpush1.msra.mxu0 0.0
    %575 = vmatprep.subr.mxu0 0.0
    %576 = vmatpush1.msra.mxu0 0.0
    %577 = vmatprep.subr.mxu0 0.0
    %578 = vmatpush1.msra.mxu0 0.0
    %579 = vmatprep.subr.mxu0 0.0
    %580 = vmatpush1.msra.mxu0 0.0
    %581 = vmatprep.subr.mxu0 0.0
    %582 = vmatpush1.msra.mxu0 0.0
    %583 = vmatprep.subr.mxu0 0.0
    %584 = vmatpush1.msra.mxu0 0.0
    %585 = vmatprep.subr.mxu0 0.0
    %586 = vmatpush1.msra.mxu0 0.0
    %587 = vmatprep.subr.mxu0 0.0
    %588 = vmatpush1.msra.mxu0 0.0
    %589 = vmatprep.subr.mxu0 0.0
    %590 = vmatpush1.msra.mxu0 0.0
    %591 = vmatprep.subr.mxu0 0.0
    %592 = vmatpush1.msra.mxu0 0.0
    %593 = vmatprep.subr.mxu0 0.0
    %594 = vmatpush1.msra.mxu0 0.0
    %595 = vmatprep.subr.mxu0 0.0
    %596 = vmatpush1.msra.mxu0 0.0
    %597 = vmatprep.subr.mxu0 0.0
    %598 = vmatpush1.msra.mxu0 0.0
    %599 = vmatprep.subr.mxu0 0.0
    %600 = vmatpush1.msra.mxu0 0.0
    %601 = vmatprep.subr.mxu0 0.0
    %602 = vmatpush1.msra.mxu0 0.0
    %603 = vmatprep.mubr.f32.mxu0 0.0
    %604 = vmatmul.mubr.f32.gmra.mrb[0].mxu0 %v537
    %v605 = vpop.f32.mrb[0].mxu0
    %v606 = vadd.f32 0.0, %v605
    %v607 = vpop.f32.mrb[0].mxu0
    %608 = vdwg.mxu0
    %v609 = vadd.f32 %v219, %v606
    %v610 = vtanh.pop %v609
    %v612 = vsel %vm223, %v610, 0
    %614 = vmatprep.subr.mxu0 0.0
    %615 = vmatpush1.msra.mxu0 %v103
    %616 = vmatprep.subr.mxu0 0.0
    %617 = vmatpush1.msra.mxu0 %v104
    %618 = vmatprep.subr.mxu0 0.0
    %619 = vmatpush1.msra.mxu0 %v105
    %620 = vmatprep.subr.mxu0 0.0
    %621 = vmatpush1.msra.mxu0 %v106
    %622 = vmatprep.subr.mxu0 0.0
    %623 = vmatpush1.msra.mxu0 0.0
    %624 = vmatprep.subr.mxu0 0.0
    %625 = vmatpush1.msra.mxu0 0.0
    %626 = vmatprep.subr.mxu0 0.0
    %627 = vmatpush1.msra.mxu0 0.0
    %628 = vmatprep.subr.mxu0 0.0
    %629 = vmatpush1.msra.mxu0 0.0
    %630 = vmatprep.subr.mxu0 0.0
    %631 = vmatpush1.msra.mxu0 0.0
    %632 = vmatprep.subr.mxu0 0.0
    %633 = vmatpush1.msra.mxu0 0.0
    %634 = vmatprep.subr.mxu0 0.0
    %635 = vmatpush1.msra.mxu0 0.0
    %636 = vmatprep.subr.mxu0 0.0
    %637 = vmatpush1.msra.mxu0 0.0
    %638 = vmatprep.subr.mxu0 0.0
    %639 = vmatpush1.msra.mxu0 0.0
    %640 = vmatprep.subr.mxu0 0.0
    %641 = vmatpush1.msra.mxu0 0.0
    %642 = vmatprep.subr.mxu0 0.0
    %643 = vmatpush1.msra.mxu0 0.0
    %644 = vmatprep.subr.mxu0 0.0
    %645 = vmatpush1.msra.mxu0 0.0
    %646 = vmatprep.subr.mxu0 0.0
    %647 = vmatpush1.msra.mxu0 0.0
    %648 = vmatprep.subr.mxu0 0.0
    %649 = vmatpush1.msra.mxu0 0.0
    %650 = vmatprep.subr.mxu0 0.0
    %651 = vmatpush1.msra.mxu0 0.0
    %652 = vmatprep.subr.mxu0 0.0
    %653 = vmatpush1.msra.mxu0 0.0
    %654 = vmatprep.subr.mxu0 0.0
    %655 = vmatpush1.msra.mxu0 0.0
    %656 = vmatprep.subr.mxu0 0.0
    %657 = vmatpush1.msra.mxu0 0.0
    %658 = vmatprep.subr.mxu0 0.0
    %659 = vmatpush1.msra.mxu0 0.0
    %660 = vmatprep.subr.mxu0 0.0
    %661 = vmatpush1.msra.mxu0 0.0
    %662 = vmatprep.subr.mxu0 0.0
    %663 = vmatpush1.msra.mxu0 0.0
    %664 = vmatprep.subr.mxu0 0.0
    %665 = vmatpush1.msra.mxu0 0.0
    %666 = vmatprep.subr.mxu0 0.0
    %667 = vmatpush1.msra.mxu0 0.0
    %668 = vmatprep.subr.mxu0 0.0
    %669 = vmatpush1.msra.mxu0 0.0
    %670 = vmatprep.subr.mxu0 0.0
    %671 = vmatpush1.msra.mxu0 0.0
    %672 = vmatprep.subr.mxu0 0.0
    %673 = vmatpush1.msra.mxu0 0.0
    %674 = vmatprep.subr.mxu0 0.0
    %675 = vmatpush1.msra.mxu0 0.0
    %676 = vmatprep.subr.mxu0 0.0
    %677 = vmatpush1.msra.mxu0 0.0
    %678 = vmatprep.mubr.f32.mxu0 0.0
    %679 = vmatmul.mubr.f32.gmra.mrb[0].mxu0 %v612
    %v680 = vpop.f32.mrb[0].mxu0
    %v681 = vadd.f32 0.0, %v680
    %v682 = vpop.f32.mrb[0].mxu0
    %683 = vdwg.mxu0
    %v685 = vrot.slane %v681, 6
    %v687 = vadd.f32 %v222, %v685
    %v688 = vtanh.pop %v687
    %v690 = vrot.slane %v688, 2
    %v691 = vsel %vm223, %v690, 0
    %693 = vmatprep.subr.mxu0 0.0
    %694 = vmatpush1.msra.mxu0 %v103
    %695 = vmatprep.subr.mxu0 0.0
    %696 = vmatpush1.msra.mxu0 %v104
    %697 = vmatprep.subr.mxu0 0.0
    %698 = vmatpush1.msra.mxu0 %v105
    %699 = vmatprep.subr.mxu0 0.0
    %700 = vmatpush1.msra.mxu0 %v106
    %701 = vmatprep.subr.mxu0 0.0
    %702 = vmatpush1.msra.mxu0 0.0
    %703 = vmatprep.subr.mxu0 0.0
    %704 = vmatpush1.msra.mxu0 0.0
    %705 = vmatprep.subr.mxu0 0.0
    %706 = vmatpush1.msra.mxu0 0.0
    %707 = vmatprep.subr.mxu0 0.0
    %708 = vmatpush1.msra.mxu0 0.0
    %709 = vmatprep.subr.mxu0 0.0
    %710 = vmatpush1.msra.mxu0 0.0
    %711 = vmatprep.subr.mxu0 0.0
    %712 = vmatpush1.msra.mxu0 0.0
    %713 = vmatprep.subr.mxu0 0.0
    %714 = vmatpush1.msra.mxu0 0.0
    %715 = vmatprep.subr.mxu0 0.0
    %716 = vmatpush1.msra.mxu0 0.0
    %717 = vmatprep.subr.mxu0 0.0
    %718 = vmatpush1.msra.mxu0 0.0
    %719 = vmatprep.subr.mxu0 0.0
    %720 = vmatpush1.msra.mxu0 0.0
    %721 = vmatprep.subr.mxu0 0.0
    %722 = vmatpush1.msra.mxu0 0.0
    %723 = vmatprep.subr.mxu0 0.0
    %724 = vmatpush1.msra.mxu0 0.0
    %725 = vmatprep.subr.mxu0 0.0
    %726 = vmatpush1.msra.mxu0 0.0
    %727 = vmatprep.subr.mxu0 0.0
    %728 = vmatpush1.msra.mxu0 0.0
    %729 = vmatprep.subr.mxu0 0.0
    %730 = vmatpush1.msra.mxu0 0.0
    %731 = vmatprep.subr.mxu0 0.0
    %732 = vmatpush1.msra.mxu0 0.0
    %733 = vmatprep.subr.mxu0 0.0
    %734 = vmatpush1.msra.mxu0 0.0
    %735 = vmatprep.subr.mxu0 0.0
    %736 = vmatpush1.msra.mxu0 0.0
    %737 = vmatprep.subr.mxu0 0.0
    %738 = vmatpush1.msra.mxu0 0.0
    %739 = vmatprep.subr.mxu0 0.0
    %740 = vmatpush1.msra.mxu0 0.0
    %741 = vmatprep.subr.mxu0 0.0
    %742 = vmatpush1.msra.mxu0 0.0
    %743 = vmatprep.subr.mxu0 0.0
    %744 = vmatpush1.msra.mxu0 0.0
    %745 = vmatprep.subr.mxu0 0.0
    %746 = vmatpush1.msra.mxu0 0.0
    %747 = vmatprep.subr.mxu0 0.0
    %748 = vmatpush1.msra.mxu0 0.0
    %749 = vmatprep.subr.mxu0 0.0
    %750 = vmatpush1.msra.mxu0 0.0
    %751 = vmatprep.subr.mxu0 0.0
    %752 = vmatpush1.msra.mxu0 0.0
    %753 = vmatprep.subr.mxu0 0.0
    %754 = vmatpush1.msra.mxu0 0.0
    %755 = vmatprep.subr.mxu0 0.0
    %756 = vmatpush1.msra.mxu0 0.0
    %757 = vmatprep.mubr.f32.mxu0 0.0
    %758 = vmatmul.mubr.f32.gmra.mrb[0].mxu0 %v691
    %v759 = vpop.f32.mrb[0].mxu0
    %v760 = vadd.f32 0.0, %v759
    %v761 = vpop.f32.mrb[0].mxu0
    %762 = vdwg.mxu0
    %v764 = vrot.slane %v760, 4
    %v766 = vadd.f32 %v219, %v764
    %v767 = vtanh.pop %v766
    %v769 = vrot.slane %v767, 4
    %v770 = vsel %vm223, %v769, 0
    %772 = vmatprep.subr.mxu0 0.0
    %773 = vmatpush1.msra.mxu0 %v103
    %774 = vmatprep.subr.mxu0 0.0
    %775 = vmatpush1.msra.mxu0 %v104
    %776 = vmatprep.subr.mxu0 0.0
    %777 = vmatpush1.msra.mxu0 %v105
    %778 = vmatprep.subr.mxu0 0.0
    %779 = vmatpush1.msra.mxu0 %v106
    %780 = vmatprep.subr.mxu0 0.0
    %781 = vmatpush1.msra.mxu0 0.0
    %782 = vmatprep.subr.mxu0 0.0
    %783 = vmatpush1.msra.mxu0 0.0
    %784 = vmatprep.subr.mxu0 0.0
    %785 = vmatpush1.msra.mxu0 0.0
    %786 = vmatprep.subr.mxu0 0.0
    %787 = vmatpush1.msra.mxu0 0.0
    %788 = vmatprep.subr.mxu0 0.0
    %789 = vmatpush1.msra.mxu0 0.0
    %790 = vmatprep.subr.mxu0 0.0
    %791 = vmatpush1.msra.mxu0 0.0
    %792 = vmatprep.subr.mxu0 0.0
    %793 = vmatpush1.msra.mxu0 0.0
    %794 = vmatprep.subr.mxu0 0.0
    %795 = vmatpush1.msra.mxu0 0.0
    %796 = vmatprep.subr.mxu0 0.0
    %797 = vmatpush1.msra.mxu0 0.0
    %798 = vmatprep.subr.mxu0 0.0
    %799 = vmatpush1.msra.mxu0 0.0
    %800 = vmatprep.subr.mxu0 0.0
    %801 = vmatpush1.msra.mxu0 0.0
    %802 = vmatprep.subr.mxu0 0.0
    %803 = vmatpush1.msra.mxu0 0.0
    %804 = vmatprep.subr.mxu0 0.0
    %805 = vmatpush1.msra.mxu0 0.0
    %806 = vmatprep.subr.mxu0 0.0
    %807 = vmatpush1.msra.mxu0 0.0
    %808 = vmatprep.subr.mxu0 0.0
    %809 = vmatpush1.msra.mxu0 0.0
    %810 = vmatprep.subr.mxu0 0.0
    %811 = vmatpush1.msra.mxu0 0.0
    %812 = vmatprep.subr.mxu0 0.0
    %813 = vmatpush1.msra.mxu0 0.0
    %814 = vmatprep.subr.mxu0 0.0
    %815 = vmatpush1.msra.mxu0 0.0
    %816 = vmatprep.subr.mxu0 0.0
    %817 = vmatpush1.msra.mxu0 0.0
    %818 = vmatprep.subr.mxu0 0.0
    %819 = vmatpush1.msra.mxu0 0.0
    %820 = vmatprep.subr.mxu0 0.0
    %821 = vmatpush1.msra.mxu0 0.0
    %822 = vmatprep.subr.mxu0 0.0
    %823 = vmatpush1.msra.mxu0 0.0
    %824 = vmatprep.subr.mxu0 0.0
    %825 = vmatpush1.msra.mxu0 0.0
    %826 = vmatprep.subr.mxu0 0.0
    %827 = vmatpush1.msra.mxu0 0.0
    %828 = vmatprep.subr.mxu0 0.0
    %829 = vmatpush1.msra.mxu0 0.0
    %830 = vmatprep.subr.mxu0 0.0
    %831 = vmatpush1.msra.mxu0 0.0
    %832 = vmatprep.subr.mxu0 0.0
    %833 = vmatpush1.msra.mxu0 0.0
    %834 = vmatprep.subr.mxu0 0.0
    %835 = vmatpush1.msra.mxu0 0.0
    %836 = vmatprep.mubr.f32.mxu0 0.0
    %837 = vmatmul.mubr.f32.gmra.mrb[0].mxu0 %v770
    %v838 = vpop.f32.mrb[0].mxu0
    %v839 = vadd.f32 0.0, %v838
    %v840 = vpop.f32.mrb[0].mxu0
    %841 = vdwg.mxu0
    %v843 = vrot.slane %v839, 2
    %v845 = vadd.f32 %v222, %v843
    %v846 = vtanh.pop %v845
    %v848 = vrot.slane %v846, 6
    %849 = vrot.lane.b32.xlu0 %v848, 112
    %v850 = vpop.permute.xlu0 %849
    %v852 = vadd.f32 %v298, %v850
    %v853 = vrot.slane %v767, 2
    %854 = vrot.lane.b32.xlu0 %v853, 112
    %v855 = vpop.permute.xlu0 %854
    %v857 = vadd.f32 %v376, %v855
    %v858 = vrot.slane %v688, 6
    %859 = vrot.lane.b32.xlu0 %v858, 112
    %v860 = vpop.permute.xlu0 %859
    %v862 = vadd.f32 %v455, %v860
    %v863 = vrot.slane %v610, 2
    %864 = vrot.lane.b32.xlu0 %v863, 112
    %v865 = vpop.permute.xlu0 %864
    %v867 = vadd.f32 %v534, %v865
    %868 = vrot.lane.b32.xlu0 %v536, 112
    %v869 = vpop.permute.xlu0 %868
    %v871 = vadd.f32 %v610, %v869
    %v872 = vrot.slane %v455, 2
    %873 = vrot.lane.b32.xlu0 %v872, 112
    %v874 = vpop.permute.xlu0 %873
    %v876 = vadd.f32 %v688, %v874
    %v877 = vrot.slane %v376, 6
    %878 = vrot.lane.b32.xlu0 %v877, 112
    %v879 = vpop.permute.xlu0 %878
    %v881 = vadd.f32 %v767, %v879
    %v882 = vrot.slane %v298, 2
    %883 = vrot.lane.b32.xlu0 %v882, 112
    %v884 = vpop.permute.xlu0 %883
    %v886 = vadd.f32 %v846, %v884
    %v887 = vld [vmem:[%s19] sm:$0xff]
    %v888 = vld [vmem:[%s19 + $0x8] sm:$0xff]
    %v890 = vlaneseq
    %v891 = vshrl.u32 %v890, 7
    %v892 = vsub.s32 0, %v891
    %v893 = vrot.slane %v108, %v892
    %vm895 = vcmask 64512
    %v896 = vsel %vm895, 0.0, 0
    %898 = vmatprep.subr.mxu0 0.0
    %899 = vmatpush1.msra.mxu0 %v107
    %900 = vmatprep.subr.mxu0 0.0
    %901 = vmatpush1.msra.mxu0 0.0
    %902 = vmatprep.subr.mxu0 0.0
    %903 = vmatpush1.msra.mxu0 0.0
    %904 = vmatprep.subr.mxu0 0.0
    %905 = vmatpush1.msra.mxu0 0.0
    %906 = vmatprep.subr.mxu0 0.0
    %907 = vmatpush1.msra.mxu0 0.0
    %908 = vmatprep.subr.mxu0 0.0
    %909 = vmatpush1.msra.mxu0 0.0
    %910 = vmatprep.subr.mxu0 0.0
    %911 = vmatpush1.msra.mxu0 0.0
    %912 = vmatprep.subr.mxu0 0.0
    %913 = vmatpush1.msra.mxu0 0.0
    %914 = vmatprep.subr.mxu0 0.0
    %915 = vmatpush1.msra.mxu0 0.0
    %916 = vmatprep.subr.mxu0 0.0
    %917 = vmatpush1.msra.mxu0 0.0
    %918 = vmatprep.subr.mxu0 0.0
    %919 = vmatpush1.msra.mxu0 0.0
    %920 = vmatprep.subr.mxu0 0.0
    %921 = vmatpush1.msra.mxu0 0.0
    %922 = vmatprep.subr.mxu0 0.0
    %923 = vmatpush1.msra.mxu0 0.0
    %924 = vmatprep.subr.mxu0 0.0
    %925 = vmatpush1.msra.mxu0 0.0
    %926 = vmatprep.subr.mxu0 0.0
    %927 = vmatpush1.msra.mxu0 0.0
    %928 = vmatprep.subr.mxu0 0.0
    %929 = vmatpush1.msra.mxu0 0.0
    %930 = vmatprep.subr.mxu0 0.0
    %931 = vmatpush1.msra.mxu0 0.0
    %932 = vmatprep.subr.mxu0 0.0
    %933 = vmatpush1.msra.mxu0 0.0
    %934 = vmatprep.subr.mxu0 0.0
    %935 = vmatpush1.msra.mxu0 0.0
    %936 = vmatprep.subr.mxu0 0.0
    %937 = vmatpush1.msra.mxu0 0.0
    %938 = vmatprep.subr.mxu0 0.0
    %939 = vmatpush1.msra.mxu0 0.0
    %940 = vmatprep.subr.mxu0 0.0
    %941 = vmatpush1.msra.mxu0 0.0
    %942 = vmatprep.subr.mxu0 0.0
    %943 = vmatpush1.msra.mxu0 0.0
    %944 = vmatprep.subr.mxu0 0.0
    %945 = vmatpush1.msra.mxu0 0.0
    %946 = vmatprep.subr.mxu0 0.0
    %947 = vmatpush1.msra.mxu0 0.0
    %948 = vmatprep.subr.mxu0 0.0
    %949 = vmatpush1.msra.mxu0 0.0
    %950 = vmatprep.subr.mxu0 0.0
    %951 = vmatpush1.msra.mxu0 0.0
    %952 = vmatprep.subr.mxu0 0.0
    %953 = vmatpush1.msra.mxu0 0.0
    %954 = vmatprep.subr.mxu0 0.0
    %955 = vmatpush1.msra.mxu0 0.0
    %956 = vmatprep.subr.mxu0 0.0
    %957 = vmatpush1.msra.mxu0 0.0
    %958 = vmatprep.subr.mxu0 0.0
    %959 = vmatpush1.msra.mxu0 0.0
    %960 = vmatprep.subr.mxu0 0.0
    %961 = vmatpush1.msra.mxu0 0.0
    %962 = vmatprep.mubr.f32.mxu0 0.0
    %963 = vmatmul.mubr.f32.gmra.mrb[0].mxu0 %v896
    %v964 = vpop.f32.mrb[0].mxu0
    %v965 = vadd.f32 %v893, %v964
    %v966 = vpop.f32.mrb[0].mxu0
    %967 = vdwg.mxu0
    %v968 = vtanh.pop %v965
    %v969 = vadd.f32 %v968, %v852
    %v970 = vmul.f32 %v969, 0.33333334
    %v972 = vlaneseq
    %v973 = vshrl.u32 %v972, 7
    %v974 = vsub.s32 0, %v973
    %v975 = vrot.slane %v111, %v974
    %v978 = vsel %vm127, %v970, 0
    %980 = vmatprep.subr.mxu0 0.0
    %981 = vmatpush1.msra.mxu0 %v109
    %982 = vmatprep.subr.mxu0 0.0
    %983 = vmatpush1.msra.mxu0 %v110
    %984 = vmatprep.subr.mxu0 0.0
    %985 = vmatpush1.msra.mxu0 0.0
    %986 = vmatprep.subr.mxu0 0.0
    %987 = vmatpush1.msra.mxu0 0.0
    %988 = vmatprep.subr.mxu0 0.0
    %989 = vmatpush1.msra.mxu0 0.0
    %990 = vmatprep.subr.mxu0 0.0
    %991 = vmatpush1.msra.mxu0 0.0
    %992 = vmatprep.subr.mxu0 0.0
    %993 = vmatpush1.msra.mxu0 0.0
    %994 = vmatprep.subr.mxu0 0.0
    %995 = vmatpush1.msra.mxu0 0.0
    %996 = vmatprep.subr.mxu0 0.0
    %997 = vmatpush1.msra.mxu0 0.0
    %998 = vmatprep.subr.mxu0 0.0
    %999 = vmatpush1.msra.mxu0 0.0
    %1000 = vmatprep.subr.mxu0 0.0
    %1001 = vmatpush1.msra.mxu0 0.0
    %1002 = vmatprep.subr.mxu0 0.0
    %1003 = vmatpush1.msra.mxu0 0.0
    %1004 = vmatprep.subr.mxu0 0.0
    %1005 = vmatpush1.msra.mxu0 0.0
    %1006 = vmatprep.subr.mxu0 0.0
    %1007 = vmatpush1.msra.mxu0 0.0
    %1008 = vmatprep.subr.mxu0 0.0
    %1009 = vmatpush1.msra.mxu0 0.0
    %1010 = vmatprep.subr.mxu0 0.0
    %1011 = vmatpush1.msra.mxu0 0.0
    %1012 = vmatprep.subr.mxu0 0.0
    %1013 = vmatpush1.msra.mxu0 0.0
    %1014 = vmatprep.subr.mxu0 0.0
    %1015 = vmatpush1.msra.mxu0 0.0
    %1016 = vmatprep.subr.mxu0 0.0
    %1017 = vmatpush1.msra.mxu0 0.0
    %1018 = vmatprep.subr.mxu0 0.0
    %1019 = vmatpush1.msra.mxu0 0.0
    %1020 = vmatprep.subr.mxu0 0.0
    %1021 = vmatpush1.msra.mxu0 0.0
    %1022 = vmatprep.subr.mxu0 0.0
    %1023 = vmatpush1.msra.mxu0 0.0
    %1024 = vmatprep.subr.mxu0 0.0
    %1025 = vmatpush1.msra.mxu0 0.0
    %1026 = vmatprep.subr.mxu0 0.0
    %1027 = vmatpush1.msra.mxu0 0.0
    %1028 = vmatprep.subr.mxu0 0.0
    %1029 = vmatpush1.msra.mxu0 0.0
    %1030 = vmatprep.subr.mxu0 0.0
    %1031 = vmatpush1.msra.mxu0 0.0
    %1032 = vmatprep.subr.mxu0 0.0
    %1033 = vmatpush1.msra.mxu0 0.0
    %1034 = vmatprep.subr.mxu0 0.0
    %1035 = vmatpush1.msra.mxu0 0.0
    %1036 = vmatprep.subr.mxu0 0.0
    %1037 = vmatpush1.msra.mxu0 0.0
    %1038 = vmatprep.subr.mxu0 0.0
    %1039 = vmatpush1.msra.mxu0 0.0
    %1040 = vmatprep.subr.mxu0 0.0
    %1041 = vmatpush1.msra.mxu0 0.0
    %1042 = vmatprep.subr.mxu0 0.0
    %1043 = vmatpush1.msra.mxu0 0.0
    %1044 = vmatprep.mubr.f32.mxu0 0.0
    %1045 = vmatmul.mubr.f32.gmra.mrb[0].mxu0 %v978
    %v1046 = vpop.f32.mrb[0].mxu0
    %v1047 = vadd.f32 %v975, %v1046
    %v1048 = vpop.f32.mrb[0].mxu0
    %1049 = vdwg.mxu0
    %v1050 = vmax.f32 %v1047, 0.0
    %v1051 = vand.u32 2147483647, %v1047
    %v1052 = vsub.f32 0.0, %v1051
    %v1053 = vmul.f32 %v1052, 1.442695
    %v1054 = vpow.pop %v1053
    %v1055 = vadd.f32 %v1054, 1.0
    %v1056 = vlog2.pop %v1055
    %v1057 = vmul.f32 %v1056, 0.6931472
    %v1058 = vadd.f32 %v1050, %v1057
    %1060 = vrot.lane.b32.xlu0 %v887, 8
    %v1061 = vpop.permute.xlu0 %1060
    %v1063 = vmul.f32 %v1058, %v1061
    %1065 = vrot.lane.b32.xlu0 %v1063, 120
    %v1066 = vpop.permute.xlu0 %1065
    %v1068 = vadd.f32 %v1047, %v1066
    %1070 = vrot.lane.b32.xlu0 %v1047, 8
    %v1071 = vpop.permute.xlu0 %1070
    %1074 = vrot.lane.b32.xlu0 %v1058, 8
    %v1075 = vpop.permute.xlu0 %1074
    %1077 = vrot.lane.b32.xlu0 %v117, 24
    %v1078 = vpop.permute.xlu0 %1077
    %v1080 = vsel %vm895, %v1068, %v1071
    %v1081 = vsel %vm127, %v1080, %v1075
    %vm1082 = vcmask 195584
    %v1083 = vsel %vm1082, %v1081, %v1078
    %vm1084 = vcmask 254976
    %1085 = vst.msk [vmem:[#allocation2] sm:$0x3] %vm1084, %v1083
    %v1087 = vsel %vm895, %v1068, 0
    %1089 = vmatprep.subr.mxu0 0.0
    %1090 = vmatpush1.msra.mxu0 %v107
    %1091 = vmatprep.subr.mxu0 0.0
    %1092 = vmatpush1.msra.mxu0 0.0
    %1093 = vmatprep.subr.mxu0 0.0
    %1094 = vmatpush1.msra.mxu0 0.0
    %1095 = vmatprep.subr.mxu0 0.0
    %1096 = vmatpush1.msra.mxu0 0.0
    %1097 = vmatprep.subr.mxu0 0.0
    %1098 = vmatpush1.msra.mxu0 0.0
    %1099 = vmatprep.subr.mxu0 0.0
    %1100 = vmatpush1.msra.mxu0 0.0
    %1101 = vmatprep.subr.mxu0 0.0
    %1102 = vmatpush1.msra.mxu0 0.0
    %1103 = vmatprep.subr.mxu0 0.0
    %1104 = vmatpush1.msra.mxu0 0.0
    %1105 = vmatprep.subr.mxu0 0.0
    %1106 = vmatpush1.msra.mxu0 0.0
    %1107 = vmatprep.subr.mxu0 0.0
    %1108 = vmatpush1.msra.mxu0 0.0
    %1109 = vmatprep.subr.mxu0 0.0
    %1110 = vmatpush1.msra.mxu0 0.0
    %1111 = vmatprep.subr.mxu0 0.0
    %1112 = vmatpush1.msra.mxu0 0.0
    %1113 = vmatprep.subr.mxu0 0.0
    %1114 = vmatpush1.msra.mxu0 0.0
    %1115 = vmatprep.subr.mxu0 0.0
    %1116 = vmatpush1.msra.mxu0 0.0
    %1117 = vmatprep.subr.mxu0 0.0
    %1118 = vmatpush1.msra.mxu0 0.0
    %1119 = vmatprep.subr.mxu0 0.0
    %1120 = vmatpush1.msra.mxu0 0.0
    %1121 = vmatprep.subr.mxu0 0.0
    %1122 = vmatpush1.msra.mxu0 0.0
    %1123 = vmatprep.subr.mxu0 0.0
    %1124 = vmatpush1.msra.mxu0 0.0
    %1125 = vmatprep.subr.mxu0 0.0
    %1126 = vmatpush1.msra.mxu0 0.0
    %1127 = vmatprep.subr.mxu0 0.0
    %1128 = vmatpush1.msra.mxu0 0.0
    %1129 = vmatprep.subr.mxu0 0.0
    %1130 = vmatpush1.msra.mxu0 0.0
    %1131 = vmatprep.subr.mxu0 0.0
    %1132 = vmatpush1.msra.mxu0 0.0
    %1133 = vmatprep.subr.mxu0 0.0
    %1134 = vmatpush1.msra.mxu0 0.0
    %1135 = vmatprep.subr.mxu0 0.0
    %1136 = vmatpush1.msra.mxu0 0.0
    %1137 = vmatprep.subr.mxu0 0.0
    %1138 = vmatpush1.msra.mxu0 0.0
    %1139 = vmatprep.subr.mxu0 0.0
    %1140 = vmatpush1.msra.mxu0 0.0
    %1141 = vmatprep.subr.mxu0 0.0
    %1142 = vmatpush1.msra.mxu0 0.0
    %1143 = vmatprep.subr.mxu0 0.0
    %1144 = vmatpush1.msra.mxu0 0.0
    %1145 = vmatprep.subr.mxu0 0.0
    %1146 = vmatpush1.msra.mxu0 0.0
    %1147 = vmatprep.subr.mxu0 0.0
    %1148 = vmatpush1.msra.mxu0 0.0
    %1149 = vmatprep.subr.mxu0 0.0
    %1150 = vmatpush1.msra.mxu0 0.0
    %1151 = vmatprep.subr.mxu0 0.0
    %1152 = vmatpush1.msra.mxu0 0.0
    %1153 = vmatprep.mubr.f32.mxu0 0.0
    %1154 = vmatmul.mubr.f32.gmra.mrb[0].mxu0 %v1087
    %v1155 = vpop.f32.mrb[0].mxu0
    %v1156 = vadd.f32 %v893, %v1155
    %v1157 = vpop.f32.mrb[0].mxu0
    %1158 = vdwg.mxu0
    %v1159 = vtanh.pop %v1156
    %v1161 = vrot.slane %v857, 2
    %v1163 = vadd.f32 %v1159, %v1161
    %v1164 = vmul.f32 %v1163, 0.33333334
    %v1166 = vsel %vm127, %v1164, 0
    %1168 = vmatprep.subr.mxu0 0.0
    %1169 = vmatpush1.msra.mxu0 %v109
    %1170 = vmatprep.subr.mxu0 0.0
    %1171 = vmatpush1.msra.mxu0 %v110
    %1172 = vmatprep.subr.mxu0 0.0
    %1173 = vmatpush1.msra.mxu0 0.0
    %1174 = vmatprep.subr.mxu0 0.0
    %1175 = vmatpush1.msra.mxu0 0.0
    %1176 = vmatprep.subr.mxu0 0.0
    %1177 = vmatpush1.msra.mxu0 0.0
    %1178 = vmatprep.subr.mxu0 0.0
    %1179 = vmatpush1.msra.mxu0 0.0
    %1180 = vmatprep.subr.mxu0 0.0
    %1181 = vmatpush1.msra.mxu0 0.0
    %1182 = vmatprep.subr.mxu0 0.0
    %1183 = vmatpush1.msra.mxu0 0.0
    %1184 = vmatprep.subr.mxu0 0.0
    %1185 = vmatpush1.msra.mxu0 0.0
    %1186 = vmatprep.subr.mxu0 0.0
    %1187 = vmatpush1.msra.mxu0 0.0
    %1188 = vmatprep.subr.mxu0 0.0
    %1189 = vmatpush1.msra.mxu0 0.0
    %1190 = vmatprep.subr.mxu0 0.0
    %1191 = vmatpush1.msra.mxu0 0.0
    %1192 = vmatprep.subr.mxu0 0.0
    %1193 = vmatpush1.msra.mxu0 0.0
    %1194 = vmatprep.subr.mxu0 0.0
    %1195 = vmatpush1.msra.mxu0 0.0
    %1196 = vmatprep.subr.mxu0 0.0
    %1197 = vmatpush1.msra.mxu0 0.0
    %1198 = vmatprep.subr.mxu0 0.0
    %1199 = vmatpush1.msra.mxu0 0.0
    %1200 = vmatprep.subr.mxu0 0.0
    %1201 = vmatpush1.msra.mxu0 0.0
    %1202 = vmatprep.subr.mxu0 0.0
    %1203 = vmatpush1.msra.mxu0 0.0
    %1204 = vmatprep.subr.mxu0 0.0
    %1205 = vmatpush1.msra.mxu0 0.0
    %1206 = vmatprep.subr.mxu0 0.0
    %1207 = vmatpush1.msra.mxu0 0.0
    %1208 = vmatprep.subr.mxu0 0.0
    %1209 = vmatpush1.msra.mxu0 0.0
    %1210 = vmatprep.subr.mxu0 0.0
    %1211 = vmatpush1.msra.mxu0 0.0
    %1212 = vmatprep.subr.mxu0 0.0
    %1213 = vmatpush1.msra.mxu0 0.0
    %1214 = vmatprep.subr.mxu0 0.0
    %1215 = vmatpush1.msra.mxu0 0.0
    %1216 = vmatprep.subr.mxu0 0.0
    %1217 = vmatpush1.msra.mxu0 0.0
    %1218 = vmatprep.subr.mxu0 0.0
    %1219 = vmatpush1.msra.mxu0 0.0
    %1220 = vmatprep.subr.mxu0 0.0
    %1221 = vmatpush1.msra.mxu0 0.0
    %1222 = vmatprep.subr.mxu0 0.0
    %1223 = vmatpush1.msra.mxu0 0.0
    %1224 = vmatprep.subr.mxu0 0.0
    %1225 = vmatpush1.msra.mxu0 0.0
    %1226 = vmatprep.subr.mxu0 0.0
    %1227 = vmatpush1.msra.mxu0 0.0
    %1228 = vmatprep.subr.mxu0 0.0
    %1229 = vmatpush1.msra.mxu0 0.0
    %1230 = vmatprep.subr.mxu0 0.0
    %1231 = vmatpush1.msra.mxu0 0.0
    %1232 = vmatprep.mubr.f32.mxu0 0.0
    %1233 = vmatmul.mubr.f32.gmra.mrb[0].mxu0 %v1166
    %v1234 = vpop.f32.mrb[0].mxu0
    %v1235 = vadd.f32 %v975, %v1234
    %v1236 = vpop.f32.mrb[0].mxu0
    %1237 = vdwg.mxu0
    %v1238 = vmax.f32 %v1235, 0.0
    %v1239 = vand.u32 2147483647, %v1235
    %v1240 = vsub.f32 0.0, %v1239
    %v1241 = vmul.f32 %v1240, 1.442695
    %v1242 = vpow.pop %v1241
    %v1243 = vadd.f32 %v1242, 1.0
    %v1244 = vlog2.pop %v1243
    %v1245 = vmul.f32 %v1244, 0.6931472
    %v1246 = vadd.f32 %v1238, %v1245
    %v1247 = vrot.slane %v887, 2
    %1248 = vrot.lane.b32.xlu0 %v1247, 8
    %v1249 = vpop.permute.xlu0 %1248
    %v1251 = vmul.f32 %v1246, %v1249
    %1253 = vrot.lane.b32.xlu0 %v1251, 120
    %v1254 = vpop.permute.xlu0 %1253
    %v1256 = vadd.f32 %v1235, %v1254
    %1258 = vrot.lane.b32.xlu0 %v1235, 8
    %v1259 = vpop.permute.xlu0 %1258
    %1262 = vrot.lane.b32.xlu0 %v1246, 8
    %v1263 = vpop.permute.xlu0 %1262
    %1265 = vrot.lane.b32.xlu0 %v1068, 24
    %v1266 = vpop.permute.xlu0 %1265
    %v1268 = vsel %vm895, %v1256, %v1259
    %v1269 = vsel %vm127, %v1268, %v1263
    %v1270 = vsel %vm1082, %v1269, %v1266
    %1271 = vst.msk [vmem:[#allocation2 + $0x2] sm:$0x3] %vm1084, %v1270
    %v1273 = vsel %vm895, %v1256, 0
    %1275 = vmatprep.subr.mxu0 0.0
    %1276 = vmatpush1.msra.mxu0 %v107
    %1277 = vmatprep.subr.mxu0 0.0
    %1278 = vmatpush1.msra.mxu0 0.0
    %1279 = vmatprep.subr.mxu0 0.0
    %1280 = vmatpush1.msra.mxu0 0.0
    %1281 = vmatprep.subr.mxu0 0.0
    %1282 = vmatpush1.msra.mxu0 0.0
    %1283 = vmatprep.subr.mxu0 0.0
    %1284 = vmatpush1.msra.mxu0 0.0
    %1285 = vmatprep.subr.mxu0 0.0
    %1286 = vmatpush1.msra.mxu0 0.0
    %1287 = vmatprep.subr.mxu0 0.0
    %1288 = vmatpush1.msra.mxu0 0.0
    %1289 = vmatprep.subr.mxu0 0.0
    %1290 = vmatpush1.msra.mxu0 0.0
    %1291 = vmatprep.subr.mxu0 0.0
    %1292 = vmatpush1.msra.mxu0 0.0
    %1293 = vmatprep.subr.mxu0 0.0
    %1294 = vmatpush1.msra.mxu0 0.0
    %1295 = vmatprep.subr.mxu0 0.0
    %1296 = vmatpush1.msra.mxu0 0.0
    %1297 = vmatprep.subr.mxu0 0.0
    %1298 = vmatpush1.msra.mxu0 0.0
    %1299 = vmatprep.subr.mxu0 0.0
    %1300 = vmatpush1.msra.mxu0 0.0
    %1301 = vmatprep.subr.mxu0 0.0
    %1302 = vmatpush1.msra.mxu0 0.0
    %1303 = vmatprep.subr.mxu0 0.0
    %1304 = vmatpush1.msra.mxu0 0.0
    %1305 = vmatprep.subr.mxu0 0.0
    %1306 = vmatpush1.msra.mxu0 0.0
    %1307 = vmatprep.subr.mxu0 0.0
    %1308 = vmatpush1.msra.mxu0 0.0
    %1309 = vmatprep.subr.mxu0 0.0
    %1310 = vmatpush1.msra.mxu0 0.0
    %1311 = vmatprep.subr.mxu0 0.0
    %1312 = vmatpush1.msra.mxu0 0.0
    %1313 = vmatprep.subr.mxu0 0.0
    %1314 = vmatpush1.msra.mxu0 0.0
    %1315 = vmatprep.subr.mxu0 0.0
    %1316 = vmatpush1.msra.mxu0 0.0
    %1317 = vmatprep.subr.mxu0 0.0
    %1318 = vmatpush1.msra.mxu0 0.0
    %1319 = vmatprep.subr.mxu0 0.0
    %1320 = vmatpush1.msra.mxu0 0.0
    %1321 = vmatprep.subr.mxu0 0.0
    %1322 = vmatpush1.msra.mxu0 0.0
    %1323 = vmatprep.subr.mxu0 0.0
    %1324 = vmatpush1.msra.mxu0 0.0
    %1325 = vmatprep.subr.mxu0 0.0
    %1326 = vmatpush1.msra.mxu0 0.0
    %1327 = vmatprep.subr.mxu0 0.0
    %1328 = vmatpush1.msra.mxu0 0.0
    %1329 = vmatprep.subr.mxu0 0.0
    %1330 = vmatpush1.msra.mxu0 0.0
    %1331 = vmatprep.subr.mxu0 0.0
    %1332 = vmatpush1.msra.mxu0 0.0
    %1333 = vmatprep.subr.mxu0 0.0
    %1334 = vmatpush1.msra.mxu0 0.0
    %1335 = vmatprep.subr.mxu0 0.0
    %1336 = vmatpush1.msra.mxu0 0.0
    %1337 = vmatprep.subr.mxu0 0.0
    %1338 = vmatpush1.msra.mxu0 0.0
    %1339 = vmatprep.mubr.f32.mxu0 0.0
    %1340 = vmatmul.mubr.f32.gmra.mrb[0].mxu0 %v1273
    %v1341 = vpop.f32.mrb[0].mxu0
    %v1342 = vadd.f32 %v893, %v1341
    %v1343 = vpop.f32.mrb[0].mxu0
    %1344 = vdwg.mxu0
    %v1345 = vtanh.pop %v1342
    %v1347 = vrot.slane %v862, 4
    %v1349 = vadd.f32 %v1345, %v1347
    %v1350 = vmul.f32 %v1349, 0.33333334
    %v1352 = vsel %vm127, %v1350, 0
    %1354 = vmatprep.subr.mxu0 0.0
    %1355 = vmatpush1.msra.mxu0 %v109
    %1356 = vmatprep.subr.mxu0 0.0
    %1357 = vmatpush1.msra.mxu0 %v110
    %1358 = vmatprep.subr.mxu0 0.0
    %1359 = vmatpush1.msra.mxu0 0.0
    %1360 = vmatprep.subr.mxu0 0.0
    %1361 = vmatpush1.msra.mxu0 0.0
    %1362 = vmatprep.subr.mxu0 0.0
    %1363 = vmatpush1.msra.mxu0 0.0
    %1364 = vmatprep.subr.mxu0 0.0
    %1365 = vmatpush1.msra.mxu0 0.0
    %1366 = vmatprep.subr.mxu0 0.0
    %1367 = vmatpush1.msra.mxu0 0.0
    %1368 = vmatprep.subr.mxu0 0.0
    %1369 = vmatpush1.msra.mxu0 0.0
    %1370 = vmatprep.subr.mxu0 0.0
    %1371 = vmatpush1.msra.mxu0 0.0
    %1372 = vmatprep.subr.mxu0 0.0
    %1373 = vmatpush1.msra.mxu0 0.0
    %1374 = vmatprep.subr.mxu0 0.0
    %1375 = vmatpush1.msra.mxu0 0.0
    %1376 = vmatprep.subr.mxu0 0.0
    %1377 = vmatpush1.msra.mxu0 0.0
    %1378 = vmatprep.subr.mxu0 0.0
    %1379 = vmatpush1.msra.mxu0 0.0
    %1380 = vmatprep.subr.mxu0 0.0
    %1381 = vmatpush1.msra.mxu0 0.0
    %1382 = vmatprep.subr.mxu0 0.0
    %1383 = vmatpush1.msra.mxu0 0.0
    %1384 = vmatprep.subr.mxu0 0.0
    %1385 = vmatpush1.msra.mxu0 0.0
    %1386 = vmatprep.subr.mxu0 0.0
    %1387 = vmatpush1.msra.mxu0 0.0
    %1388 = vmatprep.subr.mxu0 0.0
    %1389 = vmatpush1.msra.mxu0 0.0
    %1390 = vmatprep.subr.mxu0 0.0
    %1391 = vmatpush1.msra.mxu0 0.0
    %1392 = vmatprep.subr.mxu0 0.0
    %1393 = vmatpush1.msra.mxu0 0.0
    %1394 = vmatprep.subr.mxu0 0.0
    %1395 = vmatpush1.msra.mxu0 0.0
    %1396 = vmatprep.subr.mxu0 0.0
    %1397 = vmatpush1.msra.mxu0 0.0
    %1398 = vmatprep.subr.mxu0 0.0
    %1399 = vmatpush1.msra.mxu0 0.0
    %1400 = vmatprep.subr.mxu0 0.0
    %1401 = vmatpush1.msra.mxu0 0.0
    %1402 = vmatprep.subr.mxu0 0.0
    %1403 = vmatpush1.msra.mxu0 0.0
    %1404 = vmatprep.subr.mxu0 0.0
    %1405 = vmatpush1.msra.mxu0 0.0
    %1406 = vmatprep.subr.mxu0 0.0
    %1407 = vmatpush1.msra.mxu0 0.0
    %1408 = vmatprep.subr.mxu0 0.0
    %1409 = vmatpush1.msra.mxu0 0.0
    %1410 = vmatprep.subr.mxu0 0.0
    %1411 = vmatpush1.msra.mxu0 0.0
    %1412 = vmatprep.subr.mxu0 0.0
    %1413 = vmatpush1.msra.mxu0 0.0
    %1414 = vmatprep.subr.mxu0 0.0
    %1415 = vmatpush1.msra.mxu0 0.0
    %1416 = vmatprep.subr.mxu0 0.0
    %1417 = vmatpush1.msra.mxu0 0.0
    %1418 = vmatprep.mubr.f32.mxu0 0.0
    %1419 = vmatmul.mubr.f32.gmra.mrb[0].mxu0 %v1352
    %v1420 = vpop.f32.mrb[0].mxu0
    %v1421 = vadd.f32 %v975, %v1420
    %v1422 = vpop.f32.mrb[0].mxu0
    %1423 = vdwg.mxu0
    %v1424 = vmax.f32 %v1421, 0.0
    %v1425 = vand.u32 2147483647, %v1421
    %v1426 = vsub.f32 0.0, %v1425
    %v1427 = vmul.f32 %v1426, 1.442695
    %v1428 = vpow.pop %v1427
    %v1429 = vadd.f32 %v1428, 1.0
    %v1430 = vlog2.pop %v1429
    %v1431 = vmul.f32 %v1430, 0.6931472
    %v1432 = vadd.f32 %v1424, %v1431
    %v1433 = vrot.slane %v887, 4
    %1434 = vrot.lane.b32.xlu0 %v1433, 8
    %v1435 = vpop.permute.xlu0 %1434
    %v1437 = vmul.f32 %v1432, %v1435
    %1439 = vrot.lane.b32.xlu0 %v1437, 120
    %v1440 = vpop.permute.xlu0 %1439
    %v1442 = vadd.f32 %v1421, %v1440
    %1444 = vrot.lane.b32.xlu0 %v1421, 8
    %v1445 = vpop.permute.xlu0 %1444
    %1448 = vrot.lane.b32.xlu0 %v1432, 8
    %v1449 = vpop.permute.xlu0 %1448
    %1451 = vrot.lane.b32.xlu0 %v1256, 24
    %v1452 = vpop.permute.xlu0 %1451
    %v1454 = vsel %vm895, %v1442, %v1445
    %v1455 = vsel %vm127, %v1454, %v1449
    %v1456 = vsel %vm1082, %v1455, %v1452
    %1457 = vst.msk [vmem:[#allocation2 + $0x4] sm:$0x3] %vm1084, %v1456
    %v1459 = vsel %vm895, %v1442, 0
    %1461 = vmatprep.subr.mxu0 0.0
    %1462 = vmatpush1.msra.mxu0 %v107
    %1463 = vmatprep.subr.mxu0 0.0
    %1464 = vmatpush1.msra.mxu0 0.0
    %1465 = vmatprep.subr.mxu0 0.0
    %1466 = vmatpush1.msra.mxu0 0.0
    %1467 = vmatprep.subr.mxu0 0.0
    %1468 = vmatpush1.msra.mxu0 0.0
    %1469 = vmatprep.subr.mxu0 0.0
    %1470 = vmatpush1.msra.mxu0 0.0
    %1471 = vmatprep.subr.mxu0 0.0
    %1472 = vmatpush1.msra.mxu0 0.0
    %1473 = vmatprep.subr.mxu0 0.0
    %1474 = vmatpush1.msra.mxu0 0.0
    %1475 = vmatprep.subr.mxu0 0.0
    %1476 = vmatpush1.msra.mxu0 0.0
    %1477 = vmatprep.subr.mxu0 0.0
    %1478 = vmatpush1.msra.mxu0 0.0
    %1479 = vmatprep.subr.mxu0 0.0
    %1480 = vmatpush1.msra.mxu0 0.0
    %1481 = vmatprep.subr.mxu0 0.0
    %1482 = vmatpush1.msra.mxu0 0.0
    %1483 = vmatprep.subr.mxu0 0.0
    %1484 = vmatpush1.msra.mxu0 0.0
    %1485 = vmatprep.subr.mxu0 0.0
    %1486 = vmatpush1.msra.mxu0 0.0
    %1487 = vmatprep.subr.mxu0 0.0
    %1488 = vmatpush1.msra.mxu0 0.0
    %1489 = vmatprep.subr.mxu0 0.0
    %1490 = vmatpush1.msra.mxu0 0.0
    %1491 = vmatprep.subr.mxu0 0.0
    %1492 = vmatpush1.msra.mxu0 0.0
    %1493 = vmatprep.subr.mxu0 0.0
    %1494 = vmatpush1.msra.mxu0 0.0
    %1495 = vmatprep.subr.mxu0 0.0
    %1496 = vmatpush1.msra.mxu0 0.0
    %1497 = vmatprep.subr.mxu0 0.0
    %1498 = vmatpush1.msra.mxu0 0.0
    %1499 = vmatprep.subr.mxu0 0.0
    %1500 = vmatpush1.msra.mxu0 0.0
    %1501 = vmatprep.subr.mxu0 0.0
    %1502 = vmatpush1.msra.mxu0 0.0
    %1503 = vmatprep.subr.mxu0 0.0
    %1504 = vmatpush1.msra.mxu0 0.0
    %1505 = vmatprep.subr.mxu0 0.0
    %1506 = vmatpush1.msra.mxu0 0.0
    %1507 = vmatprep.subr.mxu0 0.0
    %1508 = vmatpush1.msra.mxu0 0.0
    %1509 = vmatprep.subr.mxu0 0.0
    %1510 = vmatpush1.msra.mxu0 0.0
    %1511 = vmatprep.subr.mxu0 0.0
    %1512 = vmatpush1.msra.mxu0 0.0
    %1513 = vmatprep.subr.mxu0 0.0
    %1514 = vmatpush1.msra.mxu0 0.0
    %1515 = vmatprep.subr.mxu0 0.0
    %1516 = vmatpush1.msra.mxu0 0.0
    %1517 = vmatprep.subr.mxu0 0.0
    %1518 = vmatpush1.msra.mxu0 0.0
    %1519 = vmatprep.subr.mxu0 0.0
    %1520 = vmatpush1.msra.mxu0 0.0
    %1521 = vmatprep.subr.mxu0 0.0
    %1522 = vmatpush1.msra.mxu0 0.0
    %1523 = vmatprep.subr.mxu0 0.0
    %1524 = vmatpush1.msra.mxu0 0.0
    %1525 = vmatprep.mubr.f32.mxu0 0.0
    %1526 = vmatmul.mubr.f32.gmra.mrb[0].mxu0 %v1459
    %v1527 = vpop.f32.mrb[0].mxu0
    %v1528 = vadd.f32 %v893, %v1527
    %v1529 = vpop.f32.mrb[0].mxu0
    %1530 = vdwg.mxu0
    %v1531 = vtanh.pop %v1528
    %v1533 = vrot.slane %v867, 6
    %v1535 = vadd.f32 %v1531, %v1533
    %v1536 = vmul.f32 %v1535, 0.33333334
    %v1538 = vsel %vm127, %v1536, 0
    %1540 = vmatprep.subr.mxu0 0.0
    %1541 = vmatpush1.msra.mxu0 %v109
    %1542 = vmatprep.subr.mxu0 0.0
    %1543 = vmatpush1.msra.mxu0 %v110
    %1544 = vmatprep.subr.mxu0 0.0
    %1545 = vmatpush1.msra.mxu0 0.0
    %1546 = vmatprep.subr.mxu0 0.0
    %1547 = vmatpush1.msra.mxu0 0.0
    %1548 = vmatprep.subr.mxu0 0.0
    %1549 = vmatpush1.msra.mxu0 0.0
    %1550 = vmatprep.subr.mxu0 0.0
    %1551 = vmatpush1.msra.mxu0 0.0
    %1552 = vmatprep.subr.mxu0 0.0
    %1553 = vmatpush1.msra.mxu0 0.0
    %1554 = vmatprep.subr.mxu0 0.0
    %1555 = vmatpush1.msra.mxu0 0.0
    %1556 = vmatprep.subr.mxu0 0.0
    %1557 = vmatpush1.msra.mxu0 0.0
    %1558 = vmatprep.subr.mxu0 0.0
    %1559 = vmatpush1.msra.mxu0 0.0
    %1560 = vmatprep.subr.mxu0 0.0
    %1561 = vmatpush1.msra.mxu0 0.0
    %1562 = vmatprep.subr.mxu0 0.0
    %1563 = vmatpush1.msra.mxu0 0.0
    %1564 = vmatprep.subr.mxu0 0.0
    %1565 = vmatpush1.msra.mxu0 0.0
    %1566 = vmatprep.subr.mxu0 0.0
    %1567 = vmatpush1.msra.mxu0 0.0
    %1568 = vmatprep.subr.mxu0 0.0
    %1569 = vmatpush1.msra.mxu0 0.0
    %1570 = vmatprep.subr.mxu0 0.0
    %1571 = vmatpush1.msra.mxu0 0.0
    %1572 = vmatprep.subr.mxu0 0.0
    %1573 = vmatpush1.msra.mxu0 0.0
    %1574 = vmatprep.subr.mxu0 0.0
    %1575 = vmatpush1.msra.mxu0 0.0
    %1576 = vmatprep.subr.mxu0 0.0
    %1577 = vmatpush1.msra.mxu0 0.0
    %1578 = vmatprep.subr.mxu0 0.0
    %1579 = vmatpush1.msra.mxu0 0.0
    %1580 = vmatprep.subr.mxu0 0.0
    %1581 = vmatpush1.msra.mxu0 0.0
    %1582 = vmatprep.subr.mxu0 0.0
    %1583 = vmatpush1.msra.mxu0 0.0
    %1584 = vmatprep.subr.mxu0 0.0
    %1585 = vmatpush1.msra.mxu0 0.0
    %1586 = vmatprep.subr.mxu0 0.0
    %1587 = vmatpush1.msra.mxu0 0.0
    %1588 = vmatprep.subr.mxu0 0.0
    %1589 = vmatpush1.msra.mxu0 0.0
    %1590 = vmatprep.subr.mxu0 0.0
    %1591 = vmatpush1.msra.mxu0 0.0
    %1592 = vmatprep.subr.mxu0 0.0
    %1593 = vmatpush1.msra.mxu0 0.0
    %1594 = vmatprep.subr.mxu0 0.0
    %1595 = vmatpush1.msra.mxu0 0.0
    %1596 = vmatprep.subr.mxu0 0.0
    %1597 = vmatpush1.msra.mxu0 0.0
    %1598 = vmatprep.subr.mxu0 0.0
    %1599 = vmatpush1.msra.mxu0 0.0
    %1600 = vmatprep.subr.mxu0 0.0
    %1601 = vmatpush1.msra.mxu0 0.0
    %1602 = vmatprep.subr.mxu0 0.0
    %1603 = vmatpush1.msra.mxu0 0.0
    %1604 = vmatprep.mubr.f32.mxu0 0.0
    %1605 = vmatmul.mubr.f32.gmra.mrb[0].mxu0 %v1538
    %v1606 = vpop.f32.mrb[0].mxu0
    %v1607 = vadd.f32 %v975, %v1606
    %v1608 = vpop.f32.mrb[0].mxu0
    %1609 = vdwg.mxu0
    %v1610 = vmax.f32 %v1607, 0.0
    %v1611 = vand.u32 2147483647, %v1607
    %v1612 = vsub.f32 0.0, %v1611
    %v1613 = vmul.f32 %v1612, 1.442695
    %v1614 = vpow.pop %v1613
    %v1615 = vadd.f32 %v1614, 1.0
    %v1616 = vlog2.pop %v1615
    %v1617 = vmul.f32 %v1616, 0.6931472
    %v1618 = vadd.f32 %v1610, %v1617
    %v1619 = vrot.slane %v887, 6
    %1620 = vrot.lane.b32.xlu0 %v1619, 8
    %v1621 = vpop.permute.xlu0 %1620
    %v1623 = vmul.f32 %v1618, %v1621
    %1625 = vrot.lane.b32.xlu0 %v1623, 120
    %v1626 = vpop.permute.xlu0 %1625
    %v1628 = vadd.f32 %v1607, %v1626
    %1630 = vrot.lane.b32.xlu0 %v1607, 8
    %v1631 = vpop.permute.xlu0 %1630
    %1634 = vrot.lane.b32.xlu0 %v1618, 8
    %v1635 = vpop.permute.xlu0 %1634
    %1637 = vrot.lane.b32.xlu0 %v1442, 24
    %v1638 = vpop.permute.xlu0 %1637
    %v1640 = vsel %vm895, %v1628, %v1631
    %v1641 = vsel %vm127, %v1640, %v1635
    %v1642 = vsel %vm1082, %v1641, %v1638
    %1643 = vst.msk [vmem:[#allocation2 + $0x6] sm:$0x3] %vm1084, %v1642
    %v1645 = vsel %vm895, %v1628, 0
    %1647 = vmatprep.subr.mxu0 0.0
    %1648 = vmatpush1.msra.mxu0 %v107
    %1649 = vmatprep.subr.mxu0 0.0
    %1650 = vmatpush1.msra.mxu0 0.0
    %1651 = vmatprep.subr.mxu0 0.0
    %1652 = vmatpush1.msra.mxu0 0.0
    %1653 = vmatprep.subr.mxu0 0.0
    %1654 = vmatpush1.msra.mxu0 0.0
    %1655 = vmatprep.subr.mxu0 0.0
    %1656 = vmatpush1.msra.mxu0 0.0
    %1657 = vmatprep.subr.mxu0 0.0
    %1658 = vmatpush1.msra.mxu0 0.0
    %1659 = vmatprep.subr.mxu0 0.0
    %1660 = vmatpush1.msra.mxu0 0.0
    %1661 = vmatprep.subr.mxu0 0.0
    %1662 = vmatpush1.msra.mxu0 0.0
    %1663 = vmatprep.subr.mxu0 0.0
    %1664 = vmatpush1.msra.mxu0 0.0
    %1665 = vmatprep.subr.mxu0 0.0
    %1666 = vmatpush1.msra.mxu0 0.0
    %1667 = vmatprep.subr.mxu0 0.0
    %1668 = vmatpush1.msra.mxu0 0.0
    %1669 = vmatprep.subr.mxu0 0.0
    %1670 = vmatpush1.msra.mxu0 0.0
    %1671 = vmatprep.subr.mxu0 0.0
    %1672 = vmatpush1.msra.mxu0 0.0
    %1673 = vmatprep.subr.mxu0 0.0
    %1674 = vmatpush1.msra.mxu0 0.0
    %1675 = vmatprep.subr.mxu0 0.0
    %1676 = vmatpush1.msra.mxu0 0.0
    %1677 = vmatprep.subr.mxu0 0.0
    %1678 = vmatpush1.msra.mxu0 0.0
    %1679 = vmatprep.subr.mxu0 0.0
    %1680 = vmatpush1.msra.mxu0 0.0
    %1681 = vmatprep.subr.mxu0 0.0
    %1682 = vmatpush1.msra.mxu0 0.0
    %1683 = vmatprep.subr.mxu0 0.0
    %1684 = vmatpush1.msra.mxu0 0.0
    %1685 = vmatprep.subr.mxu0 0.0
    %1686 = vmatpush1.msra.mxu0 0.0
    %1687 = vmatprep.subr.mxu0 0.0
    %1688 = vmatpush1.msra.mxu0 0.0
    %1689 = vmatprep.subr.mxu0 0.0
    %1690 = vmatpush1.msra.mxu0 0.0
    %1691 = vmatprep.subr.mxu0 0.0
    %1692 = vmatpush1.msra.mxu0 0.0
    %1693 = vmatprep.subr.mxu0 0.0
    %1694 = vmatpush1.msra.mxu0 0.0
    %1695 = vmatprep.subr.mxu0 0.0
    %1696 = vmatpush1.msra.mxu0 0.0
    %1697 = vmatprep.subr.mxu0 0.0
    %1698 = vmatpush1.msra.mxu0 0.0
    %1699 = vmatprep.subr.mxu0 0.0
    %1700 = vmatpush1.msra.mxu0 0.0
    %1701 = vmatprep.subr.mxu0 0.0
    %1702 = vmatpush1.msra.mxu0 0.0
    %1703 = vmatprep.subr.mxu0 0.0
    %1704 = vmatpush1.msra.mxu0 0.0
    %1705 = vmatprep.subr.mxu0 0.0
    %1706 = vmatpush1.msra.mxu0 0.0
    %1707 = vmatprep.subr.mxu0 0.0
    %1708 = vmatpush1.msra.mxu0 0.0
    %1709 = vmatprep.subr.mxu0 0.0
    %1710 = vmatpush1.msra.mxu0 0.0
    %1711 = vmatprep.mubr.f32.mxu0 0.0
    %1712 = vmatmul.mubr.f32.gmra.mrb[0].mxu0 %v1645
    %v1713 = vpop.f32.mrb[0].mxu0
    %v1714 = vadd.f32 %v893, %v1713
    %v1715 = vpop.f32.mrb[0].mxu0
    %1716 = vdwg.mxu0
    %v1717 = vtanh.pop %v1714
    %v1718 = vadd.f32 %v1717, %v871
    %v1719 = vmul.f32 %v1718, 0.33333334
    %v1721 = vsel %vm127, %v1719, 0
    %1723 = vmatprep.subr.mxu0 0.0
    %1724 = vmatpush1.msra.mxu0 %v109
    %1725 = vmatprep.subr.mxu0 0.0
    %1726 = vmatpush1.msra.mxu0 %v110
    %1727 = vmatprep.subr.mxu0 0.0
    %1728 = vmatpush1.msra.mxu0 0.0
    %1729 = vmatprep.subr.mxu0 0.0
    %1730 = vmatpush1.msra.mxu0 0.0
    %1731 = vmatprep.subr.mxu0 0.0
    %1732 = vmatpush1.msra.mxu0 0.0
    %1733 = vmatprep.subr.mxu0 0.0
    %1734 = vmatpush1.msra.mxu0 0.0
    %1735 = vmatprep.subr.mxu0 0.0
    %1736 = vmatpush1.msra.mxu0 0.0
    %1737 = vmatprep.subr.mxu0 0.0
    %1738 = vmatpush1.msra.mxu0 0.0
    %1739 = vmatprep.subr.mxu0 0.0
    %1740 = vmatpush1.msra.mxu0 0.0
    %1741 = vmatprep.subr.mxu0 0.0
    %1742 = vmatpush1.msra.mxu0 0.0
    %1743 = vmatprep.subr.mxu0 0.0
    %1744 = vmatpush1.msra.mxu0 0.0
    %1745 = vmatprep.subr.mxu0 0.0
    %1746 = vmatpush1.msra.mxu0 0.0
    %1747 = vmatprep.subr.mxu0 0.0
    %1748 = vmatpush1.msra.mxu0 0.0
    %1749 = vmatprep.subr.mxu0 0.0
    %1750 = vmatpush1.msra.mxu0 0.0
    %1751 = vmatprep.subr.mxu0 0.0
    %1752 = vmatpush1.msra.mxu0 0.0
    %1753 = vmatprep.subr.mxu0 0.0
    %1754 = vmatpush1.msra.mxu0 0.0
    %1755 = vmatprep.subr.mxu0 0.0
    %1756 = vmatpush1.msra.mxu0 0.0
    %1757 = vmatprep.subr.mxu0 0.0
    %1758 = vmatpush1.msra.mxu0 0.0
    %1759 = vmatprep.subr.mxu0 0.0
    %1760 = vmatpush1.msra.mxu0 0.0
    %1761 = vmatprep.subr.mxu0 0.0
    %1762 = vmatpush1.msra.mxu0 0.0
    %1763 = vmatprep.subr.mxu0 0.0
    %1764 = vmatpush1.msra.mxu0 0.0
    %1765 = vmatprep.subr.mxu0 0.0
    %1766 = vmatpush1.msra.mxu0 0.0
    %1767 = vmatprep.subr.mxu0 0.0
    %1768 = vmatpush1.msra.mxu0 0.0
    %1769 = vmatprep.subr.mxu0 0.0
    %1770 = vmatpush1.msra.mxu0 0.0
    %1771 = vmatprep.subr.mxu0 0.0
    %1772 = vmatpush1.msra.mxu0 0.0
    %1773 = vmatprep.subr.mxu0 0.0
    %1774 = vmatpush1.msra.mxu0 0.0
    %1775 = vmatprep.subr.mxu0 0.0
    %1776 = vmatpush1.msra.mxu0 0.0
    %1777 = vmatprep.subr.mxu0 0.0
    %1778 = vmatpush1.msra.mxu0 0.0
    %1779 = vmatprep.subr.mxu0 0.0
    %1780 = vmatpush1.msra.mxu0 0.0
    %1781 = vmatprep.subr.mxu0 0.0
    %1782 = vmatpush1.msra.mxu0 0.0
    %1783 = vmatprep.subr.mxu0 0.0
    %1784 = vmatpush1.msra.mxu0 0.0
    %1785 = vmatprep.subr.mxu0 0.0
    %1786 = vmatpush1.msra.mxu0 0.0
    %1787 = vmatprep.mubr.f32.mxu0 0.0
    %1788 = vmatmul.mubr.f32.gmra.mrb[0].mxu0 %v1721
    %v1789 = vpop.f32.mrb[0].mxu0
    %v1790 = vadd.f32 %v975, %v1789
    %v1791 = vpop.f32.mrb[0].mxu0
    %1792 = vdwg.mxu0
    %v1793 = vmax.f32 %v1790, 0.0
    %v1794 = vand.u32 2147483647, %v1790
    %v1795 = vsub.f32 0.0, %v1794
    %v1796 = vmul.f32 %v1795, 1.442695
    %v1797 = vpow.pop %v1796
    %v1798 = vadd.f32 %v1797, 1.0
    %v1799 = vlog2.pop %v1798
    %v1800 = vmul.f32 %v1799, 0.6931472
    %v1801 = vadd.f32 %v1793, %v1800
    %1803 = vrot.lane.b32.xlu0 %v888, 8
    %v1804 = vpop.permute.xlu0 %1803
    %v1806 = vmul.f32 %v1801, %v1804
    %1808 = vrot.lane.b32.xlu0 %v1806, 120
    %v1809 = vpop.permute.xlu0 %1808
    %v1811 = vadd.f32 %v1790, %v1809
    %1813 = vrot.lane.b32.xlu0 %v1790, 8
    %v1814 = vpop.permute.xlu0 %1813
    %1817 = vrot.lane.b32.xlu0 %v1801, 8
    %v1818 = vpop.permute.xlu0 %1817
    %1820 = vrot.lane.b32.xlu0 %v1628, 24
    %v1821 = vpop.permute.xlu0 %1820
    %v1823 = vsel %vm895, %v1811, %v1814
    %v1824 = vsel %vm127, %v1823, %v1818
    %v1825 = vsel %vm1082, %v1824, %v1821
    %1826 = vst.msk [vmem:[#allocation2 + $0x8] sm:$0x3] %vm1084, %v1825
    %v1828 = vsel %vm895, %v1811, 0
    %1830 = vmatprep.subr.mxu0 0.0
    %1831 = vmatpush1.msra.mxu0 %v107
    %1832 = vmatprep.subr.mxu0 0.0
    %1833 = vmatpush1.msra.mxu0 0.0
    %1834 = vmatprep.subr.mxu0 0.0
    %1835 = vmatpush1.msra.mxu0 0.0
    %1836 = vmatprep.subr.mxu0 0.0
    %1837 = vmatpush1.msra.mxu0 0.0
    %1838 = vmatprep.subr.mxu0 0.0
    %1839 = vmatpush1.msra.mxu0 0.0
    %1840 = vmatprep.subr.mxu0 0.0
    %1841 = vmatpush1.msra.mxu0 0.0
    %1842 = vmatprep.subr.mxu0 0.0
    %1843 = vmatpush1.msra.mxu0 0.0
    %1844 = vmatprep.subr.mxu0 0.0
    %1845 = vmatpush1.msra.mxu0 0.0
    %1846 = vmatprep.subr.mxu0 0.0
    %1847 = vmatpush1.msra.mxu0 0.0
    %1848 = vmatprep.subr.mxu0 0.0
    %1849 = vmatpush1.msra.mxu0 0.0
    %1850 = vmatprep.subr.mxu0 0.0
    %1851 = vmatpush1.msra.mxu0 0.0
    %1852 = vmatprep.subr.mxu0 0.0
    %1853 = vmatpush1.msra.mxu0 0.0
    %1854 = vmatprep.subr.mxu0 0.0
    %1855 = vmatpush1.msra.mxu0 0.0
    %1856 = vmatprep.subr.mxu0 0.0
    %1857 = vmatpush1.msra.mxu0 0.0
    %1858 = vmatprep.subr.mxu0 0.0
    %1859 = vmatpush1.msra.mxu0 0.0
    %1860 = vmatprep.subr.mxu0 0.0
    %1861 = vmatpush1.msra.mxu0 0.0
    %1862 = vmatprep.subr.mxu0 0.0
    %1863 = vmatpush1.msra.mxu0 0.0
    %1864 = vmatprep.subr.mxu0 0.0
    %1865 = vmatpush1.msra.mxu0 0.0
    %1866 = vmatprep.subr.mxu0 0.0
    %1867 = vmatpush1.msra.mxu0 0.0
    %1868 = vmatprep.subr.mxu0 0.0
    %1869 = vmatpush1.msra.mxu0 0.0
    %1870 = vmatprep.subr.mxu0 0.0
    %1871 = vmatpush1.msra.mxu0 0.0
    %1872 = vmatprep.subr.mxu0 0.0
    %1873 = vmatpush1.msra.mxu0 0.0
    %1874 = vmatprep.subr.mxu0 0.0
    %1875 = vmatpush1.msra.mxu0 0.0
    %1876 = vmatprep.subr.mxu0 0.0
    %1877 = vmatpush1.msra.mxu0 0.0
    %1878 = vmatprep.subr.mxu0 0.0
    %1879 = vmatpush1.msra.mxu0 0.0
    %1880 = vmatprep.subr.mxu0 0.0
    %1881 = vmatpush1.msra.mxu0 0.0
    %1882 = vmatprep.subr.mxu0 0.0
    %1883 = vmatpush1.msra.mxu0 0.0
    %1884 = vmatprep.subr.mxu0 0.0
    %1885 = vmatpush1.msra.mxu0 0.0
    %1886 = vmatprep.subr.mxu0 0.0
    %1887 = vmatpush1.msra.mxu0 0.0
    %1888 = vmatprep.subr.mxu0 0.0
    %1889 = vmatpush1.msra.mxu0 0.0
    %1890 = vmatprep.subr.mxu0 0.0
    %1891 = vmatpush1.msra.mxu0 0.0
    %1892 = vmatprep.subr.mxu0 0.0
    %1893 = vmatpush1.msra.mxu0 0.0
    %1894 = vmatprep.mubr.f32.mxu0 0.0
    %1895 = vmatmul.mubr.f32.gmra.mrb[0].mxu0 %v1828
    %v1896 = vpop.f32.mrb[0].mxu0
    %v1897 = vadd.f32 %v893, %v1896
    %v1898 = vpop.f32.mrb[0].mxu0
    %1899 = vdwg.mxu0
    %v1900 = vtanh.pop %v1897
    %v1902 = vrot.slane %v876, 2
    %v1904 = vadd.f32 %v1900, %v1902
    %v1905 = vmul.f32 %v1904, 0.33333334
    %v1907 = vsel %vm127, %v1905, 0
    %1909 = vmatprep.subr.mxu0 0.0
    %1910 = vmatpush1.msra.mxu0 %v109
    %1911 = vmatprep.subr.mxu0 0.0
    %1912 = vmatpush1.msra.mxu0 %v110
    %1913 = vmatprep.subr.mxu0 0.0
    %1914 = vmatpush1.msra.mxu0 0.0
    %1915 = vmatprep.subr.mxu0 0.0
    %1916 = vmatpush1.msra.mxu0 0.0
    %1917 = vmatprep.subr.mxu0 0.0
    %1918 = vmatpush1.msra.mxu0 0.0
    %1919 = vmatprep.subr.mxu0 0.0
    %1920 = vmatpush1.msra.mxu0 0.0
    %1921 = vmatprep.subr.mxu0 0.0
    %1922 = vmatpush1.msra.mxu0 0.0
    %1923 = vmatprep.subr.mxu0 0.0
    %1924 = vmatpush1.msra.mxu0 0.0
    %1925 = vmatprep.subr.mxu0 0.0
    %1926 = vmatpush1.msra.mxu0 0.0
    %1927 = vmatprep.subr.mxu0 0.0
    %1928 = vmatpush1.msra.mxu0 0.0
    %1929 = vmatprep.subr.mxu0 0.0
    %1930 = vmatpush1.msra.mxu0 0.0
    %1931 = vmatprep.subr.mxu0 0.0
    %1932 = vmatpush1.msra.mxu0 0.0
    %1933 = vmatprep.subr.mxu0 0.0
    %1934 = vmatpush1.msra.mxu0 0.0
    %1935 = vmatprep.subr.mxu0 0.0
    %1936 = vmatpush1.msra.mxu0 0.0
    %1937 = vmatprep.subr.mxu0 0.0
    %1938 = vmatpush1.msra.mxu0 0.0
    %1939 = vmatprep.subr.mxu0 0.0
    %1940 = vmatpush1.msra.mxu0 0.0
    %1941 = vmatprep.subr.mxu0 0.0
    %1942 = vmatpush1.msra.mxu0 0.0
    %1943 = vmatprep.subr.mxu0 0.0
    %1944 = vmatpush1.msra.mxu0 0.0
    %1945 = vmatprep.subr.mxu0 0.0
    %1946 = vmatpush1.msra.mxu0 0.0
    %1947 = vmatprep.subr.mxu0 0.0
    %1948 = vmatpush1.msra.mxu0 0.0
    %1949 = vmatprep.subr.mxu0 0.0
    %1950 = vmatpush1.msra.mxu0 0.0
    %1951 = vmatprep.subr.mxu0 0.0
    %1952 = vmatpush1.msra.mxu0 0.0
    %1953 = vmatprep.subr.mxu0 0.0
    %1954 = vmatpush1.msra.mxu0 0.0
    %1955 = vmatprep.subr.mxu0 0.0
    %1956 = vmatpush1.msra.mxu0 0.0
    %1957 = vmatprep.subr.mxu0 0.0
    %1958 = vmatpush1.msra.mxu0 0.0
    %1959 = vmatprep.subr.mxu0 0.0
    %1960 = vmatpush1.msra.mxu0 0.0
    %1961 = vmatprep.subr.mxu0 0.0
    %1962 = vmatpush1.msra.mxu0 0.0
    %1963 = vmatprep.subr.mxu0 0.0
    %1964 = vmatpush1.msra.mxu0 0.0
    %1965 = vmatprep.subr.mxu0 0.0
    %1966 = vmatpush1.msra.mxu0 0.0
    %1967 = vmatprep.subr.mxu0 0.0
    %1968 = vmatpush1.msra.mxu0 0.0
    %1969 = vmatprep.subr.mxu0 0.0
    %1970 = vmatpush1.msra.mxu0 0.0
    %1971 = vmatprep.subr.mxu0 0.0
    %1972 = vmatpush1.msra.mxu0 0.0
    %1973 = vmatprep.mubr.f32.mxu0 0.0
    %1974 = vmatmul.mubr.f32.gmra.mrb[0].mxu0 %v1907
    %v1975 = vpop.f32.mrb[0].mxu0
    %v1976 = vadd.f32 %v975, %v1975
    %v1977 = vpop.f32.mrb[0].mxu0
    %1978 = vdwg.mxu0
    %v1979 = vmax.f32 %v1976, 0.0
    %v1980 = vand.u32 2147483647, %v1976
    %v1981 = vsub.f32 0.0, %v1980
    %v1982 = vmul.f32 %v1981, 1.442695
    %v1983 = vpow.pop %v1982
    %v1984 = vadd.f32 %v1983, 1.0
    %v1985 = vlog2.pop %v1984
    %v1986 = vmul.f32 %v1985, 0.6931472
    %v1987 = vadd.f32 %v1979, %v1986
    %v1988 = vrot.slane %v888, 2
    %1989 = vrot.lane.b32.xlu0 %v1988, 8
    %v1990 = vpop.permute.xlu0 %1989
    %v1992 = vmul.f32 %v1987, %v1990
    %1994 = vrot.lane.b32.xlu0 %v1992, 120
    %v1995 = vpop.permute.xlu0 %1994
    %v1997 = vadd.f32 %v1976, %v1995
    %1999 = vrot.lane.b32.xlu0 %v1976, 8
    %v2000 = vpop.permute.xlu0 %1999
    %2003 = vrot.lane.b32.xlu0 %v1987, 8
    %v2004 = vpop.permute.xlu0 %2003
    %2006 = vrot.lane.b32.xlu0 %v1811, 24
    %v2007 = vpop.permute.xlu0 %2006
    %v2009 = vsel %vm895, %v1997, %v2000
    %v2010 = vsel %vm127, %v2009, %v2004
    %v2011 = vsel %vm1082, %v2010, %v2007
    %2012 = vst.msk [vmem:[#allocation2 + $0xa] sm:$0x3] %vm1084, %v2011
    %v2014 = vsel %vm895, %v1997, 0
    %2016 = vmatprep.subr.mxu0 0.0
    %2017 = vmatpush1.msra.mxu0 %v107
    %2018 = vmatprep.subr.mxu0 0.0
    %2019 = vmatpush1.msra.mxu0 0.0
    %2020 = vmatprep.subr.mxu0 0.0
    %2021 = vmatpush1.msra.mxu0 0.0
    %2022 = vmatprep.subr.mxu0 0.0
    %2023 = vmatpush1.msra.mxu0 0.0
    %2024 = vmatprep.subr.mxu0 0.0
    %2025 = vmatpush1.msra.mxu0 0.0
    %2026 = vmatprep.subr.mxu0 0.0
    %2027 = vmatpush1.msra.mxu0 0.0
    %2028 = vmatprep.subr.mxu0 0.0
    %2029 = vmatpush1.msra.mxu0 0.0
    %2030 = vmatprep.subr.mxu0 0.0
    %2031 = vmatpush1.msra.mxu0 0.0
    %2032 = vmatprep.subr.mxu0 0.0
    %2033 = vmatpush1.msra.mxu0 0.0
    %2034 = vmatprep.subr.mxu0 0.0
    %2035 = vmatpush1.msra.mxu0 0.0
    %2036 = vmatprep.subr.mxu0 0.0
    %2037 = vmatpush1.msra.mxu0 0.0
    %2038 = vmatprep.subr.mxu0 0.0
    %2039 = vmatpush1.msra.mxu0 0.0
    %2040 = vmatprep.subr.mxu0 0.0
    %2041 = vmatpush1.msra.mxu0 0.0
    %2042 = vmatprep.subr.mxu0 0.0
    %2043 = vmatpush1.msra.mxu0 0.0
    %2044 = vmatprep.subr.mxu0 0.0
    %2045 = vmatpush1.msra.mxu0 0.0
    %2046 = vmatprep.subr.mxu0 0.0
    %2047 = vmatpush1.msra.mxu0 0.0
    %2048 = vmatprep.subr.mxu0 0.0
    %2049 = vmatpush1.msra.mxu0 0.0
    %2050 = vmatprep.subr.mxu0 0.0
    %2051 = vmatpush1.msra.mxu0 0.0
    %2052 = vmatprep.subr.mxu0 0.0
    %2053 = vmatpush1.msra.mxu0 0.0
    %2054 = vmatprep.subr.mxu0 0.0
    %2055 = vmatpush1.msra.mxu0 0.0
    %2056 = vmatprep.subr.mxu0 0.0
    %2057 = vmatpush1.msra.mxu0 0.0
    %2058 = vmatprep.subr.mxu0 0.0
    %2059 = vmatpush1.msra.mxu0 0.0
    %2060 = vmatprep.subr.mxu0 0.0
    %2061 = vmatpush1.msra.mxu0 0.0
    %2062 = vmatprep.subr.mxu0 0.0
    %2063 = vmatpush1.msra.mxu0 0.0
    %2064 = vmatprep.subr.mxu0 0.0
    %2065 = vmatpush1.msra.mxu0 0.0
    %2066 = vmatprep.subr.mxu0 0.0
    %2067 = vmatpush1.msra.mxu0 0.0
    %2068 = vmatprep.subr.mxu0 0.0
    %2069 = vmatpush1.msra.mxu0 0.0
    %2070 = vmatprep.subr.mxu0 0.0
    %2071 = vmatpush1.msra.mxu0 0.0
    %2072 = vmatprep.subr.mxu0 0.0
    %2073 = vmatpush1.msra.mxu0 0.0
    %2074 = vmatprep.subr.mxu0 0.0
    %2075 = vmatpush1.msra.mxu0 0.0
    %2076 = vmatprep.subr.mxu0 0.0
    %2077 = vmatpush1.msra.mxu0 0.0
    %2078 = vmatprep.subr.mxu0 0.0
    %2079 = vmatpush1.msra.mxu0 0.0
    %2080 = vmatprep.mubr.f32.mxu0 0.0
    %2081 = vmatmul.mubr.f32.gmra.mrb[0].mxu0 %v2014
    %v2082 = vpop.f32.mrb[0].mxu0
    %v2083 = vadd.f32 %v893, %v2082
    %v2084 = vpop.f32.mrb[0].mxu0
    %2085 = vdwg.mxu0
    %v2086 = vtanh.pop %v2083
    %v2088 = vrot.slane %v881, 4
    %v2090 = vadd.f32 %v2086, %v2088
    %v2091 = vmul.f32 %v2090, 0.33333334
    %v2093 = vsel %vm127, %v2091, 0
    %2095 = vmatprep.subr.mxu0 0.0
    %2096 = vmatpush1.msra.mxu0 %v109
    %2097 = vmatprep.subr.mxu0 0.0
    %2098 = vmatpush1.msra.mxu0 %v110
    %2099 = vmatprep.subr.mxu0 0.0
    %2100 = vmatpush1.msra.mxu0 0.0
    %2101 = vmatprep.subr.mxu0 0.0
    %2102 = vmatpush1.msra.mxu0 0.0
    %2103 = vmatprep.subr.mxu0 0.0
    %2104 = vmatpush1.msra.mxu0 0.0
    %2105 = vmatprep.subr.mxu0 0.0
    %2106 = vmatpush1.msra.mxu0 0.0
    %2107 = vmatprep.subr.mxu0 0.0
    %2108 = vmatpush1.msra.mxu0 0.0
    %2109 = vmatprep.subr.mxu0 0.0
    %2110 = vmatpush1.msra.mxu0 0.0
    %2111 = vmatprep.subr.mxu0 0.0
    %2112 = vmatpush1.msra.mxu0 0.0
    %2113 = vmatprep.subr.mxu0 0.0
    %2114 = vmatpush1.msra.mxu0 0.0
    %2115 = vmatprep.subr.mxu0 0.0
    %2116 = vmatpush1.msra.mxu0 0.0
    %2117 = vmatprep.subr.mxu0 0.0
    %2118 = vmatpush1.msra.mxu0 0.0
    %2119 = vmatprep.subr.mxu0 0.0
    %2120 = vmatpush1.msra.mxu0 0.0
    %2121 = vmatprep.subr.mxu0 0.0
    %2122 = vmatpush1.msra.mxu0 0.0
    %2123 = vmatprep.subr.mxu0 0.0
    %2124 = vmatpush1.msra.mxu0 0.0
    %2125 = vmatprep.subr.mxu0 0.0
    %2126 = vmatpush1.msra.mxu0 0.0
    %2127 = vmatprep.subr.mxu0 0.0
    %2128 = vmatpush1.msra.mxu0 0.0
    %2129 = vmatprep.subr.mxu0 0.0
    %2130 = vmatpush1.msra.mxu0 0.0
    %2131 = vmatprep.subr.mxu0 0.0
    %2132 = vmatpush1.msra.mxu0 0.0
    %2133 = vmatprep.subr.mxu0 0.0
    %2134 = vmatpush1.msra.mxu0 0.0
    %2135 = vmatprep.subr.mxu0 0.0
    %2136 = vmatpush1.msra.mxu0 0.0
    %2137 = vmatprep.subr.mxu0 0.0
    %2138 = vmatpush1.msra.mxu0 0.0
    %2139 = vmatprep.subr.mxu0 0.0
    %2140 = vmatpush1.msra.mxu0 0.0
    %2141 = vmatprep.subr.mxu0 0.0
    %2142 = vmatpush1.msra.mxu0 0.0
    %2143 = vmatprep.subr.mxu0 0.0
    %2144 = vmatpush1.msra.mxu0 0.0
    %2145 = vmatprep.subr.mxu0 0.0
    %2146 = vmatpush1.msra.mxu0 0.0
    %2147 = vmatprep.subr.mxu0 0.0
    %2148 = vmatpush1.msra.mxu0 0.0
    %2149 = vmatprep.subr.mxu0 0.0
    %2150 = vmatpush1.msra.mxu0 0.0
    %2151 = vmatprep.subr.mxu0 0.0
    %2152 = vmatpush1.msra.mxu0 0.0
    %2153 = vmatprep.subr.mxu0 0.0
    %2154 = vmatpush1.msra.mxu0 0.0
    %2155 = vmatprep.subr.mxu0 0.0
    %2156 = vmatpush1.msra.mxu0 0.0
    %2157 = vmatprep.subr.mxu0 0.0
    %2158 = vmatpush1.msra.mxu0 0.0
    %2159 = vmatprep.mubr.f32.mxu0 0.0
    %2160 = vmatmul.mubr.f32.gmra.mrb[0].mxu0 %v2093
    %v2161 = vpop.f32.mrb[0].mxu0
    %v2162 = vadd.f32 %v975, %v2161
    %v2163 = vpop.f32.mrb[0].mxu0
    %2164 = vdwg.mxu0
    %v2165 = vmax.f32 %v2162, 0.0
    %v2166 = vand.u32 2147483647, %v2162
    %v2167 = vsub.f32 0.0, %v2166
    %v2168 = vmul.f32 %v2167, 1.442695
    %v2169 = vpow.pop %v2168
    %v2170 = vadd.f32 %v2169, 1.0
    %v2171 = vlog2.pop %v2170
    %v2172 = vmul.f32 %v2171, 0.6931472
    %v2173 = vadd.f32 %v2165, %v2172
    %v2174 = vrot.slane %v888, 4
    %2175 = vrot.lane.b32.xlu0 %v2174, 8
    %v2176 = vpop.permute.xlu0 %2175
    %v2178 = vmul.f32 %v2173, %v2176
    %2180 = vrot.lane.b32.xlu0 %v2178, 120
    %v2181 = vpop.permute.xlu0 %2180
    %v2183 = vadd.f32 %v2162, %v2181
    %2185 = vrot.lane.b32.xlu0 %v2162, 8
    %v2186 = vpop.permute.xlu0 %2185
    %2189 = vrot.lane.b32.xlu0 %v2173, 8
    %v2190 = vpop.permute.xlu0 %2189
    %2192 = vrot.lane.b32.xlu0 %v1997, 24
    %v2193 = vpop.permute.xlu0 %2192
    %v2195 = vsel %vm895, %v2183, %v2186
    %v2196 = vsel %vm127, %v2195, %v2190
    %v2197 = vsel %vm1082, %v2196, %v2193
    %2198 = vst.msk [vmem:[#allocation2 + $0xc] sm:$0x3] %vm1084, %v2197
    %v2200 = vsel %vm895, %v2183, 0
    %2202 = vmatprep.subr.mxu0 0.0
    %2203 = vmatpush1.msra.mxu0 %v107
    %2204 = vmatprep.subr.mxu0 0.0
    %2205 = vmatpush1.msra.mxu0 0.0
    %2206 = vmatprep.subr.mxu0 0.0
    %2207 = vmatpush1.msra.mxu0 0.0
    %2208 = vmatprep.subr.mxu0 0.0
    %2209 = vmatpush1.msra.mxu0 0.0
    %2210 = vmatprep.subr.mxu0 0.0
    %2211 = vmatpush1.msra.mxu0 0.0
    %2212 = vmatprep.subr.mxu0 0.0
    %2213 = vmatpush1.msra.mxu0 0.0
    %2214 = vmatprep.subr.mxu0 0.0
    %2215 = vmatpush1.msra.mxu0 0.0
    %2216 = vmatprep.subr.mxu0 0.0
    %2217 = vmatpush1.msra.mxu0 0.0
    %2218 = vmatprep.subr.mxu0 0.0
    %2219 = vmatpush1.msra.mxu0 0.0
    %2220 = vmatprep.subr.mxu0 0.0
    %2221 = vmatpush1.msra.mxu0 0.0
    %2222 = vmatprep.subr.mxu0 0.0
    %2223 = vmatpush1.msra.mxu0 0.0
    %2224 = vmatprep.subr.mxu0 0.0
    %2225 = vmatpush1.msra.mxu0 0.0
    %2226 = vmatprep.subr.mxu0 0.0
    %2227 = vmatpush1.msra.mxu0 0.0
    %2228 = vmatprep.subr.mxu0 0.0
    %2229 = vmatpush1.msra.mxu0 0.0
    %2230 = vmatprep.subr.mxu0 0.0
    %2231 = vmatpush1.msra.mxu0 0.0
    %2232 = vmatprep.subr.mxu0 0.0
    %2233 = vmatpush1.msra.mxu0 0.0
    %2234 = vmatprep.subr.mxu0 0.0
    %2235 = vmatpush1.msra.mxu0 0.0
    %2236 = vmatprep.subr.mxu0 0.0
    %2237 = vmatpush1.msra.mxu0 0.0
    %2238 = vmatprep.subr.mxu0 0.0
    %2239 = vmatpush1.msra.mxu0 0.0
    %2240 = vmatprep.subr.mxu0 0.0
    %2241 = vmatpush1.msra.mxu0 0.0
    %2242 = vmatprep.subr.mxu0 0.0
    %2243 = vmatpush1.msra.mxu0 0.0
    %2244 = vmatprep.subr.mxu0 0.0
    %2245 = vmatpush1.msra.mxu0 0.0
    %2246 = vmatprep.subr.mxu0 0.0
    %2247 = vmatpush1.msra.mxu0 0.0
    %2248 = vmatprep.subr.mxu0 0.0
    %2249 = vmatpush1.msra.mxu0 0.0
    %2250 = vmatprep.subr.mxu0 0.0
    %2251 = vmatpush1.msra.mxu0 0.0
    %2252 = vmatprep.subr.mxu0 0.0
    %2253 = vmatpush1.msra.mxu0 0.0
    %2254 = vmatprep.subr.mxu0 0.0
    %2255 = vmatpush1.msra.mxu0 0.0
    %2256 = vmatprep.subr.mxu0 0.0
    %2257 = vmatpush1.msra.mxu0 0.0
    %2258 = vmatprep.subr.mxu0 0.0
    %2259 = vmatpush1.msra.mxu0 0.0
    %2260 = vmatprep.subr.mxu0 0.0
    %2261 = vmatpush1.msra.mxu0 0.0
    %2262 = vmatprep.subr.mxu0 0.0
    %2263 = vmatpush1.msra.mxu0 0.0
    %2264 = vmatprep.subr.mxu0 0.0
    %2265 = vmatpush1.msra.mxu0 0.0
    %2266 = vmatprep.mubr.f32.mxu0 0.0
    %2267 = vmatmul.mubr.f32.gmra.mrb[0].mxu0 %v2200
    %v2268 = vpop.f32.mrb[0].mxu0
    %v2269 = vadd.f32 %v893, %v2268
    %v2270 = vpop.f32.mrb[0].mxu0
    %2271 = vdwg.mxu0
    %v2272 = vtanh.pop %v2269
    %v2274 = vrot.slane %v886, 6
    %v2276 = vadd.f32 %v2272, %v2274
    %v2277 = vmul.f32 %v2276, 0.33333334
    %v2279 = vsel %vm127, %v2277, 0
    %2281 = vmatprep.subr.mxu0 0.0
    %2282 = vmatpush1.msra.mxu0 %v109
    %2283 = vmatprep.subr.mxu0 0.0
    %2284 = vmatpush1.msra.mxu0 %v110
    %2285 = vmatprep.subr.mxu0 0.0
    %2286 = vmatpush1.msra.mxu0 0.0
    %2287 = vmatprep.subr.mxu0 0.0
    %2288 = vmatpush1.msra.mxu0 0.0
    %2289 = vmatprep.subr.mxu0 0.0
    %2290 = vmatpush1.msra.mxu0 0.0
    %2291 = vmatprep.subr.mxu0 0.0
    %2292 = vmatpush1.msra.mxu0 0.0
    %2293 = vmatprep.subr.mxu0 0.0
    %2294 = vmatpush1.msra.mxu0 0.0
    %2295 = vmatprep.subr.mxu0 0.0
    %2296 = vmatpush1.msra.mxu0 0.0
    %2297 = vmatprep.subr.mxu0 0.0
    %2298 = vmatpush1.msra.mxu0 0.0
    %2299 = vmatprep.subr.mxu0 0.0
    %2300 = vmatpush1.msra.mxu0 0.0
    %2301 = vmatprep.subr.mxu0 0.0
    %2302 = vmatpush1.msra.mxu0 0.0
    %2303 = vmatprep.subr.mxu0 0.0
    %2304 = vmatpush1.msra.mxu0 0.0
    %2305 = vmatprep.subr.mxu0 0.0
    %2306 = vmatpush1.msra.mxu0 0.0
    %2307 = vmatprep.subr.mxu0 0.0
    %2308 = vmatpush1.msra.mxu0 0.0
    %2309 = vmatprep.subr.mxu0 0.0
    %2310 = vmatpush1.msra.mxu0 0.0
    %2311 = vmatprep.subr.mxu0 0.0
    %2312 = vmatpush1.msra.mxu0 0.0
    %2313 = vmatprep.subr.mxu0 0.0
    %2314 = vmatpush1.msra.mxu0 0.0
    %2315 = vmatprep.subr.mxu0 0.0
    %2316 = vmatpush1.msra.mxu0 0.0
    %2317 = vmatprep.subr.mxu0 0.0
    %2318 = vmatpush1.msra.mxu0 0.0
    %2319 = vmatprep.subr.mxu0 0.0
    %2320 = vmatpush1.msra.mxu0 0.0
    %2321 = vmatprep.subr.mxu0 0.0
    %2322 = vmatpush1.msra.mxu0 0.0
    %2323 = vmatprep.subr.mxu0 0.0
    %2324 = vmatpush1.msra.mxu0 0.0
    %2325 = vmatprep.subr.mxu0 0.0
    %2326 = vmatpush1.msra.mxu0 0.0
    %2327 = vmatprep.subr.mxu0 0.0
    %2328 = vmatpush1.msra.mxu0 0.0
    %2329 = vmatprep.subr.mxu0 0.0
    %2330 = vmatpush1.msra.mxu0 0.0
    %2331 = vmatprep.subr.mxu0 0.0
    %2332 = vmatpush1.msra.mxu0 0.0
    %2333 = vmatprep.subr.mxu0 0.0
    %2334 = vmatpush1.msra.mxu0 0.0
    %2335 = vmatprep.subr.mxu0 0.0
    %2336 = vmatpush1.msra.mxu0 0.0
    %2337 = vmatprep.subr.mxu0 0.0
    %2338 = vmatpush1.msra.mxu0 0.0
    %2339 = vmatprep.subr.mxu0 0.0
    %2340 = vmatpush1.msra.mxu0 0.0
    %2341 = vmatprep.subr.mxu0 0.0
    %2342 = vmatpush1.msra.mxu0 0.0
    %2343 = vmatprep.subr.mxu0 0.0
    %2344 = vmatpush1.msra.mxu0 0.0
    %2345 = vmatprep.mubr.f32.mxu0 0.0
    %2346 = vmatmul.mubr.f32.gmra.mrb[0].mxu0 %v2279
    %v2347 = vpop.f32.mrb[0].mxu0
    %v2348 = vadd.f32 %v975, %v2347
    %v2349 = vpop.f32.mrb[0].mxu0
    %2350 = vdwg.mxu0
    %v2351 = vmax.f32 %v2348, 0.0
    %v2352 = vand.u32 2147483647, %v2348
    %v2353 = vsub.f32 0.0, %v2352
    %v2354 = vmul.f32 %v2353, 1.442695
    %v2355 = vpow.pop %v2354
    %v2356 = vadd.f32 %v2355, 1.0
    %v2357 = vlog2.pop %v2356
    %v2358 = vmul.f32 %v2357, 0.6931472
    %v2359 = vadd.f32 %v2351, %v2358
    %v2360 = vrot.slane %v888, 6
    %2361 = vrot.lane.b32.xlu0 %v2360, 8
    %v2362 = vpop.permute.xlu0 %2361
    %v2364 = vmul.f32 %v2359, %v2362
    %2366 = vrot.lane.b32.xlu0 %v2364, 120
    %v2367 = vpop.permute.xlu0 %2366
    %v2369 = vadd.f32 %v2348, %v2367
    %2371 = vrot.lane.b32.xlu0 %v2348, 8
    %v2372 = vpop.permute.xlu0 %2371
    %2375 = vrot.lane.b32.xlu0 %v2359, 8
    %v2376 = vpop.permute.xlu0 %2375
    %2378 = vrot.lane.b32.xlu0 %v2183, 24
    %v2379 = vpop.permute.xlu0 %2378
    %v2381 = vsel %vm895, %v2369, %v2372
    %v2382 = vsel %vm127, %v2381, %v2376
    %v2383 = vsel %vm1082, %v2382, %v2379
    %2384 = vst.msk [vmem:[#allocation2 + $0xe] sm:$0x3] %vm1084, %v2383
    %s2385 = scalar_lea.vmem %s1, 16
    %v2386 = vld [vmem:[%s2385] sm:$0xff]
    %v2387 = vld [vmem:[%s2385 + $0x8] sm:$0xff]
    %s2388 = scalar_lea.vmem %s2, 1
    %v2389 = vld [vmem:[%s2388] sm:$0x1]
    %v2391 = vlaneseq
    %v2392 = vshrl.u32 %v2391, 7
    %v2393 = vsub.s32 0, %v2392
    %v2394 = vrot.slane %v2389, %v2393
    %2396 = vmatprep.subr.mxu0 0.0
    %2397 = vmatpush1.msra.mxu0 %v2386
    %2398 = vmatprep.subr.mxu0 0.0
    %2399 = vmatpush1.msra.mxu0 %v2387
    %2400 = vmatprep.subr.mxu0 0.0
    %2401 = vmatpush1.msra.mxu0 0.0
    %2402 = vmatprep.subr.mxu0 0.0
    %2403 = vmatpush1.msra.mxu0 0.0
    %2404 = vmatprep.subr.mxu0 0.0
    %2405 = vmatpush1.msra.mxu0 0.0
    %2406 = vmatprep.subr.mxu0 0.0
    %2407 = vmatpush1.msra.mxu0 0.0
    %2408 = vmatprep.subr.mxu0 0.0
    %2409 = vmatpush1.msra.mxu0 0.0
    %2410 = vmatprep.subr.mxu0 0.0
    %2411 = vmatpush1.msra.mxu0 0.0
    %2412 = vmatprep.subr.mxu0 0.0
    %2413 = vmatpush1.msra.mxu0 0.0
    %2414 = vmatprep.subr.mxu0 0.0
    %2415 = vmatpush1.msra.mxu0 0.0
    %2416 = vmatprep.subr.mxu0 0.0
    %2417 = vmatpush1.msra.mxu0 0.0
    %2418 = vmatprep.subr.mxu0 0.0
    %2419 = vmatpush1.msra.mxu0 0.0
    %2420 = vmatprep.subr.mxu0 0.0
    %2421 = vmatpush1.msra.mxu0 0.0
    %2422 = vmatprep.subr.mxu0 0.0
    %2423 = vmatpush1.msra.mxu0 0.0
    %2424 = vmatprep.subr.mxu0 0.0
    %2425 = vmatpush1.msra.mxu0 0.0
    %2426 = vmatprep.subr.mxu0 0.0
    %2427 = vmatpush1.msra.mxu0 0.0
    %2428 = vmatprep.subr.mxu0 0.0
    %2429 = vmatpush1.msra.mxu0 0.0
    %2430 = vmatprep.subr.mxu0 0.0
    %2431 = vmatpush1.msra.mxu0 0.0
    %2432 = vmatprep.subr.mxu0 0.0
    %2433 = vmatpush1.msra.mxu0 0.0
    %2434 = vmatprep.subr.mxu0 0.0
    %2435 = vmatpush1.msra.mxu0 0.0
    %2436 = vmatprep.subr.mxu0 0.0
    %2437 = vmatpush1.msra.mxu0 0.0
    %2438 = vmatprep.subr.mxu0 0.0
    %2439 = vmatpush1.msra.mxu0 0.0
    %2440 = vmatprep.subr.mxu0 0.0
    %2441 = vmatpush1.msra.mxu0 0.0
    %2442 = vmatprep.subr.mxu0 0.0
    %2443 = vmatpush1.msra.mxu0 0.0
    %2444 = vmatprep.subr.mxu0 0.0
    %2445 = vmatpush1.msra.mxu0 0.0
    %2446 = vmatprep.subr.mxu0 0.0
    %2447 = vmatpush1.msra.mxu0 0.0
    %2448 = vmatprep.subr.mxu0 0.0
    %2449 = vmatpush1.msra.mxu0 0.0
    %2450 = vmatprep.subr.mxu0 0.0
    %2451 = vmatpush1.msra.mxu0 0.0
    %2452 = vmatprep.subr.mxu0 0.0
    %2453 = vmatpush1.msra.mxu0 0.0
    %2454 = vmatprep.subr.mxu0 0.0
    %2455 = vmatpush1.msra.mxu0 0.0
    %2456 = vmatprep.subr.mxu0 0.0
    %2457 = vmatpush1.msra.mxu0 0.0
    %2458 = vmatprep.subr.mxu0 0.0
    %2459 = vmatpush1.msra.mxu0 0.0
    %2460 = vmatprep.mubr.f32.mxu0 0.0
    %2461 = vmatmul.mubr.f32.gmra.mrb[0].mxu0 %v129
    %v2462 = vpop.f32.mrb[0].mxu0
    %v2463 = vadd.f32 %v2394, %v2462
    %v2464 = vpop.f32.mrb[0].mxu0
    %2465 = vmatprep.mubr.f32.mxu0 0.0
    %2466 = vmatmul.mubr.f32.gmra.mrb[0].mxu0 %v132
    %v2467 = vpop.f32.mrb[0].mxu0
    %v2468 = vadd.f32 %v2394, %v2467
    %v2469 = vpop.f32.mrb[0].mxu0
    %2470 = vdwg.mxu0
    %v2472 = vrot.slane %v2468, 6
    %v2474 = vsel %vm127, %v2463, %v2472
    %v2475 = vrot.slane %v2468, 2
    %v2477 = vsel %vm127, %v2463, %v2475
    %v2479 = vrot.slane %v2463, 6
    %v2481 = vsel %vm127, %v2468, %v2479
    %v2482 = vrot.slane %v2463, 2
    %v2484 = vsel %vm127, %v2468, %v2482
    %v2485 = vadd.f32 %v2474, %v294
    %v2486 = vtanh.pop %v2485
    %v2488 = vsel %vm223, %v2486, 0
    %2490 = vmatprep.subr.mxu0 0.0
    %2491 = vmatpush1.msra.mxu0 %v103
    %2492 = vmatprep.subr.mxu0 0.0
    %2493 = vmatpush1.msra.mxu0 %v104
    %2494 = vmatprep.subr.mxu0 0.0
    %2495 = vmatpush1.msra.mxu0 %v105
    %2496 = vmatprep.subr.mxu0 0.0
    %2497 = vmatpush1.msra.mxu0 %v106
    %2498 = vmatprep.subr.mxu0 0.0
    %2499 = vmatpush1.msra.mxu0 0.0
    %2500 = vmatprep.subr.mxu0 0.0
    %2501 = vmatpush1.msra.mxu0 0.0
    %2502 = vmatprep.subr.mxu0 0.0
    %2503 = vmatpush1.msra.mxu0 0.0
    %2504 = vmatprep.subr.mxu0 0.0
    %2505 = vmatpush1.msra.mxu0 0.0
    %2506 = vmatprep.subr.mxu0 0.0
    %2507 = vmatpush1.msra.mxu0 0.0
    %2508 = vmatprep.subr.mxu0 0.0
    %2509 = vmatpush1.msra.mxu0 0.0
    %2510 = vmatprep.subr.mxu0 0.0
    %2511 = vmatpush1.msra.mxu0 0.0
    %2512 = vmatprep.subr.mxu0 0.0
    %2513 = vmatpush1.msra.mxu0 0.0
    %2514 = vmatprep.subr.mxu0 0.0
    %2515 = vmatpush1.msra.mxu0 0.0
    %2516 = vmatprep.subr.mxu0 0.0
    %2517 = vmatpush1.msra.mxu0 0.0
    %2518 = vmatprep.subr.mxu0 0.0
    %2519 = vmatpush1.msra.mxu0 0.0
    %2520 = vmatprep.subr.mxu0 0.0
    %2521 = vmatpush1.msra.mxu0 0.0
    %2522 = vmatprep.subr.mxu0 0.0
    %2523 = vmatpush1.msra.mxu0 0.0
    %2524 = vmatprep.subr.mxu0 0.0
    %2525 = vmatpush1.msra.mxu0 0.0
    %2526 = vmatprep.subr.mxu0 0.0
    %2527 = vmatpush1.msra.mxu0 0.0
    %2528 = vmatprep.subr.mxu0 0.0
    %2529 = vmatpush1.msra.mxu0 0.0
    %2530 = vmatprep.subr.mxu0 0.0
    %2531 = vmatpush1.msra.mxu0 0.0
    %2532 = vmatprep.subr.mxu0 0.0
    %2533 = vmatpush1.msra.mxu0 0.0
    %2534 = vmatprep.subr.mxu0 0.0
    %2535 = vmatpush1.msra.mxu0 0.0
    %2536 = vmatprep.subr.mxu0 0.0
    %2537 = vmatpush1.msra.mxu0 0.0
    %2538 = vmatprep.subr.mxu0 0.0
    %2539 = vmatpush1.msra.mxu0 0.0
    %2540 = vmatprep.subr.mxu0 0.0
    %2541 = vmatpush1.msra.mxu0 0.0
    %2542 = vmatprep.subr.mxu0 0.0
    %2543 = vmatpush1.msra.mxu0 0.0
    %2544 = vmatprep.subr.mxu0 0.0
    %2545 = vmatpush1.msra.mxu0 0.0
    %2546 = vmatprep.subr.mxu0 0.0
    %2547 = vmatpush1.msra.mxu0 0.0
    %2548 = vmatprep.subr.mxu0 0.0
    %2549 = vmatpush1.msra.mxu0 0.0
    %2550 = vmatprep.subr.mxu0 0.0
    %2551 = vmatpush1.msra.mxu0 0.0
    %2552 = vmatprep.subr.mxu0 0.0
    %2553 = vmatpush1.msra.mxu0 0.0
    %2554 = vmatprep.mubr.f32.mxu0 0.0
    %2555 = vmatmul.mubr.f32.gmra.mrb[0].mxu0 %v2488
    %v2556 = vpop.f32.mrb[0].mxu0
    %v2557 = vadd.f32 0.0, %v2556
    %v2558 = vpop.f32.mrb[0].mxu0
    %2559 = vdwg.mxu0
    %v2561 = vrot.slane %v2557, 6
    %v2563 = vadd.f32 %v2477, %v2561
    %v2564 = vtanh.pop %v2563
    %v2566 = vrot.slane %v2564, 2
    %v2567 = vsel %vm223, %v2566, 0
    %2569 = vmatprep.subr.mxu0 0.0
    %2570 = vmatpush1.msra.mxu0 %v103
    %2571 = vmatprep.subr.mxu0 0.0
    %2572 = vmatpush1.msra.mxu0 %v104
    %2573 = vmatprep.subr.mxu0 0.0
    %2574 = vmatpush1.msra.mxu0 %v105
    %2575 = vmatprep.subr.mxu0 0.0
    %2576 = vmatpush1.msra.mxu0 %v106
    %2577 = vmatprep.subr.mxu0 0.0
    %2578 = vmatpush1.msra.mxu0 0.0
    %2579 = vmatprep.subr.mxu0 0.0
    %2580 = vmatpush1.msra.mxu0 0.0
    %2581 = vmatprep.subr.mxu0 0.0
    %2582 = vmatpush1.msra.mxu0 0.0
    %2583 = vmatprep.subr.mxu0 0.0
    %2584 = vmatpush1.msra.mxu0 0.0
    %2585 = vmatprep.subr.mxu0 0.0
    %2586 = vmatpush1.msra.mxu0 0.0
    %2587 = vmatprep.subr.mxu0 0.0
    %2588 = vmatpush1.msra.mxu0 0.0
    %2589 = vmatprep.subr.mxu0 0.0
    %2590 = vmatpush1.msra.mxu0 0.0
    %2591 = vmatprep.subr.mxu0 0.0
    %2592 = vmatpush1.msra.mxu0 0.0
    %2593 = vmatprep.subr.mxu0 0.0
    %2594 = vmatpush1.msra.mxu0 0.0
    %2595 = vmatprep.subr.mxu0 0.0
    %2596 = vmatpush1.msra.mxu0 0.0
    %2597 = vmatprep.subr.mxu0 0.0
    %2598 = vmatpush1.msra.mxu0 0.0
    %2599 = vmatprep.subr.mxu0 0.0
    %2600 = vmatpush1.msra.mxu0 0.0
    %2601 = vmatprep.subr.mxu0 0.0
    %2602 = vmatpush1.msra.mxu0 0.0
    %2603 = vmatprep.subr.mxu0 0.0
    %2604 = vmatpush1.msra.mxu0 0.0
    %2605 = vmatprep.subr.mxu0 0.0
    %2606 = vmatpush1.msra.mxu0 0.0
    %2607 = vmatprep.subr.mxu0 0.0
    %2608 = vmatpush1.msra.mxu0 0.0
    %2609 = vmatprep.subr.mxu0 0.0
    %2610 = vmatpush1.msra.mxu0 0.0
    %2611 = vmatprep.subr.mxu0 0.0
    %2612 = vmatpush1.msra.mxu0 0.0
    %2613 = vmatprep.subr.mxu0 0.0
    %2614 = vmatpush1.msra.mxu0 0.0
    %2615 = vmatprep.subr.mxu0 0.0
    %2616 = vmatpush1.msra.mxu0 0.0
    %2617 = vmatprep.subr.mxu0 0.0
    %2618 = vmatpush1.msra.mxu0 0.0
    %2619 = vmatprep.subr.mxu0 0.0
    %2620 = vmatpush1.msra.mxu0 0.0
    %2621 = vmatprep.subr.mxu0 0.0
    %2622 = vmatpush1.msra.mxu0 0.0
    %2623 = vmatprep.subr.mxu0 0.0
    %2624 = vmatpush1.msra.mxu0 0.0
    %2625 = vmatprep.subr.mxu0 0.0
    %2626 = vmatpush1.msra.mxu0 0.0
    %2627 = vmatprep.subr.mxu0 0.0
    %2628 = vmatpush1.msra.mxu0 0.0
    %2629 = vmatprep.subr.mxu0 0.0
    %2630 = vmatpush1.msra.mxu0 0.0
    %2631 = vmatprep.subr.mxu0 0.0
    %2632 = vmatpush1.msra.mxu0 0.0
    %2633 = vmatprep.mubr.f32.mxu0 0.0
    %2634 = vmatmul.mubr.f32.gmra.mrb[0].mxu0 %v2567
    %v2635 = vpop.f32.mrb[0].mxu0
    %v2636 = vadd.f32 0.0, %v2635
    %v2637 = vpop.f32.mrb[0].mxu0
    %2638 = vdwg.mxu0
    %v2640 = vrot.slane %v2636, 4
    %v2642 = vadd.f32 %v2474, %v2640
    %v2643 = vtanh.pop %v2642
    %v2645 = vrot.slane %v2643, 4
    %v2646 = vsel %vm223, %v2645, 0
    %2648 = vmatprep.subr.mxu0 0.0
    %2649 = vmatpush1.msra.mxu0 %v103
    %2650 = vmatprep.subr.mxu0 0.0
    %2651 = vmatpush1.msra.mxu0 %v104
    %2652 = vmatprep.subr.mxu0 0.0
    %2653 = vmatpush1.msra.mxu0 %v105
    %2654 = vmatprep.subr.mxu0 0.0
    %2655 = vmatpush1.msra.mxu0 %v106
    %2656 = vmatprep.subr.mxu0 0.0
    %2657 = vmatpush1.msra.mxu0 0.0
    %2658 = vmatprep.subr.mxu0 0.0
    %2659 = vmatpush1.msra.mxu0 0.0
    %2660 = vmatprep.subr.mxu0 0.0
    %2661 = vmatpush1.msra.mxu0 0.0
    %2662 = vmatprep.subr.mxu0 0.0
    %2663 = vmatpush1.msra.mxu0 0.0
    %2664 = vmatprep.subr.mxu0 0.0
    %2665 = vmatpush1.msra.mxu0 0.0
    %2666 = vmatprep.subr.mxu0 0.0
    %2667 = vmatpush1.msra.mxu0 0.0
    %2668 = vmatprep.subr.mxu0 0.0
    %2669 = vmatpush1.msra.mxu0 0.0
    %2670 = vmatprep.subr.mxu0 0.0
    %2671 = vmatpush1.msra.mxu0 0.0
    %2672 = vmatprep.subr.mxu0 0.0
    %2673 = vmatpush1.msra.mxu0 0.0
    %2674 = vmatprep.subr.mxu0 0.0
    %2675 = vmatpush1.msra.mxu0 0.0
    %2676 = vmatprep.subr.mxu0 0.0
    %2677 = vmatpush1.msra.mxu0 0.0
    %2678 = vmatprep.subr.mxu0 0.0
    %2679 = vmatpush1.msra.mxu0 0.0
    %2680 = vmatprep.subr.mxu0 0.0
    %2681 = vmatpush1.msra.mxu0 0.0
    %2682 = vmatprep.subr.mxu0 0.0
    %2683 = vmatpush1.msra.mxu0 0.0
    %2684 = vmatprep.subr.mxu0 0.0
    %2685 = vmatpush1.msra.mxu0 0.0
    %2686 = vmatprep.subr.mxu0 0.0
    %2687 = vmatpush1.msra.mxu0 0.0
    %2688 = vmatprep.subr.mxu0 0.0
    %2689 = vmatpush1.msra.mxu0 0.0
    %2690 = vmatprep.subr.mxu0 0.0
    %2691 = vmatpush1.msra.mxu0 0.0
    %2692 = vmatprep.subr.mxu0 0.0
    %2693 = vmatpush1.msra.mxu0 0.0
    %2694 = vmatprep.subr.mxu0 0.0
    %2695 = vmatpush1.msra.mxu0 0.0
    %2696 = vmatprep.subr.mxu0 0.0
    %2697 = vmatpush1.msra.mxu0 0.0
    %2698 = vmatprep.subr.mxu0 0.0
    %2699 = vmatpush1.msra.mxu0 0.0
    %2700 = vmatprep.subr.mxu0 0.0
    %2701 = vmatpush1.msra.mxu0 0.0
    %2702 = vmatprep.subr.mxu0 0.0
    %2703 = vmatpush1.msra.mxu0 0.0
    %2704 = vmatprep.subr.mxu0 0.0
    %2705 = vmatpush1.msra.mxu0 0.0
    %2706 = vmatprep.subr.mxu0 0.0
    %2707 = vmatpush1.msra.mxu0 0.0
    %2708 = vmatprep.subr.mxu0 0.0
    %2709 = vmatpush1.msra.mxu0 0.0
    %2710 = vmatprep.subr.mxu0 0.0
    %2711 = vmatpush1.msra.mxu0 0.0
    %2712 = vmatprep.mubr.f32.mxu0 0.0
    %2713 = vmatmul.mubr.f32.gmra.mrb[0].mxu0 %v2646
    %v2714 = vpop.f32.mrb[0].mxu0
    %v2715 = vadd.f32 0.0, %v2714
    %v2716 = vpop.f32.mrb[0].mxu0
    %2717 = vdwg.mxu0
    %v2719 = vrot.slane %v2715, 2
    %v2721 = vadd.f32 %v2477, %v2719
    %v2722 = vtanh.pop %v2721
    %v2724 = vrot.slane %v2722, 6
    %v2725 = vsel %vm223, %v2724, 0
    %2727 = vmatprep.subr.mxu0 0.0
    %2728 = vmatpush1.msra.mxu0 %v103
    %2729 = vmatprep.subr.mxu0 0.0
    %2730 = vmatpush1.msra.mxu0 %v104
    %2731 = vmatprep.subr.mxu0 0.0
    %2732 = vmatpush1.msra.mxu0 %v105
    %2733 = vmatprep.subr.mxu0 0.0
    %2734 = vmatpush1.msra.mxu0 %v106
    %2735 = vmatprep.subr.mxu0 0.0
    %2736 = vmatpush1.msra.mxu0 0.0
    %2737 = vmatprep.subr.mxu0 0.0
    %2738 = vmatpush1.msra.mxu0 0.0
    %2739 = vmatprep.subr.mxu0 0.0
    %2740 = vmatpush1.msra.mxu0 0.0
    %2741 = vmatprep.subr.mxu0 0.0
    %2742 = vmatpush1.msra.mxu0 0.0
    %2743 = vmatprep.subr.mxu0 0.0
    %2744 = vmatpush1.msra.mxu0 0.0
    %2745 = vmatprep.subr.mxu0 0.0
    %2746 = vmatpush1.msra.mxu0 0.0
    %2747 = vmatprep.subr.mxu0 0.0
    %2748 = vmatpush1.msra.mxu0 0.0
    %2749 = vmatprep.subr.mxu0 0.0
    %2750 = vmatpush1.msra.mxu0 0.0
    %2751 = vmatprep.subr.mxu0 0.0
    %2752 = vmatpush1.msra.mxu0 0.0
    %2753 = vmatprep.subr.mxu0 0.0
    %2754 = vmatpush1.msra.mxu0 0.0
    %2755 = vmatprep.subr.mxu0 0.0
    %2756 = vmatpush1.msra.mxu0 0.0
    %2757 = vmatprep.subr.mxu0 0.0
    %2758 = vmatpush1.msra.mxu0 0.0
    %2759 = vmatprep.subr.mxu0 0.0
    %2760 = vmatpush1.msra.mxu0 0.0
    %2761 = vmatprep.subr.mxu0 0.0
    %2762 = vmatpush1.msra.mxu0 0.0
    %2763 = vmatprep.subr.mxu0 0.0
    %2764 = vmatpush1.msra.mxu0 0.0
    %2765 = vmatprep.subr.mxu0 0.0
    %2766 = vmatpush1.msra.mxu0 0.0
    %2767 = vmatprep.subr.mxu0 0.0
    %2768 = vmatpush1.msra.mxu0 0.0
    %2769 = vmatprep.subr.mxu0 0.0
    %2770 = vmatpush1.msra.mxu0 0.0
    %2771 = vmatprep.subr.mxu0 0.0
    %2772 = vmatpush1.msra.mxu0 0.0
    %2773 = vmatprep.subr.mxu0 0.0
    %2774 = vmatpush1.msra.mxu0 0.0
    %2775 = vmatprep.subr.mxu0 0.0
    %2776 = vmatpush1.msra.mxu0 0.0
    %2777 = vmatprep.subr.mxu0 0.0
    %2778 = vmatpush1.msra.mxu0 0.0
    %2779 = vmatprep.subr.mxu0 0.0
    %2780 = vmatpush1.msra.mxu0 0.0
    %2781 = vmatprep.subr.mxu0 0.0
    %2782 = vmatpush1.msra.mxu0 0.0
    %2783 = vmatprep.subr.mxu0 0.0
    %2784 = vmatpush1.msra.mxu0 0.0
    %2785 = vmatprep.subr.mxu0 0.0
    %2786 = vmatpush1.msra.mxu0 0.0
    %2787 = vmatprep.subr.mxu0 0.0
    %2788 = vmatpush1.msra.mxu0 0.0
    %2789 = vmatprep.subr.mxu0 0.0
    %2790 = vmatpush1.msra.mxu0 0.0
    %2791 = vmatprep.mubr.f32.mxu0 0.0
    %2792 = vmatmul.mubr.f32.gmra.mrb[0].mxu0 %v2725
    %v2793 = vpop.f32.mrb[0].mxu0
    %v2794 = vadd.f32 0.0, %v2793
    %v2795 = vpop.f32.mrb[0].mxu0
    %2796 = vdwg.mxu0
    %v2797 = vadd.f32 %v2481, %v2794
    %v2798 = vtanh.pop %v2797
    %v2800 = vsel %vm223, %v2798, 0
    %2802 = vmatprep.subr.mxu0 0.0
    %2803 = vmatpush1.msra.mxu0 %v103
    %2804 = vmatprep.subr.mxu0 0.0
    %2805 = vmatpush1.msra.mxu0 %v104
    %2806 = vmatprep.subr.mxu0 0.0
    %2807 = vmatpush1.msra.mxu0 %v105
    %2808 = vmatprep.subr.mxu0 0.0
    %2809 = vmatpush1.msra.mxu0 %v106
    %2810 = vmatprep.subr.mxu0 0.0
    %2811 = vmatpush1.msra.mxu0 0.0
    %2812 = vmatprep.subr.mxu0 0.0
    %2813 = vmatpush1.msra.mxu0 0.0
    %2814 = vmatprep.subr.mxu0 0.0
    %2815 = vmatpush1.msra.mxu0 0.0
    %2816 = vmatprep.subr.mxu0 0.0
    %2817 = vmatpush1.msra.mxu0 0.0
    %2818 = vmatprep.subr.mxu0 0.0
    %2819 = vmatpush1.msra.mxu0 0.0
    %2820 = vmatprep.subr.mxu0 0.0
    %2821 = vmatpush1.msra.mxu0 0.0
    %2822 = vmatprep.subr.mxu0 0.0
    %2823 = vmatpush1.msra.mxu0 0.0
    %2824 = vmatprep.subr.mxu0 0.0
    %2825 = vmatpush1.msra.mxu0 0.0
    %2826 = vmatprep.subr.mxu0 0.0
    %2827 = vmatpush1.msra.mxu0 0.0
    %2828 = vmatprep.subr.mxu0 0.0
    %2829 = vmatpush1.msra.mxu0 0.0
    %2830 = vmatprep.subr.mxu0 0.0
    %2831 = vmatpush1.msra.mxu0 0.0
    %2832 = vmatprep.subr.mxu0 0.0
    %2833 = vmatpush1.msra.mxu0 0.0
    %2834 = vmatprep.subr.mxu0 0.0
    %2835 = vmatpush1.msra.mxu0 0.0
    %2836 = vmatprep.subr.mxu0 0.0
    %2837 = vmatpush1.msra.mxu0 0.0
    %2838 = vmatprep.subr.mxu0 0.0
    %2839 = vmatpush1.msra.mxu0 0.0
    %2840 = vmatprep.subr.mxu0 0.0
    %2841 = vmatpush1.msra.mxu0 0.0
    %2842 = vmatprep.subr.mxu0 0.0
    %2843 = vmatpush1.msra.mxu0 0.0
    %2844 = vmatprep.subr.mxu0 0.0
    %2845 = vmatpush1.msra.mxu0 0.0
    %2846 = vmatprep.subr.mxu0 0.0
    %2847 = vmatpush1.msra.mxu0 0.0
    %2848 = vmatprep.subr.mxu0 0.0
    %2849 = vmatpush1.msra.mxu0 0.0
    %2850 = vmatprep.subr.mxu0 0.0
    %2851 = vmatpush1.msra.mxu0 0.0
    %2852 = vmatprep.subr.mxu0 0.0
    %2853 = vmatpush1.msra.mxu0 0.0
    %2854 = vmatprep.subr.mxu0 0.0
    %2855 = vmatpush1.msra.mxu0 0.0
    %2856 = vmatprep.subr.mxu0 0.0
    %2857 = vmatpush1.msra.mxu0 0.0
    %2858 = vmatprep.subr.mxu0 0.0
    %2859 = vmatpush1.msra.mxu0 0.0
    %2860 = vmatprep.subr.mxu0 0.0
    %2861 = vmatpush1.msra.mxu0 0.0
    %2862 = vmatprep.subr.mxu0 0.0
    %2863 = vmatpush1.msra.mxu0 0.0
    %2864 = vmatprep.subr.mxu0 0.0
    %2865 = vmatpush1.msra.mxu0 0.0
    %2866 = vmatprep.mubr.f32.mxu0 0.0
    %2867 = vmatmul.mubr.f32.gmra.mrb[0].mxu0 %v2800
    %v2868 = vpop.f32.mrb[0].mxu0
    %v2869 = vadd.f32 0.0, %v2868
    %v2870 = vpop.f32.mrb[0].mxu0
    %2871 = vdwg.mxu0
    %v2873 = vrot.slane %v2869, 6
    %v2875 = vadd.f32 %v2484, %v2873
    %v2876 = vtanh.pop %v2875
    %v2878 = vrot.slane %v2876, 2
    %v2879 = vsel %vm223, %v2878, 0
    %2881 = vmatprep.subr.mxu0 0.0
    %2882 = vmatpush1.msra.mxu0 %v103
    %2883 = vmatprep.subr.mxu0 0.0
    %2884 = vmatpush1.msra.mxu0 %v104
    %2885 = vmatprep.subr.mxu0 0.0
    %2886 = vmatpush1.msra.mxu0 %v105
    %2887 = vmatprep.subr.mxu0 0.0
    %2888 = vmatpush1.msra.mxu0 %v106
    %2889 = vmatprep.subr.mxu0 0.0
    %2890 = vmatpush1.msra.mxu0 0.0
    %2891 = vmatprep.subr.mxu0 0.0
    %2892 = vmatpush1.msra.mxu0 0.0
    %2893 = vmatprep.subr.mxu0 0.0
    %2894 = vmatpush1.msra.mxu0 0.0
    %2895 = vmatprep.subr.mxu0 0.0
    %2896 = vmatpush1.msra.mxu0 0.0
    %2897 = vmatprep.subr.mxu0 0.0
    %2898 = vmatpush1.msra.mxu0 0.0
    %2899 = vmatprep.subr.mxu0 0.0
    %2900 = vmatpush1.msra.mxu0 0.0
    %2901 = vmatprep.subr.mxu0 0.0
    %2902 = vmatpush1.msra.mxu0 0.0
    %2903 = vmatprep.subr.mxu0 0.0
    %2904 = vmatpush1.msra.mxu0 0.0
    %2905 = vmatprep.subr.mxu0 0.0
    %2906 = vmatpush1.msra.mxu0 0.0
    %2907 = vmatprep.subr.mxu0 0.0
    %2908 = vmatpush1.msra.mxu0 0.0
    %2909 = vmatprep.subr.mxu0 0.0
    %2910 = vmatpush1.msra.mxu0 0.0
    %2911 = vmatprep.subr.mxu0 0.0
    %2912 = vmatpush1.msra.mxu0 0.0
    %2913 = vmatprep.subr.mxu0 0.0
    %2914 = vmatpush1.msra.mxu0 0.0
    %2915 = vmatprep.subr.mxu0 0.0
    %2916 = vmatpush1.msra.mxu0 0.0
    %2917 = vmatprep.subr.mxu0 0.0
    %2918 = vmatpush1.msra.mxu0 0.0
    %2919 = vmatprep.subr.mxu0 0.0
    %2920 = vmatpush1.msra.mxu0 0.0
    %2921 = vmatprep.subr.mxu0 0.0
    %2922 = vmatpush1.msra.mxu0 0.0
    %2923 = vmatprep.subr.mxu0 0.0
    %2924 = vmatpush1.msra.mxu0 0.0
    %2925 = vmatprep.subr.mxu0 0.0
    %2926 = vmatpush1.msra.mxu0 0.0
    %2927 = vmatprep.subr.mxu0 0.0
    %2928 = vmatpush1.msra.mxu0 0.0
    %2929 = vmatprep.subr.mxu0 0.0
    %2930 = vmatpush1.msra.mxu0 0.0
    %2931 = vmatprep.subr.mxu0 0.0
    %2932 = vmatpush1.msra.mxu0 0.0
    %2933 = vmatprep.subr.mxu0 0.0
    %2934 = vmatpush1.msra.mxu0 0.0
    %2935 = vmatprep.subr.mxu0 0.0
    %2936 = vmatpush1.msra.mxu0 0.0
    %2937 = vmatprep.subr.mxu0 0.0
    %2938 = vmatpush1.msra.mxu0 0.0
    %2939 = vmatprep.subr.mxu0 0.0
    %2940 = vmatpush1.msra.mxu0 0.0
    %2941 = vmatprep.subr.mxu0 0.0
    %2942 = vmatpush1.msra.mxu0 0.0
    %2943 = vmatprep.subr.mxu0 0.0
    %2944 = vmatpush1.msra.mxu0 0.0
    %2945 = vmatprep.mubr.f32.mxu0 0.0
    %2946 = vmatmul.mubr.f32.gmra.mrb[0].mxu0 %v2879
    %v2947 = vpop.f32.mrb[0].mxu0
    %v2948 = vadd.f32 0.0, %v2947
    %v2949 = vpop.f32.mrb[0].mxu0
    %2950 = vdwg.mxu0
    %v2952 = vrot.slane %v2948, 4
    %v2954 = vadd.f32 %v2481, %v2952
    %v2955 = vtanh.pop %v2954
    %v2957 = vrot.slane %v2955, 4
    %v2958 = vsel %vm223, %v2957, 0
    %2960 = vmatprep.subr.mxu0 0.0
    %2961 = vmatpush1.msra.mxu0 %v103
    %2962 = vmatprep.subr.mxu0 0.0
    %2963 = vmatpush1.msra.mxu0 %v104
    %2964 = vmatprep.subr.mxu0 0.0
    %2965 = vmatpush1.msra.mxu0 %v105
    %2966 = vmatprep.subr.mxu0 0.0
    %2967 = vmatpush1.msra.mxu0 %v106
    %2968 = vmatprep.subr.mxu0 0.0
    %2969 = vmatpush1.msra.mxu0 0.0
    %2970 = vmatprep.subr.mxu0 0.0
    %2971 = vmatpush1.msra.mxu0 0.0
    %2972 = vmatprep.subr.mxu0 0.0
    %2973 = vmatpush1.msra.mxu0 0.0
    %2974 = vmatprep.subr.mxu0 0.0
    %2975 = vmatpush1.msra.mxu0 0.0
    %2976 = vmatprep.subr.mxu0 0.0
    %2977 = vmatpush1.msra.mxu0 0.0
    %2978 = vmatprep.subr.mxu0 0.0
    %2979 = vmatpush1.msra.mxu0 0.0
    %2980 = vmatprep.subr.mxu0 0.0
    %2981 = vmatpush1.msra.mxu0 0.0
    %2982 = vmatprep.subr.mxu0 0.0
    %2983 = vmatpush1.msra.mxu0 0.0
    %2984 = vmatprep.subr.mxu0 0.0
    %2985 = vmatpush1.msra.mxu0 0.0
    %2986 = vmatprep.subr.mxu0 0.0
    %2987 = vmatpush1.msra.mxu0 0.0
    %2988 = vmatprep.subr.mxu0 0.0
    %2989 = vmatpush1.msra.mxu0 0.0
    %2990 = vmatprep.subr.mxu0 0.0
    %2991 = vmatpush1.msra.mxu0 0.0
    %2992 = vmatprep.subr.mxu0 0.0
    %2993 = vmatpush1.msra.mxu0 0.0
    %2994 = vmatprep.subr.mxu0 0.0
    %2995 = vmatpush1.msra.mxu0 0.0
    %2996 = vmatprep.subr.mxu0 0.0
    %2997 = vmatpush1.msra.mxu0 0.0
    %2998 = vmatprep.subr.mxu0 0.0
    %2999 = vmatpush1.msra.mxu0 0.0
    %3000 = vmatprep.subr.mxu0 0.0
    %3001 = vmatpush1.msra.mxu0 0.0
    %3002 = vmatprep.subr.mxu0 0.0
    %3003 = vmatpush1.msra.mxu0 0.0
    %3004 = vmatprep.subr.mxu0 0.0
    %3005 = vmatpush1.msra.mxu0 0.0
    %3006 = vmatprep.subr.mxu0 0.0
    %3007 = vmatpush1.msra.mxu0 0.0
    %3008 = vmatprep.subr.mxu0 0.0
    %3009 = vmatpush1.msra.mxu0 0.0
    %3010 = vmatprep.subr.mxu0 0.0
    %3011 = vmatpush1.msra.mxu0 0.0
    %3012 = vmatprep.subr.mxu0 0.0
    %3013 = vmatpush1.msra.mxu0 0.0
    %3014 = vmatprep.subr.mxu0 0.0
    %3015 = vmatpush1.msra.mxu0 0.0
    %3016 = vmatprep.subr.mxu0 0.0
    %3017 = vmatpush1.msra.mxu0 0.0
    %3018 = vmatprep.subr.mxu0 0.0
    %3019 = vmatpush1.msra.mxu0 0.0
    %3020 = vmatprep.subr.mxu0 0.0
    %3021 = vmatpush1.msra.mxu0 0.0
    %3022 = vmatprep.subr.mxu0 0.0
    %3023 = vmatpush1.msra.mxu0 0.0
    %3024 = vmatprep.mubr.f32.mxu0 0.0
    %3025 = vmatmul.mubr.f32.gmra.mrb[0].mxu0 %v2958
    %v3026 = vpop.f32.mrb[0].mxu0
    %v3027 = vadd.f32 0.0, %v3026
    %v3028 = vpop.f32.mrb[0].mxu0
    %3029 = vdwg.mxu0
    %v3031 = vrot.slane %v3027, 2
    %v3033 = vadd.f32 %v2484, %v3031
    %v3034 = vtanh.pop %v3033
    %v3036 = vrot.slane %v3034, 6
    %3037 = vrot.lane.b32.xlu0 %v3036, 112
    %v3038 = vpop.permute.xlu0 %3037
    %v3040 = vadd.f32 %v2486, %v3038
    %v3041 = vrot.slane %v2955, 2
    %3042 = vrot.lane.b32.xlu0 %v3041, 112
    %v3043 = vpop.permute.xlu0 %3042
    %v3045 = vadd.f32 %v2564, %v3043
    %v3046 = vrot.slane %v2876, 6
    %3047 = vrot.lane.b32.xlu0 %v3046, 112
    %v3048 = vpop.permute.xlu0 %3047
    %v3050 = vadd.f32 %v2643, %v3048
    %v3051 = vrot.slane %v2798, 2
    %3052 = vrot.lane.b32.xlu0 %v3051, 112
    %v3053 = vpop.permute.xlu0 %3052
    %v3055 = vadd.f32 %v2722, %v3053
    %3056 = vrot.lane.b32.xlu0 %v2724, 112
    %v3057 = vpop.permute.xlu0 %3056
    %v3059 = vadd.f32 %v2798, %v3057
    %v3060 = vrot.slane %v2643, 2
    %3061 = vrot.lane.b32.xlu0 %v3060, 112
    %v3062 = vpop.permute.xlu0 %3061
    %v3064 = vadd.f32 %v2876, %v3062
    %v3065 = vrot.slane %v2564, 6
    %3066 = vrot.lane.b32.xlu0 %v3065, 112
    %v3067 = vpop.permute.xlu0 %3066
    %v3069 = vadd.f32 %v2955, %v3067
    %v3070 = vrot.slane %v2486, 2
    %3071 = vrot.lane.b32.xlu0 %v3070, 112
    %v3072 = vpop.permute.xlu0 %3071
    %v3074 = vadd.f32 %v3034, %v3072
    %s3075 = scalar_lea.vmem %s19, 16
    %v3076 = vld [vmem:[%s3075] sm:$0xff]
    %v3077 = vld [vmem:[%s3075 + $0x8] sm:$0xff]
    %v3078 = vadd.f32 %v968, %v3040
    %v3079 = vmul.f32 %v3078, 0.33333334
    %v3081 = vsel %vm127, %v3079, 0
    %3083 = vmatprep.subr.mxu0 0.0
    %3084 = vmatpush1.msra.mxu0 %v109
    %3085 = vmatprep.subr.mxu0 0.0
    %3086 = vmatpush1.msra.mxu0 %v110
    %3087 = vmatprep.subr.mxu0 0.0
    %3088 = vmatpush1.msra.mxu0 0.0
    %3089 = vmatprep.subr.mxu0 0.0
    %3090 = vmatpush1.msra.mxu0 0.0
    %3091 = vmatprep.subr.mxu0 0.0
    %3092 = vmatpush1.msra.mxu0 0.0
    %3093 = vmatprep.subr.mxu0 0.0
    %3094 = vmatpush1.msra.mxu0 0.0
    %3095 = vmatprep.subr.mxu0 0.0
    %3096 = vmatpush1.msra.mxu0 0.0
    %3097 = vmatprep.subr.mxu0 0.0
    %3098 = vmatpush1.msra.mxu0 0.0
    %3099 = vmatprep.subr.mxu0 0.0
    %3100 = vmatpush1.msra.mxu0 0.0
    %3101 = vmatprep.subr.mxu0 0.0
    %3102 = vmatpush1.msra.mxu0 0.0
    %3103 = vmatprep.subr.mxu0 0.0
    %3104 = vmatpush1.msra.mxu0 0.0
    %3105 = vmatprep.subr.mxu0 0.0
    %3106 = vmatpush1.msra.mxu0 0.0
    %3107 = vmatprep.subr.mxu0 0.0
    %3108 = vmatpush1.msra.mxu0 0.0
    %3109 = vmatprep.subr.mxu0 0.0
    %3110 = vmatpush1.msra.mxu0 0.0
    %3111 = vmatprep.subr.mxu0 0.0
    %3112 = vmatpush1.msra.mxu0 0.0
    %3113 = vmatprep.subr.mxu0 0.0
    %3114 = vmatpush1.msra.mxu0 0.0
    %3115 = vmatprep.subr.mxu0 0.0
    %3116 = vmatpush1.msra.mxu0 0.0
    %3117 = vmatprep.subr.mxu0 0.0
    %3118 = vmatpush1.msra.mxu0 0.0
    %3119 = vmatprep.subr.mxu0 0.0
    %3120 = vmatpush1.msra.mxu0 0.0
    %3121 = vmatprep.subr.mxu0 0.0
    %3122 = vmatpush1.msra.mxu0 0.0
    %3123 = vmatprep.subr.mxu0 0.0
    %3124 = vmatpush1.msra.mxu0 0.0
    %3125 = vmatprep.subr.mxu0 0.0
    %3126 = vmatpush1.msra.mxu0 0.0
    %3127 = vmatprep.subr.mxu0 0.0
    %3128 = vmatpush1.msra.mxu0 0.0
    %3129 = vmatprep.subr.mxu0 0.0
    %3130 = vmatpush1.msra.mxu0 0.0
    %3131 = vmatprep.subr.mxu0 0.0
    %3132 = vmatpush1.msra.mxu0 0.0
    %3133 = vmatprep.subr.mxu0 0.0
    %3134 = vmatpush1.msra.mxu0 0.0
    %3135 = vmatprep.subr.mxu0 0.0
    %3136 = vmatpush1.msra.mxu0 0.0
    %3137 = vmatprep.subr.mxu0 0.0
    %3138 = vmatpush1.msra.mxu0 0.0
    %3139 = vmatprep.subr.mxu0 0.0
    %3140 = vmatpush1.msra.mxu0 0.0
    %3141 = vmatprep.subr.mxu0 0.0
    %3142 = vmatpush1.msra.mxu0 0.0
    %3143 = vmatprep.subr.mxu0 0.0
    %3144 = vmatpush1.msra.mxu0 0.0
    %3145 = vmatprep.subr.mxu0 0.0
    %3146 = vmatpush1.msra.mxu0 0.0
    %3147 = vmatprep.mubr.f32.mxu0 0.0
    %3148 = vmatmul.mubr.f32.gmra.mrb[0].mxu0 %v3081
    %v3149 = vpop.f32.mrb[0].mxu0
    %v3150 = vadd.f32 %v975, %v3149
    %v3151 = vpop.f32.mrb[0].mxu0
    %3152 = vdwg.mxu0
    %v3153 = vmax.f32 %v3150, 0.0
    %v3154 = vand.u32 2147483647, %v3150
    %v3155 = vsub.f32 0.0, %v3154
    %v3156 = vmul.f32 %v3155, 1.442695
    %v3157 = vpow.pop %v3156
    %v3158 = vadd.f32 %v3157, 1.0
    %v3159 = vlog2.pop %v3158
    %v3160 = vmul.f32 %v3159, 0.6931472
    %v3161 = vadd.f32 %v3153, %v3160
    %3163 = vrot.lane.b32.xlu0 %v3076, 8
    %v3164 = vpop.permute.xlu0 %3163
    %v3166 = vmul.f32 %v3161, %v3164
    %3168 = vrot.lane.b32.xlu0 %v3166, 120
    %v3169 = vpop.permute.xlu0 %3168
    %v3171 = vadd.f32 %v3150, %v3169
    %3173 = vrot.lane.b32.xlu0 %v3150, 8
    %v3174 = vpop.permute.xlu0 %3173
    %3177 = vrot.lane.b32.xlu0 %v3161, 8
    %v3178 = vpop.permute.xlu0 %3177
    %v3180 = vsel %vm895, %v3171, %v3174
    %v3181 = vsel %vm127, %v3180, %v3178
    %v3182 = vsel %vm1082, %v3181, %v1078
    %3184 = vrot.lane.b32.xlu0 %v3182, 32
    %v3185 = vpop.permute.xlu0 %3184
    %vm3187 = vcmask 517376
    %3188 = vst.msk [vmem:[#allocation2] sm:$0x3] %vm3187, %v3185
    %v3190 = vsel %vm895, %v3171, 0
    %3192 = vmatprep.subr.mxu0 0.0
    %3193 = vmatpush1.msra.mxu0 %v107
    %3194 = vmatprep.subr.mxu0 0.0
    %3195 = vmatpush1.msra.mxu0 0.0
    %3196 = vmatprep.subr.mxu0 0.0
    %3197 = vmatpush1.msra.mxu0 0.0
    %3198 = vmatprep.subr.mxu0 0.0
    %3199 = vmatpush1.msra.mxu0 0.0
    %3200 = vmatprep.subr.mxu0 0.0
    %3201 = vmatpush1.msra.mxu0 0.0
    %3202 = vmatprep.subr.mxu0 0.0
    %3203 = vmatpush1.msra.mxu0 0.0
    %3204 = vmatprep.subr.mxu0 0.0
    %3205 = vmatpush1.msra.mxu0 0.0
    %3206 = vmatprep.subr.mxu0 0.0
    %3207 = vmatpush1.msra.mxu0 0.0
    %3208 = vmatprep.subr.mxu0 0.0
    %3209 = vmatpush1.msra.mxu0 0.0
    %3210 = vmatprep.subr.mxu0 0.0
    %3211 = vmatpush1.msra.mxu0 0.0
    %3212 = vmatprep.subr.mxu0 0.0
    %3213 = vmatpush1.msra.mxu0 0.0
    %3214 = vmatprep.subr.mxu0 0.0
    %3215 = vmatpush1.msra.mxu0 0.0
    %3216 = vmatprep.subr.mxu0 0.0
    %3217 = vmatpush1.msra.mxu0 0.0
    %3218 = vmatprep.subr.mxu0 0.0
    %3219 = vmatpush1.msra.mxu0 0.0
    %3220 = vmatprep.subr.mxu0 0.0
    %3221 = vmatpush1.msra.mxu0 0.0
    %3222 = vmatprep.subr.mxu0 0.0
    %3223 = vmatpush1.msra.mxu0 0.0
    %3224 = vmatprep.subr.mxu0 0.0
    %3225 = vmatpush1.msra.mxu0 0.0
    %3226 = vmatprep.subr.mxu0 0.0
    %3227 = vmatpush1.msra.mxu0 0.0
    %3228 = vmatprep.subr.mxu0 0.0
    %3229 = vmatpush1.msra.mxu0 0.0
    %3230 = vmatprep.subr.mxu0 0.0
    %3231 = vmatpush1.msra.mxu0 0.0
    %3232 = vmatprep.subr.mxu0 0.0
    %3233 = vmatpush1.msra.mxu0 0.0
    %3234 = vmatprep.subr.mxu0 0.0
    %3235 = vmatpush1.msra.mxu0 0.0
    %3236 = vmatprep.subr.mxu0 0.0
    %3237 = vmatpush1.msra.mxu0 0.0
    %3238 = vmatprep.subr.mxu0 0.0
    %3239 = vmatpush1.msra.mxu0 0.0
    %3240 = vmatprep.subr.mxu0 0.0
    %3241 = vmatpush1.msra.mxu0 0.0
    %3242 = vmatprep.subr.mxu0 0.0
    %3243 = vmatpush1.msra.mxu0 0.0
    %3244 = vmatprep.subr.mxu0 0.0
    %3245 = vmatpush1.msra.mxu0 0.0
    %3246 = vmatprep.subr.mxu0 0.0
    %3247 = vmatpush1.msra.mxu0 0.0
    %3248 = vmatprep.subr.mxu0 0.0
    %3249 = vmatpush1.msra.mxu0 0.0
    %3250 = vmatprep.subr.mxu0 0.0
    %3251 = vmatpush1.msra.mxu0 0.0
    %3252 = vmatprep.subr.mxu0 0.0
    %3253 = vmatpush1.msra.mxu0 0.0
    %3254 = vmatprep.subr.mxu0 0.0
    %3255 = vmatpush1.msra.mxu0 0.0
    %3256 = vmatprep.mubr.f32.mxu0 0.0
    %3257 = vmatmul.mubr.f32.gmra.mrb[0].mxu0 %v3190
    %v3258 = vpop.f32.mrb[0].mxu0
    %v3259 = vadd.f32 %v893, %v3258
    %v3260 = vpop.f32.mrb[0].mxu0
    %3261 = vdwg.mxu0
    %v3262 = vtanh.pop %v3259
    %v3264 = vrot.slane %v3045, 2
    %v3266 = vadd.f32 %v3262, %v3264
    %v3267 = vmul.f32 %v3266, 0.33333334
    %v3269 = vsel %vm127, %v3267, 0
    %3271 = vmatprep.subr.mxu0 0.0
    %3272 = vmatpush1.msra.mxu0 %v109
    %3273 = vmatprep.subr.mxu0 0.0
    %3274 = vmatpush1.msra.mxu0 %v110
    %3275 = vmatprep.subr.mxu0 0.0
    %3276 = vmatpush1.msra.mxu0 0.0
    %3277 = vmatprep.subr.mxu0 0.0
    %3278 = vmatpush1.msra.mxu0 0.0
    %3279 = vmatprep.subr.mxu0 0.0
    %3280 = vmatpush1.msra.mxu0 0.0
    %3281 = vmatprep.subr.mxu0 0.0
    %3282 = vmatpush1.msra.mxu0 0.0
    %3283 = vmatprep.subr.mxu0 0.0
    %3284 = vmatpush1.msra.mxu0 0.0
    %3285 = vmatprep.subr.mxu0 0.0
    %3286 = vmatpush1.msra.mxu0 0.0
    %3287 = vmatprep.subr.mxu0 0.0
    %3288 = vmatpush1.msra.mxu0 0.0
    %3289 = vmatprep.subr.mxu0 0.0
    %3290 = vmatpush1.msra.mxu0 0.0
    %3291 = vmatprep.subr.mxu0 0.0
    %3292 = vmatpush1.msra.mxu0 0.0
    %3293 = vmatprep.subr.mxu0 0.0
    %3294 = vmatpush1.msra.mxu0 0.0
    %3295 = vmatprep.subr.mxu0 0.0
    %3296 = vmatpush1.msra.mxu0 0.0
    %3297 = vmatprep.subr.mxu0 0.0
    %3298 = vmatpush1.msra.mxu0 0.0
    %3299 = vmatprep.subr.mxu0 0.0
    %3300 = vmatpush1.msra.mxu0 0.0
    %3301 = vmatprep.subr.mxu0 0.0
    %3302 = vmatpush1.msra.mxu0 0.0
    %3303 = vmatprep.subr.mxu0 0.0
    %3304 = vmatpush1.msra.mxu0 0.0
    %3305 = vmatprep.subr.mxu0 0.0
    %3306 = vmatpush1.msra.mxu0 0.0
    %3307 = vmatprep.subr.mxu0 0.0
    %3308 = vmatpush1.msra.mxu0 0.0
    %3309 = vmatprep.subr.mxu0 0.0
    %3310 = vmatpush1.msra.mxu0 0.0
    %3311 = vmatprep.subr.mxu0 0.0
    %3312 = vmatpush1.msra.mxu0 0.0
    %3313 = vmatprep.subr.mxu0 0.0
    %3314 = vmatpush1.msra.mxu0 0.0
    %3315 = vmatprep.subr.mxu0 0.0
    %3316 = vmatpush1.msra.mxu0 0.0
    %3317 = vmatprep.subr.mxu0 0.0
    %3318 = vmatpush1.msra.mxu0 0.0
    %3319 = vmatprep.subr.mxu0 0.0
    %3320 = vmatpush1.msra.mxu0 0.0
    %3321 = vmatprep.subr.mxu0 0.0
    %3322 = vmatpush1.msra.mxu0 0.0
    %3323 = vmatprep.subr.mxu0 0.0
    %3324 = vmatpush1.msra.mxu0 0.0
    %3325 = vmatprep.subr.mxu0 0.0
    %3326 = vmatpush1.msra.mxu0 0.0
    %3327 = vmatprep.subr.mxu0 0.0
    %3328 = vmatpush1.msra.mxu0 0.0
    %3329 = vmatprep.subr.mxu0 0.0
    %3330 = vmatpush1.msra.mxu0 0.0
    %3331 = vmatprep.subr.mxu0 0.0
    %3332 = vmatpush1.msra.mxu0 0.0
    %3333 = vmatprep.subr.mxu0 0.0
    %3334 = vmatpush1.msra.mxu0 0.0
    %3335 = vmatprep.mubr.f32.mxu0 0.0
    %3336 = vmatmul.mubr.f32.gmra.mrb[0].mxu0 %v3269
    %v3337 = vpop.f32.mrb[0].mxu0
    %v3338 = vadd.f32 %v975, %v3337
    %v3339 = vpop.f32.mrb[0].mxu0
    %3340 = vdwg.mxu0
    %v3341 = vmax.f32 %v3338, 0.0
    %v3342 = vand.u32 2147483647, %v3338
    %v3343 = vsub.f32 0.0, %v3342
    %v3344 = vmul.f32 %v3343, 1.442695
    %v3345 = vpow.pop %v3344
    %v3346 = vadd.f32 %v3345, 1.0
    %v3347 = vlog2.pop %v3346
    %v3348 = vmul.f32 %v3347, 0.6931472
    %v3349 = vadd.f32 %v3341, %v3348
    %v3350 = vrot.slane %v3076, 2
    %3351 = vrot.lane.b32.xlu0 %v3350, 8
    %v3352 = vpop.permute.xlu0 %3351
    %v3354 = vmul.f32 %v3349, %v3352
    %3356 = vrot.lane.b32.xlu0 %v3354, 120
    %v3357 = vpop.permute.xlu0 %3356
    %v3359 = vadd.f32 %v3338, %v3357
    %3361 = vrot.lane.b32.xlu0 %v3338, 8
    %v3362 = vpop.permute.xlu0 %3361
    %3365 = vrot.lane.b32.xlu0 %v3349, 8
    %v3366 = vpop.permute.xlu0 %3365
    %3368 = vrot.lane.b32.xlu0 %v3171, 24
    %v3369 = vpop.permute.xlu0 %3368
    %v3371 = vsel %vm895, %v3359, %v3362
    %v3372 = vsel %vm127, %v3371, %v3366
    %v3373 = vsel %vm1082, %v3372, %v3369
    %3375 = vrot.lane.b32.xlu0 %v3373, 32
    %v3376 = vpop.permute.xlu0 %3375
    %3378 = vst.msk [vmem:[#allocation2 + $0x2] sm:$0x3] %vm3187, %v3376
    %v3380 = vsel %vm895, %v3359, 0
    %3382 = vmatprep.subr.mxu0 0.0
    %3383 = vmatpush1.msra.mxu0 %v107
    %3384 = vmatprep.subr.mxu0 0.0
    %3385 = vmatpush1.msra.mxu0 0.0
    %3386 = vmatprep.subr.mxu0 0.0
    %3387 = vmatpush1.msra.mxu0 0.0
    %3388 = vmatprep.subr.mxu0 0.0
    %3389 = vmatpush1.msra.mxu0 0.0
    %3390 = vmatprep.subr.mxu0 0.0
    %3391 = vmatpush1.msra.mxu0 0.0
    %3392 = vmatprep.subr.mxu0 0.0
    %3393 = vmatpush1.msra.mxu0 0.0
    %3394 = vmatprep.subr.mxu0 0.0
    %3395 = vmatpush1.msra.mxu0 0.0
    %3396 = vmatprep.subr.mxu0 0.0
    %3397 = vmatpush1.msra.mxu0 0.0
    %3398 = vmatprep.subr.mxu0 0.0
    %3399 = vmatpush1.msra.mxu0 0.0
    %3400 = vmatprep.subr.mxu0 0.0
    %3401 = vmatpush1.msra.mxu0 0.0
    %3402 = vmatprep.subr.mxu0 0.0
    %3403 = vmatpush1.msra.mxu0 0.0
    %3404 = vmatprep.subr.mxu0 0.0
    %3405 = vmatpush1.msra.mxu0 0.0
    %3406 = vmatprep.subr.mxu0 0.0
    %3407 = vmatpush1.msra.mxu0 0.0
    %3408 = vmatprep.subr.mxu0 0.0
    %3409 = vmatpush1.msra.mxu0 0.0
    %3410 = vmatprep.subr.mxu0 0.0
    %3411 = vmatpush1.msra.mxu0 0.0
    %3412 = vmatprep.subr.mxu0 0.0
    %3413 = vmatpush1.msra.mxu0 0.0
    %3414 = vmatprep.subr.mxu0 0.0
    %3415 = vmatpush1.msra.mxu0 0.0
    %3416 = vmatprep.subr.mxu0 0.0
    %3417 = vmatpush1.msra.mxu0 0.0
    %3418 = vmatprep.subr.mxu0 0.0
    %3419 = vmatpush1.msra.mxu0 0.0
    %3420 = vmatprep.subr.mxu0 0.0
    %3421 = vmatpush1.msra.mxu0 0.0
    %3422 = vmatprep.subr.mxu0 0.0
    %3423 = vmatpush1.msra.mxu0 0.0
    %3424 = vmatprep.subr.mxu0 0.0
    %3425 = vmatpush1.msra.mxu0 0.0
    %3426 = vmatprep.subr.mxu0 0.0
    %3427 = vmatpush1.msra.mxu0 0.0
    %3428 = vmatprep.subr.mxu0 0.0
    %3429 = vmatpush1.msra.mxu0 0.0
    %3430 = vmatprep.subr.mxu0 0.0
    %3431 = vmatpush1.msra.mxu0 0.0
    %3432 = vmatprep.subr.mxu0 0.0
    %3433 = vmatpush1.msra.mxu0 0.0
    %3434 = vmatprep.subr.mxu0 0.0
    %3435 = vmatpush1.msra.mxu0 0.0
    %3436 = vmatprep.subr.mxu0 0.0
    %3437 = vmatpush1.msra.mxu0 0.0
    %3438 = vmatprep.subr.mxu0 0.0
    %3439 = vmatpush1.msra.mxu0 0.0
    %3440 = vmatprep.subr.mxu0 0.0
    %3441 = vmatpush1.msra.mxu0 0.0
    %3442 = vmatprep.subr.mxu0 0.0
    %3443 = vmatpush1.msra.mxu0 0.0
    %3444 = vmatprep.subr.mxu0 0.0
    %3445 = vmatpush1.msra.mxu0 0.0
    %3446 = vmatprep.mubr.f32.mxu0 0.0
    %3447 = vmatmul.mubr.f32.gmra.mrb[0].mxu0 %v3380
    %v3448 = vpop.f32.mrb[0].mxu0
    %v3449 = vadd.f32 %v893, %v3448
    %v3450 = vpop.f32.mrb[0].mxu0
    %3451 = vdwg.mxu0
    %v3452 = vtanh.pop %v3449
    %v3454 = vrot.slane %v3050, 4
    %v3456 = vadd.f32 %v3452, %v3454
    %v3457 = vmul.f32 %v3456, 0.33333334
    %v3459 = vsel %vm127, %v3457, 0
    %3461 = vmatprep.subr.mxu0 0.0
    %3462 = vmatpush1.msra.mxu0 %v109
    %3463 = vmatprep.subr.mxu0 0.0
    %3464 = vmatpush1.msra.mxu0 %v110
    %3465 = vmatprep.subr.mxu0 0.0
    %3466 = vmatpush1.msra.mxu0 0.0
    %3467 = vmatprep.subr.mxu0 0.0
    %3468 = vmatpush1.msra.mxu0 0.0
    %3469 = vmatprep.subr.mxu0 0.0
    %3470 = vmatpush1.msra.mxu0 0.0
    %3471 = vmatprep.subr.mxu0 0.0
    %3472 = vmatpush1.msra.mxu0 0.0
    %3473 = vmatprep.subr.mxu0 0.0
    %3474 = vmatpush1.msra.mxu0 0.0
    %3475 = vmatprep.subr.mxu0 0.0
    %3476 = vmatpush1.msra.mxu0 0.0
    %3477 = vmatprep.subr.mxu0 0.0
    %3478 = vmatpush1.msra.mxu0 0.0
    %3479 = vmatprep.subr.mxu0 0.0
    %3480 = vmatpush1.msra.mxu0 0.0
    %3481 = vmatprep.subr.mxu0 0.0
    %3482 = vmatpush1.msra.mxu0 0.0
    %3483 = vmatprep.subr.mxu0 0.0
    %3484 = vmatpush1.msra.mxu0 0.0
    %3485 = vmatprep.subr.mxu0 0.0
    %3486 = vmatpush1.msra.mxu0 0.0
    %3487 = vmatprep.subr.mxu0 0.0
    %3488 = vmatpush1.msra.mxu0 0.0
    %3489 = vmatprep.subr.mxu0 0.0
    %3490 = vmatpush1.msra.mxu0 0.0
    %3491 = vmatprep.subr.mxu0 0.0
    %3492 = vmatpush1.msra.mxu0 0.0
    %3493 = vmatprep.subr.mxu0 0.0
    %3494 = vmatpush1.msra.mxu0 0.0
    %3495 = vmatprep.subr.mxu0 0.0
    %3496 = vmatpush1.msra.mxu0 0.0
    %3497 = vmatprep.subr.mxu0 0.0
    %3498 = vmatpush1.msra.mxu0 0.0
    %3499 = vmatprep.subr.mxu0 0.0
    %3500 = vmatpush1.msra.mxu0 0.0
    %3501 = vmatprep.subr.mxu0 0.0
    %3502 = vmatpush1.msra.mxu0 0.0
    %3503 = vmatprep.subr.mxu0 0.0
    %3504 = vmatpush1.msra.mxu0 0.0
    %3505 = vmatprep.subr.mxu0 0.0
    %3506 = vmatpush1.msra.mxu0 0.0
    %3507 = vmatprep.subr.mxu0 0.0
    %3508 = vmatpush1.msra.mxu0 0.0
    %3509 = vmatprep.subr.mxu0 0.0
    %3510 = vmatpush1.msra.mxu0 0.0
    %3511 = vmatprep.subr.mxu0 0.0
    %3512 = vmatpush1.msra.mxu0 0.0
    %3513 = vmatprep.subr.mxu0 0.0
    %3514 = vmatpush1.msra.mxu0 0.0
    %3515 = vmatprep.subr.mxu0 0.0
    %3516 = vmatpush1.msra.mxu0 0.0
    %3517 = vmatprep.subr.mxu0 0.0
    %3518 = vmatpush1.msra.mxu0 0.0
    %3519 = vmatprep.subr.mxu0 0.0
    %3520 = vmatpush1.msra.mxu0 0.0
    %3521 = vmatprep.subr.mxu0 0.0
    %3522 = vmatpush1.msra.mxu0 0.0
    %3523 = vmatprep.subr.mxu0 0.0
    %3524 = vmatpush1.msra.mxu0 0.0
    %3525 = vmatprep.mubr.f32.mxu0 0.0
    %3526 = vmatmul.mubr.f32.gmra.mrb[0].mxu0 %v3459
    %v3527 = vpop.f32.mrb[0].mxu0
    %v3528 = vadd.f32 %v975, %v3527
    %v3529 = vpop.f32.mrb[0].mxu0
    %3530 = vdwg.mxu0
    %v3531 = vmax.f32 %v3528, 0.0
    %v3532 = vand.u32 2147483647, %v3528
    %v3533 = vsub.f32 0.0, %v3532
    %v3534 = vmul.f32 %v3533, 1.442695
    %v3535 = vpow.pop %v3534
    %v3536 = vadd.f32 %v3535, 1.0
    %v3537 = vlog2.pop %v3536
    %v3538 = vmul.f32 %v3537, 0.6931472
    %v3539 = vadd.f32 %v3531, %v3538
    %v3540 = vrot.slane %v3076, 4
    %3541 = vrot.lane.b32.xlu0 %v3540, 8
    %v3542 = vpop.permute.xlu0 %3541
    %v3544 = vmul.f32 %v3539, %v3542
    %3546 = vrot.lane.b32.xlu0 %v3544, 120
    %v3547 = vpop.permute.xlu0 %3546
    %v3549 = vadd.f32 %v3528, %v3547
    %3551 = vrot.lane.b32.xlu0 %v3528, 8
    %v3552 = vpop.permute.xlu0 %3551
    %3555 = vrot.lane.b32.xlu0 %v3539, 8
    %v3556 = vpop.permute.xlu0 %3555
    %3558 = vrot.lane.b32.xlu0 %v3359, 24
    %v3559 = vpop.permute.xlu0 %3558
    %v3561 = vsel %vm895, %v3549, %v3552
    %v3562 = vsel %vm127, %v3561, %v3556
    %v3563 = vsel %vm1082, %v3562, %v3559
    %3565 = vrot.lane.b32.xlu0 %v3563, 32
    %v3566 = vpop.permute.xlu0 %3565
    %3568 = vst.msk [vmem:[#allocation2 + $0x4] sm:$0x3] %vm3187, %v3566
    %v3570 = vsel %vm895, %v3549, 0
    %3572 = vmatprep.subr.mxu0 0.0
    %3573 = vmatpush1.msra.mxu0 %v107
    %3574 = vmatprep.subr.mxu0 0.0
    %3575 = vmatpush1.msra.mxu0 0.0
    %3576 = vmatprep.subr.mxu0 0.0
    %3577 = vmatpush1.msra.mxu0 0.0
    %3578 = vmatprep.subr.mxu0 0.0
    %3579 = vmatpush1.msra.mxu0 0.0
    %3580 = vmatprep.subr.mxu0 0.0
    %3581 = vmatpush1.msra.mxu0 0.0
    %3582 = vmatprep.subr.mxu0 0.0
    %3583 = vmatpush1.msra.mxu0 0.0
    %3584 = vmatprep.subr.mxu0 0.0
    %3585 = vmatpush1.msra.mxu0 0.0
    %3586 = vmatprep.subr.mxu0 0.0
    %3587 = vmatpush1.msra.mxu0 0.0
    %3588 = vmatprep.subr.mxu0 0.0
    %3589 = vmatpush1.msra.mxu0 0.0
    %3590 = vmatprep.subr.mxu0 0.0
    %3591 = vmatpush1.msra.mxu0 0.0
    %3592 = vmatprep.subr.mxu0 0.0
    %3593 = vmatpush1.msra.mxu0 0.0
    %3594 = vmatprep.subr.mxu0 0.0
    %3595 = vmatpush1.msra.mxu0 0.0
    %3596 = vmatprep.subr.mxu0 0.0
    %3597 = vmatpush1.msra.mxu0 0.0
    %3598 = vmatprep.subr.mxu0 0.0
    %3599 = vmatpush1.msra.mxu0 0.0
    %3600 = vmatprep.subr.mxu0 0.0
    %3601 = vmatpush1.msra.mxu0 0.0
    %3602 = vmatprep.subr.mxu0 0.0
    %3603 = vmatpush1.msra.mxu0 0.0
    %3604 = vmatprep.subr.mxu0 0.0
    %3605 = vmatpush1.msra.mxu0 0.0
    %3606 = vmatprep.subr.mxu0 0.0
    %3607 = vmatpush1.msra.mxu0 0.0
    %3608 = vmatprep.subr.mxu0 0.0
    %3609 = vmatpush1.msra.mxu0 0.0
    %3610 = vmatprep.subr.mxu0 0.0
    %3611 = vmatpush1.msra.mxu0 0.0
    %3612 = vmatprep.subr.mxu0 0.0
    %3613 = vmatpush1.msra.mxu0 0.0
    %3614 = vmatprep.subr.mxu0 0.0
    %3615 = vmatpush1.msra.mxu0 0.0
    %3616 = vmatprep.subr.mxu0 0.0
    %3617 = vmatpush1.msra.mxu0 0.0
    %3618 = vmatprep.subr.mxu0 0.0
    %3619 = vmatpush1.msra.mxu0 0.0
    %3620 = vmatprep.subr.mxu0 0.0
    %3621 = vmatpush1.msra.mxu0 0.0
    %3622 = vmatprep.subr.mxu0 0.0
    %3623 = vmatpush1.msra.mxu0 0.0
    %3624 = vmatprep.subr.mxu0 0.0
    %3625 = vmatpush1.msra.mxu0 0.0
    %3626 = vmatprep.subr.mxu0 0.0
    %3627 = vmatpush1.msra.mxu0 0.0
    %3628 = vmatprep.subr.mxu0 0.0
    %3629 = vmatpush1.msra.mxu0 0.0
    %3630 = vmatprep.subr.mxu0 0.0
    %3631 = vmatpush1.msra.mxu0 0.0
    %3632 = vmatprep.subr.mxu0 0.0
    %3633 = vmatpush1.msra.mxu0 0.0
    %3634 = vmatprep.subr.mxu0 0.0
    %3635 = vmatpush1.msra.mxu0 0.0
    %3636 = vmatprep.mubr.f32.mxu0 0.0
    %3637 = vmatmul.mubr.f32.gmra.mrb[0].mxu0 %v3570
    %v3638 = vpop.f32.mrb[0].mxu0
    %v3639 = vadd.f32 %v893, %v3638
    %v3640 = vpop.f32.mrb[0].mxu0
    %3641 = vdwg.mxu0
    %v3642 = vtanh.pop %v3639
    %v3644 = vrot.slane %v3055, 6
    %v3646 = vadd.f32 %v3642, %v3644
    %v3647 = vmul.f32 %v3646, 0.33333334
    %v3649 = vsel %vm127, %v3647, 0
    %3651 = vmatprep.subr.mxu0 0.0
    %3652 = vmatpush1.msra.mxu0 %v109
    %3653 = vmatprep.subr.mxu0 0.0
    %3654 = vmatpush1.msra.mxu0 %v110
    %3655 = vmatprep.subr.mxu0 0.0
    %3656 = vmatpush1.msra.mxu0 0.0
    %3657 = vmatprep.subr.mxu0 0.0
    %3658 = vmatpush1.msra.mxu0 0.0
    %3659 = vmatprep.subr.mxu0 0.0
    %3660 = vmatpush1.msra.mxu0 0.0
    %3661 = vmatprep.subr.mxu0 0.0
    %3662 = vmatpush1.msra.mxu0 0.0
    %3663 = vmatprep.subr.mxu0 0.0
    %3664 = vmatpush1.msra.mxu0 0.0
    %3665 = vmatprep.subr.mxu0 0.0
    %3666 = vmatpush1.msra.mxu0 0.0
    %3667 = vmatprep.subr.mxu0 0.0
    %3668 = vmatpush1.msra.mxu0 0.0
    %3669 = vmatprep.subr.mxu0 0.0
    %3670 = vmatpush1.msra.mxu0 0.0
    %3671 = vmatprep.subr.mxu0 0.0
    %3672 = vmatpush1.msra.mxu0 0.0
    %3673 = vmatprep.subr.mxu0 0.0
    %3674 = vmatpush1.msra.mxu0 0.0
    %3675 = vmatprep.subr.mxu0 0.0
    %3676 = vmatpush1.msra.mxu0 0.0
    %3677 = vmatprep.subr.mxu0 0.0
    %3678 = vmatpush1.msra.mxu0 0.0
    %3679 = vmatprep.subr.mxu0 0.0
    %3680 = vmatpush1.msra.mxu0 0.0
    %3681 = vmatprep.subr.mxu0 0.0
    %3682 = vmatpush1.msra.mxu0 0.0
    %3683 = vmatprep.subr.mxu0 0.0
    %3684 = vmatpush1.msra.mxu0 0.0
    %3685 = vmatprep.subr.mxu0 0.0
    %3686 = vmatpush1.msra.mxu0 0.0
    %3687 = vmatprep.subr.mxu0 0.0
    %3688 = vmatpush1.msra.mxu0 0.0
    %3689 = vmatprep.subr.mxu0 0.0
    %3690 = vmatpush1.msra.mxu0 0.0
    %3691 = vmatprep.subr.mxu0 0.0
    %3692 = vmatpush1.msra.mxu0 0.0
    %3693 = vmatprep.subr.mxu0 0.0
    %3694 = vmatpush1.msra.mxu0 0.0
    %3695 = vmatprep.subr.mxu0 0.0
    %3696 = vmatpush1.msra.mxu0 0.0
    %3697 = vmatprep.subr.mxu0 0.0
    %3698 = vmatpush1.msra.mxu0 0.0
    %3699 = vmatprep.subr.mxu0 0.0
    %3700 = vmatpush1.msra.mxu0 0.0
    %3701 = vmatprep.subr.mxu0 0.0
    %3702 = vmatpush1.msra.mxu0 0.0
    %3703 = vmatprep.subr.mxu0 0.0
    %3704 = vmatpush1.msra.mxu0 0.0
    %3705 = vmatprep.subr.mxu0 0.0
    %3706 = vmatpush1.msra.mxu0 0.0
    %3707 = vmatprep.subr.mxu0 0.0
    %3708 = vmatpush1.msra.mxu0 0.0
    %3709 = vmatprep.subr.mxu0 0.0
    %3710 = vmatpush1.msra.mxu0 0.0
    %3711 = vmatprep.subr.mxu0 0.0
    %3712 = vmatpush1.msra.mxu0 0.0
    %3713 = vmatprep.subr.mxu0 0.0
    %3714 = vmatpush1.msra.mxu0 0.0
    %3715 = vmatprep.mubr.f32.mxu0 0.0
    %3716 = vmatmul.mubr.f32.gmra.mrb[0].mxu0 %v3649
    %v3717 = vpop.f32.mrb[0].mxu0
    %v3718 = vadd.f32 %v975, %v3717
    %v3719 = vpop.f32.mrb[0].mxu0
    %3720 = vdwg.mxu0
    %v3721 = vmax.f32 %v3718, 0.0
    %v3722 = vand.u32 2147483647, %v3718
    %v3723 = vsub.f32 0.0, %v3722
    %v3724 = vmul.f32 %v3723, 1.442695
    %v3725 = vpow.pop %v3724
    %v3726 = vadd.f32 %v3725, 1.0
    %v3727 = vlog2.pop %v3726
    %v3728 = vmul.f32 %v3727, 0.6931472
    %v3729 = vadd.f32 %v3721, %v3728
    %v3730 = vrot.slane %v3076, 6
    %3731 = vrot.lane.b32.xlu0 %v3730, 8
    %v3732 = vpop.permute.xlu0 %3731
    %v3734 = vmul.f32 %v3729, %v3732
    %3736 = vrot.lane.b32.xlu0 %v3734, 120
    %v3737 = vpop.permute.xlu0 %3736
    %v3739 = vadd.f32 %v3718, %v3737
    %3741 = vrot.lane.b32.xlu0 %v3718, 8
    %v3742 = vpop.permute.xlu0 %3741
    %3745 = vrot.lane.b32.xlu0 %v3729, 8
    %v3746 = vpop.permute.xlu0 %3745
    %3748 = vrot.lane.b32.xlu0 %v3549, 24
    %v3749 = vpop.permute.xlu0 %3748
    %v3751 = vsel %vm895, %v3739, %v3742
    %v3752 = vsel %vm127, %v3751, %v3746
    %v3753 = vsel %vm1082, %v3752, %v3749
    %3755 = vrot.lane.b32.xlu0 %v3753, 32
    %v3756 = vpop.permute.xlu0 %3755
    %3758 = vst.msk [vmem:[#allocation2 + $0x6] sm:$0x3] %vm3187, %v3756
    %v3760 = vsel %vm895, %v3739, 0
    %3762 = vmatprep.subr.mxu0 0.0
    %3763 = vmatpush1.msra.mxu0 %v107
    %3764 = vmatprep.subr.mxu0 0.0
    %3765 = vmatpush1.msra.mxu0 0.0
    %3766 = vmatprep.subr.mxu0 0.0
    %3767 = vmatpush1.msra.mxu0 0.0
    %3768 = vmatprep.subr.mxu0 0.0
    %3769 = vmatpush1.msra.mxu0 0.0
    %3770 = vmatprep.subr.mxu0 0.0
    %3771 = vmatpush1.msra.mxu0 0.0
    %3772 = vmatprep.subr.mxu0 0.0
    %3773 = vmatpush1.msra.mxu0 0.0
    %3774 = vmatprep.subr.mxu0 0.0
    %3775 = vmatpush1.msra.mxu0 0.0
    %3776 = vmatprep.subr.mxu0 0.0
    %3777 = vmatpush1.msra.mxu0 0.0
    %3778 = vmatprep.subr.mxu0 0.0
    %3779 = vmatpush1.msra.mxu0 0.0
    %3780 = vmatprep.subr.mxu0 0.0
    %3781 = vmatpush1.msra.mxu0 0.0
    %3782 = vmatprep.subr.mxu0 0.0
    %3783 = vmatpush1.msra.mxu0 0.0
    %3784 = vmatprep.subr.mxu0 0.0
    %3785 = vmatpush1.msra.mxu0 0.0
    %3786 = vmatprep.subr.mxu0 0.0
    %3787 = vmatpush1.msra.mxu0 0.0
    %3788 = vmatprep.subr.mxu0 0.0
    %3789 = vmatpush1.msra.mxu0 0.0
    %3790 = vmatprep.subr.mxu0 0.0
    %3791 = vmatpush1.msra.mxu0 0.0
    %3792 = vmatprep.subr.mxu0 0.0
    %3793 = vmatpush1.msra.mxu0 0.0
    %3794 = vmatprep.subr.mxu0 0.0
    %3795 = vmatpush1.msra.mxu0 0.0
    %3796 = vmatprep.subr.mxu0 0.0
    %3797 = vmatpush1.msra.mxu0 0.0
    %3798 = vmatprep.subr.mxu0 0.0
    %3799 = vmatpush1.msra.mxu0 0.0
    %3800 = vmatprep.subr.mxu0 0.0
    %3801 = vmatpush1.msra.mxu0 0.0
    %3802 = vmatprep.subr.mxu0 0.0
    %3803 = vmatpush1.msra.mxu0 0.0
    %3804 = vmatprep.subr.mxu0 0.0
    %3805 = vmatpush1.msra.mxu0 0.0
    %3806 = vmatprep.subr.mxu0 0.0
    %3807 = vmatpush1.msra.mxu0 0.0
    %3808 = vmatprep.subr.mxu0 0.0
    %3809 = vmatpush1.msra.mxu0 0.0
    %3810 = vmatprep.subr.mxu0 0.0
    %3811 = vmatpush1.msra.mxu0 0.0
    %3812 = vmatprep.subr.mxu0 0.0
    %3813 = vmatpush1.msra.mxu0 0.0
    %3814 = vmatprep.subr.mxu0 0.0
    %3815 = vmatpush1.msra.mxu0 0.0
    %3816 = vmatprep.subr.mxu0 0.0
    %3817 = vmatpush1.msra.mxu0 0.0
    %3818 = vmatprep.subr.mxu0 0.0
    %3819 = vmatpush1.msra.mxu0 0.0
    %3820 = vmatprep.subr.mxu0 0.0
    %3821 = vmatpush1.msra.mxu0 0.0
    %3822 = vmatprep.subr.mxu0 0.0
    %3823 = vmatpush1.msra.mxu0 0.0
    %3824 = vmatprep.subr.mxu0 0.0
    %3825 = vmatpush1.msra.mxu0 0.0
    %3826 = vmatprep.mubr.f32.mxu0 0.0
    %3827 = vmatmul.mubr.f32.gmra.mrb[0].mxu0 %v3760
    %v3828 = vpop.f32.mrb[0].mxu0
    %v3829 = vadd.f32 %v893, %v3828
    %v3830 = vpop.f32.mrb[0].mxu0
    %3831 = vdwg.mxu0
    %v3832 = vtanh.pop %v3829
    %v3833 = vadd.f32 %v3832, %v3059
    %v3834 = vmul.f32 %v3833, 0.33333334
    %v3836 = vsel %vm127, %v3834, 0
    %3838 = vmatprep.subr.mxu0 0.0
    %3839 = vmatpush1.msra.mxu0 %v109
    %3840 = vmatprep.subr.mxu0 0.0
    %3841 = vmatpush1.msra.mxu0 %v110
    %3842 = vmatprep.subr.mxu0 0.0
    %3843 = vmatpush1.msra.mxu0 0.0
    %3844 = vmatprep.subr.mxu0 0.0
    %3845 = vmatpush1.msra.mxu0 0.0
    %3846 = vmatprep.subr.mxu0 0.0
    %3847 = vmatpush1.msra.mxu0 0.0
    %3848 = vmatprep.subr.mxu0 0.0
    %3849 = vmatpush1.msra.mxu0 0.0
    %3850 = vmatprep.subr.mxu0 0.0
    %3851 = vmatpush1.msra.mxu0 0.0
    %3852 = vmatprep.subr.mxu0 0.0
    %3853 = vmatpush1.msra.mxu0 0.0
    %3854 = vmatprep.subr.mxu0 0.0
    %3855 = vmatpush1.msra.mxu0 0.0
    %3856 = vmatprep.subr.mxu0 0.0
    %3857 = vmatpush1.msra.mxu0 0.0
    %3858 = vmatprep.subr.mxu0 0.0
    %3859 = vmatpush1.msra.mxu0 0.0
    %3860 = vmatprep.subr.mxu0 0.0
    %3861 = vmatpush1.msra.mxu0 0.0
    %3862 = vmatprep.subr.mxu0 0.0
    %3863 = vmatpush1.msra.mxu0 0.0
    %3864 = vmatprep.subr.mxu0 0.0
    %3865 = vmatpush1.msra.mxu0 0.0
    %3866 = vmatprep.subr.mxu0 0.0
    %3867 = vmatpush1.msra.mxu0 0.0
    %3868 = vmatprep.subr.mxu0 0.0
    %3869 = vmatpush1.msra.mxu0 0.0
    %3870 = vmatprep.subr.mxu0 0.0
    %3871 = vmatpush1.msra.mxu0 0.0
    %3872 = vmatprep.subr.mxu0 0.0
    %3873 = vmatpush1.msra.mxu0 0.0
    %3874 = vmatprep.subr.mxu0 0.0
    %3875 = vmatpush1.msra.mxu0 0.0
    %3876 = vmatprep.subr.mxu0 0.0
    %3877 = vmatpush1.msra.mxu0 0.0
    %3878 = vmatprep.subr.mxu0 0.0
    %3879 = vmatpush1.msra.mxu0 0.0
    %3880 = vmatprep.subr.mxu0 0.0
    %3881 = vmatpush1.msra.mxu0 0.0
    %3882 = vmatprep.subr.mxu0 0.0
    %3883 = vmatpush1.msra.mxu0 0.0
    %3884 = vmatprep.subr.mxu0 0.0
    %3885 = vmatpush1.msra.mxu0 0.0
    %3886 = vmatprep.subr.mxu0 0.0
    %3887 = vmatpush1.msra.mxu0 0.0
    %3888 = vmatprep.subr.mxu0 0.0
    %3889 = vmatpush1.msra.mxu0 0.0
    %3890 = vmatprep.subr.mxu0 0.0
    %3891 = vmatpush1.msra.mxu0 0.0
    %3892 = vmatprep.subr.mxu0 0.0
    %3893 = vmatpush1.msra.mxu0 0.0
    %3894 = vmatprep.subr.mxu0 0.0
    %3895 = vmatpush1.msra.mxu0 0.0
    %3896 = vmatprep.subr.mxu0 0.0
    %3897 = vmatpush1.msra.mxu0 0.0
    %3898 = vmatprep.subr.mxu0 0.0
    %3899 = vmatpush1.msra.mxu0 0.0
    %3900 = vmatprep.subr.mxu0 0.0
    %3901 = vmatpush1.msra.mxu0 0.0
    %3902 = vmatprep.mubr.f32.mxu0 0.0
    %3903 = vmatmul.mubr.f32.gmra.mrb[0].mxu0 %v3836
    %v3904 = vpop.f32.mrb[0].mxu0
    %v3905 = vadd.f32 %v975, %v3904
    %v3906 = vpop.f32.mrb[0].mxu0
    %3907 = vdwg.mxu0
    %v3908 = vmax.f32 %v3905, 0.0
    %v3909 = vand.u32 2147483647, %v3905
    %v3910 = vsub.f32 0.0, %v3909
    %v3911 = vmul.f32 %v3910, 1.442695
    %v3912 = vpow.pop %v3911
    %v3913 = vadd.f32 %v3912, 1.0
    %v3914 = vlog2.pop %v3913
    %v3915 = vmul.f32 %v3914, 0.6931472
    %v3916 = vadd.f32 %v3908, %v3915
    %3918 = vrot.lane.b32.xlu0 %v3077, 8
    %v3919 = vpop.permute.xlu0 %3918
    %v3921 = vmul.f32 %v3916, %v3919
    %3923 = vrot.lane.b32.xlu0 %v3921, 120
    %v3924 = vpop.permute.xlu0 %3923
    %v3926 = vadd.f32 %v3905, %v3924
    %3928 = vrot.lane.b32.xlu0 %v3905, 8
    %v3929 = vpop.permute.xlu0 %3928
    %3932 = vrot.lane.b32.xlu0 %v3916, 8
    %v3933 = vpop.permute.xlu0 %3932
    %3935 = vrot.lane.b32.xlu0 %v3739, 24
    %v3936 = vpop.permute.xlu0 %3935
    %v3938 = vsel %vm895, %v3926, %v3929
    %v3939 = vsel %vm127, %v3938, %v3933
    %v3940 = vsel %vm1082, %v3939, %v3936
    %3942 = vrot.lane.b32.xlu0 %v3940, 32
    %v3943 = vpop.permute.xlu0 %3942
    %3945 = vst.msk [vmem:[#allocation2 + $0x8] sm:$0x3] %vm3187, %v3943
    %v3947 = vsel %vm895, %v3926, 0
    %3949 = vmatprep.subr.mxu0 0.0
    %3950 = vmatpush1.msra.mxu0 %v107
    %3951 = vmatprep.subr.mxu0 0.0
    %3952 = vmatpush1.msra.mxu0 0.0
    %3953 = vmatprep.subr.mxu0 0.0
    %3954 = vmatpush1.msra.mxu0 0.0
    %3955 = vmatprep.subr.mxu0 0.0
    %3956 = vmatpush1.msra.mxu0 0.0
    %3957 = vmatprep.subr.mxu0 0.0
    %3958 = vmatpush1.msra.mxu0 0.0
    %3959 = vmatprep.subr.mxu0 0.0
    %3960 = vmatpush1.msra.mxu0 0.0
    %3961 = vmatprep.subr.mxu0 0.0
    %3962 = vmatpush1.msra.mxu0 0.0
    %3963 = vmatprep.subr.mxu0 0.0
    %3964 = vmatpush1.msra.mxu0 0.0
    %3965 = vmatprep.subr.mxu0 0.0
    %3966 = vmatpush1.msra.mxu0 0.0
    %3967 = vmatprep.subr.mxu0 0.0
    %3968 = vmatpush1.msra.mxu0 0.0
    %3969 = vmatprep.subr.mxu0 0.0
    %3970 = vmatpush1.msra.mxu0 0.0
    %3971 = vmatprep.subr.mxu0 0.0
    %3972 = vmatpush1.msra.mxu0 0.0
    %3973 = vmatprep.subr.mxu0 0.0
    %3974 = vmatpush1.msra.mxu0 0.0
    %3975 = vmatprep.subr.mxu0 0.0
    %3976 = vmatpush1.msra.mxu0 0.0
    %3977 = vmatprep.subr.mxu0 0.0
    %3978 = vmatpush1.msra.mxu0 0.0
    %3979 = vmatprep.subr.mxu0 0.0
    %3980 = vmatpush1.msra.mxu0 0.0
    %3981 = vmatprep.subr.mxu0 0.0
    %3982 = vmatpush1.msra.mxu0 0.0
    %3983 = vmatprep.subr.mxu0 0.0
    %3984 = vmatpush1.msra.mxu0 0.0
    %3985 = vmatprep.subr.mxu0 0.0
    %3986 = vmatpush1.msra.mxu0 0.0
    %3987 = vmatprep.subr.mxu0 0.0
    %3988 = vmatpush1.msra.mxu0 0.0
    %3989 = vmatprep.subr.mxu0 0.0
    %3990 = vmatpush1.msra.mxu0 0.0
    %3991 = vmatprep.subr.mxu0 0.0
    %3992 = vmatpush1.msra.mxu0 0.0
    %3993 = vmatprep.subr.mxu0 0.0
    %3994 = vmatpush1.msra.mxu0 0.0
    %3995 = vmatprep.subr.mxu0 0.0
    %3996 = vmatpush1.msra.mxu0 0.0
    %3997 = vmatprep.subr.mxu0 0.0
    %3998 = vmatpush1.msra.mxu0 0.0
    %3999 = vmatprep.subr.mxu0 0.0
    %4000 = vmatpush1.msra.mxu0 0.0
    %4001 = vmatprep.subr.mxu0 0.0
    %4002 = vmatpush1.msra.mxu0 0.0
    %4003 = vmatprep.subr.mxu0 0.0
    %4004 = vmatpush1.msra.mxu0 0.0
    %4005 = vmatprep.subr.mxu0 0.0
    %4006 = vmatpush1.msra.mxu0 0.0
    %4007 = vmatprep.subr.mxu0 0.0
    %4008 = vmatpush1.msra.mxu0 0.0
    %4009 = vmatprep.subr.mxu0 0.0
    %4010 = vmatpush1.msra.mxu0 0.0
    %4011 = vmatprep.subr.mxu0 0.0
    %4012 = vmatpush1.msra.mxu0 0.0
    %4013 = vmatprep.mubr.f32.mxu0 0.0
    %4014 = vmatmul.mubr.f32.gmra.mrb[0].mxu0 %v3947
    %v4015 = vpop.f32.mrb[0].mxu0
    %v4016 = vadd.f32 %v893, %v4015
    %v4017 = vpop.f32.mrb[0].mxu0
    %4018 = vdwg.mxu0
    %v4019 = vtanh.pop %v4016
    %v4021 = vrot.slane %v3064, 2
    %v4023 = vadd.f32 %v4019, %v4021
    %v4024 = vmul.f32 %v4023, 0.33333334
    %v4026 = vsel %vm127, %v4024, 0
    %4028 = vmatprep.subr.mxu0 0.0
    %4029 = vmatpush1.msra.mxu0 %v109
    %4030 = vmatprep.subr.mxu0 0.0
    %4031 = vmatpush1.msra.mxu0 %v110
    %4032 = vmatprep.subr.mxu0 0.0
    %4033 = vmatpush1.msra.mxu0 0.0
    %4034 = vmatprep.subr.mxu0 0.0
    %4035 = vmatpush1.msra.mxu0 0.0
    %4036 = vmatprep.subr.mxu0 0.0
    %4037 = vmatpush1.msra.mxu0 0.0
    %4038 = vmatprep.subr.mxu0 0.0
    %4039 = vmatpush1.msra.mxu0 0.0
    %4040 = vmatprep.subr.mxu0 0.0
    %4041 = vmatpush1.msra.mxu0 0.0
    %4042 = vmatprep.subr.mxu0 0.0
    %4043 = vmatpush1.msra.mxu0 0.0
    %4044 = vmatprep.subr.mxu0 0.0
    %4045 = vmatpush1.msra.mxu0 0.0
    %4046 = vmatprep.subr.mxu0 0.0
    %4047 = vmatpush1.msra.mxu0 0.0
    %4048 = vmatprep.subr.mxu0 0.0
    %4049 = vmatpush1.msra.mxu0 0.0
    %4050 = vmatprep.subr.mxu0 0.0
    %4051 = vmatpush1.msra.mxu0 0.0
    %4052 = vmatprep.subr.mxu0 0.0
    %4053 = vmatpush1.msra.mxu0 0.0
    %4054 = vmatprep.subr.mxu0 0.0
    %4055 = vmatpush1.msra.mxu0 0.0
    %4056 = vmatprep.subr.mxu0 0.0
    %4057 = vmatpush1.msra.mxu0 0.0
    %4058 = vmatprep.subr.mxu0 0.0
    %4059 = vmatpush1.msra.mxu0 0.0
    %4060 = vmatprep.subr.mxu0 0.0
    %4061 = vmatpush1.msra.mxu0 0.0
    %4062 = vmatprep.subr.mxu0 0.0
    %4063 = vmatpush1.msra.mxu0 0.0
    %4064 = vmatprep.subr.mxu0 0.0
    %4065 = vmatpush1.msra.mxu0 0.0
    %4066 = vmatprep.subr.mxu0 0.0
    %4067 = vmatpush1.msra.mxu0 0.0
    %4068 = vmatprep.subr.mxu0 0.0
    %4069 = vmatpush1.msra.mxu0 0.0
    %4070 = vmatprep.subr.mxu0 0.0
    %4071 = vmatpush1.msra.mxu0 0.0
    %4072 = vmatprep.subr.mxu0 0.0
    %4073 = vmatpush1.msra.mxu0 0.0
    %4074 = vmatprep.subr.mxu0 0.0
    %4075 = vmatpush1.msra.mxu0 0.0
    %4076 = vmatprep.subr.mxu0 0.0
    %4077 = vmatpush1.msra.mxu0 0.0
    %4078 = vmatprep.subr.mxu0 0.0
    %4079 = vmatpush1.msra.mxu0 0.0
    %4080 = vmatprep.subr.mxu0 0.0
    %4081 = vmatpush1.msra.mxu0 0.0
    %4082 = vmatprep.subr.mxu0 0.0
    %4083 = vmatpush1.msra.mxu0 0.0
    %4084 = vmatprep.subr.mxu0 0.0
    %4085 = vmatpush1.msra.mxu0 0.0
    %4086 = vmatprep.subr.mxu0 0.0
    %4087 = vmatpush1.msra.mxu0 0.0
    %4088 = vmatprep.subr.mxu0 0.0
    %4089 = vmatpush1.msra.mxu0 0.0
    %4090 = vmatprep.subr.mxu0 0.0
    %4091 = vmatpush1.msra.mxu0 0.0
    %4092 = vmatprep.mubr.f32.mxu0 0.0
    %4093 = vmatmul.mubr.f32.gmra.mrb[0].mxu0 %v4026
    %v4094 = vpop.f32.mrb[0].mxu0
    %v4095 = vadd.f32 %v975, %v4094
    %v4096 = vpop.f32.mrb[0].mxu0
    %4097 = vdwg.mxu0
    %v4098 = vmax.f32 %v4095, 0.0
    %v4099 = vand.u32 2147483647, %v4095
    %v4100 = vsub.f32 0.0, %v4099
    %v4101 = vmul.f32 %v4100, 1.442695
    %v4102 = vpow.pop %v4101
    %v4103 = vadd.f32 %v4102, 1.0
    %v4104 = vlog2.pop %v4103
    %v4105 = vmul.f32 %v4104, 0.6931472
    %v4106 = vadd.f32 %v4098, %v4105
    %v4107 = vrot.slane %v3077, 2
    %4108 = vrot.lane.b32.xlu0 %v4107, 8
    %v4109 = vpop.permute.xlu0 %4108
    %v4111 = vmul.f32 %v4106, %v4109
    %4113 = vrot.lane.b32.xlu0 %v4111, 120
    %v4114 = vpop.permute.xlu0 %4113
    %v4116 = vadd.f32 %v4095, %v4114
    %4118 = vrot.lane.b32.xlu0 %v4095, 8
    %v4119 = vpop.permute.xlu0 %4118
    %4122 = vrot.lane.b32.xlu0 %v4106, 8
    %v4123 = vpop.permute.xlu0 %4122
    %4125 = vrot.lane.b32.xlu0 %v3926, 24
    %v4126 = vpop.permute.xlu0 %4125
    %v4128 = vsel %vm895, %v4116, %v4119
    %v4129 = vsel %vm127, %v4128, %v4123
    %v4130 = vsel %vm1082, %v4129, %v4126
    %4132 = vrot.lane.b32.xlu0 %v4130, 32
    %v4133 = vpop.permute.xlu0 %4132
    %4135 = vst.msk [vmem:[#allocation2 + $0xa] sm:$0x3] %vm3187, %v4133
    %v4137 = vsel %vm895, %v4116, 0
    %4139 = vmatprep.subr.mxu0 0.0
    %4140 = vmatpush1.msra.mxu0 %v107
    %4141 = vmatprep.subr.mxu0 0.0
    %4142 = vmatpush1.msra.mxu0 0.0
    %4143 = vmatprep.subr.mxu0 0.0
    %4144 = vmatpush1.msra.mxu0 0.0
    %4145 = vmatprep.subr.mxu0 0.0
    %4146 = vmatpush1.msra.mxu0 0.0
    %4147 = vmatprep.subr.mxu0 0.0
    %4148 = vmatpush1.msra.mxu0 0.0
    %4149 = vmatprep.subr.mxu0 0.0
    %4150 = vmatpush1.msra.mxu0 0.0
    %4151 = vmatprep.subr.mxu0 0.0
    %4152 = vmatpush1.msra.mxu0 0.0
    %4153 = vmatprep.subr.mxu0 0.0
    %4154 = vmatpush1.msra.mxu0 0.0
    %4155 = vmatprep.subr.mxu0 0.0
    %4156 = vmatpush1.msra.mxu0 0.0
    %4157 = vmatprep.subr.mxu0 0.0
    %4158 = vmatpush1.msra.mxu0 0.0
    %4159 = vmatprep.subr.mxu0 0.0
    %4160 = vmatpush1.msra.mxu0 0.0
    %4161 = vmatprep.subr.mxu0 0.0
    %4162 = vmatpush1.msra.mxu0 0.0
    %4163 = vmatprep.subr.mxu0 0.0
    %4164 = vmatpush1.msra.mxu0 0.0
    %4165 = vmatprep.subr.mxu0 0.0
    %4166 = vmatpush1.msra.mxu0 0.0
    %4167 = vmatprep.subr.mxu0 0.0
    %4168 = vmatpush1.msra.mxu0 0.0
    %4169 = vmatprep.subr.mxu0 0.0
    %4170 = vmatpush1.msra.mxu0 0.0
    %4171 = vmatprep.subr.mxu0 0.0
    %4172 = vmatpush1.msra.mxu0 0.0
    %4173 = vmatprep.subr.mxu0 0.0
    %4174 = vmatpush1.msra.mxu0 0.0
    %4175 = vmatprep.subr.mxu0 0.0
    %4176 = vmatpush1.msra.mxu0 0.0
    %4177 = vmatprep.subr.mxu0 0.0
    %4178 = vmatpush1.msra.mxu0 0.0
    %4179 = vmatprep.subr.mxu0 0.0
    %4180 = vmatpush1.msra.mxu0 0.0
    %4181 = vmatprep.subr.mxu0 0.0
    %4182 = vmatpush1.msra.mxu0 0.0
    %4183 = vmatprep.subr.mxu0 0.0
    %4184 = vmatpush1.msra.mxu0 0.0
    %4185 = vmatprep.subr.mxu0 0.0
    %4186 = vmatpush1.msra.mxu0 0.0
    %4187 = vmatprep.subr.mxu0 0.0
    %4188 = vmatpush1.msra.mxu0 0.0
    %4189 = vmatprep.subr.mxu0 0.0
    %4190 = vmatpush1.msra.mxu0 0.0
    %4191 = vmatprep.subr.mxu0 0.0
    %4192 = vmatpush1.msra.mxu0 0.0
    %4193 = vmatprep.subr.mxu0 0.0
    %4194 = vmatpush1.msra.mxu0 0.0
    %4195 = vmatprep.subr.mxu0 0.0
    %4196 = vmatpush1.msra.mxu0 0.0
    %4197 = vmatprep.subr.mxu0 0.0
    %4198 = vmatpush1.msra.mxu0 0.0
    %4199 = vmatprep.subr.mxu0 0.0
    %4200 = vmatpush1.msra.mxu0 0.0
    %4201 = vmatprep.subr.mxu0 0.0
    %4202 = vmatpush1.msra.mxu0 0.0
    %4203 = vmatprep.mubr.f32.mxu0 0.0
    %4204 = vmatmul.mubr.f32.gmra.mrb[0].mxu0 %v4137
    %v4205 = vpop.f32.mrb[0].mxu0
    %v4206 = vadd.f32 %v893, %v4205
    %v4207 = vpop.f32.mrb[0].mxu0
    %4208 = vdwg.mxu0
    %v4209 = vtanh.pop %v4206
    %v4211 = vrot.slane %v3069, 4
    %v4213 = vadd.f32 %v4209, %v4211
    %v4214 = vmul.f32 %v4213, 0.33333334
    %v4216 = vsel %vm127, %v4214, 0
    %4218 = vmatprep.subr.mxu0 0.0
    %4219 = vmatpush1.msra.mxu0 %v109
    %4220 = vmatprep.subr.mxu0 0.0
    %4221 = vmatpush1.msra.mxu0 %v110
    %4222 = vmatprep.subr.mxu0 0.0
    %4223 = vmatpush1.msra.mxu0 0.0
    %4224 = vmatprep.subr.mxu0 0.0
    %4225 = vmatpush1.msra.mxu0 0.0
    %4226 = vmatprep.subr.mxu0 0.0
    %4227 = vmatpush1.msra.mxu0 0.0
    %4228 = vmatprep.subr.mxu0 0.0
    %4229 = vmatpush1.msra.mxu0 0.0
    %4230 = vmatprep.subr.mxu0 0.0
    %4231 = vmatpush1.msra.mxu0 0.0
    %4232 = vmatprep.subr.mxu0 0.0
    %4233 = vmatpush1.msra.mxu0 0.0
    %4234 = vmatprep.subr.mxu0 0.0
    %4235 = vmatpush1.msra.mxu0 0.0
    %4236 = vmatprep.subr.mxu0 0.0
    %4237 = vmatpush1.msra.mxu0 0.0
    %4238 = vmatprep.subr.mxu0 0.0
    %4239 = vmatpush1.msra.mxu0 0.0
    %4240 = vmatprep.subr.mxu0 0.0
    %4241 = vmatpush1.msra.mxu0 0.0
    %4242 = vmatprep.subr.mxu0 0.0
    %4243 = vmatpush1.msra.mxu0 0.0
    %4244 = vmatprep.subr.mxu0 0.0
    %4245 = vmatpush1.msra.mxu0 0.0
    %4246 = vmatprep.subr.mxu0 0.0
    %4247 = vmatpush1.msra.mxu0 0.0
    %4248 = vmatprep.subr.mxu0 0.0
    %4249 = vmatpush1.msra.mxu0 0.0
    %4250 = vmatprep.subr.mxu0 0.0
    %4251 = vmatpush1.msra.mxu0 0.0
    %4252 = vmatprep.subr.mxu0 0.0
    %4253 = vmatpush1.msra.mxu0 0.0
    %4254 = vmatprep.subr.mxu0 0.0
    %4255 = vmatpush1.msra.mxu0 0.0
    %4256 = vmatprep.subr.mxu0 0.0
    %4257 = vmatpush1.msra.mxu0 0.0
    %4258 = vmatprep.subr.mxu0 0.0
    %4259 = vmatpush1.msra.mxu0 0.0
    %4260 = vmatprep.subr.mxu0 0.0
    %4261 = vmatpush1.msra.mxu0 0.0
    %4262 = vmatprep.subr.mxu0 0.0
    %4263 = vmatpush1.msra.mxu0 0.0
    %4264 = vmatprep.subr.mxu0 0.0
    %4265 = vmatpush1.msra.mxu0 0.0
    %4266 = vmatprep.subr.mxu0 0.0
    %4267 = vmatpush1.msra.mxu0 0.0
    %4268 = vmatprep.subr.mxu0 0.0
    %4269 = vmatpush1.msra.mxu0 0.0
    %4270 = vmatprep.subr.mxu0 0.0
    %4271 = vmatpush1.msra.mxu0 0.0
    %4272 = vmatprep.subr.mxu0 0.0
    %4273 = vmatpush1.msra.mxu0 0.0
    %4274 = vmatprep.subr.mxu0 0.0
    %4275 = vmatpush1.msra.mxu0 0.0
    %4276 = vmatprep.subr.mxu0 0.0
    %4277 = vmatpush1.msra.mxu0 0.0
    %4278 = vmatprep.subr.mxu0 0.0
    %4279 = vmatpush1.msra.mxu0 0.0
    %4280 = vmatprep.subr.mxu0 0.0
    %4281 = vmatpush1.msra.mxu0 0.0
    %4282 = vmatprep.mubr.f32.mxu0 0.0
    %4283 = vmatmul.mubr.f32.gmra.mrb[0].mxu0 %v4216
    %v4284 = vpop.f32.mrb[0].mxu0
    %v4285 = vadd.f32 %v975, %v4284
    %v4286 = vpop.f32.mrb[0].mxu0
    %4287 = vdwg.mxu0
    %v4288 = vmax.f32 %v4285, 0.0
    %v4289 = vand.u32 2147483647, %v4285
    %v4290 = vsub.f32 0.0, %v4289
    %v4291 = vmul.f32 %v4290, 1.442695
    %v4292 = vpow.pop %v4291
    %v4293 = vadd.f32 %v4292, 1.0
    %v4294 = vlog2.pop %v4293
    %v4295 = vmul.f32 %v4294, 0.6931472
    %v4296 = vadd.f32 %v4288, %v4295
    %v4297 = vrot.slane %v3077, 4
    %4298 = vrot.lane.b32.xlu0 %v4297, 8
    %v4299 = vpop.permute.xlu0 %4298
    %v4301 = vmul.f32 %v4296, %v4299
    %4303 = vrot.lane.b32.xlu0 %v4301, 120
    %v4304 = vpop.permute.xlu0 %4303
    %v4306 = vadd.f32 %v4285, %v4304
    %4308 = vrot.lane.b32.xlu0 %v4285, 8
    %v4309 = vpop.permute.xlu0 %4308
    %4312 = vrot.lane.b32.xlu0 %v4296, 8
    %v4313 = vpop.permute.xlu0 %4312
    %4315 = vrot.lane.b32.xlu0 %v4116, 24
    %v4316 = vpop.permute.xlu0 %4315
    %v4318 = vsel %vm895, %v4306, %v4309
    %v4319 = vsel %vm127, %v4318, %v4313
    %v4320 = vsel %vm1082, %v4319, %v4316
    %4322 = vrot.lane.b32.xlu0 %v4320, 32
    %v4323 = vpop.permute.xlu0 %4322
    %4325 = vst.msk [vmem:[#allocation2 + $0xc] sm:$0x3] %vm3187, %v4323
    %v4327 = vsel %vm895, %v4306, 0
    %4329 = vmatprep.subr.mxu0 0.0
    %4330 = vmatpush1.msra.mxu0 %v107
    %4331 = vmatprep.subr.mxu0 0.0
    %4332 = vmatpush1.msra.mxu0 0.0
    %4333 = vmatprep.subr.mxu0 0.0
    %4334 = vmatpush1.msra.mxu0 0.0
    %4335 = vmatprep.subr.mxu0 0.0
    %4336 = vmatpush1.msra.mxu0 0.0
    %4337 = vmatprep.subr.mxu0 0.0
    %4338 = vmatpush1.msra.mxu0 0.0
    %4339 = vmatprep.subr.mxu0 0.0
    %4340 = vmatpush1.msra.mxu0 0.0
    %4341 = vmatprep.subr.mxu0 0.0
    %4342 = vmatpush1.msra.mxu0 0.0
    %4343 = vmatprep.subr.mxu0 0.0
    %4344 = vmatpush1.msra.mxu0 0.0
    %4345 = vmatprep.subr.mxu0 0.0
    %4346 = vmatpush1.msra.mxu0 0.0
    %4347 = vmatprep.subr.mxu0 0.0
    %4348 = vmatpush1.msra.mxu0 0.0
    %4349 = vmatprep.subr.mxu0 0.0
    %4350 = vmatpush1.msra.mxu0 0.0
    %4351 = vmatprep.subr.mxu0 0.0
    %4352 = vmatpush1.msra.mxu0 0.0
    %4353 = vmatprep.subr.mxu0 0.0
    %4354 = vmatpush1.msra.mxu0 0.0
    %4355 = vmatprep.subr.mxu0 0.0
    %4356 = vmatpush1.msra.mxu0 0.0
    %4357 = vmatprep.subr.mxu0 0.0
    %4358 = vmatpush1.msra.mxu0 0.0
    %4359 = vmatprep.subr.mxu0 0.0
    %4360 = vmatpush1.msra.mxu0 0.0
    %4361 = vmatprep.subr.mxu0 0.0
    %4362 = vmatpush1.msra.mxu0 0.0
    %4363 = vmatprep.subr.mxu0 0.0
    %4364 = vmatpush1.msra.mxu0 0.0
    %4365 = vmatprep.subr.mxu0 0.0
    %4366 = vmatpush1.msra.mxu0 0.0
    %4367 = vmatprep.subr.mxu0 0.0
    %4368 = vmatpush1.msra.mxu0 0.0
    %4369 = vmatprep.subr.mxu0 0.0
    %4370 = vmatpush1.msra.mxu0 0.0
    %4371 = vmatprep.subr.mxu0 0.0
    %4372 = vmatpush1.msra.mxu0 0.0
    %4373 = vmatprep.subr.mxu0 0.0
    %4374 = vmatpush1.msra.mxu0 0.0
    %4375 = vmatprep.subr.mxu0 0.0
    %4376 = vmatpush1.msra.mxu0 0.0
    %4377 = vmatprep.subr.mxu0 0.0
    %4378 = vmatpush1.msra.mxu0 0.0
    %4379 = vmatprep.subr.mxu0 0.0
    %4380 = vmatpush1.msra.mxu0 0.0
    %4381 = vmatprep.subr.mxu0 0.0
    %4382 = vmatpush1.msra.mxu0 0.0
    %4383 = vmatprep.subr.mxu0 0.0
    %4384 = vmatpush1.msra.mxu0 0.0
    %4385 = vmatprep.subr.mxu0 0.0
    %4386 = vmatpush1.msra.mxu0 0.0
    %4387 = vmatprep.subr.mxu0 0.0
    %4388 = vmatpush1.msra.mxu0 0.0
    %4389 = vmatprep.subr.mxu0 0.0
    %4390 = vmatpush1.msra.mxu0 0.0
    %4391 = vmatprep.subr.mxu0 0.0
    %4392 = vmatpush1.msra.mxu0 0.0
    %4393 = vmatprep.mubr.f32.mxu0 0.0
    %4394 = vmatmul.mubr.f32.gmra.mrb[0].mxu0 %v4327
    %v4395 = vpop.f32.mrb[0].mxu0
    %v4396 = vadd.f32 %v893, %v4395
    %v4397 = vpop.f32.mrb[0].mxu0
    %4398 = vdwg.mxu0
    %v4399 = vtanh.pop %v4396
    %v4401 = vrot.slane %v3074, 6
    %v4403 = vadd.f32 %v4399, %v4401
    %v4404 = vmul.f32 %v4403, 0.33333334
    %v4406 = vsel %vm127, %v4404, 0
    %4408 = vmatprep.subr.mxu0 0.0
    %4409 = vmatpush1.msra.mxu0 %v109
    %4410 = vmatprep.subr.mxu0 0.0
    %4411 = vmatpush1.msra.mxu0 %v110
    %4412 = vmatprep.subr.mxu0 0.0
    %4413 = vmatpush1.msra.mxu0 0.0
    %4414 = vmatprep.subr.mxu0 0.0
    %4415 = vmatpush1.msra.mxu0 0.0
    %4416 = vmatprep.subr.mxu0 0.0
    %4417 = vmatpush1.msra.mxu0 0.0
    %4418 = vmatprep.subr.mxu0 0.0
    %4419 = vmatpush1.msra.mxu0 0.0
    %4420 = vmatprep.subr.mxu0 0.0
    %4421 = vmatpush1.msra.mxu0 0.0
    %4422 = vmatprep.subr.mxu0 0.0
    %4423 = vmatpush1.msra.mxu0 0.0
    %4424 = vmatprep.subr.mxu0 0.0
    %4425 = vmatpush1.msra.mxu0 0.0
    %4426 = vmatprep.subr.mxu0 0.0
    %4427 = vmatpush1.msra.mxu0 0.0
    %4428 = vmatprep.subr.mxu0 0.0
    %4429 = vmatpush1.msra.mxu0 0.0
    %4430 = vmatprep.subr.mxu0 0.0
    %4431 = vmatpush1.msra.mxu0 0.0
    %4432 = vmatprep.subr.mxu0 0.0
    %4433 = vmatpush1.msra.mxu0 0.0
    %4434 = vmatprep.subr.mxu0 0.0
    %4435 = vmatpush1.msra.mxu0 0.0
    %4436 = vmatprep.subr.mxu0 0.0
    %4437 = vmatpush1.msra.mxu0 0.0
    %4438 = vmatprep.subr.mxu0 0.0
    %4439 = vmatpush1.msra.mxu0 0.0
    %4440 = vmatprep.subr.mxu0 0.0
    %4441 = vmatpush1.msra.mxu0 0.0
    %4442 = vmatprep.subr.mxu0 0.0
    %4443 = vmatpush1.msra.mxu0 0.0
    %4444 = vmatprep.subr.mxu0 0.0
    %4445 = vmatpush1.msra.mxu0 0.0
    %4446 = vmatprep.subr.mxu0 0.0
    %4447 = vmatpush1.msra.mxu0 0.0
    %4448 = vmatprep.subr.mxu0 0.0
    %4449 = vmatpush1.msra.mxu0 0.0
    %4450 = vmatprep.subr.mxu0 0.0
    %4451 = vmatpush1.msra.mxu0 0.0
    %4452 = vmatprep.subr.mxu0 0.0
    %4453 = vmatpush1.msra.mxu0 0.0
    %4454 = vmatprep.subr.mxu0 0.0
    %4455 = vmatpush1.msra.mxu0 0.0
    %4456 = vmatprep.subr.mxu0 0.0
    %4457 = vmatpush1.msra.mxu0 0.0
    %4458 = vmatprep.subr.mxu0 0.0
    %4459 = vmatpush1.msra.mxu0 0.0
    %4460 = vmatprep.subr.mxu0 0.0
    %4461 = vmatpush1.msra.mxu0 0.0
    %4462 = vmatprep.subr.mxu0 0.0
    %4463 = vmatpush1.msra.mxu0 0.0
    %4464 = vmatprep.subr.mxu0 0.0
    %4465 = vmatpush1.msra.mxu0 0.0
    %4466 = vmatprep.subr.mxu0 0.0
    %4467 = vmatpush1.msra.mxu0 0.0
    %4468 = vmatprep.subr.mxu0 0.0
    %4469 = vmatpush1.msra.mxu0 0.0
    %4470 = vmatprep.subr.mxu0 0.0
    %4471 = vmatpush1.msra.mxu0 0.0
    %4472 = vmatprep.mubr.f32.mxu0 0.0
    %4473 = vmatmul.mubr.f32.gmra.mrb[0].mxu0 %v4406
    %v4474 = vpop.f32.mrb[0].mxu0
    %v4475 = vadd.f32 %v975, %v4474
    %v4476 = vpop.f32.mrb[0].mxu0
    %4477 = vdwg.mxu0
    %v4478 = vmax.f32 %v4475, 0.0
    %v4479 = vand.u32 2147483647, %v4475
    %v4480 = vsub.f32 0.0, %v4479
    %v4481 = vmul.f32 %v4480, 1.442695
    %v4482 = vpow.pop %v4481
    %v4483 = vadd.f32 %v4482, 1.0
    %v4484 = vlog2.pop %v4483
    %v4485 = vmul.f32 %v4484, 0.6931472
    %v4486 = vadd.f32 %v4478, %v4485
    %v4487 = vrot.slane %v3077, 6
    %4488 = vrot.lane.b32.xlu0 %v4487, 8
    %v4489 = vpop.permute.xlu0 %4488
    %v4491 = vmul.f32 %v4486, %v4489
    %4493 = vrot.lane.b32.xlu0 %v4491, 120
    %v4494 = vpop.permute.xlu0 %4493
    %v4496 = vadd.f32 %v4475, %v4494
    %4498 = vrot.lane.b32.xlu0 %v4475, 8
    %v4499 = vpop.permute.xlu0 %4498
    %4502 = vrot.lane.b32.xlu0 %v4486, 8
    %v4503 = vpop.permute.xlu0 %4502
    %4505 = vrot.lane.b32.xlu0 %v4306, 24
    %v4506 = vpop.permute.xlu0 %4505
    %v4508 = vsel %vm895, %v4496, %v4499
    %v4509 = vsel %vm127, %v4508, %v4503
    %v4510 = vsel %vm1082, %v4509, %v4506
    %4512 = vrot.lane.b32.xlu0 %v4510, 32
    %v4513 = vpop.permute.xlu0 %4512
    %4515 = vst.msk [vmem:[#allocation2 + $0xe] sm:$0x3] %vm3187, %v4513
    %v4516 = vld [vmem:[#allocation2] sm:$0xff]
    %v4517 = vld [vmem:[#allocation2 + $0x8] sm:$0xff]
    %v4518 = vld [vmem:[%s9] sm:$0xff]
    %v4519 = vld [vmem:[%s10] sm:$0x1]
    %v4520 = vld [vmem:[%s11] sm:$0xff]
    %v4521 = vld [vmem:[%s11 + $0x8] sm:$0xff]
    %v4522 = vld [vmem:[%s11 + $0x10] sm:$0xff]
    %v4523 = vld [vmem:[%s12] sm:$0x1]
    %v4524 = vld [vmem:[%s13] sm:$0xff]
    %v4525 = vld [vmem:[%s14] sm:$0x1]
    %v4527 = vlaneseq
    %v4528 = vshrl.u32 %v4527, 7
    %v4529 = vsub.s32 0, %v4528
    %v4530 = vrot.slane %v4519, %v4529
    %4534 = vrot.lane.b32.xlu0 %v4516, 104
    %v4535 = vpop.permute.xlu0 %4534
    %4536 = vrot.lane.b32.xlu0 %v4517, 104
    %v4537 = vpop.permute.xlu0 %4536
    %v4538 = vsel %vm895, %v4535, 0
    %v4540 = vsel %vm895, %v4537, 0
    %4542 = vmatprep.subr.mxu0 0.0
    %4543 = vmatpush1.msra.mxu0 %v4518
    %4544 = vmatprep.subr.mxu0 0.0
    %4545 = vmatpush1.msra.mxu0 0.0
    %4546 = vmatprep.subr.mxu0 0.0
    %4547 = vmatpush1.msra.mxu0 0.0
    %4548 = vmatprep.subr.mxu0 0.0
    %4549 = vmatpush1.msra.mxu0 0.0
    %4550 = vmatprep.subr.mxu0 0.0
    %4551 = vmatpush1.msra.mxu0 0.0
    %4552 = vmatprep.subr.mxu0 0.0
    %4553 = vmatpush1.msra.mxu0 0.0
    %4554 = vmatprep.subr.mxu0 0.0
    %4555 = vmatpush1.msra.mxu0 0.0
    %4556 = vmatprep.subr.mxu0 0.0
    %4557 = vmatpush1.msra.mxu0 0.0
    %4558 = vmatprep.subr.mxu0 0.0
    %4559 = vmatpush1.msra.mxu0 0.0
    %4560 = vmatprep.subr.mxu0 0.0
    %4561 = vmatpush1.msra.mxu0 0.0
    %4562 = vmatprep.subr.mxu0 0.0
    %4563 = vmatpush1.msra.mxu0 0.0
    %4564 = vmatprep.subr.mxu0 0.0
    %4565 = vmatpush1.msra.mxu0 0.0
    %4566 = vmatprep.subr.mxu0 0.0
    %4567 = vmatpush1.msra.mxu0 0.0
    %4568 = vmatprep.subr.mxu0 0.0
    %4569 = vmatpush1.msra.mxu0 0.0
    %4570 = vmatprep.subr.mxu0 0.0
    %4571 = vmatpush1.msra.mxu0 0.0
    %4572 = vmatprep.subr.mxu0 0.0
    %4573 = vmatpush1.msra.mxu0 0.0
    %4574 = vmatprep.subr.mxu0 0.0
    %4575 = vmatpush1.msra.mxu0 0.0
    %4576 = vmatprep.subr.mxu0 0.0
    %4577 = vmatpush1.msra.mxu0 0.0
    %4578 = vmatprep.subr.mxu0 0.0
    %4579 = vmatpush1.msra.mxu0 0.0
    %4580 = vmatprep.subr.mxu0 0.0
    %4581 = vmatpush1.msra.mxu0 0.0
    %4582 = vmatprep.subr.mxu0 0.0
    %4583 = vmatpush1.msra.mxu0 0.0
    %4584 = vmatprep.subr.mxu0 0.0
    %4585 = vmatpush1.msra.mxu0 0.0
    %4586 = vmatprep.subr.mxu0 0.0
    %4587 = vmatpush1.msra.mxu0 0.0
    %4588 = vmatprep.subr.mxu0 0.0
    %4589 = vmatpush1.msra.mxu0 0.0
    %4590 = vmatprep.subr.mxu0 0.0
    %4591 = vmatpush1.msra.mxu0 0.0
    %4592 = vmatprep.subr.mxu0 0.0
    %4593 = vmatpush1.msra.mxu0 0.0
    %4594 = vmatprep.subr.mxu0 0.0
    %4595 = vmatpush1.msra.mxu0 0.0
    %4596 = vmatprep.subr.mxu0 0.0
    %4597 = vmatpush1.msra.mxu0 0.0
    %4598 = vmatprep.subr.mxu0 0.0
    %4599 = vmatpush1.msra.mxu0 0.0
    %4600 = vmatprep.subr.mxu0 0.0
    %4601 = vmatpush1.msra.mxu0 0.0
    %4602 = vmatprep.subr.mxu0 0.0
    %4603 = vmatpush1.msra.mxu0 0.0
    %4604 = vmatprep.subr.mxu0 0.0
    %4605 = vmatpush1.msra.mxu0 0.0
    %4606 = vmatprep.mubr.f32.mxu0 0.0
    %4607 = vmatmul.mubr.f32.gmra.mrb[0].mxu0 %v4538
    %v4608 = vpop.f32.mrb[0].mxu0
    %v4609 = vadd.f32 %v4530, %v4608
    %v4610 = vpop.f32.mrb[0].mxu0
    %4611 = vmatprep.mubr.f32.mxu0 0.0
    %4612 = vmatmul.mubr.f32.gmra.mrb[0].mxu0 %v4540
    %v4613 = vpop.f32.mrb[0].mxu0
    %v4614 = vadd.f32 %v4530, %v4613
    %v4615 = vpop.f32.mrb[0].mxu0
    %4616 = vdwg.mxu0
    %v4617 = vmax.f32 %v4609, 0.0
    %v4618 = vmax.f32 %v4614, 0.0
    %v4620 = vlaneseq
    %v4621 = vshrl.u32 %v4620, 7
    %v4622 = vsub.s32 0, %v4621
    %v4623 = vrot.slane %v4523, %v4622
    %v4626 = vsel %vm1082, %v4617, 0
    %v4629 = vsel %vm1082, %v4618, 0
    %4631 = vmatprep.subr.mxu0 0.0
    %4632 = vmatpush1.msra.mxu0 %v4520
    %4633 = vmatprep.subr.mxu0 0.0
    %4634 = vmatpush1.msra.mxu0 %v4521
    %4635 = vmatprep.subr.mxu0 0.0
    %4636 = vmatpush1.msra.mxu0 %v4522
    %4637 = vmatprep.subr.mxu0 0.0
    %4638 = vmatpush1.msra.mxu0 0.0
    %4639 = vmatprep.subr.mxu0 0.0
    %4640 = vmatpush1.msra.mxu0 0.0
    %4641 = vmatprep.subr.mxu0 0.0
    %4642 = vmatpush1.msra.mxu0 0.0
    %4643 = vmatprep.subr.mxu0 0.0
    %4644 = vmatpush1.msra.mxu0 0.0
    %4645 = vmatprep.subr.mxu0 0.0
    %4646 = vmatpush1.msra.mxu0 0.0
    %4647 = vmatprep.subr.mxu0 0.0
    %4648 = vmatpush1.msra.mxu0 0.0
    %4649 = vmatprep.subr.mxu0 0.0
    %4650 = vmatpush1.msra.mxu0 0.0
    %4651 = vmatprep.subr.mxu0 0.0
    %4652 = vmatpush1.msra.mxu0 0.0
    %4653 = vmatprep.subr.mxu0 0.0
    %4654 = vmatpush1.msra.mxu0 0.0
    %4655 = vmatprep.subr.mxu0 0.0
    %4656 = vmatpush1.msra.mxu0 0.0
    %4657 = vmatprep.subr.mxu0 0.0
    %4658 = vmatpush1.msra.mxu0 0.0
    %4659 = vmatprep.subr.mxu0 0.0
    %4660 = vmatpush1.msra.mxu0 0.0
    %4661 = vmatprep.subr.mxu0 0.0
    %4662 = vmatpush1.msra.mxu0 0.0
    %4663 = vmatprep.subr.mxu0 0.0
    %4664 = vmatpush1.msra.mxu0 0.0
    %4665 = vmatprep.subr.mxu0 0.0
    %4666 = vmatpush1.msra.mxu0 0.0
    %4667 = vmatprep.subr.mxu0 0.0
    %4668 = vmatpush1.msra.mxu0 0.0
    %4669 = vmatprep.subr.mxu0 0.0
    %4670 = vmatpush1.msra.mxu0 0.0
    %4671 = vmatprep.subr.mxu0 0.0
    %4672 = vmatpush1.msra.mxu0 0.0
    %4673 = vmatprep.subr.mxu0 0.0
    %4674 = vmatpush1.msra.mxu0 0.0
    %4675 = vmatprep.subr.mxu0 0.0
    %4676 = vmatpush1.msra.mxu0 0.0
    %4677 = vmatprep.subr.mxu0 0.0
    %4678 = vmatpush1.msra.mxu0 0.0
    %4679 = vmatprep.subr.mxu0 0.0
    %4680 = vmatpush1.msra.mxu0 0.0
    %4681 = vmatprep.subr.mxu0 0.0
    %4682 = vmatpush1.msra.mxu0 0.0
    %4683 = vmatprep.subr.mxu0 0.0
    %4684 = vmatpush1.msra.mxu0 0.0
    %4685 = vmatprep.subr.mxu0 0.0
    %4686 = vmatpush1.msra.mxu0 0.0
    %4687 = vmatprep.subr.mxu0 0.0
    %4688 = vmatpush1.msra.mxu0 0.0
    %4689 = vmatprep.subr.mxu0 0.0
    %4690 = vmatpush1.msra.mxu0 0.0
    %4691 = vmatprep.subr.mxu0 0.0
    %4692 = vmatpush1.msra.mxu0 0.0
    %4693 = vmatprep.subr.mxu0 0.0
    %4694 = vmatpush1.msra.mxu0 0.0
    %4695 = vmatprep.mubr.f32.mxu0 0.0
    %4696 = vmatmul.mubr.f32.gmra.mrb[0].mxu0 %v4626
    %v4697 = vpop.f32.mrb[0].mxu0
    %v4698 = vadd.f32 %v4623, %v4697
    %v4699 = vpop.f32.mrb[0].mxu0
    %4700 = vmatprep.mubr.f32.mxu0 0.0
    %4701 = vmatmul.mubr.f32.gmra.mrb[0].mxu0 %v4629
    %v4702 = vpop.f32.mrb[0].mxu0
    %v4703 = vadd.f32 %v4623, %v4702
    %v4704 = vpop.f32.mrb[0].mxu0
    %4705 = vdwg.mxu0
    %v4706 = vsub.f32 0.0, %v4698
    %v4707 = vsub.f32 0.0, %v4703
    %v4708 = vmul.f32 %v4706, 1.442695
    %v4709 = vpow.pop %v4708
    %v4710 = vmul.f32 %v4707, 1.442695
    %v4711 = vpow.pop %v4710
    %v4712 = vadd.f32 %v4709, 1.0
    %v4713 = vadd.f32 %v4711, 1.0
    %v4714 = vrcp.pop %v4712
    %v4715 = vrcp.pop %v4713
    %v4716 = vsub.f32 1.0, %v4714
    %v4717 = vsub.f32 1.0, %v4715
    %4720 = vrot.lane.b32.xlu0 %v4609, 104
    %v4721 = vpop.permute.xlu0 %4720
    %4722 = vrot.lane.b32.xlu0 %v4614, 104
    %v4723 = vpop.permute.xlu0 %4722
    %v4726 = vmul.f32 %v4716, %v4721
    %v4727 = vmul.f32 %v4717, %v4723
    %4730 = vrot.lane.b32.xlu0 %v4698, 120
    %v4731 = vpop.permute.xlu0 %4730
    %4732 = vrot.lane.b32.xlu0 %v4703, 120
    %v4733 = vpop.permute.xlu0 %4732
    %v4736 = vmul.f32 %v4714, %v4731
    %v4737 = vmul.f32 %v4715, %v4733
    %v4738 = vadd.f32 %v4726, %v4736
    %v4739 = vadd.f32 %v4727, %v4737
    %v4740 = vmax.f32 %v4698, 0.0
    %v4741 = vmax.f32 %v4703, 0.0
    %v4743 = vlaneseq
    %v4744 = vshrl.u32 %v4743, 7
    %v4745 = vsub.s32 0, %v4744
    %v4746 = vrot.slane %v4525, %v4745
    %4750 = vrot.lane.b32.xlu0 %v4740, 120
    %v4751 = vpop.permute.xlu0 %4750
    %4752 = vrot.lane.b32.xlu0 %v4741, 120
    %v4753 = vpop.permute.xlu0 %4752
    %v4754 = vsel %vm895, %v4751, 0
    %v4756 = vsel %vm895, %v4753, 0
    %4758 = vmatprep.subr.mxu0 0.0
    %4759 = vmatpush1.msra.mxu0 %v4524
    %4760 = vmatprep.subr.mxu0 0.0
    %4761 = vmatpush1.msra.mxu0 0.0
    %4762 = vmatprep.subr.mxu0 0.0
    %4763 = vmatpush1.msra.mxu0 0.0
    %4764 = vmatprep.subr.mxu0 0.0
    %4765 = vmatpush1.msra.mxu0 0.0
    %4766 = vmatprep.subr.mxu0 0.0
    %4767 = vmatpush1.msra.mxu0 0.0
    %4768 = vmatprep.subr.mxu0 0.0
    %4769 = vmatpush1.msra.mxu0 0.0
    %4770 = vmatprep.subr.mxu0 0.0
    %4771 = vmatpush1.msra.mxu0 0.0
    %4772 = vmatprep.subr.mxu0 0.0
    %4773 = vmatpush1.msra.mxu0 0.0
    %4774 = vmatprep.subr.mxu0 0.0
    %4775 = vmatpush1.msra.mxu0 0.0
    %4776 = vmatprep.subr.mxu0 0.0
    %4777 = vmatpush1.msra.mxu0 0.0
    %4778 = vmatprep.subr.mxu0 0.0
    %4779 = vmatpush1.msra.mxu0 0.0
    %4780 = vmatprep.subr.mxu0 0.0
    %4781 = vmatpush1.msra.mxu0 0.0
    %4782 = vmatprep.subr.mxu0 0.0
    %4783 = vmatpush1.msra.mxu0 0.0
    %4784 = vmatprep.subr.mxu0 0.0
    %4785 = vmatpush1.msra.mxu0 0.0
    %4786 = vmatprep.subr.mxu0 0.0
    %4787 = vmatpush1.msra.mxu0 0.0
    %4788 = vmatprep.subr.mxu0 0.0
    %4789 = vmatpush1.msra.mxu0 0.0
    %4790 = vmatprep.subr.mxu0 0.0
    %4791 = vmatpush1.msra.mxu0 0.0
    %4792 = vmatprep.subr.mxu0 0.0
    %4793 = vmatpush1.msra.mxu0 0.0
    %4794 = vmatprep.subr.mxu0 0.0
    %4795 = vmatpush1.msra.mxu0 0.0
    %4796 = vmatprep.subr.mxu0 0.0
    %4797 = vmatpush1.msra.mxu0 0.0
    %4798 = vmatprep.subr.mxu0 0.0
    %4799 = vmatpush1.msra.mxu0 0.0
    %4800 = vmatprep.subr.mxu0 0.0
    %4801 = vmatpush1.msra.mxu0 0.0
    %4802 = vmatprep.subr.mxu0 0.0
    %4803 = vmatpush1.msra.mxu0 0.0
    %4804 = vmatprep.subr.mxu0 0.0
    %4805 = vmatpush1.msra.mxu0 0.0
    %4806 = vmatprep.subr.mxu0 0.0
    %4807 = vmatpush1.msra.mxu0 0.0
    %4808 = vmatprep.subr.mxu0 0.0
    %4809 = vmatpush1.msra.mxu0 0.0
    %4810 = vmatprep.subr.mxu0 0.0
    %4811 = vmatpush1.msra.mxu0 0.0
    %4812 = vmatprep.subr.mxu0 0.0
    %4813 = vmatpush1.msra.mxu0 0.0
    %4814 = vmatprep.subr.mxu0 0.0
    %4815 = vmatpush1.msra.mxu0 0.0
    %4816 = vmatprep.subr.mxu0 0.0
    %4817 = vmatpush1.msra.mxu0 0.0
    %4818 = vmatprep.subr.mxu0 0.0
    %4819 = vmatpush1.msra.mxu0 0.0
    %4820 = vmatprep.subr.mxu0 0.0
    %4821 = vmatpush1.msra.mxu0 0.0
    %4822 = vmatprep.mubr.f32.mxu0 0.0
    %4823 = vmatmul.mubr.f32.gmra.mrb[0].mxu0 %v4754
    %v4824 = vpop.f32.mrb[0].mxu0
    %v4825 = vadd.f32 %v4746, %v4824
    %v4826 = vpop.f32.mrb[0].mxu0
    %4827 = vmatprep.mubr.f32.mxu0 0.0
    %4828 = vmatmul.mubr.f32.gmra.mrb[0].mxu0 %v4756
    %v4829 = vpop.f32.mrb[0].mxu0
    %v4830 = vadd.f32 %v4746, %v4829
    %v4831 = vpop.f32.mrb[0].mxu0
    %4832 = vdwg.mxu0
    %v4833 = vmax.f32 %v4825, 0.0
    %v4834 = vmax.f32 %v4830, 0.0
    %v4835 = vand.u32 2147483647, %v4825
    %v4836 = vand.u32 2147483647, %v4830
    %v4837 = vsub.f32 0.0, %v4835
    %v4838 = vsub.f32 0.0, %v4836
    %v4839 = vmul.f32 %v4837, 1.442695
    %v4840 = vpow.pop %v4839
    %v4841 = vmul.f32 %v4838, 1.442695
    %v4842 = vpow.pop %v4841
    %v4843 = vadd.f32 %v4840, 1.0
    %v4844 = vadd.f32 %v4842, 1.0
    %v4845 = vlog2.pop %v4843
    %v4846 = vmul.f32 %v4845, 0.6931472
    %v4847 = vlog2.pop %v4844
    %v4848 = vmul.f32 %v4847, 0.6931472
    %v4849 = vadd.f32 %v4833, %v4846
    %v4850 = vadd.f32 %v4834, %v4848
    %v4851 = vld [vmem:[%s15] sm:$0xff]
    %v4852 = vld [vmem:[%s16] sm:$0x1]
    %v4854 = vlaneseq
    %v4855 = vshrl.u32 %v4854, 7
    %v4856 = vsub.s32 0, %v4855
    %v4857 = vrot.slane %v4852, %v4856
    %v4859 = vsel %vm895, %v4516, 0
    %v4861 = vsel %vm895, %v4517, 0
    %4863 = vmatprep.subr.mxu0 0.0
    %4864 = vmatpush1.msra.mxu0 %v4851
    %4865 = vmatprep.subr.mxu0 0.0
    %4866 = vmatpush1.msra.mxu0 0.0
    %4867 = vmatprep.subr.mxu0 0.0
    %4868 = vmatpush1.msra.mxu0 0.0
    %4869 = vmatprep.subr.mxu0 0.0
    %4870 = vmatpush1.msra.mxu0 0.0
    %4871 = vmatprep.subr.mxu0 0.0
    %4872 = vmatpush1.msra.mxu0 0.0
    %4873 = vmatprep.subr.mxu0 0.0
    %4874 = vmatpush1.msra.mxu0 0.0
    %4875 = vmatprep.subr.mxu0 0.0
    %4876 = vmatpush1.msra.mxu0 0.0
    %4877 = vmatprep.subr.mxu0 0.0
    %4878 = vmatpush1.msra.mxu0 0.0
    %4879 = vmatprep.subr.mxu0 0.0
    %4880 = vmatpush1.msra.mxu0 0.0
    %4881 = vmatprep.subr.mxu0 0.0
    %4882 = vmatpush1.msra.mxu0 0.0
    %4883 = vmatprep.subr.mxu0 0.0
    %4884 = vmatpush1.msra.mxu0 0.0
    %4885 = vmatprep.subr.mxu0 0.0
    %4886 = vmatpush1.msra.mxu0 0.0
    %4887 = vmatprep.subr.mxu0 0.0
    %4888 = vmatpush1.msra.mxu0 0.0
    %4889 = vmatprep.subr.mxu0 0.0
    %4890 = vmatpush1.msra.mxu0 0.0
    %4891 = vmatprep.subr.mxu0 0.0
    %4892 = vmatpush1.msra.mxu0 0.0
    %4893 = vmatprep.subr.mxu0 0.0
    %4894 = vmatpush1.msra.mxu0 0.0
    %4895 = vmatprep.subr.mxu0 0.0
    %4896 = vmatpush1.msra.mxu0 0.0
    %4897 = vmatprep.subr.mxu0 0.0
    %4898 = vmatpush1.msra.mxu0 0.0
    %4899 = vmatprep.subr.mxu0 0.0
    %4900 = vmatpush1.msra.mxu0 0.0
    %4901 = vmatprep.subr.mxu0 0.0
    %4902 = vmatpush1.msra.mxu0 0.0
    %4903 = vmatprep.subr.mxu0 0.0
    %4904 = vmatpush1.msra.mxu0 0.0
    %4905 = vmatprep.subr.mxu0 0.0
    %4906 = vmatpush1.msra.mxu0 0.0
    %4907 = vmatprep.subr.mxu0 0.0
    %4908 = vmatpush1.msra.mxu0 0.0
    %4909 = vmatprep.subr.mxu0 0.0
    %4910 = vmatpush1.msra.mxu0 0.0
    %4911 = vmatprep.subr.mxu0 0.0
    %4912 = vmatpush1.msra.mxu0 0.0
    %4913 = vmatprep.subr.mxu0 0.0
    %4914 = vmatpush1.msra.mxu0 0.0
    %4915 = vmatprep.subr.mxu0 0.0
    %4916 = vmatpush1.msra.mxu0 0.0
    %4917 = vmatprep.subr.mxu0 0.0
    %4918 = vmatpush1.msra.mxu0 0.0
    %4919 = vmatprep.subr.mxu0 0.0
    %4920 = vmatpush1.msra.mxu0 0.0
    %4921 = vmatprep.subr.mxu0 0.0
    %4922 = vmatpush1.msra.mxu0 0.0
    %4923 = vmatprep.subr.mxu0 0.0
    %4924 = vmatpush1.msra.mxu0 0.0
    %4925 = vmatprep.subr.mxu0 0.0
    %4926 = vmatpush1.msra.mxu0 0.0
    %4927 = vmatprep.mubr.f32.mxu0 0.0
    %4928 = vmatmul.mubr.f32.gmra.mrb[0].mxu0 %v4859
    %v4929 = vpop.f32.mrb[0].mxu0
    %v4930 = vadd.f32 %v4857, %v4929
    %v4931 = vpop.f32.mrb[0].mxu0
    %4932 = vmatprep.mubr.f32.mxu0 0.0
    %4933 = vmatmul.mubr.f32.gmra.mrb[0].mxu0 %v4861
    %v4934 = vpop.f32.mrb[0].mxu0
    %v4935 = vadd.f32 %v4857, %v4934
    %v4936 = vpop.f32.mrb[0].mxu0
    %4937 = vdwg.mxu0
    %v4938 = vmax.f32 %v4930, 0.0
    %v4939 = vmax.f32 %v4935, 0.0
    %v4940 = vld [vmem:[%s17] sm:$0xff]
    %v4941 = vld [vmem:[%s17 + $0x8] sm:$0xff]
    %v4942 = vld [vmem:[%s17 + $0x10] sm:$0xff]
    %v4943 = vld [vmem:[%s18] sm:$0x1]
    %v4945 = vlaneseq
    %v4946 = vshrl.u32 %v4945, 7
    %v4947 = vsub.s32 0, %v4946
    %v4948 = vrot.slane %v4943, %v4947
    %v4951 = vsel %vm1082, %v4938, 0
    %v4954 = vsel %vm1082, %v4939, 0
    %4956 = vmatprep.subr.mxu0 0.0
    %4957 = vmatpush1.msra.mxu0 %v4940
    %4958 = vmatprep.subr.mxu0 0.0
    %4959 = vmatpush1.msra.mxu0 %v4941
    %4960 = vmatprep.subr.mxu0 0.0
    %4961 = vmatpush1.msra.mxu0 %v4942
    %4962 = vmatprep.subr.mxu0 0.0
    %4963 = vmatpush1.msra.mxu0 0.0
    %4964 = vmatprep.subr.mxu0 0.0
    %4965 = vmatpush1.msra.mxu0 0.0
    %4966 = vmatprep.subr.mxu0 0.0
    %4967 = vmatpush1.msra.mxu0 0.0
    %4968 = vmatprep.subr.mxu0 0.0
    %4969 = vmatpush1.msra.mxu0 0.0
    %4970 = vmatprep.subr.mxu0 0.0
    %4971 = vmatpush1.msra.mxu0 0.0
    %4972 = vmatprep.subr.mxu0 0.0
    %4973 = vmatpush1.msra.mxu0 0.0
    %4974 = vmatprep.subr.mxu0 0.0
    %4975 = vmatpush1.msra.mxu0 0.0
    %4976 = vmatprep.subr.mxu0 0.0
    %4977 = vmatpush1.msra.mxu0 0.0
    %4978 = vmatprep.subr.mxu0 0.0
    %4979 = vmatpush1.msra.mxu0 0.0
    %4980 = vmatprep.subr.mxu0 0.0
    %4981 = vmatpush1.msra.mxu0 0.0
    %4982 = vmatprep.subr.mxu0 0.0
    %4983 = vmatpush1.msra.mxu0 0.0
    %4984 = vmatprep.subr.mxu0 0.0
    %4985 = vmatpush1.msra.mxu0 0.0
    %4986 = vmatprep.subr.mxu0 0.0
    %4987 = vmatpush1.msra.mxu0 0.0
    %4988 = vmatprep.subr.mxu0 0.0
    %4989 = vmatpush1.msra.mxu0 0.0
    %4990 = vmatprep.subr.mxu0 0.0
    %4991 = vmatpush1.msra.mxu0 0.0
    %4992 = vmatprep.subr.mxu0 0.0
    %4993 = vmatpush1.msra.mxu0 0.0
    %4994 = vmatprep.subr.mxu0 0.0
    %4995 = vmatpush1.msra.mxu0 0.0
    %4996 = vmatprep.subr.mxu0 0.0
    %4997 = vmatpush1.msra.mxu0 0.0
    %4998 = vmatprep.subr.mxu0 0.0
    %4999 = vmatpush1.msra.mxu0 0.0
    %5000 = vmatprep.subr.mxu0 0.0
    %5001 = vmatpush1.msra.mxu0 0.0
    %5002 = vmatprep.subr.mxu0 0.0
    %5003 = vmatpush1.msra.mxu0 0.0
    %5004 = vmatprep.subr.mxu0 0.0
    %5005 = vmatpush1.msra.mxu0 0.0
    %5006 = vmatprep.subr.mxu0 0.0
    %5007 = vmatpush1.msra.mxu0 0.0
    %5008 = vmatprep.subr.mxu0 0.0
    %5009 = vmatpush1.msra.mxu0 0.0
    %5010 = vmatprep.subr.mxu0 0.0
    %5011 = vmatpush1.msra.mxu0 0.0
    %5012 = vmatprep.subr.mxu0 0.0
    %5013 = vmatpush1.msra.mxu0 0.0
    %5014 = vmatprep.subr.mxu0 0.0
    %5015 = vmatpush1.msra.mxu0 0.0
    %5016 = vmatprep.subr.mxu0 0.0
    %5017 = vmatpush1.msra.mxu0 0.0
    %5018 = vmatprep.subr.mxu0 0.0
    %5019 = vmatpush1.msra.mxu0 0.0
    %5020 = vmatprep.mubr.f32.mxu0 0.0
    %5021 = vmatmul.mubr.f32.gmra.mrb[0].mxu0 %v4951
    %v5022 = vpop.f32.mrb[0].mxu0
    %v5023 = vadd.f32 %v4948, %v5022
    %v5024 = vpop.f32.mrb[0].mxu0
    %5025 = vmatprep.mubr.f32.mxu0 0.0
    %5026 = vmatmul.mubr.f32.gmra.mrb[0].mxu0 %v4954
    %v5027 = vpop.f32.mrb[0].mxu0
    %v5028 = vadd.f32 %v4948, %v5027
    %v5029 = vpop.f32.mrb[0].mxu0
    %5030 = vdwg.mxu0
    %v5031 = vmax.f32 %v5023, 0.0
    %v5032 = vmax.f32 %v5028, 0.0
    %v5033 = vand.u32 2147483647, %v5023
    %v5034 = vand.u32 2147483647, %v5028
    %v5035 = vsub.f32 0.0, %v5033
    %v5036 = vsub.f32 0.0, %v5034
    %v5037 = vmul.f32 %v5035, 1.442695
    %v5038 = vpow.pop %v5037
    %v5039 = vmul.f32 %v5036, 1.442695
    %v5040 = vpow.pop %v5039
    %v5041 = vadd.f32 %v5038, 1.0
    %v5042 = vadd.f32 %v5040, 1.0
    %v5043 = vlog2.pop %v5041
    %v5044 = vmul.f32 %v5043, 0.6931472
    %v5045 = vlog2.pop %v5042
    %v5046 = vmul.f32 %v5045, 0.6931472
    %v5047 = vadd.f32 %v5031, %v5044
    %v5048 = vadd.f32 %v5032, %v5046
    %5051 = vrot.lane.b32.xlu0 %v4738, 24
    %v5052 = vpop.permute.xlu0 %5051
    %5053 = vrot.lane.b32.xlu0 %v4739, 24
    %v5054 = vpop.permute.xlu0 %5053
    %5059 = vrot.lane.b32.xlu0 %v4849, 32
    %v5060 = vpop.permute.xlu0 %5059
    %5061 = vrot.lane.b32.xlu0 %v4850, 32
    %v5062 = vpop.permute.xlu0 %5061
    %5067 = vrot.lane.b32.xlu0 %v5023, 40
    %v5068 = vpop.permute.xlu0 %5067
    %5069 = vrot.lane.b32.xlu0 %v5028, 40
    %v5070 = vpop.permute.xlu0 %5069
    %5075 = vrot.lane.b32.xlu0 %v5047, 40
    %v5076 = vpop.permute.xlu0 %5075
    %5077 = vrot.lane.b32.xlu0 %v5048, 40
    %v5078 = vpop.permute.xlu0 %5077
    %v5081 = vsel %vm1082, %v4516, %v5052
    %v5082 = vsel %vm1082, %v4517, %v5054
    %v5083 = vsel %vm223, %v5081, %v5060
    %v5084 = vsel %vm223, %v5082, %v5062
    %vm5085 = vcmask 326656
    %v5086 = vsel %vm5085, %v5083, %v5068
    %v5087 = vsel %vm5085, %v5084, %v5070
    %vm5088 = vcmask 408576
    %v5089 = vsel %vm5088, %v5086, %v5076
    %v5090 = vsel %vm5088, %v5087, %v5078
    %vm5091 = vcmask 490496
    %v5092 = vsel %vm5091, %v5089, 0.0
    %v5093 = vsel %vm5091, %v5090, 0.0
    %5094 = vst [vmem:[#allocation9] sm:$0xff] %v5092
    %5095 = vst [vmem:[#allocation9 + $0x8] sm:$0xff] %v5093
    %5096 = vrot.lane.b32.xlu0 %v4516, 72
    %v5097 = vpop.permute.xlu0 %5096
    %5098 = vrot.lane.b32.xlu0 %v4517, 72
    %v5099 = vpop.permute.xlu0 %5098
    %v5100 = vsel %vm895, %v5097, 0
    %v5102 = vsel %vm895, %v5099, 0
    %5104 = vmatprep.subr.mxu0 0.0
    %5105 = vmatpush1.msra.mxu0 %v4518
    %5106 = vmatprep.subr.mxu0 0.0
    %5107 = vmatpush1.msra.mxu0 0.0
    %5108 = vmatprep.subr.mxu0 0.0
    %5109 = vmatpush1.msra.mxu0 0.0
    %5110 = vmatprep.subr.mxu0 0.0
    %5111 = vmatpush1.msra.mxu0 0.0
    %5112 = vmatprep.subr.mxu0 0.0
    %5113 = vmatpush1.msra.mxu0 0.0
    %5114 = vmatprep.subr.mxu0 0.0
    %5115 = vmatpush1.msra.mxu0 0.0
    %5116 = vmatprep.subr.mxu0 0.0
    %5117 = vmatpush1.msra.mxu0 0.0
    %5118 = vmatprep.subr.mxu0 0.0
    %5119 = vmatpush1.msra.mxu0 0.0
    %5120 = vmatprep.subr.mxu0 0.0
    %5121 = vmatpush1.msra.mxu0 0.0
    %5122 = vmatprep.subr.mxu0 0.0
    %5123 = vmatpush1.msra.mxu0 0.0
    %5124 = vmatprep.subr.mxu0 0.0
    %5125 = vmatpush1.msra.mxu0 0.0
    %5126 = vmatprep.subr.mxu0 0.0
    %5127 = vmatpush1.msra.mxu0 0.0
    %5128 = vmatprep.subr.mxu0 0.0
    %5129 = vmatpush1.msra.mxu0 0.0
    %5130 = vmatprep.subr.mxu0 0.0
    %5131 = vmatpush1.msra.mxu0 0.0
    %5132 = vmatprep.subr.mxu0 0.0
    %5133 = vmatpush1.msra.mxu0 0.0
    %5134 = vmatprep.subr.mxu0 0.0
    %5135 = vmatpush1.msra.mxu0 0.0
    %5136 = vmatprep.subr.mxu0 0.0
    %5137 = vmatpush1.msra.mxu0 0.0
    %5138 = vmatprep.subr.mxu0 0.0
    %5139 = vmatpush1.msra.mxu0 0.0
    %5140 = vmatprep.subr.mxu0 0.0
    %5141 = vmatpush1.msra.mxu0 0.0
    %5142 = vmatprep.subr.mxu0 0.0
    %5143 = vmatpush1.msra.mxu0 0.0
    %5144 = vmatprep.subr.mxu0 0.0
    %5145 = vmatpush1.msra.mxu0 0.0
    %5146 = vmatprep.subr.mxu0 0.0
    %5147 = vmatpush1.msra.mxu0 0.0
    %5148 = vmatprep.subr.mxu0 0.0
    %5149 = vmatpush1.msra.mxu0 0.0
    %5150 = vmatprep.subr.mxu0 0.0
    %5151 = vmatpush1.msra.mxu0 0.0
    %5152 = vmatprep.subr.mxu0 0.0
    %5153 = vmatpush1.msra.mxu0 0.0
    %5154 = vmatprep.subr.mxu0 0.0
    %5155 = vmatpush1.msra.mxu0 0.0
    %5156 = vmatprep.subr.mxu0 0.0
    %5157 = vmatpush1.msra.mxu0 0.0
    %5158 = vmatprep.subr.mxu0 0.0
    %5159 = vmatpush1.msra.mxu0 0.0
    %5160 = vmatprep.subr.mxu0 0.0
    %5161 = vmatpush1.msra.mxu0 0.0
    %5162 = vmatprep.subr.mxu0 0.0
    %5163 = vmatpush1.msra.mxu0 0.0
    %5164 = vmatprep.subr.mxu0 0.0
    %5165 = vmatpush1.msra.mxu0 0.0
    %5166 = vmatprep.subr.mxu0 0.0
    %5167 = vmatpush1.msra.mxu0 0.0
    %5168 = vmatprep.mubr.f32.mxu0 0.0
    %5169 = vmatmul.mubr.f32.gmra.mrb[0].mxu0 %v5100
    %v5170 = vpop.f32.mrb[0].mxu0
    %v5171 = vadd.f32 %v4530, %v5170
    %v5172 = vpop.f32.mrb[0].mxu0
    %5173 = vmatprep.mubr.f32.mxu0 0.0
    %5174 = vmatmul.mubr.f32.gmra.mrb[0].mxu0 %v5102
    %v5175 = vpop.f32.mrb[0].mxu0
    %v5176 = vadd.f32 %v4530, %v5175
    %v5177 = vpop.f32.mrb[0].mxu0
    %5178 = vdwg.mxu0
    %v5179 = vmax.f32 %v5171, 0.0
    %v5180 = vmax.f32 %v5176, 0.0
    %v5182 = vsel %vm1082, %v5179, 0
    %v5185 = vsel %vm1082, %v5180, 0
    %5187 = vmatprep.subr.mxu0 0.0
    %5188 = vmatpush1.msra.mxu0 %v4520
    %5189 = vmatprep.subr.mxu0 0.0
    %5190 = vmatpush1.msra.mxu0 %v4521
    %5191 = vmatprep.subr.mxu0 0.0
    %5192 = vmatpush1.msra.mxu0 %v4522
    %5193 = vmatprep.subr.mxu0 0.0
    %5194 = vmatpush1.msra.mxu0 0.0
    %5195 = vmatprep.subr.mxu0 0.0
    %5196 = vmatpush1.msra.mxu0 0.0
    %5197 = vmatprep.subr.mxu0 0.0
    %5198 = vmatpush1.msra.mxu0 0.0
    %5199 = vmatprep.subr.mxu0 0.0
    %5200 = vmatpush1.msra.mxu0 0.0
    %5201 = vmatprep.subr.mxu0 0.0
    %5202 = vmatpush1.msra.mxu0 0.0
    %5203 = vmatprep.subr.mxu0 0.0
    %5204 = vmatpush1.msra.mxu0 0.0
    %5205 = vmatprep.subr.mxu0 0.0
    %5206 = vmatpush1.msra.mxu0 0.0
    %5207 = vmatprep.subr.mxu0 0.0
    %5208 = vmatpush1.msra.mxu0 0.0
    %5209 = vmatprep.subr.mxu0 0.0
    %5210 = vmatpush1.msra.mxu0 0.0
    %5211 = vmatprep.subr.mxu0 0.0
    %5212 = vmatpush1.msra.mxu0 0.0
    %5213 = vmatprep.subr.mxu0 0.0
    %5214 = vmatpush1.msra.mxu0 0.0
    %5215 = vmatprep.subr.mxu0 0.0
    %5216 = vmatpush1.msra.mxu0 0.0
    %5217 = vmatprep.subr.mxu0 0.0
    %5218 = vmatpush1.msra.mxu0 0.0
    %5219 = vmatprep.subr.mxu0 0.0
    %5220 = vmatpush1.msra.mxu0 0.0
    %5221 = vmatprep.subr.mxu0 0.0
    %5222 = vmatpush1.msra.mxu0 0.0
    %5223 = vmatprep.subr.mxu0 0.0
    %5224 = vmatpush1.msra.mxu0 0.0
    %5225 = vmatprep.subr.mxu0 0.0
    %5226 = vmatpush1.msra.mxu0 0.0
    %5227 = vmatprep.subr.mxu0 0.0
    %5228 = vmatpush1.msra.mxu0 0.0
    %5229 = vmatprep.subr.mxu0 0.0
    %5230 = vmatpush1.msra.mxu0 0.0
    %5231 = vmatprep.subr.mxu0 0.0
    %5232 = vmatpush1.msra.mxu0 0.0
    %5233 = vmatprep.subr.mxu0 0.0
    %5234 = vmatpush1.msra.mxu0 0.0
    %5235 = vmatprep.subr.mxu0 0.0
    %5236 = vmatpush1.msra.mxu0 0.0
    %5237 = vmatprep.subr.mxu0 0.0
    %5238 = vmatpush1.msra.mxu0 0.0
    %5239 = vmatprep.subr.mxu0 0.0
    %5240 = vmatpush1.msra.mxu0 0.0
    %5241 = vmatprep.subr.mxu0 0.0
    %5242 = vmatpush1.msra.mxu0 0.0
    %5243 = vmatprep.subr.mxu0 0.0
    %5244 = vmatpush1.msra.mxu0 0.0
    %5245 = vmatprep.subr.mxu0 0.0
    %5246 = vmatpush1.msra.mxu0 0.0
    %5247 = vmatprep.subr.mxu0 0.0
    %5248 = vmatpush1.msra.mxu0 0.0
    %5249 = vmatprep.subr.mxu0 0.0
    %5250 = vmatpush1.msra.mxu0 0.0
    %5251 = vmatprep.mubr.f32.mxu0 0.0
    %5252 = vmatmul.mubr.f32.gmra.mrb[0].mxu0 %v5182
    %v5253 = vpop.f32.mrb[0].mxu0
    %v5254 = vadd.f32 %v4623, %v5253
    %v5255 = vpop.f32.mrb[0].mxu0
    %5256 = vmatprep.mubr.f32.mxu0 0.0
    %5257 = vmatmul.mubr.f32.gmra.mrb[0].mxu0 %v5185
    %v5258 = vpop.f32.mrb[0].mxu0
    %v5259 = vadd.f32 %v4623, %v5258
    %v5260 = vpop.f32.mrb[0].mxu0
    %5261 = vdwg.mxu0
    %v5262 = vsub.f32 0.0, %v5254
    %v5263 = vsub.f32 0.0, %v5259
    %v5264 = vmul.f32 %v5262, 1.442695
    %v5265 = vpow.pop %v5264
    %v5266 = vmul.f32 %v5263, 1.442695
    %v5267 = vpow.pop %v5266
    %v5268 = vadd.f32 %v5265, 1.0
    %v5269 = vadd.f32 %v5267, 1.0
    %v5270 = vrcp.pop %v5268
    %v5271 = vrcp.pop %v5269
    %v5272 = vsub.f32 1.0, %v5270
    %v5273 = vsub.f32 1.0, %v5271
    %5276 = vrot.lane.b32.xlu0 %v5171, 104
    %v5277 = vpop.permute.xlu0 %5276
    %5278 = vrot.lane.b32.xlu0 %v5176, 104
    %v5279 = vpop.permute.xlu0 %5278
    %v5282 = vmul.f32 %v5272, %v5277
    %v5283 = vmul.f32 %v5273, %v5279
    %5286 = vrot.lane.b32.xlu0 %v5254, 120
    %v5287 = vpop.permute.xlu0 %5286
    %5288 = vrot.lane.b32.xlu0 %v5259, 120
    %v5289 = vpop.permute.xlu0 %5288
    %v5292 = vmul.f32 %v5270, %v5287
    %v5293 = vmul.f32 %v5271, %v5289
    %v5294 = vadd.f32 %v5282, %v5292
    %v5295 = vadd.f32 %v5283, %v5293
    %v5296 = vmax.f32 %v5254, 0.0
    %v5297 = vmax.f32 %v5259, 0.0
    %5300 = vrot.lane.b32.xlu0 %v5296, 120
    %v5301 = vpop.permute.xlu0 %5300
    %5302 = vrot.lane.b32.xlu0 %v5297, 120
    %v5303 = vpop.permute.xlu0 %5302
    %v5304 = vsel %vm895, %v5301, 0
    %v5306 = vsel %vm895, %v5303, 0
    %5308 = vmatprep.subr.mxu0 0.0
    %5309 = vmatpush1.msra.mxu0 %v4524
    %5310 = vmatprep.subr.mxu0 0.0
    %5311 = vmatpush1.msra.mxu0 0.0
    %5312 = vmatprep.subr.mxu0 0.0
    %5313 = vmatpush1.msra.mxu0 0.0
    %5314 = vmatprep.subr.mxu0 0.0
    %5315 = vmatpush1.msra.mxu0 0.0
    %5316 = vmatprep.subr.mxu0 0.0
    %5317 = vmatpush1.msra.mxu0 0.0
    %5318 = vmatprep.subr.mxu0 0.0
    %5319 = vmatpush1.msra.mxu0 0.0
    %5320 = vmatprep.subr.mxu0 0.0
    %5321 = vmatpush1.msra.mxu0 0.0
    %5322 = vmatprep.subr.mxu0 0.0
    %5323 = vmatpush1.msra.mxu0 0.0
    %5324 = vmatprep.subr.mxu0 0.0
    %5325 = vmatpush1.msra.mxu0 0.0
    %5326 = vmatprep.subr.mxu0 0.0
    %5327 = vmatpush1.msra.mxu0 0.0
    %5328 = vmatprep.subr.mxu0 0.0
    %5329 = vmatpush1.msra.mxu0 0.0
    %5330 = vmatprep.subr.mxu0 0.0
    %5331 = vmatpush1.msra.mxu0 0.0
    %5332 = vmatprep.subr.mxu0 0.0
    %5333 = vmatpush1.msra.mxu0 0.0
    %5334 = vmatprep.subr.mxu0 0.0
    %5335 = vmatpush1.msra.mxu0 0.0
    %5336 = vmatprep.subr.mxu0 0.0
    %5337 = vmatpush1.msra.mxu0 0.0
    %5338 = vmatprep.subr.mxu0 0.0
    %5339 = vmatpush1.msra.mxu0 0.0
    %5340 = vmatprep.subr.mxu0 0.0
    %5341 = vmatpush1.msra.mxu0 0.0
    %5342 = vmatprep.subr.mxu0 0.0
    %5343 = vmatpush1.msra.mxu0 0.0
    %5344 = vmatprep.subr.mxu0 0.0
    %5345 = vmatpush1.msra.mxu0 0.0
    %5346 = vmatprep.subr.mxu0 0.0
    %5347 = vmatpush1.msra.mxu0 0.0
    %5348 = vmatprep.subr.mxu0 0.0
    %5349 = vmatpush1.msra.mxu0 0.0
    %5350 = vmatprep.subr.mxu0 0.0
    %5351 = vmatpush1.msra.mxu0 0.0
    %5352 = vmatprep.subr.mxu0 0.0
    %5353 = vmatpush1.msra.mxu0 0.0
    %5354 = vmatprep.subr.mxu0 0.0
    %5355 = vmatpush1.msra.mxu0 0.0
    %5356 = vmatprep.subr.mxu0 0.0
    %5357 = vmatpush1.msra.mxu0 0.0
    %5358 = vmatprep.subr.mxu0 0.0
    %5359 = vmatpush1.msra.mxu0 0.0
    %5360 = vmatprep.subr.mxu0 0.0
    %5361 = vmatpush1.msra.mxu0 0.0
    %5362 = vmatprep.subr.mxu0 0.0
    %5363 = vmatpush1.msra.mxu0 0.0
    %5364 = vmatprep.subr.mxu0 0.0
    %5365 = vmatpush1.msra.mxu0 0.0
    %5366 = vmatprep.subr.mxu0 0.0
    %5367 = vmatpush1.msra.mxu0 0.0
    %5368 = vmatprep.subr.mxu0 0.0
    %5369 = vmatpush1.msra.mxu0 0.0
    %5370 = vmatprep.subr.mxu0 0.0
    %5371 = vmatpush1.msra.mxu0 0.0
    %5372 = vmatprep.mubr.f32.mxu0 0.0
    %5373 = vmatmul.mubr.f32.gmra.mrb[0].mxu0 %v5304
    %v5374 = vpop.f32.mrb[0].mxu0
    %v5375 = vadd.f32 %v4746, %v5374
    %v5376 = vpop.f32.mrb[0].mxu0
    %5377 = vmatprep.mubr.f32.mxu0 0.0
    %5378 = vmatmul.mubr.f32.gmra.mrb[0].mxu0 %v5306
    %v5379 = vpop.f32.mrb[0].mxu0
    %v5380 = vadd.f32 %v4746, %v5379
    %v5381 = vpop.f32.mrb[0].mxu0
    %5382 = vdwg.mxu0
    %v5383 = vmax.f32 %v5375, 0.0
    %v5384 = vmax.f32 %v5380, 0.0
    %v5385 = vand.u32 2147483647, %v5375
    %v5386 = vand.u32 2147483647, %v5380
    %v5387 = vsub.f32 0.0, %v5385
    %v5388 = vsub.f32 0.0, %v5386
    %v5389 = vmul.f32 %v5387, 1.442695
    %v5390 = vpow.pop %v5389
    %v5391 = vmul.f32 %v5388, 1.442695
    %v5392 = vpow.pop %v5391
    %v5393 = vadd.f32 %v5390, 1.0
    %v5394 = vadd.f32 %v5392, 1.0
    %v5395 = vlog2.pop %v5393
    %v5396 = vmul.f32 %v5395, 0.6931472
    %v5397 = vlog2.pop %v5394
    %v5398 = vmul.f32 %v5397, 0.6931472
    %v5399 = vadd.f32 %v5383, %v5396
    %v5400 = vadd.f32 %v5384, %v5398
    %s5401 = scalar_lea.vmem %s15, 8
    %v5402 = vld [vmem:[%s5401] sm:$0xff]
    %s5403 = scalar_lea.vmem %s16, 1
    %v5404 = vld [vmem:[%s5403] sm:$0x1]
    %v5406 = vlaneseq
    %v5407 = vshrl.u32 %v5406, 7
    %v5408 = vsub.s32 0, %v5407
    %v5409 = vrot.slane %v5404, %v5408
    %5411 = vrot.lane.b32.xlu0 %v4516, 96
    %v5412 = vpop.permute.xlu0 %5411
    %5413 = vrot.lane.b32.xlu0 %v4517, 96
    %v5414 = vpop.permute.xlu0 %5413
    %v5415 = vsel %vm895, %v5412, 0
    %v5417 = vsel %vm895, %v5414, 0
    %5419 = vmatprep.subr.mxu0 0.0
    %5420 = vmatpush1.msra.mxu0 %v5402
    %5421 = vmatprep.subr.mxu0 0.0
    %5422 = vmatpush1.msra.mxu0 0.0
    %5423 = vmatprep.subr.mxu0 0.0
    %5424 = vmatpush1.msra.mxu0 0.0
    %5425 = vmatprep.subr.mxu0 0.0
    %5426 = vmatpush1.msra.mxu0 0.0
    %5427 = vmatprep.subr.mxu0 0.0
    %5428 = vmatpush1.msra.mxu0 0.0
    %5429 = vmatprep.subr.mxu0 0.0
    %5430 = vmatpush1.msra.mxu0 0.0
    %5431 = vmatprep.subr.mxu0 0.0
    %5432 = vmatpush1.msra.mxu0 0.0
    %5433 = vmatprep.subr.mxu0 0.0
    %5434 = vmatpush1.msra.mxu0 0.0
    %5435 = vmatprep.subr.mxu0 0.0
    %5436 = vmatpush1.msra.mxu0 0.0
    %5437 = vmatprep.subr.mxu0 0.0
    %5438 = vmatpush1.msra.mxu0 0.0
    %5439 = vmatprep.subr.mxu0 0.0
    %5440 = vmatpush1.msra.mxu0 0.0
    %5441 = vmatprep.subr.mxu0 0.0
    %5442 = vmatpush1.msra.mxu0 0.0
    %5443 = vmatprep.subr.mxu0 0.0
    %5444 = vmatpush1.msra.mxu0 0.0
    %5445 = vmatprep.subr.mxu0 0.0
    %5446 = vmatpush1.msra.mxu0 0.0
    %5447 = vmatprep.subr.mxu0 0.0
    %5448 = vmatpush1.msra.mxu0 0.0
    %5449 = vmatprep.subr.mxu0 0.0
    %5450 = vmatpush1.msra.mxu0 0.0
    %5451 = vmatprep.subr.mxu0 0.0
    %5452 = vmatpush1.msra.mxu0 0.0
    %5453 = vmatprep.subr.mxu0 0.0
    %5454 = vmatpush1.msra.mxu0 0.0
    %5455 = vmatprep.subr.mxu0 0.0
    %5456 = vmatpush1.msra.mxu0 0.0
    %5457 = vmatprep.subr.mxu0 0.0
    %5458 = vmatpush1.msra.mxu0 0.0
    %5459 = vmatprep.subr.mxu0 0.0
    %5460 = vmatpush1.msra.mxu0 0.0
    %5461 = vmatprep.subr.mxu0 0.0
    %5462 = vmatpush1.msra.mxu0 0.0
    %5463 = vmatprep.subr.mxu0 0.0
    %5464 = vmatpush1.msra.mxu0 0.0
    %5465 = vmatprep.subr.mxu0 0.0
    %5466 = vmatpush1.msra.mxu0 0.0
    %5467 = vmatprep.subr.mxu0 0.0
    %5468 = vmatpush1.msra.mxu0 0.0
    %5469 = vmatprep.subr.mxu0 0.0
    %5470 = vmatpush1.msra.mxu0 0.0
    %5471 = vmatprep.subr.mxu0 0.0
    %5472 = vmatpush1.msra.mxu0 0.0
    %5473 = vmatprep.subr.mxu0 0.0
    %5474 = vmatpush1.msra.mxu0 0.0
    %5475 = vmatprep.subr.mxu0 0.0
    %5476 = vmatpush1.msra.mxu0 0.0
    %5477 = vmatprep.subr.mxu0 0.0
    %5478 = vmatpush1.msra.mxu0 0.0
    %5479 = vmatprep.subr.mxu0 0.0
    %5480 = vmatpush1.msra.mxu0 0.0
    %5481 = vmatprep.subr.mxu0 0.0
    %5482 = vmatpush1.msra.mxu0 0.0
    %5483 = vmatprep.mubr.f32.mxu0 0.0
    %5484 = vmatmul.mubr.f32.gmra.mrb[0].mxu0 %v5415
    %v5485 = vpop.f32.mrb[0].mxu0
    %v5486 = vadd.f32 %v5409, %v5485
    %v5487 = vpop.f32.mrb[0].mxu0
    %5488 = vmatprep.mubr.f32.mxu0 0.0
    %5489 = vmatmul.mubr.f32.gmra.mrb[0].mxu0 %v5417
    %v5490 = vpop.f32.mrb[0].mxu0
    %v5491 = vadd.f32 %v5409, %v5490
    %v5492 = vpop.f32.mrb[0].mxu0
    %5493 = vdwg.mxu0
    %v5494 = vmax.f32 %v5486, 0.0
    %v5495 = vmax.f32 %v5491, 0.0
    %s5496 = scalar_lea.vmem %s17, 24
    %v5497 = vld [vmem:[%s5496] sm:$0xff]
    %v5498 = vld [vmem:[%s5496 + $0x8] sm:$0xff]
    %v5499 = vld [vmem:[%s5496 + $0x10] sm:$0xff]
    %s5500 = scalar_lea.vmem %s18, 1
    %v5501 = vld [vmem:[%s5500] sm:$0x1]
    %v5503 = vlaneseq
    %v5504 = vshrl.u32 %v5503, 7
    %v5505 = vsub.s32 0, %v5504
    %v5506 = vrot.slane %v5501, %v5505
    %v5509 = vsel %vm1082, %v5494, 0
    %v5512 = vsel %vm1082, %v5495, 0
    %5514 = vmatprep.subr.mxu0 0.0
    %5515 = vmatpush1.msra.mxu0 %v5497
    %5516 = vmatprep.subr.mxu0 0.0
    %5517 = vmatpush1.msra.mxu0 %v5498
    %5518 = vmatprep.subr.mxu0 0.0
    %5519 = vmatpush1.msra.mxu0 %v5499
    %5520 = vmatprep.subr.mxu0 0.0
    %5521 = vmatpush1.msra.mxu0 0.0
    %5522 = vmatprep.subr.mxu0 0.0
    %5523 = vmatpush1.msra.mxu0 0.0
    %5524 = vmatprep.subr.mxu0 0.0
    %5525 = vmatpush1.msra.mxu0 0.0
    %5526 = vmatprep.subr.mxu0 0.0
    %5527 = vmatpush1.msra.mxu0 0.0
    %5528 = vmatprep.subr.mxu0 0.0
    %5529 = vmatpush1.msra.mxu0 0.0
    %5530 = vmatprep.subr.mxu0 0.0
    %5531 = vmatpush1.msra.mxu0 0.0
    %5532 = vmatprep.subr.mxu0 0.0
    %5533 = vmatpush1.msra.mxu0 0.0
    %5534 = vmatprep.subr.mxu0 0.0
    %5535 = vmatpush1.msra.mxu0 0.0
    %5536 = vmatprep.subr.mxu0 0.0
    %5537 = vmatpush1.msra.mxu0 0.0
    %5538 = vmatprep.subr.mxu0 0.0
    %5539 = vmatpush1.msra.mxu0 0.0
    %5540 = vmatprep.subr.mxu0 0.0
    %5541 = vmatpush1.msra.mxu0 0.0
    %5542 = vmatprep.subr.mxu0 0.0
    %5543 = vmatpush1.msra.mxu0 0.0
    %5544 = vmatprep.subr.mxu0 0.0
    %5545 = vmatpush1.msra.mxu0 0.0
    %5546 = vmatprep.subr.mxu0 0.0
    %5547 = vmatpush1.msra.mxu0 0.0
    %5548 = vmatprep.subr.mxu0 0.0
    %5549 = vmatpush1.msra.mxu0 0.0
    %5550 = vmatprep.subr.mxu0 0.0
    %5551 = vmatpush1.msra.mxu0 0.0
    %5552 = vmatprep.subr.mxu0 0.0
    %5553 = vmatpush1.msra.mxu0 0.0
    %5554 = vmatprep.subr.mxu0 0.0
    %5555 = vmatpush1.msra.mxu0 0.0
    %5556 = vmatprep.subr.mxu0 0.0
    %5557 = vmatpush1.msra.mxu0 0.0
    %5558 = vmatprep.subr.mxu0 0.0
    %5559 = vmatpush1.msra.mxu0 0.0
    %5560 = vmatprep.subr.mxu0 0.0
    %5561 = vmatpush1.msra.mxu0 0.0
    %5562 = vmatprep.subr.mxu0 0.0
    %5563 = vmatpush1.msra.mxu0 0.0
    %5564 = vmatprep.subr.mxu0 0.0
    %5565 = vmatpush1.msra.mxu0 0.0
    %5566 = vmatprep.subr.mxu0 0.0
    %5567 = vmatpush1.msra.mxu0 0.0
    %5568 = vmatprep.subr.mxu0 0.0
    %5569 = vmatpush1.msra.mxu0 0.0
    %5570 = vmatprep.subr.mxu0 0.0
    %5571 = vmatpush1.msra.mxu0 0.0
    %5572 = vmatprep.subr.mxu0 0.0
    %5573 = vmatpush1.msra.mxu0 0.0
    %5574 = vmatprep.subr.mxu0 0.0
    %5575 = vmatpush1.msra.mxu0 0.0
    %5576 = vmatprep.subr.mxu0 0.0
    %5577 = vmatpush1.msra.mxu0 0.0
    %5578 = vmatprep.mubr.f32.mxu0 0.0
    %5579 = vmatmul.mubr.f32.gmra.mrb[0].mxu0 %v5509
    %v5580 = vpop.f32.mrb[0].mxu0
    %v5581 = vadd.f32 %v5506, %v5580
    %v5582 = vpop.f32.mrb[0].mxu0
    %5583 = vmatprep.mubr.f32.mxu0 0.0
    %5584 = vmatmul.mubr.f32.gmra.mrb[0].mxu0 %v5512
    %v5585 = vpop.f32.mrb[0].mxu0
    %v5586 = vadd.f32 %v5506, %v5585
    %v5587 = vpop.f32.mrb[0].mxu0
    %5588 = vdwg.mxu0
    %v5589 = vmax.f32 %v5581, 0.0
    %v5590 = vmax.f32 %v5586, 0.0
    %v5591 = vand.u32 2147483647, %v5581
    %v5592 = vand.u32 2147483647, %v5586
    %v5593 = vsub.f32 0.0, %v5591
    %v5594 = vsub.f32 0.0, %v5592
    %v5595 = vmul.f32 %v5593, 1.442695
    %v5596 = vpow.pop %v5595
    %v5597 = vmul.f32 %v5594, 1.442695
    %v5598 = vpow.pop %v5597
    %v5599 = vadd.f32 %v5596, 1.0
    %v5600 = vadd.f32 %v5598, 1.0
    %v5601 = vlog2.pop %v5599
    %v5602 = vmul.f32 %v5601, 0.6931472
    %v5603 = vlog2.pop %v5600
    %v5604 = vmul.f32 %v5603, 0.6931472
    %v5605 = vadd.f32 %v5589, %v5602
    %v5606 = vadd.f32 %v5590, %v5604
    %5611 = vrot.lane.b32.xlu0 %v5294, 24
    %v5612 = vpop.permute.xlu0 %5611
    %5613 = vrot.lane.b32.xlu0 %v5295, 24
    %v5614 = vpop.permute.xlu0 %5613
    %5619 = vrot.lane.b32.xlu0 %v5399, 32
    %v5620 = vpop.permute.xlu0 %5619
    %5621 = vrot.lane.b32.xlu0 %v5400, 32
    %v5622 = vpop.permute.xlu0 %5621
    %5627 = vrot.lane.b32.xlu0 %v5581, 40
    %v5628 = vpop.permute.xlu0 %5627
    %5629 = vrot.lane.b32.xlu0 %v5586, 40
    %v5630 = vpop.permute.xlu0 %5629
    %5635 = vrot.lane.b32.xlu0 %v5605, 40
    %v5636 = vpop.permute.xlu0 %5635
    %5637 = vrot.lane.b32.xlu0 %v5606, 40
    %v5638 = vpop.permute.xlu0 %5637
    %v5641 = vsel %vm127, %v5412, %v5412
    %v5642 = vsel %vm127, %v5414, %v5414
    %v5643 = vsel %vm1082, %v5641, %v5612
    %v5644 = vsel %vm1082, %v5642, %v5614
    %v5645 = vsel %vm223, %v5643, %v5620
    %v5646 = vsel %vm223, %v5644, %v5622
    %v5647 = vsel %vm5085, %v5645, %v5628
    %v5648 = vsel %vm5085, %v5646, %v5630
    %v5649 = vsel %vm5088, %v5647, %v5636
    %v5650 = vsel %vm5088, %v5648, %v5638
    %v5651 = vsel %vm5091, %v5649, 0.0
    %v5652 = vsel %vm5091, %v5650, 0.0
    %s5653 = scalar_lea.vmem [#allocation9], 16
    %5654 = vst [vmem:[%s5653] sm:$0xff] %v5651
    %5655 = vst [vmem:[%s5653 + $0x8] sm:$0xff] %v5652
    // Predicated region
    $region94: #{tpu_custom_call.1} parent=1 // pred_check
      _
    $region95: #{tpu_custom_call.1} parent=1 // pred_check_branch
      %5657 = sbr.rel (0) target = $region97
    $region96: #{tpu_custom_call.1} parent=1 // pred_region
      %s5659 = ssub.s32 512, 512
      %5660 = vsyncadd [#allocation5], %s5659
      %s5661 = sshll.u32 [#allocation9], 4
      %s5662 = int_to_ptr.vmem [resolvable:$true] %s5661
      %5667 = dma.vmem_to_hbm [thread:$0]  %s5662, 512, %s20, [#allocation5], 128, 128, 8
    $region97: #{tpu_custom_call.1} parent=1 // pred_fallthru
      _
    // Predicated region
    $region98: #{tpu_custom_call.1} parent=1 // pred_check
      _
    $region99: #{tpu_custom_call.1} parent=1 // pred_check_branch
      %5669 = sbr.rel (0) target = $region101
    $region100: #{tpu_custom_call.1} parent=1 // pred_region
      %5670 = dma.done [#allocation5], 512
    $region101: #{tpu_custom_call.1} parent=1 // pred_fallthru
      _
    %5671 = vsyncpa [#allocation4], 1
    %5672 = vsyncpa [#allocation7], 1
    %5673 = vsyncpa [#allocation5], 1

</llo_original>
